<compile_context>
chip_gen: v5e
topology: v5e:2x2
jax: 0.10.0
libtpu: 0.0.40
codegen_flags: <defaults>
</compile_context>

<pallas_src>
import math

import jax
import jax.numpy as jnp
from jax import lax
from jax.experimental import pallas as pl
from jax.experimental.pallas import tpu as pltpu


_CHUNK_ROWS = 128  # flat spatial rows per conv-accumulation chunk (caps vreg pressure)


# ---------------------------------------------------------------------------
# Fused Pallas kernel: 4x [conv3x3 + BN + ReLU] (+maxpool2x2 / avgpool) + fc1/relu/fc2
# ---------------------------------------------------------------------------

def _make_fused_kernel(layer_dims):
    """One grid step == one image.  layer_dims: tuple of (H, W, Cin, Cout) per block."""
    n = len(layer_dims)

    def kernel(*refs):
        x_ref = refs[0]                                   # (1, H, W, Cin) NHWC block
        conv_refs = refs[1:1 + 3 * n]                     # per layer: w(9,Ci,Co), scale, bias
        w1_ref, b1_ref, w2_ref, b2_ref = refs[1 + 3 * n:5 + 3 * n]
        o_ref = refs[5 + 3 * n]                           # (1, 1, 2F)
        pad_refs = refs[6 + 3 * n:6 + 4 * n]              # padded input slabs per layer
        acc_refs = refs[6 + 4 * n:6 + 5 * n]              # conv output slabs per layer

        # Zero every padded slab: the 1-pixel halo and the +2 guard rows must be zero
        # (interiors are fully overwritten below).  Done every grid step so megacore
        # sharding on v7x needs no cross-iteration scratch state.
        for l in range(n):
            pad_refs[l][...] = jnp.zeros_like(pad_refs[l])

        # Scatter this image into layer 0's padded slab interior.
        H0, W0, _, _ = layer_dims[0]
        Wp0 = W0 + 2
        for h in range(H0):
            pad_refs[0][pl.ds((h + 1) * Wp0 + 1, W0), :] = x_ref[0, h, :, :]

        for l in range(n):
            H, W, Cin, Cout = layer_dims[l]
            Wp = W + 2
            M = H * Wp                      # flat output rows (2 junk columns per row)
            w_ref = conv_refs[3 * l]        # (9, Cin, Cout), taps row-major over (kh, kw)
            s_ref = conv_refs[3 * l + 1]    # (1, Cout)  inference-BN folded scale
            b_ref = conv_refs[3 * l + 2]    # (1, Cout)  inference-BN folded bias
            pad_ref = pad_refs[l]
            acc_ref = acc_refs[l]

            # 3x3 conv == 9 whole-plane matmuls over row-shifted slabs of the padded
            # input, chunked so the f32 accumulator stays register-resident; the BN
            # affine + ReLU epilogue is applied once per chunk (not per output row).
            scale = s_ref[...]
            bias = b_ref[...]
            # NOTE: inputs kept f32 (not bf16) so the result verifies to 1e-3 vs the
            # pure-JAX reference; matmul accumulation is f32 either way.
            for r0 in range(0, M, _CHUNK_ROWS):
                rows = min(_CHUNK_ROWS, M - r0)
                acc = None
                for t in range(9):
                    off = (t // 3) * Wp + (t % 3)
                    slab = pad_ref[pl.ds(off + r0, rows), :]             # (rows, Cin)
                    part = jnp.dot(slab, w_ref[t],
                                   preferred_element_type=jnp.float32)  # (rows, Cout)
                    acc = part if acc is None else acc + part
                acc_ref[pl.ds(r0, rows), :] = jnp.maximum(acc * scale + bias, 0.0)

            if l < n - 1:
                # Fused 2x2 / stride-2 maxpool, written straight into the next layer's
                # padded slab interior (no separate kernel, no HBM round trip).
                Ho, Wo = H // 2, W // 2
                Wpo = Wo + 2
                nxt = pad_refs[l + 1]
                for r in range(Ho):
                    top = (2 * r) * Wp
                    bot = (2 * r + 1) * Wp
                    m = jnp.maximum(
                        jnp.maximum(acc_ref[pl.ds(top, Wo, stride=2), :],
                                    acc_ref[pl.ds(top + 1, Wo, stride=2), :]),
                        jnp.maximum(acc_ref[pl.ds(bot, Wo, stride=2), :],
                                    acc_ref[pl.ds(bot + 1, Wo, stride=2), :]))
                    nxt[pl.ds((r + 1) * Wpo + 1, Wo), :] = m
            else:
                # AdaptiveAvgPool2d(1) over the valid columns, then fc1 + ReLU + fc2.
                pooled = jnp.zeros((1, Cout), jnp.float32)
                for h in range(H):
                    pooled = pooled + jnp.sum(acc_ref[pl.ds(h * Wp, W), :],
                                              axis=0, keepdims=True)
                pooled = pooled * (1.0 / (H * W))
                hid = jnp.dot(pooled, w1_ref[...], preferred_element_type=jnp.float32)
                hid = jnp.maximum(hid + b1_ref[...], 0.0)
                out = jnp.dot(hid, w2_ref[...], preferred_element_type=jnp.float32)
                o_ref[0, :, :] = out + b2_ref[...]

    return kernel


def fused_localization_forward(x_nhwc, params):
    """x_nhwc: (B, H, W, Cin) -> (B, 2F) via a single pallas_call."""
    B, H, W, Cin = x_nhwc.shape
    convs = params["convs"]

    layer_dims = []
    h, w, cin = H, W, Cin
    for i, (w9, _, _) in enumerate(convs):
        cout = w9.shape[-1]
        layer_dims.append((h, w, cin, cout))
        cin = cout
        if i < len(convs) - 1:
            assert h % 2 == 0 and w % 2 == 0, "maxpool2x2 requires even spatial dims"
            h //= 2
            w //= 2
    layer_dims = tuple(layer_dims)

    fc_dim = params["w1"].shape[1]
    out_dim = params["w2"].shape[1]
    c_last = layer_dims[-1][3]

    inputs = [x_nhwc]
    in_specs = [pl.BlockSpec((1, H, W, Cin), lambda b: (b, 0, 0, 0))]
    for (w9, s, bb) in convs:
        inputs += [w9, s, bb]
        in_specs += [
            pl.BlockSpec(w9.shape, lambda b: (0, 0, 0)),
            pl.BlockSpec(s.shape, lambda b: (0, 0)),
            pl.BlockSpec(bb.shape, lambda b: (0, 0)),
        ]
    inputs += [params["w1"], params["b1"], params["w2"], params["b2"]]
    in_specs += [
        pl.BlockSpec((c_last, fc_dim), lambda b: (0, 0)),
        pl.BlockSpec((1, fc_dim), lambda b: (0, 0)),
        pl.BlockSpec((fc_dim, out_dim), lambda b: (0, 0)),
        pl.BlockSpec((1, out_dim), lambda b: (0, 0)),
    ]

    # Per-layer VMEM scratch: padded input slab (+2 guard rows so the kh=kw=2 tap slice
    # never reads out of bounds) and the flat conv-output slab.
    scratch_shapes = (
        [pltpu.VMEM(((hh + 2) * (ww + 2) + 2, cc), jnp.float32)
         for (hh, ww, cc, _) in layer_dims]
        + [pltpu.VMEM((hh * (ww + 2), co), jnp.float32)
           for (hh, ww, _, co) in layer_dims]
    )

    out = pl.pallas_call(
        _make_fused_kernel(layer_dims),
        out_shape=jax.ShapeDtypeStruct((B, 1, out_dim), jnp.float32),
        grid=(B,),
        in_specs=in_specs,
        out_specs=pl.BlockSpec((1, 1, out_dim), lambda b: (b, 0, 0)),
        scratch_shapes=scratch_shapes,
        compiler_params=pltpu.CompilerParams(
            dimension_semantics=("parallel",)),   # batch across TCs on v7x
    )(*inputs)
    return out.reshape(B, out_dim)


# ---------------------------------------------------------------------------
# Parameter setup (deterministic, synthetic) and forward wrappers
# ---------------------------------------------------------------------------

def get_initial_fiducials(num_fiducial):
    """RARE paper Fig. 6(a) control points, as in the PyTorch module."""
    half = num_fiducial // 2
    ctrl_x = jnp.linspace(-1.0, 1.0, half)
    y_top = jnp.linspace(0.0, -1.0, half)
    y_bot = jnp.linspace(1.0, 0.0, half)
    top = jnp.stack([ctrl_x, y_top], axis=1)
    bot = jnp.stack([ctrl_x, y_bot], axis=1)
    return jnp.concatenate([top, bot], axis=0)          # (F, 2)


def init_params(key, in_channels, num_fiducial, model_name="small"):
    if model_name == "large":
        num_filters_list = [64, 128, 256, 512]
        fc_dim = 256
    else:
        num_filters_list = [16, 32, 64, 128]
        fc_dim = 64
    params = {"convs": []}
    cin = in_channels
    for cout in num_filters_list:
        key, kw, kg, kb, km, kv = jax.random.split(key, 6)
        w = jax.random.normal(kw, (3, 3, cin, cout), jnp.float32) / math.sqrt(9 * cin)
        gamma = 1.0 + 0.1 * jax.random.normal(kg, (cout,), jnp.float32)
        beta = 0.1 * jax.random.normal(kb, (cout,), jnp.float32)
        mean = 0.1 * jax.random.normal(km, (cout,), jnp.float32)
        var = jnp.abs(jax.random.normal(kv, (cout,), jnp.float32)) + 0.5
        # TODO(synk): training-mode BatchNorm (batch statistics) not implemented;
        # inference-mode BN (running stats) is folded into an affine scale/bias.
        scale = gamma / jnp.sqrt(var + 1e-5)
        bias = beta - mean * scale
        params["convs"].append((w.reshape(9, cin, cout),
                                scale.reshape(1, cout),
                                bias.reshape(1, cout)))
        cin = cout
    key, k1, k2, k3 = jax.random.split(key, 4)
    last = num_filters_list[-1]
    params["w1"] = jax.random.normal(k1, (last, fc_dim), jnp.float32) / math.sqrt(last)
    params["b1"] = 0.1 * jax.random.normal(k2, (1, fc_dim), jnp.float32)
    params["w2"] = jax.random.normal(k3, (fc_dim, num_fiducial * 2), jnp.float32) / math.sqrt(fc_dim)
    # fc2 bias initialized to the RARE initial fiducial points (as in the module).
    params["b2"] = get_initial_fiducials(num_fiducial).reshape(1, num_fiducial * 2)
    return params


def localization_network_forward(x_nchw, params, num_fiducial):
    x = jnp.transpose(x_nchw, (0, 2, 3, 1)).astype(jnp.float32)   # NCHW -> NHWC
    out = fused_localization_forward(x, params)                    # (B, 2F)
    return out.reshape(out.shape[0], num_fiducial, 2)


def reference_forward(x_nchw, params, num_fiducial):
    """Pure-JAX reference of the same forward pass (for verification)."""
    x = jnp.transpose(x_nchw, (0, 2, 3, 1)).astype(jnp.float32)
    n_blocks = len(params["convs"])
    for i, (w9, scale, bias) in enumerate(params["convs"]):
        cin, cout = w9.shape[1], w9.shape[2]
        w = w9.reshape(3, 3, cin, cout)
        y = lax.conv_general_dilated(x, w, (1, 1), "SAME",
                                     dimension_numbers=("NHWC", "HWIO", "NHWC"))
        x = jnp.maximum(y * scale + bias, 0.0)
        if i < n_blocks - 1:
            B, H, W, C = x.shape
            x = x.reshape(B, H // 2, 2, W // 2, 2, C).max(axis=(2, 4))
    pooled = x.mean(axis=(1, 2))
    h = jnp.maximum(pooled @ params["w1"] + params["b1"], 0.0)
    out = h @ params["w2"] + params["b2"]
    return out.reshape(out.shape[0], num_fiducial, 2)


if __name__ == "__main__":
    key = jax.random.PRNGKey(0)
    key, kx, kp = jax.random.split(key, 3)

    B, C_in, H, W = 2, 4, 16, 16          # NCHW, like the PyTorch module's input
    NUM_FIDUCIAL = 20

    x = jax.random.normal(kx, (B, C_in, H, W), jnp.float32)
    params = init_params(kp, C_in, NUM_FIDUCIAL, model_name="small")

    out = localization_network_forward(x, params, NUM_FIDUCIAL)
    out = jax.block_until_ready(out)
    assert out.shape == (B, NUM_FIDUCIAL, 2), out.shape

    ref = reference_forward(x, params, NUM_FIDUCIAL)
    max_diff = float(jnp.max(jnp.abs(out - ref)))
    if not bool(jnp.allclose(out, ref, atol=1e-3, rtol=1e-3)):
        raise AssertionError(f"Pallas output mismatch vs reference (max abs diff {max_diff})")

    print("KERNEL_OK")
</pallas_src>

<mosaic_0001>
module attributes {stable_mosaic.version = 11 : i64} {
  func.func @kernel(%arg0: i32, %arg1: memref<1x16x16x4xf32, #tpu.memory_space<vmem>>, %arg2: memref<9x4x16xf32, #tpu.memory_space<vmem>>, %arg3: memref<1x16xf32, #tpu.memory_space<vmem>>, %arg4: memref<1x16xf32, #tpu.memory_space<vmem>>, %arg5: memref<9x16x32xf32, #tpu.memory_space<vmem>>, %arg6: memref<1x32xf32, #tpu.memory_space<vmem>>, %arg7: memref<1x32xf32, #tpu.memory_space<vmem>>, %arg8: memref<9x32x64xf32, #tpu.memory_space<vmem>>, %arg9: memref<1x64xf32, #tpu.memory_space<vmem>>, %arg10: memref<1x64xf32, #tpu.memory_space<vmem>>, %arg11: memref<9x64x128xf32, #tpu.memory_space<vmem>>, %arg12: memref<1x128xf32, #tpu.memory_space<vmem>>, %arg13: memref<1x128xf32, #tpu.memory_space<vmem>>, %arg14: memref<128x64xf32, #tpu.memory_space<vmem>>, %arg15: memref<1x64xf32, #tpu.memory_space<vmem>>, %arg16: memref<64x40xf32, #tpu.memory_space<vmem>>, %arg17: memref<1x40xf32, #tpu.memory_space<vmem>>, %arg18: memref<1x1x40xf32, #tpu.memory_space<vmem>>, %arg19: memref<326x4xf32, #tpu.memory_space<vmem>>, %arg20: memref<102x16xf32, #tpu.memory_space<vmem>>, %arg21: memref<38x32xf32, #tpu.memory_space<vmem>>, %arg22: memref<18x64xf32, #tpu.memory_space<vmem>>, %arg23: memref<288x16xf32, #tpu.memory_space<vmem>>, %arg24: memref<80x32xf32, #tpu.memory_space<vmem>>, %arg25: memref<24x64xf32, #tpu.memory_space<vmem>>, %arg26: memref<8x128xf32, #tpu.memory_space<vmem>>) attributes {dimension_semantics = [#tpu.dimension_semantics<parallel>], iteration_bounds = array<i64: 2>, scalar_prefetch = 0 : i64, scratch_operands = 8 : i64, tpu.core_type = #tpu.core_type<tc>, window_params = [{transform_indices = @transform_0, window_bounds = array<i64: 1, 16, 16, 4>}, {pipeline_mode = #tpu.pipeline_mode<synchronous>, transform_indices = @transform_1, window_bounds = array<i64: 9, 4, 16>}, {pipeline_mode = #tpu.pipeline_mode<synchronous>, transform_indices = @transform_2, window_bounds = array<i64: 1, 16>}, {pipeline_mode = #tpu.pipeline_mode<synchronous>, transform_indices = @transform_3, window_bounds = array<i64: 1, 16>}, {pipeline_mode = #tpu.pipeline_mode<synchronous>, transform_indices = @transform_4, window_bounds = array<i64: 9, 16, 32>}, {pipeline_mode = #tpu.pipeline_mode<synchronous>, transform_indices = @transform_5, window_bounds = array<i64: 1, 32>}, {pipeline_mode = #tpu.pipeline_mode<synchronous>, transform_indices = @transform_6, window_bounds = array<i64: 1, 32>}, {pipeline_mode = #tpu.pipeline_mode<synchronous>, transform_indices = @transform_7, window_bounds = array<i64: 9, 32, 64>}, {pipeline_mode = #tpu.pipeline_mode<synchronous>, transform_indices = @transform_8, window_bounds = array<i64: 1, 64>}, {pipeline_mode = #tpu.pipeline_mode<synchronous>, transform_indices = @transform_9, window_bounds = array<i64: 1, 64>}, {pipeline_mode = #tpu.pipeline_mode<synchronous>, transform_indices = @transform_10, window_bounds = array<i64: 9, 64, 128>}, {pipeline_mode = #tpu.pipeline_mode<synchronous>, transform_indices = @transform_11, window_bounds = array<i64: 1, 128>}, {pipeline_mode = #tpu.pipeline_mode<synchronous>, transform_indices = @transform_12, window_bounds = array<i64: 1, 128>}, {pipeline_mode = #tpu.pipeline_mode<synchronous>, transform_indices = @transform_13, window_bounds = array<i64: 128, 64>}, {pipeline_mode = #tpu.pipeline_mode<synchronous>, transform_indices = @transform_14, window_bounds = array<i64: 1, 64>}, {pipeline_mode = #tpu.pipeline_mode<synchronous>, transform_indices = @transform_15, window_bounds = array<i64: 64, 40>}, {pipeline_mode = #tpu.pipeline_mode<synchronous>, transform_indices = @transform_16, window_bounds = array<i64: 1, 40>}, {transform_indices = @transform_17, window_bounds = array<i64: 1, 1, 40>}]} {
    %cst = arith.constant 0.000000e+00 : f32
    %0 = vector.broadcast %cst : f32 to vector<326x4xf32>
    %c0 = arith.constant 0 : index
    %c0_0 = arith.constant 0 : index
    %1 = vector.load %arg19[%c0, %c0_0] : memref<326x4xf32, #tpu.memory_space<vmem>>, vector<326x4xf32>
    tpu.vector_store %arg19[%c0, %c0_0], %0 {strides = array<i32>} : memref<326x4xf32, #tpu.memory_space<vmem>>, vector<326x4xf32>,
    %cst_1 = arith.constant 0.000000e+00 : f32
    %2 = vector.broadcast %cst_1 : f32 to vector<102x16xf32>
    %c0_2 = arith.constant 0 : index
    %c0_3 = arith.constant 0 : index
    %3 = vector.load %arg20[%c0_2, %c0_3] : memref<102x16xf32, #tpu.memory_space<vmem>>, vector<102x16xf32>
    tpu.vector_store %arg20[%c0_2, %c0_3], %2 {strides = array<i32>} : memref<102x16xf32, #tpu.memory_space<vmem>>, vector<102x16xf32>,
    %cst_4 = arith.constant 0.000000e+00 : f32
    %4 = vector.broadcast %cst_4 : f32 to vector<38x32xf32>
    %c0_5 = arith.constant 0 : index
    %c0_6 = arith.constant 0 : index
    %5 = vector.load %arg21[%c0_5, %c0_6] : memref<38x32xf32, #tpu.memory_space<vmem>>, vector<38x32xf32>
    tpu.vector_store %arg21[%c0_5, %c0_6], %4 {strides = array<i32>} : memref<38x32xf32, #tpu.memory_space<vmem>>, vector<38x32xf32>,
    %cst_7 = arith.constant 0.000000e+00 : f32
    %6 = vector.broadcast %cst_7 : f32 to vector<18x64xf32>
    %c0_8 = arith.constant 0 : index
    %c0_9 = arith.constant 0 : index
    %7 = vector.load %arg22[%c0_8, %c0_9] : memref<18x64xf32, #tpu.memory_space<vmem>>, vector<18x64xf32>
    tpu.vector_store %arg22[%c0_8, %c0_9], %6 {strides = array<i32>} : memref<18x64xf32, #tpu.memory_space<vmem>>, vector<18x64xf32>,
    %c0_10 = arith.constant 0 : index
    %c0_11 = arith.constant 0 : index
    %c0_12 = arith.constant 0 : index
    %c0_13 = arith.constant 0 : index
    %8 = vector.load %arg1[%c0_10, %c0_11, %c0_12, %c0_13] : memref<1x16x16x4xf32, #tpu.memory_space<vmem>>, vector<1x1x16x4xf32>
    %9 = vector.shape_cast %8 : vector<1x1x16x4xf32> to vector<16x4xf32>
    %c19 = arith.constant 19 : index
    %c0_14 = arith.constant 0 : index
    %10 = vector.load %arg19[%c19, %c0_14] : memref<326x4xf32, #tpu.memory_space<vmem>>, vector<16x4xf32>
    tpu.vector_store %arg19[%c19, %c0_14], %9 {strides = array<i32>} : memref<326x4xf32, #tpu.memory_space<vmem>>, vector<16x4xf32>,
    %c0_15 = arith.constant 0 : index
    %c1 = arith.constant 1 : index
    %c0_16 = arith.constant 0 : index
    %c0_17 = arith.constant 0 : index
    %11 = vector.load %arg1[%c0_15, %c1, %c0_16, %c0_17] : memref<1x16x16x4xf32, #tpu.memory_space<vmem>>, vector<1x1x16x4xf32>
    %12 = vector.shape_cast %11 : vector<1x1x16x4xf32> to vector<16x4xf32>
    %c37 = arith.constant 37 : index
    %c0_18 = arith.constant 0 : index
    %13 = vector.load %arg19[%c37, %c0_18] : memref<326x4xf32, #tpu.memory_space<vmem>>, vector<16x4xf32>
    tpu.vector_store %arg19[%c37, %c0_18], %12 {strides = array<i32>} : memref<326x4xf32, #tpu.memory_space<vmem>>, vector<16x4xf32>,
    %c0_19 = arith.constant 0 : index
    %c2 = arith.constant 2 : index
    %c0_20 = arith.constant 0 : index
    %c0_21 = arith.constant 0 : index
    %14 = vector.load %arg1[%c0_19, %c2, %c0_20, %c0_21] : memref<1x16x16x4xf32, #tpu.memory_space<vmem>>, vector<1x1x16x4xf32>
    %15 = vector.shape_cast %14 : vector<1x1x16x4xf32> to vector<16x4xf32>
    %c55 = arith.constant 55 : index
    %c0_22 = arith.constant 0 : index
    %16 = vector.load %arg19[%c55, %c0_22] : memref<326x4xf32, #tpu.memory_space<vmem>>, vector<16x4xf32>
    tpu.vector_store %arg19[%c55, %c0_22], %15 {strides = array<i32>} : memref<326x4xf32, #tpu.memory_space<vmem>>, vector<16x4xf32>,
    %c0_23 = arith.constant 0 : index
    %c3 = arith.constant 3 : index
    %c0_24 = arith.constant 0 : index
    %c0_25 = arith.constant 0 : index
    %17 = vector.load %arg1[%c0_23, %c3, %c0_24, %c0_25] : memref<1x16x16x4xf32, #tpu.memory_space<vmem>>, vector<1x1x16x4xf32>
    %18 = vector.shape_cast %17 : vector<1x1x16x4xf32> to vector<16x4xf32>
    %c73 = arith.constant 73 : index
    %c0_26 = arith.constant 0 : index
    %19 = vector.load %arg19[%c73, %c0_26] : memref<326x4xf32, #tpu.memory_space<vmem>>, vector<16x4xf32>
    tpu.vector_store %arg19[%c73, %c0_26], %18 {strides = array<i32>} : memref<326x4xf32, #tpu.memory_space<vmem>>, vector<16x4xf32>,
    %c0_27 = arith.constant 0 : index
    %c4 = arith.constant 4 : index
    %c0_28 = arith.constant 0 : index
    %c0_29 = arith.constant 0 : index
    %20 = vector.load %arg1[%c0_27, %c4, %c0_28, %c0_29] : memref<1x16x16x4xf32, #tpu.memory_space<vmem>>, vector<1x1x16x4xf32>
    %21 = vector.shape_cast %20 : vector<1x1x16x4xf32> to vector<16x4xf32>
    %c91 = arith.constant 91 : index
    %c0_30 = arith.constant 0 : index
    %22 = vector.load %arg19[%c91, %c0_30] : memref<326x4xf32, #tpu.memory_space<vmem>>, vector<16x4xf32>
    tpu.vector_store %arg19[%c91, %c0_30], %21 {strides = array<i32>} : memref<326x4xf32, #tpu.memory_space<vmem>>, vector<16x4xf32>,
    %c0_31 = arith.constant 0 : index
    %c5 = arith.constant 5 : index
    %c0_32 = arith.constant 0 : index
    %c0_33 = arith.constant 0 : index
    %23 = vector.load %arg1[%c0_31, %c5, %c0_32, %c0_33] : memref<1x16x16x4xf32, #tpu.memory_space<vmem>>, vector<1x1x16x4xf32>
    %24 = vector.shape_cast %23 : vector<1x1x16x4xf32> to vector<16x4xf32>
    %c109 = arith.constant 109 : index
    %c0_34 = arith.constant 0 : index
    %25 = vector.load %arg19[%c109, %c0_34] : memref<326x4xf32, #tpu.memory_space<vmem>>, vector<16x4xf32>
    tpu.vector_store %arg19[%c109, %c0_34], %24 {strides = array<i32>} : memref<326x4xf32, #tpu.memory_space<vmem>>, vector<16x4xf32>,
    %c0_35 = arith.constant 0 : index
    %c6 = arith.constant 6 : index
    %c0_36 = arith.constant 0 : index
    %c0_37 = arith.constant 0 : index
    %26 = vector.load %arg1[%c0_35, %c6, %c0_36, %c0_37] : memref<1x16x16x4xf32, #tpu.memory_space<vmem>>, vector<1x1x16x4xf32>
    %27 = vector.shape_cast %26 : vector<1x1x16x4xf32> to vector<16x4xf32>
    %c127 = arith.constant 127 : index
    %c0_38 = arith.constant 0 : index
    %28 = vector.load %arg19[%c127, %c0_38] : memref<326x4xf32, #tpu.memory_space<vmem>>, vector<16x4xf32>
    tpu.vector_store %arg19[%c127, %c0_38], %27 {strides = array<i32>} : memref<326x4xf32, #tpu.memory_space<vmem>>, vector<16x4xf32>,
    %c0_39 = arith.constant 0 : index
    %c7 = arith.constant 7 : index
    %c0_40 = arith.constant 0 : index
    %c0_41 = arith.constant 0 : index
    %29 = vector.load %arg1[%c0_39, %c7, %c0_40, %c0_41] : memref<1x16x16x4xf32, #tpu.memory_space<vmem>>, vector<1x1x16x4xf32>
    %30 = vector.shape_cast %29 : vector<1x1x16x4xf32> to vector<16x4xf32>
    %c145 = arith.constant 145 : index
    %c0_42 = arith.constant 0 : index
    %31 = vector.load %arg19[%c145, %c0_42] : memref<326x4xf32, #tpu.memory_space<vmem>>, vector<16x4xf32>
    tpu.vector_store %arg19[%c145, %c0_42], %30 {strides = array<i32>} : memref<326x4xf32, #tpu.memory_space<vmem>>, vector<16x4xf32>,
    %c0_43 = arith.constant 0 : index
    %c8 = arith.constant 8 : index
    %c0_44 = arith.constant 0 : index
    %c0_45 = arith.constant 0 : index
    %32 = vector.load %arg1[%c0_43, %c8, %c0_44, %c0_45] : memref<1x16x16x4xf32, #tpu.memory_space<vmem>>, vector<1x1x16x4xf32>
    %33 = vector.shape_cast %32 : vector<1x1x16x4xf32> to vector<16x4xf32>
    %c163 = arith.constant 163 : index
    %c0_46 = arith.constant 0 : index
    %34 = vector.load %arg19[%c163, %c0_46] : memref<326x4xf32, #tpu.memory_space<vmem>>, vector<16x4xf32>
    tpu.vector_store %arg19[%c163, %c0_46], %33 {strides = array<i32>} : memref<326x4xf32, #tpu.memory_space<vmem>>, vector<16x4xf32>,
    %c0_47 = arith.constant 0 : index
    %c9 = arith.constant 9 : index
    %c0_48 = arith.constant 0 : index
    %c0_49 = arith.constant 0 : index
    %35 = vector.load %arg1[%c0_47, %c9, %c0_48, %c0_49] : memref<1x16x16x4xf32, #tpu.memory_space<vmem>>, vector<1x1x16x4xf32>
    %36 = vector.shape_cast %35 : vector<1x1x16x4xf32> to vector<16x4xf32>
    %c181 = arith.constant 181 : index
    %c0_50 = arith.constant 0 : index
    %37 = vector.load %arg19[%c181, %c0_50] : memref<326x4xf32, #tpu.memory_space<vmem>>, vector<16x4xf32>
    tpu.vector_store %arg19[%c181, %c0_50], %36 {strides = array<i32>} : memref<326x4xf32, #tpu.memory_space<vmem>>, vector<16x4xf32>,
    %c0_51 = arith.constant 0 : index
    %c10 = arith.constant 10 : index
    %c0_52 = arith.constant 0 : index
    %c0_53 = arith.constant 0 : index
    %38 = vector.load %arg1[%c0_51, %c10, %c0_52, %c0_53] : memref<1x16x16x4xf32, #tpu.memory_space<vmem>>, vector<1x1x16x4xf32>
    %39 = vector.shape_cast %38 : vector<1x1x16x4xf32> to vector<16x4xf32>
    %c199 = arith.constant 199 : index
    %c0_54 = arith.constant 0 : index
    %40 = vector.load %arg19[%c199, %c0_54] : memref<326x4xf32, #tpu.memory_space<vmem>>, vector<16x4xf32>
    tpu.vector_store %arg19[%c199, %c0_54], %39 {strides = array<i32>} : memref<326x4xf32, #tpu.memory_space<vmem>>, vector<16x4xf32>,
    %c0_55 = arith.constant 0 : index
    %c11 = arith.constant 11 : index
    %c0_56 = arith.constant 0 : index
    %c0_57 = arith.constant 0 : index
    %41 = vector.load %arg1[%c0_55, %c11, %c0_56, %c0_57] : memref<1x16x16x4xf32, #tpu.memory_space<vmem>>, vector<1x1x16x4xf32>
    %42 = vector.shape_cast %41 : vector<1x1x16x4xf32> to vector<16x4xf32>
    %c217 = arith.constant 217 : index
    %c0_58 = arith.constant 0 : index
    %43 = vector.load %arg19[%c217, %c0_58] : memref<326x4xf32, #tpu.memory_space<vmem>>, vector<16x4xf32>
    tpu.vector_store %arg19[%c217, %c0_58], %42 {strides = array<i32>} : memref<326x4xf32, #tpu.memory_space<vmem>>, vector<16x4xf32>,
    %c0_59 = arith.constant 0 : index
    %c12 = arith.constant 12 : index
    %c0_60 = arith.constant 0 : index
    %c0_61 = arith.constant 0 : index
    %44 = vector.load %arg1[%c0_59, %c12, %c0_60, %c0_61] : memref<1x16x16x4xf32, #tpu.memory_space<vmem>>, vector<1x1x16x4xf32>
    %45 = vector.shape_cast %44 : vector<1x1x16x4xf32> to vector<16x4xf32>
    %c235 = arith.constant 235 : index
    %c0_62 = arith.constant 0 : index
    %46 = vector.load %arg19[%c235, %c0_62] : memref<326x4xf32, #tpu.memory_space<vmem>>, vector<16x4xf32>
    tpu.vector_store %arg19[%c235, %c0_62], %45 {strides = array<i32>} : memref<326x4xf32, #tpu.memory_space<vmem>>, vector<16x4xf32>,
    %c0_63 = arith.constant 0 : index
    %c13 = arith.constant 13 : index
    %c0_64 = arith.constant 0 : index
    %c0_65 = arith.constant 0 : index
    %47 = vector.load %arg1[%c0_63, %c13, %c0_64, %c0_65] : memref<1x16x16x4xf32, #tpu.memory_space<vmem>>, vector<1x1x16x4xf32>
    %48 = vector.shape_cast %47 : vector<1x1x16x4xf32> to vector<16x4xf32>
    %c253 = arith.constant 253 : index
    %c0_66 = arith.constant 0 : index
    %49 = vector.load %arg19[%c253, %c0_66] : memref<326x4xf32, #tpu.memory_space<vmem>>, vector<16x4xf32>
    tpu.vector_store %arg19[%c253, %c0_66], %48 {strides = array<i32>} : memref<326x4xf32, #tpu.memory_space<vmem>>, vector<16x4xf32>,
    %c0_67 = arith.constant 0 : index
    %c14 = arith.constant 14 : index
    %c0_68 = arith.constant 0 : index
    %c0_69 = arith.constant 0 : index
    %50 = vector.load %arg1[%c0_67, %c14, %c0_68, %c0_69] : memref<1x16x16x4xf32, #tpu.memory_space<vmem>>, vector<1x1x16x4xf32>
    %51 = vector.shape_cast %50 : vector<1x1x16x4xf32> to vector<16x4xf32>
    %c271 = arith.constant 271 : index
    %c0_70 = arith.constant 0 : index
    %52 = vector.load %arg19[%c271, %c0_70] : memref<326x4xf32, #tpu.memory_space<vmem>>, vector<16x4xf32>
    tpu.vector_store %arg19[%c271, %c0_70], %51 {strides = array<i32>} : memref<326x4xf32, #tpu.memory_space<vmem>>, vector<16x4xf32>,
    %c0_71 = arith.constant 0 : index
    %c15 = arith.constant 15 : index
    %c0_72 = arith.constant 0 : index
    %c0_73 = arith.constant 0 : index
    %53 = vector.load %arg1[%c0_71, %c15, %c0_72, %c0_73] : memref<1x16x16x4xf32, #tpu.memory_space<vmem>>, vector<1x1x16x4xf32>
    %54 = vector.shape_cast %53 : vector<1x1x16x4xf32> to vector<16x4xf32>
    %c289 = arith.constant 289 : index
    %c0_74 = arith.constant 0 : index
    %55 = vector.load %arg19[%c289, %c0_74] : memref<326x4xf32, #tpu.memory_space<vmem>>, vector<16x4xf32>
    tpu.vector_store %arg19[%c289, %c0_74], %54 {strides = array<i32>} : memref<326x4xf32, #tpu.memory_space<vmem>>, vector<16x4xf32>,
    %c0_75 = arith.constant 0 : index
    %c0_76 = arith.constant 0 : index
    %56 = vector.load %arg3[%c0_75, %c0_76] : memref<1x16xf32, #tpu.memory_space<vmem>>, vector<1x16xf32>
    %c0_77 = arith.constant 0 : index
    %c0_78 = arith.constant 0 : index
    %57 = vector.load %arg4[%c0_77, %c0_78] : memref<1x16xf32, #tpu.memory_space<vmem>>, vector<1x16xf32>
    %c0_79 = arith.constant 0 : index
    %c0_80 = arith.constant 0 : index
    %58 = vector.load %arg19[%c0_79, %c0_80] : memref<326x4xf32, #tpu.memory_space<vmem>>, vector<128x4xf32>
    %c0_81 = arith.constant 0 : index
    %c0_82 = arith.constant 0 : index
    %c0_83 = arith.constant 0 : index
    %59 = vector.load %arg2[%c0_81, %c0_82, %c0_83] : memref<9x4x16xf32, #tpu.memory_space<vmem>>, vector<1x4x16xf32>
    %60 = vector.shape_cast %59 : vector<1x4x16xf32> to vector<4x16xf32>
    %cst_84 = arith.constant dense<0.000000e+00> : vector<128x16xf32>
    %61 = tpu.matmul %58, %60, %cst_84 {dimension_numbers = #tpu.dot_dimension_numbers<[1], [0], [0], [1], [0, 0, 1, 1], [], []>} : vector<128x4xf32>, vector<4x16xf32>, vector<128x16xf32> -> vector<128x16xf32>
    %c1_85 = arith.constant 1 : index
    %c0_86 = arith.constant 0 : index
    %62 = vector.load %arg19[%c1_85, %c0_86] : memref<326x4xf32, #tpu.memory_space<vmem>>, vector<128x4xf32>
    %c1_87 = arith.constant 1 : index
    %c0_88 = arith.constant 0 : index
    %c0_89 = arith.constant 0 : index
    %63 = vector.load %arg2[%c1_87, %c0_88, %c0_89] : memref<9x4x16xf32, #tpu.memory_space<vmem>>, vector<1x4x16xf32>
    %64 = vector.shape_cast %63 : vector<1x4x16xf32> to vector<4x16xf32>
    %cst_90 = arith.constant dense<0.000000e+00> : vector<128x16xf32>
    %65 = tpu.matmul %62, %64, %cst_90 {dimension_numbers = #tpu.dot_dimension_numbers<[1], [0], [0], [1], [0, 0, 1, 1], [], []>} : vector<128x4xf32>, vector<4x16xf32>, vector<128x16xf32> -> vector<128x16xf32>
    %66 = arith.addf %61, %65 : vector<128x16xf32>
    %c2_91 = arith.constant 2 : index
    %c0_92 = arith.constant 0 : index
    %67 = vector.load %arg19[%c2_91, %c0_92] : memref<326x4xf32, #tpu.memory_space<vmem>>, vector<128x4xf32>
    %c2_93 = arith.constant 2 : index
    %c0_94 = arith.constant 0 : index
    %c0_95 = arith.constant 0 : index
    %68 = vector.load %arg2[%c2_93, %c0_94, %c0_95] : memref<9x4x16xf32, #tpu.memory_space<vmem>>, vector<1x4x16xf32>
    %69 = vector.shape_cast %68 : vector<1x4x16xf32> to vector<4x16xf32>
    %cst_96 = arith.constant dense<0.000000e+00> : vector<128x16xf32>
    %70 = tpu.matmul %67, %69, %cst_96 {dimension_numbers = #tpu.dot_dimension_numbers<[1], [0], [0], [1], [0, 0, 1, 1], [], []>} : vector<128x4xf32>, vector<4x16xf32>, vector<128x16xf32> -> vector<128x16xf32>
    %71 = arith.addf %66, %70 : vector<128x16xf32>
    %c18 = arith.constant 18 : index
    %c0_97 = arith.constant 0 : index
    %72 = vector.load %arg19[%c18, %c0_97] : memref<326x4xf32, #tpu.memory_space<vmem>>, vector<128x4xf32>
    %c3_98 = arith.constant 3 : index
    %c0_99 = arith.constant 0 : index
    %c0_100 = arith.constant 0 : index
    %73 = vector.load %arg2[%c3_98, %c0_99, %c0_100] : memref<9x4x16xf32, #tpu.memory_space<vmem>>, vector<1x4x16xf32>
    %74 = vector.shape_cast %73 : vector<1x4x16xf32> to vector<4x16xf32>
    %cst_101 = arith.constant dense<0.000000e+00> : vector<128x16xf32>
    %75 = tpu.matmul %72, %74, %cst_101 {dimension_numbers = #tpu.dot_dimension_numbers<[1], [0], [0], [1], [0, 0, 1, 1], [], []>} : vector<128x4xf32>, vector<4x16xf32>, vector<128x16xf32> -> vector<128x16xf32>
    %76 = arith.addf %71, %75 : vector<128x16xf32>
    %c19_102 = arith.constant 19 : index
    %c0_103 = arith.constant 0 : index
    %77 = vector.load %arg19[%c19_102, %c0_103] : memref<326x4xf32, #tpu.memory_space<vmem>>, vector<128x4xf32>
    %c4_104 = arith.constant 4 : index
    %c0_105 = arith.constant 0 : index
    %c0_106 = arith.constant 0 : index
    %78 = vector.load %arg2[%c4_104, %c0_105, %c0_106] : memref<9x4x16xf32, #tpu.memory_space<vmem>>, vector<1x4x16xf32>
    %79 = vector.shape_cast %78 : vector<1x4x16xf32> to vector<4x16xf32>
    %cst_107 = arith.constant dense<0.000000e+00> : vector<128x16xf32>
    %80 = tpu.matmul %77, %79, %cst_107 {dimension_numbers = #tpu.dot_dimension_numbers<[1], [0], [0], [1], [0, 0, 1, 1], [], []>} : vector<128x4xf32>, vector<4x16xf32>, vector<128x16xf32> -> vector<128x16xf32>
    %81 = arith.addf %76, %80 : vector<128x16xf32>
    %c20 = arith.constant 20 : index
    %c0_108 = arith.constant 0 : index
    %82 = vector.load %arg19[%c20, %c0_108] : memref<326x4xf32, #tpu.memory_space<vmem>>, vector<128x4xf32>
    %c5_109 = arith.constant 5 : index
    %c0_110 = arith.constant 0 : index
    %c0_111 = arith.constant 0 : index
    %83 = vector.load %arg2[%c5_109, %c0_110, %c0_111] : memref<9x4x16xf32, #tpu.memory_space<vmem>>, vector<1x4x16xf32>
    %84 = vector.shape_cast %83 : vector<1x4x16xf32> to vector<4x16xf32>
    %cst_112 = arith.constant dense<0.000000e+00> : vector<128x16xf32>
    %85 = tpu.matmul %82, %84, %cst_112 {dimension_numbers = #tpu.dot_dimension_numbers<[1], [0], [0], [1], [0, 0, 1, 1], [], []>} : vector<128x4xf32>, vector<4x16xf32>, vector<128x16xf32> -> vector<128x16xf32>
    %86 = arith.addf %81, %85 : vector<128x16xf32>
    %c36 = arith.constant 36 : index
    %c0_113 = arith.constant 0 : index
    %87 = vector.load %arg19[%c36, %c0_113] : memref<326x4xf32, #tpu.memory_space<vmem>>, vector<128x4xf32>
    %c6_114 = arith.constant 6 : index
    %c0_115 = arith.constant 0 : index
    %c0_116 = arith.constant 0 : index
    %88 = vector.load %arg2[%c6_114, %c0_115, %c0_116] : memref<9x4x16xf32, #tpu.memory_space<vmem>>, vector<1x4x16xf32>
    %89 = vector.shape_cast %88 : vector<1x4x16xf32> to vector<4x16xf32>
    %cst_117 = arith.constant dense<0.000000e+00> : vector<128x16xf32>
    %90 = tpu.matmul %87, %89, %cst_117 {dimension_numbers = #tpu.dot_dimension_numbers<[1], [0], [0], [1], [0, 0, 1, 1], [], []>} : vector<128x4xf32>, vector<4x16xf32>, vector<128x16xf32> -> vector<128x16xf32>
    %91 = arith.addf %86, %90 : vector<128x16xf32>
    %c37_118 = arith.constant 37 : index
    %c0_119 = arith.constant 0 : index
    %92 = vector.load %arg19[%c37_118, %c0_119] : memref<326x4xf32, #tpu.memory_space<vmem>>, vector<128x4xf32>
    %c7_120 = arith.constant 7 : index
    %c0_121 = arith.constant 0 : index
    %c0_122 = arith.constant 0 : index
    %93 = vector.load %arg2[%c7_120, %c0_121, %c0_122] : memref<9x4x16xf32, #tpu.memory_space<vmem>>, vector<1x4x16xf32>
    %94 = vector.shape_cast %93 : vector<1x4x16xf32> to vector<4x16xf32>
    %cst_123 = arith.constant dense<0.000000e+00> : vector<128x16xf32>
    %95 = tpu.matmul %92, %94, %cst_123 {dimension_numbers = #tpu.dot_dimension_numbers<[1], [0], [0], [1], [0, 0, 1, 1], [], []>} : vector<128x4xf32>, vector<4x16xf32>, vector<128x16xf32> -> vector<128x16xf32>
    %96 = arith.addf %91, %95 : vector<128x16xf32>
    %c38 = arith.constant 38 : index
    %c0_124 = arith.constant 0 : index
    %97 = vector.load %arg19[%c38, %c0_124] : memref<326x4xf32, #tpu.memory_space<vmem>>, vector<128x4xf32>
    %c8_125 = arith.constant 8 : index
    %c0_126 = arith.constant 0 : index
    %c0_127 = arith.constant 0 : index
    %98 = vector.load %arg2[%c8_125, %c0_126, %c0_127] : memref<9x4x16xf32, #tpu.memory_space<vmem>>, vector<1x4x16xf32>
    %99 = vector.shape_cast %98 : vector<1x4x16xf32> to vector<4x16xf32>
    %cst_128 = arith.constant dense<0.000000e+00> : vector<128x16xf32>
    %100 = tpu.matmul %97, %99, %cst_128 {dimension_numbers = #tpu.dot_dimension_numbers<[1], [0], [0], [1], [0, 0, 1, 1], [], []>} : vector<128x4xf32>, vector<4x16xf32>, vector<128x16xf32> -> vector<128x16xf32>
    %101 = arith.addf %96, %100 : vector<128x16xf32>
    %102 = vector.broadcast %56 : vector<1x16xf32> to vector<128x16xf32>
    %103 = arith.mulf %101, %102 : vector<128x16xf32>
    %104 = vector.broadcast %57 : vector<1x16xf32> to vector<128x16xf32>
    %105 = arith.addf %103, %104 : vector<128x16xf32>
    %cst_129 = arith.constant 0.000000e+00 : f32
    %106 = vector.broadcast %cst_129 : f32 to vector<128x16xf32>
    %107 = arith.maximumf %105, %106 : vector<128x16xf32>
    %c0_130 = arith.constant 0 : index
    %c0_131 = arith.constant 0 : index
    %108 = vector.load %arg23[%c0_130, %c0_131] : memref<288x16xf32, #tpu.memory_space<vmem>>, vector<128x16xf32>
    tpu.vector_store %arg23[%c0_130, %c0_131], %107 {strides = array<i32>} : memref<288x16xf32, #tpu.memory_space<vmem>>, vector<128x16xf32>,
    %c128 = arith.constant 128 : index
    %c0_132 = arith.constant 0 : index
    %109 = vector.load %arg19[%c128, %c0_132] : memref<326x4xf32, #tpu.memory_space<vmem>>, vector<128x4xf32>
    %c0_133 = arith.constant 0 : index
    %c0_134 = arith.constant 0 : index
    %c0_135 = arith.constant 0 : index
    %110 = vector.load %arg2[%c0_133, %c0_134, %c0_135] : memref<9x4x16xf32, #tpu.memory_space<vmem>>, vector<1x4x16xf32>
    %111 = vector.shape_cast %110 : vector<1x4x16xf32> to vector<4x16xf32>
    %cst_136 = arith.constant dense<0.000000e+00> : vector<128x16xf32>
    %112 = tpu.matmul %109, %111, %cst_136 {dimension_numbers = #tpu.dot_dimension_numbers<[1], [0], [0], [1], [0, 0, 1, 1], [], []>} : vector<128x4xf32>, vector<4x16xf32>, vector<128x16xf32> -> vector<128x16xf32>
    %c129 = arith.constant 129 : index
    %c0_137 = arith.constant 0 : index
    %113 = vector.load %arg19[%c129, %c0_137] : memref<326x4xf32, #tpu.memory_space<vmem>>, vector<128x4xf32>
    %c1_138 = arith.constant 1 : index
    %c0_139 = arith.constant 0 : index
    %c0_140 = arith.constant 0 : index
    %114 = vector.load %arg2[%c1_138, %c0_139, %c0_140] : memref<9x4x16xf32, #tpu.memory_space<vmem>>, vector<1x4x16xf32>
    %115 = vector.shape_cast %114 : vector<1x4x16xf32> to vector<4x16xf32>
    %cst_141 = arith.constant dense<0.000000e+00> : vector<128x16xf32>
    %116 = tpu.matmul %113, %115, %cst_141 {dimension_numbers = #tpu.dot_dimension_numbers<[1], [0], [0], [1], [0, 0, 1, 1], [], []>} : vector<128x4xf32>, vector<4x16xf32>, vector<128x16xf32> -> vector<128x16xf32>
    %117 = arith.addf %112, %116 : vector<128x16xf32>
    %c130 = arith.constant 130 : index
    %c0_142 = arith.constant 0 : index
    %118 = vector.load %arg19[%c130, %c0_142] : memref<326x4xf32, #tpu.memory_space<vmem>>, vector<128x4xf32>
    %c2_143 = arith.constant 2 : index
    %c0_144 = arith.constant 0 : index
    %c0_145 = arith.constant 0 : index
    %119 = vector.load %arg2[%c2_143, %c0_144, %c0_145] : memref<9x4x16xf32, #tpu.memory_space<vmem>>, vector<1x4x16xf32>
    %120 = vector.shape_cast %119 : vector<1x4x16xf32> to vector<4x16xf32>
    %cst_146 = arith.constant dense<0.000000e+00> : vector<128x16xf32>
    %121 = tpu.matmul %118, %120, %cst_146 {dimension_numbers = #tpu.dot_dimension_numbers<[1], [0], [0], [1], [0, 0, 1, 1], [], []>} : vector<128x4xf32>, vector<4x16xf32>, vector<128x16xf32> -> vector<128x16xf32>
    %122 = arith.addf %117, %121 : vector<128x16xf32>
    %c146 = arith.constant 146 : index
    %c0_147 = arith.constant 0 : index
    %123 = vector.load %arg19[%c146, %c0_147] : memref<326x4xf32, #tpu.memory_space<vmem>>, vector<128x4xf32>
    %c3_148 = arith.constant 3 : index
    %c0_149 = arith.constant 0 : index
    %c0_150 = arith.constant 0 : index
    %124 = vector.load %arg2[%c3_148, %c0_149, %c0_150] : memref<9x4x16xf32, #tpu.memory_space<vmem>>, vector<1x4x16xf32>
    %125 = vector.shape_cast %124 : vector<1x4x16xf32> to vector<4x16xf32>
    %cst_151 = arith.constant dense<0.000000e+00> : vector<128x16xf32>
    %126 = tpu.matmul %123, %125, %cst_151 {dimension_numbers = #tpu.dot_dimension_numbers<[1], [0], [0], [1], [0, 0, 1, 1], [], []>} : vector<128x4xf32>, vector<4x16xf32>, vector<128x16xf32> -> vector<128x16xf32>
    %127 = arith.addf %122, %126 : vector<128x16xf32>
    %c147 = arith.constant 147 : index
    %c0_152 = arith.constant 0 : index
    %128 = vector.load %arg19[%c147, %c0_152] : memref<326x4xf32, #tpu.memory_space<vmem>>, vector<128x4xf32>
    %c4_153 = arith.constant 4 : index
    %c0_154 = arith.constant 0 : index
    %c0_155 = arith.constant 0 : index
    %129 = vector.load %arg2[%c4_153, %c0_154, %c0_155] : memref<9x4x16xf32, #tpu.memory_space<vmem>>, vector<1x4x16xf32>
    %130 = vector.shape_cast %129 : vector<1x4x16xf32> to vector<4x16xf32>
    %cst_156 = arith.constant dense<0.000000e+00> : vector<128x16xf32>
    %131 = tpu.matmul %128, %130, %cst_156 {dimension_numbers = #tpu.dot_dimension_numbers<[1], [0], [0], [1], [0, 0, 1, 1], [], []>} : vector<128x4xf32>, vector<4x16xf32>, vector<128x16xf32> -> vector<128x16xf32>
    %132 = arith.addf %127, %131 : vector<128x16xf32>
    %c148 = arith.constant 148 : index
    %c0_157 = arith.constant 0 : index
    %133 = vector.load %arg19[%c148, %c0_157] : memref<326x4xf32, #tpu.memory_space<vmem>>, vector<128x4xf32>
    %c5_158 = arith.constant 5 : index
    %c0_159 = arith.constant 0 : index
    %c0_160 = arith.constant 0 : index
    %134 = vector.load %arg2[%c5_158, %c0_159, %c0_160] : memref<9x4x16xf32, #tpu.memory_space<vmem>>, vector<1x4x16xf32>
    %135 = vector.shape_cast %134 : vector<1x4x16xf32> to vector<4x16xf32>
    %cst_161 = arith.constant dense<0.000000e+00> : vector<128x16xf32>
    %136 = tpu.matmul %133, %135, %cst_161 {dimension_numbers = #tpu.dot_dimension_numbers<[1], [0], [0], [1], [0, 0, 1, 1], [], []>} : vector<128x4xf32>, vector<4x16xf32>, vector<128x16xf32> -> vector<128x16xf32>
    %137 = arith.addf %132, %136 : vector<128x16xf32>
    %c164 = arith.constant 164 : index
    %c0_162 = arith.constant 0 : index
    %138 = vector.load %arg19[%c164, %c0_162] : memref<326x4xf32, #tpu.memory_space<vmem>>, vector<128x4xf32>
    %c6_163 = arith.constant 6 : index
    %c0_164 = arith.constant 0 : index
    %c0_165 = arith.constant 0 : index
    %139 = vector.load %arg2[%c6_163, %c0_164, %c0_165] : memref<9x4x16xf32, #tpu.memory_space<vmem>>, vector<1x4x16xf32>
    %140 = vector.shape_cast %139 : vector<1x4x16xf32> to vector<4x16xf32>
    %cst_166 = arith.constant dense<0.000000e+00> : vector<128x16xf32>
    %141 = tpu.matmul %138, %140, %cst_166 {dimension_numbers = #tpu.dot_dimension_numbers<[1], [0], [0], [1], [0, 0, 1, 1], [], []>} : vector<128x4xf32>, vector<4x16xf32>, vector<128x16xf32> -> vector<128x16xf32>
    %142 = arith.addf %137, %141 : vector<128x16xf32>
    %c165 = arith.constant 165 : index
    %c0_167 = arith.constant 0 : index
    %143 = vector.load %arg19[%c165, %c0_167] : memref<326x4xf32, #tpu.memory_space<vmem>>, vector<128x4xf32>
    %c7_168 = arith.constant 7 : index
    %c0_169 = arith.constant 0 : index
    %c0_170 = arith.constant 0 : index
    %144 = vector.load %arg2[%c7_168, %c0_169, %c0_170] : memref<9x4x16xf32, #tpu.memory_space<vmem>>, vector<1x4x16xf32>
    %145 = vector.shape_cast %144 : vector<1x4x16xf32> to vector<4x16xf32>
    %cst_171 = arith.constant dense<0.000000e+00> : vector<128x16xf32>
    %146 = tpu.matmul %143, %145, %cst_171 {dimension_numbers = #tpu.dot_dimension_numbers<[1], [0], [0], [1], [0, 0, 1, 1], [], []>} : vector<128x4xf32>, vector<4x16xf32>, vector<128x16xf32> -> vector<128x16xf32>
    %147 = arith.addf %142, %146 : vector<128x16xf32>
    %c166 = arith.constant 166 : index
    %c0_172 = arith.constant 0 : index
    %148 = vector.load %arg19[%c166, %c0_172] : memref<326x4xf32, #tpu.memory_space<vmem>>, vector<128x4xf32>
    %c8_173 = arith.constant 8 : index
    %c0_174 = arith.constant 0 : index
    %c0_175 = arith.constant 0 : index
    %149 = vector.load %arg2[%c8_173, %c0_174, %c0_175] : memref<9x4x16xf32, #tpu.memory_space<vmem>>, vector<1x4x16xf32>
    %150 = vector.shape_cast %149 : vector<1x4x16xf32> to vector<4x16xf32>
    %cst_176 = arith.constant dense<0.000000e+00> : vector<128x16xf32>
    %151 = tpu.matmul %148, %150, %cst_176 {dimension_numbers = #tpu.dot_dimension_numbers<[1], [0], [0], [1], [0, 0, 1, 1], [], []>} : vector<128x4xf32>, vector<4x16xf32>, vector<128x16xf32> -> vector<128x16xf32>
    %152 = arith.addf %147, %151 : vector<128x16xf32>
    %153 = vector.broadcast %56 : vector<1x16xf32> to vector<128x16xf32>
    %154 = arith.mulf %152, %153 : vector<128x16xf32>
    %155 = vector.broadcast %57 : vector<1x16xf32> to vector<128x16xf32>
    %156 = arith.addf %154, %155 : vector<128x16xf32>
    %cst_177 = arith.constant 0.000000e+00 : f32
    %157 = vector.broadcast %cst_177 : f32 to vector<128x16xf32>
    %158 = arith.maximumf %156, %157 : vector<128x16xf32>
    %c128_178 = arith.constant 128 : index
    %c0_179 = arith.constant 0 : index
    %159 = vector.load %arg23[%c128_178, %c0_179] : memref<288x16xf32, #tpu.memory_space<vmem>>, vector<128x16xf32>
    tpu.vector_store %arg23[%c128_178, %c0_179], %158 {strides = array<i32>} : memref<288x16xf32, #tpu.memory_space<vmem>>, vector<128x16xf32>,
    %c256 = arith.constant 256 : index
    %c0_180 = arith.constant 0 : index
    %160 = vector.load %arg19[%c256, %c0_180] : memref<326x4xf32, #tpu.memory_space<vmem>>, vector<32x4xf32>
    %c0_181 = arith.constant 0 : index
    %c0_182 = arith.constant 0 : index
    %c0_183 = arith.constant 0 : index
    %161 = vector.load %arg2[%c0_181, %c0_182, %c0_183] : memref<9x4x16xf32, #tpu.memory_space<vmem>>, vector<1x4x16xf32>
    %162 = vector.shape_cast %161 : vector<1x4x16xf32> to vector<4x16xf32>
    %cst_184 = arith.constant dense<0.000000e+00> : vector<32x16xf32>
    %163 = tpu.matmul %160, %162, %cst_184 {dimension_numbers = #tpu.dot_dimension_numbers<[1], [0], [0], [1], [0, 0, 1, 1], [], []>} : vector<32x4xf32>, vector<4x16xf32>, vector<32x16xf32> -> vector<32x16xf32>
    %c257 = arith.constant 257 : index
    %c0_185 = arith.constant 0 : index
    %164 = vector.load %arg19[%c257, %c0_185] : memref<326x4xf32, #tpu.memory_space<vmem>>, vector<32x4xf32>
    %c1_186 = arith.constant 1 : index
    %c0_187 = arith.constant 0 : index
    %c0_188 = arith.constant 0 : index
    %165 = vector.load %arg2[%c1_186, %c0_187, %c0_188] : memref<9x4x16xf32, #tpu.memory_space<vmem>>, vector<1x4x16xf32>
    %166 = vector.shape_cast %165 : vector<1x4x16xf32> to vector<4x16xf32>
    %cst_189 = arith.constant dense<0.000000e+00> : vector<32x16xf32>
    %167 = tpu.matmul %164, %166, %cst_189 {dimension_numbers = #tpu.dot_dimension_numbers<[1], [0], [0], [1], [0, 0, 1, 1], [], []>} : vector<32x4xf32>, vector<4x16xf32>, vector<32x16xf32> -> vector<32x16xf32>
    %168 = arith.addf %163, %167 : vector<32x16xf32>
    %c258 = arith.constant 258 : index
    %c0_190 = arith.constant 0 : index
    %169 = vector.load %arg19[%c258, %c0_190] : memref<326x4xf32, #tpu.memory_space<vmem>>, vector<32x4xf32>
    %c2_191 = arith.constant 2 : index
    %c0_192 = arith.constant 0 : index
    %c0_193 = arith.constant 0 : index
    %170 = vector.load %arg2[%c2_191, %c0_192, %c0_193] : memref<9x4x16xf32, #tpu.memory_space<vmem>>, vector<1x4x16xf32>
    %171 = vector.shape_cast %170 : vector<1x4x16xf32> to vector<4x16xf32>
    %cst_194 = arith.constant dense<0.000000e+00> : vector<32x16xf32>
    %172 = tpu.matmul %169, %171, %cst_194 {dimension_numbers = #tpu.dot_dimension_numbers<[1], [0], [0], [1], [0, 0, 1, 1], [], []>} : vector<32x4xf32>, vector<4x16xf32>, vector<32x16xf32> -> vector<32x16xf32>
    %173 = arith.addf %168, %172 : vector<32x16xf32>
    %c274 = arith.constant 274 : index
    %c0_195 = arith.constant 0 : index
    %174 = vector.load %arg19[%c274, %c0_195] : memref<326x4xf32, #tpu.memory_space<vmem>>, vector<32x4xf32>
    %c3_196 = arith.constant 3 : index
    %c0_197 = arith.constant 0 : index
    %c0_198 = arith.constant 0 : index
    %175 = vector.load %arg2[%c3_196, %c0_197, %c0_198] : memref<9x4x16xf32, #tpu.memory_space<vmem>>, vector<1x4x16xf32>
    %176 = vector.shape_cast %175 : vector<1x4x16xf32> to vector<4x16xf32>
    %cst_199 = arith.constant dense<0.000000e+00> : vector<32x16xf32>
    %177 = tpu.matmul %174, %176, %cst_199 {dimension_numbers = #tpu.dot_dimension_numbers<[1], [0], [0], [1], [0, 0, 1, 1], [], []>} : vector<32x4xf32>, vector<4x16xf32>, vector<32x16xf32> -> vector<32x16xf32>
    %178 = arith.addf %173, %177 : vector<32x16xf32>
    %c275 = arith.constant 275 : index
    %c0_200 = arith.constant 0 : index
    %179 = vector.load %arg19[%c275, %c0_200] : memref<326x4xf32, #tpu.memory_space<vmem>>, vector<32x4xf32>
    %c4_201 = arith.constant 4 : index
    %c0_202 = arith.constant 0 : index
    %c0_203 = arith.constant 0 : index
    %180 = vector.load %arg2[%c4_201, %c0_202, %c0_203] : memref<9x4x16xf32, #tpu.memory_space<vmem>>, vector<1x4x16xf32>
    %181 = vector.shape_cast %180 : vector<1x4x16xf32> to vector<4x16xf32>
    %cst_204 = arith.constant dense<0.000000e+00> : vector<32x16xf32>
    %182 = tpu.matmul %179, %181, %cst_204 {dimension_numbers = #tpu.dot_dimension_numbers<[1], [0], [0], [1], [0, 0, 1, 1], [], []>} : vector<32x4xf32>, vector<4x16xf32>, vector<32x16xf32> -> vector<32x16xf32>
    %183 = arith.addf %178, %182 : vector<32x16xf32>
    %c276 = arith.constant 276 : index
    %c0_205 = arith.constant 0 : index
    %184 = vector.load %arg19[%c276, %c0_205] : memref<326x4xf32, #tpu.memory_space<vmem>>, vector<32x4xf32>
    %c5_206 = arith.constant 5 : index
    %c0_207 = arith.constant 0 : index
    %c0_208 = arith.constant 0 : index
    %185 = vector.load %arg2[%c5_206, %c0_207, %c0_208] : memref<9x4x16xf32, #tpu.memory_space<vmem>>, vector<1x4x16xf32>
    %186 = vector.shape_cast %185 : vector<1x4x16xf32> to vector<4x16xf32>
    %cst_209 = arith.constant dense<0.000000e+00> : vector<32x16xf32>
    %187 = tpu.matmul %184, %186, %cst_209 {dimension_numbers = #tpu.dot_dimension_numbers<[1], [0], [0], [1], [0, 0, 1, 1], [], []>} : vector<32x4xf32>, vector<4x16xf32>, vector<32x16xf32> -> vector<32x16xf32>
    %188 = arith.addf %183, %187 : vector<32x16xf32>
    %c292 = arith.constant 292 : index
    %c0_210 = arith.constant 0 : index
    %189 = vector.load %arg19[%c292, %c0_210] : memref<326x4xf32, #tpu.memory_space<vmem>>, vector<32x4xf32>
    %c6_211 = arith.constant 6 : index
    %c0_212 = arith.constant 0 : index
    %c0_213 = arith.constant 0 : index
    %190 = vector.load %arg2[%c6_211, %c0_212, %c0_213] : memref<9x4x16xf32, #tpu.memory_space<vmem>>, vector<1x4x16xf32>
    %191 = vector.shape_cast %190 : vector<1x4x16xf32> to vector<4x16xf32>
    %cst_214 = arith.constant dense<0.000000e+00> : vector<32x16xf32>
    %192 = tpu.matmul %189, %191, %cst_214 {dimension_numbers = #tpu.dot_dimension_numbers<[1], [0], [0], [1], [0, 0, 1, 1], [], []>} : vector<32x4xf32>, vector<4x16xf32>, vector<32x16xf32> -> vector<32x16xf32>
    %193 = arith.addf %188, %192 : vector<32x16xf32>
    %c293 = arith.constant 293 : index
    %c0_215 = arith.constant 0 : index
    %194 = vector.load %arg19[%c293, %c0_215] : memref<326x4xf32, #tpu.memory_space<vmem>>, vector<32x4xf32>
    %c7_216 = arith.constant 7 : index
    %c0_217 = arith.constant 0 : index
    %c0_218 = arith.constant 0 : index
    %195 = vector.load %arg2[%c7_216, %c0_217, %c0_218] : memref<9x4x16xf32, #tpu.memory_space<vmem>>, vector<1x4x16xf32>
    %196 = vector.shape_cast %195 : vector<1x4x16xf32> to vector<4x16xf32>
    %cst_219 = arith.constant dense<0.000000e+00> : vector<32x16xf32>
    %197 = tpu.matmul %194, %196, %cst_219 {dimension_numbers = #tpu.dot_dimension_numbers<[1], [0], [0], [1], [0, 0, 1, 1], [], []>} : vector<32x4xf32>, vector<4x16xf32>, vector<32x16xf32> -> vector<32x16xf32>
    %198 = arith.addf %193, %197 : vector<32x16xf32>
    %c294 = arith.constant 294 : index
    %c0_220 = arith.constant 0 : index
    %199 = vector.load %arg19[%c294, %c0_220] : memref<326x4xf32, #tpu.memory_space<vmem>>, vector<32x4xf32>
    %c8_221 = arith.constant 8 : index
    %c0_222 = arith.constant 0 : index
    %c0_223 = arith.constant 0 : index
    %200 = vector.load %arg2[%c8_221, %c0_222, %c0_223] : memref<9x4x16xf32, #tpu.memory_space<vmem>>, vector<1x4x16xf32>
    %201 = vector.shape_cast %200 : vector<1x4x16xf32> to vector<4x16xf32>
    %cst_224 = arith.constant dense<0.000000e+00> : vector<32x16xf32>
    %202 = tpu.matmul %199, %201, %cst_224 {dimension_numbers = #tpu.dot_dimension_numbers<[1], [0], [0], [1], [0, 0, 1, 1], [], []>} : vector<32x4xf32>, vector<4x16xf32>, vector<32x16xf32> -> vector<32x16xf32>
    %203 = arith.addf %198, %202 : vector<32x16xf32>
    %204 = vector.broadcast %56 : vector<1x16xf32> to vector<32x16xf32>
    %205 = arith.mulf %203, %204 : vector<32x16xf32>
    %206 = vector.broadcast %57 : vector<1x16xf32> to vector<32x16xf32>
    %207 = arith.addf %205, %206 : vector<32x16xf32>
    %cst_225 = arith.constant 0.000000e+00 : f32
    %208 = vector.broadcast %cst_225 : f32 to vector<32x16xf32>
    %209 = arith.maximumf %207, %208 : vector<32x16xf32>
    %c256_226 = arith.constant 256 : index
    %c0_227 = arith.constant 0 : index
    %210 = vector.load %arg23[%c256_226, %c0_227] : memref<288x16xf32, #tpu.memory_space<vmem>>, vector<32x16xf32>
    tpu.vector_store %arg23[%c256_226, %c0_227], %209 {strides = array<i32>} : memref<288x16xf32, #tpu.memory_space<vmem>>, vector<32x16xf32>,
    %c0_228 = arith.constant 0 : index
    %c0_229 = arith.constant 0 : index
    %211 = tpu.strided_load %arg23[%c0_228, %c0_229] {strides = array<i32: 2, 1>} : memref<288x16xf32, #tpu.memory_space<vmem>>, vector<8x16xf32>
    %c1_230 = arith.constant 1 : index
    %c0_231 = arith.constant 0 : index
    %212 = tpu.strided_load %arg23[%c1_230, %c0_231] {strides = array<i32: 2, 1>} : memref<288x16xf32, #tpu.memory_space<vmem>>, vector<8x16xf32>
    %213 = arith.maximumf %211, %212 : vector<8x16xf32>
    %c18_232 = arith.constant 18 : index
    %c0_233 = arith.constant 0 : index
    %214 = tpu.strided_load %arg23[%c18_232, %c0_233] {strides = array<i32: 2, 1>} : memref<288x16xf32, #tpu.memory_space<vmem>>, vector<8x16xf32>
    %c19_234 = arith.constant 19 : index
    %c0_235 = arith.constant 0 : index
    %215 = tpu.strided_load %arg23[%c19_234, %c0_235] {strides = array<i32: 2, 1>} : memref<288x16xf32, #tpu.memory_space<vmem>>, vector<8x16xf32>
    %216 = arith.maximumf %214, %215 : vector<8x16xf32>
    %217 = arith.maximumf %213, %216 : vector<8x16xf32>
    %c11_236 = arith.constant 11 : index
    %c0_237 = arith.constant 0 : index
    %218 = vector.load %arg20[%c11_236, %c0_237] : memref<102x16xf32, #tpu.memory_space<vmem>>, vector<8x16xf32>
    tpu.vector_store %arg20[%c11_236, %c0_237], %217 {strides = array<i32>} : memref<102x16xf32, #tpu.memory_space<vmem>>, vector<8x16xf32>,
    %c36_238 = arith.constant 36 : index
    %c0_239 = arith.constant 0 : index
    %219 = tpu.strided_load %arg23[%c36_238, %c0_239] {strides = array<i32: 2, 1>} : memref<288x16xf32, #tpu.memory_space<vmem>>, vector<8x16xf32>
    %c37_240 = arith.constant 37 : index
    %c0_241 = arith.constant 0 : index
    %220 = tpu.strided_load %arg23[%c37_240, %c0_241] {strides = array<i32: 2, 1>} : memref<288x16xf32, #tpu.memory_space<vmem>>, vector<8x16xf32>
    %221 = arith.maximumf %219, %220 : vector<8x16xf32>
    %c54 = arith.constant 54 : index
    %c0_242 = arith.constant 0 : index
    %222 = tpu.strided_load %arg23[%c54, %c0_242] {strides = array<i32: 2, 1>} : memref<288x16xf32, #tpu.memory_space<vmem>>, vector<8x16xf32>
    %c55_243 = arith.constant 55 : index
    %c0_244 = arith.constant 0 : index
    %223 = tpu.strided_load %arg23[%c55_243, %c0_244] {strides = array<i32: 2, 1>} : memref<288x16xf32, #tpu.memory_space<vmem>>, vector<8x16xf32>
    %224 = arith.maximumf %222, %223 : vector<8x16xf32>
    %225 = arith.maximumf %221, %224 : vector<8x16xf32>
    %c21 = arith.constant 21 : index
    %c0_245 = arith.constant 0 : index
    %226 = vector.load %arg20[%c21, %c0_245] : memref<102x16xf32, #tpu.memory_space<vmem>>, vector<8x16xf32>
    tpu.vector_store %arg20[%c21, %c0_245], %225 {strides = array<i32>} : memref<102x16xf32, #tpu.memory_space<vmem>>, vector<8x16xf32>,
    %c72 = arith.constant 72 : index
    %c0_246 = arith.constant 0 : index
    %227 = tpu.strided_load %arg23[%c72, %c0_246] {strides = array<i32: 2, 1>} : memref<288x16xf32, #tpu.memory_space<vmem>>, vector<8x16xf32>
    %c73_247 = arith.constant 73 : index
    %c0_248 = arith.constant 0 : index
    %228 = tpu.strided_load %arg23[%c73_247, %c0_248] {strides = array<i32: 2, 1>} : memref<288x16xf32, #tpu.memory_space<vmem>>, vector<8x16xf32>
    %229 = arith.maximumf %227, %228 : vector<8x16xf32>
    %c90 = arith.constant 90 : index
    %c0_249 = arith.constant 0 : index
    %230 = tpu.strided_load %arg23[%c90, %c0_249] {strides = array<i32: 2, 1>} : memref<288x16xf32, #tpu.memory_space<vmem>>, vector<8x16xf32>
    %c91_250 = arith.constant 91 : index
    %c0_251 = arith.constant 0 : index
    %231 = tpu.strided_load %arg23[%c91_250, %c0_251] {strides = array<i32: 2, 1>} : memref<288x16xf32, #tpu.memory_space<vmem>>, vector<8x16xf32>
    %232 = arith.maximumf %230, %231 : vector<8x16xf32>
    %233 = arith.maximumf %229, %232 : vector<8x16xf32>
    %c31 = arith.constant 31 : index
    %c0_252 = arith.constant 0 : index
    %234 = vector.load %arg20[%c31, %c0_252] : memref<102x16xf32, #tpu.memory_space<vmem>>, vector<8x16xf32>
    tpu.vector_store %arg20[%c31, %c0_252], %233 {strides = array<i32>} : memref<102x16xf32, #tpu.memory_space<vmem>>, vector<8x16xf32>,
    %c108 = arith.constant 108 : index
    %c0_253 = arith.constant 0 : index
    %235 = tpu.strided_load %arg23[%c108, %c0_253] {strides = array<i32: 2, 1>} : memref<288x16xf32, #tpu.memory_space<vmem>>, vector<8x16xf32>
    %c109_254 = arith.constant 109 : index
    %c0_255 = arith.constant 0 : index
    %236 = tpu.strided_load %arg23[%c109_254, %c0_255] {strides = array<i32: 2, 1>} : memref<288x16xf32, #tpu.memory_space<vmem>>, vector<8x16xf32>
    %237 = arith.maximumf %235, %236 : vector<8x16xf32>
    %c126 = arith.constant 126 : index
    %c0_256 = arith.constant 0 : index
    %238 = tpu.strided_load %arg23[%c126, %c0_256] {strides = array<i32: 2, 1>} : memref<288x16xf32, #tpu.memory_space<vmem>>, vector<8x16xf32>
    %c127_257 = arith.constant 127 : index
    %c0_258 = arith.constant 0 : index
    %239 = tpu.strided_load %arg23[%c127_257, %c0_258] {strides = array<i32: 2, 1>} : memref<288x16xf32, #tpu.memory_space<vmem>>, vector<8x16xf32>
    %240 = arith.maximumf %238, %239 : vector<8x16xf32>
    %241 = arith.maximumf %237, %240 : vector<8x16xf32>
    %c41 = arith.constant 41 : index
    %c0_259 = arith.constant 0 : index
    %242 = vector.load %arg20[%c41, %c0_259] : memref<102x16xf32, #tpu.memory_space<vmem>>, vector<8x16xf32>
    tpu.vector_store %arg20[%c41, %c0_259], %241 {strides = array<i32>} : memref<102x16xf32, #tpu.memory_space<vmem>>, vector<8x16xf32>,
    %c144 = arith.constant 144 : index
    %c0_260 = arith.constant 0 : index
    %243 = tpu.strided_load %arg23[%c144, %c0_260] {strides = array<i32: 2, 1>} : memref<288x16xf32, #tpu.memory_space<vmem>>, vector<8x16xf32>
    %c145_261 = arith.constant 145 : index
    %c0_262 = arith.constant 0 : index
    %244 = tpu.strided_load %arg23[%c145_261, %c0_262] {strides = array<i32: 2, 1>} : memref<288x16xf32, #tpu.memory_space<vmem>>, vector<8x16xf32>
    %245 = arith.maximumf %243, %244 : vector<8x16xf32>
    %c162 = arith.constant 162 : index
    %c0_263 = arith.constant 0 : index
    %246 = tpu.strided_load %arg23[%c162, %c0_263] {strides = array<i32: 2, 1>} : memref<288x16xf32, #tpu.memory_space<vmem>>, vector<8x16xf32>
    %c163_264 = arith.constant 163 : index
    %c0_265 = arith.constant 0 : index
    %247 = tpu.strided_load %arg23[%c163_264, %c0_265] {strides = array<i32: 2, 1>} : memref<288x16xf32, #tpu.memory_space<vmem>>, vector<8x16xf32>
    %248 = arith.maximumf %246, %247 : vector<8x16xf32>
    %249 = arith.maximumf %245, %248 : vector<8x16xf32>
    %c51 = arith.constant 51 : index
    %c0_266 = arith.constant 0 : index
    %250 = vector.load %arg20[%c51, %c0_266] : memref<102x16xf32, #tpu.memory_space<vmem>>, vector<8x16xf32>
    tpu.vector_store %arg20[%c51, %c0_266], %249 {strides = array<i32>} : memref<102x16xf32, #tpu.memory_space<vmem>>, vector<8x16xf32>,
    %c180 = arith.constant 180 : index
    %c0_267 = arith.constant 0 : index
    %251 = tpu.strided_load %arg23[%c180, %c0_267] {strides = array<i32: 2, 1>} : memref<288x16xf32, #tpu.memory_space<vmem>>, vector<8x16xf32>
    %c181_268 = arith.constant 181 : index
    %c0_269 = arith.constant 0 : index
    %252 = tpu.strided_load %arg23[%c181_268, %c0_269] {strides = array<i32: 2, 1>} : memref<288x16xf32, #tpu.memory_space<vmem>>, vector<8x16xf32>
    %253 = arith.maximumf %251, %252 : vector<8x16xf32>
    %c198 = arith.constant 198 : index
    %c0_270 = arith.constant 0 : index
    %254 = tpu.strided_load %arg23[%c198, %c0_270] {strides = array<i32: 2, 1>} : memref<288x16xf32, #tpu.memory_space<vmem>>, vector<8x16xf32>
    %c199_271 = arith.constant 199 : index
    %c0_272 = arith.constant 0 : index
    %255 = tpu.strided_load %arg23[%c199_271, %c0_272] {strides = array<i32: 2, 1>} : memref<288x16xf32, #tpu.memory_space<vmem>>, vector<8x16xf32>
    %256 = arith.maximumf %254, %255 : vector<8x16xf32>
    %257 = arith.maximumf %253, %256 : vector<8x16xf32>
    %c61 = arith.constant 61 : index
    %c0_273 = arith.constant 0 : index
    %258 = vector.load %arg20[%c61, %c0_273] : memref<102x16xf32, #tpu.memory_space<vmem>>, vector<8x16xf32>
    tpu.vector_store %arg20[%c61, %c0_273], %257 {strides = array<i32>} : memref<102x16xf32, #tpu.memory_space<vmem>>, vector<8x16xf32>,
    %c216 = arith.constant 216 : index
    %c0_274 = arith.constant 0 : index
    %259 = tpu.strided_load %arg23[%c216, %c0_274] {strides = array<i32: 2, 1>} : memref<288x16xf32, #tpu.memory_space<vmem>>, vector<8x16xf32>
    %c217_275 = arith.constant 217 : index
    %c0_276 = arith.constant 0 : index
    %260 = tpu.strided_load %arg23[%c217_275, %c0_276] {strides = array<i32: 2, 1>} : memref<288x16xf32, #tpu.memory_space<vmem>>, vector<8x16xf32>
    %261 = arith.maximumf %259, %260 : vector<8x16xf32>
    %c234 = arith.constant 234 : index
    %c0_277 = arith.constant 0 : index
    %262 = tpu.strided_load %arg23[%c234, %c0_277] {strides = array<i32: 2, 1>} : memref<288x16xf32, #tpu.memory_space<vmem>>, vector<8x16xf32>
    %c235_278 = arith.constant 235 : index
    %c0_279 = arith.constant 0 : index
    %263 = tpu.strided_load %arg23[%c235_278, %c0_279] {strides = array<i32: 2, 1>} : memref<288x16xf32, #tpu.memory_space<vmem>>, vector<8x16xf32>
    %264 = arith.maximumf %262, %263 : vector<8x16xf32>
    %265 = arith.maximumf %261, %264 : vector<8x16xf32>
    %c71 = arith.constant 71 : index
    %c0_280 = arith.constant 0 : index
    %266 = vector.load %arg20[%c71, %c0_280] : memref<102x16xf32, #tpu.memory_space<vmem>>, vector<8x16xf32>
    tpu.vector_store %arg20[%c71, %c0_280], %265 {strides = array<i32>} : memref<102x16xf32, #tpu.memory_space<vmem>>, vector<8x16xf32>,
    %c252 = arith.constant 252 : index
    %c0_281 = arith.constant 0 : index
    %267 = tpu.strided_load %arg23[%c252, %c0_281] {strides = array<i32: 2, 1>} : memref<288x16xf32, #tpu.memory_space<vmem>>, vector<8x16xf32>
    %c253_282 = arith.constant 253 : index
    %c0_283 = arith.constant 0 : index
    %268 = tpu.strided_load %arg23[%c253_282, %c0_283] {strides = array<i32: 2, 1>} : memref<288x16xf32, #tpu.memory_space<vmem>>, vector<8x16xf32>
    %269 = arith.maximumf %267, %268 : vector<8x16xf32>
    %c270 = arith.constant 270 : index
    %c0_284 = arith.constant 0 : index
    %270 = tpu.strided_load %arg23[%c270, %c0_284] {strides = array<i32: 2, 1>} : memref<288x16xf32, #tpu.memory_space<vmem>>, vector<8x16xf32>
    %c271_285 = arith.constant 271 : index
    %c0_286 = arith.constant 0 : index
    %271 = tpu.strided_load %arg23[%c271_285, %c0_286] {strides = array<i32: 2, 1>} : memref<288x16xf32, #tpu.memory_space<vmem>>, vector<8x16xf32>
    %272 = arith.maximumf %270, %271 : vector<8x16xf32>
    %273 = arith.maximumf %269, %272 : vector<8x16xf32>
    %c81 = arith.constant 81 : index
    %c0_287 = arith.constant 0 : index
    %274 = vector.load %arg20[%c81, %c0_287] : memref<102x16xf32, #tpu.memory_space<vmem>>, vector<8x16xf32>
    tpu.vector_store %arg20[%c81, %c0_287], %273 {strides = array<i32>} : memref<102x16xf32, #tpu.memory_space<vmem>>, vector<8x16xf32>,
    %c0_288 = arith.constant 0 : index
    %c0_289 = arith.constant 0 : index
    %275 = vector.load %arg6[%c0_288, %c0_289] : memref<1x32xf32, #tpu.memory_space<vmem>>, vector<1x32xf32>
    %c0_290 = arith.constant 0 : index
    %c0_291 = arith.constant 0 : index
    %276 = vector.load %arg7[%c0_290, %c0_291] : memref<1x32xf32, #tpu.memory_space<vmem>>, vector<1x32xf32>
    %c0_292 = arith.constant 0 : index
    %c0_293 = arith.constant 0 : index
    %277 = vector.load %arg20[%c0_292, %c0_293] : memref<102x16xf32, #tpu.memory_space<vmem>>, vector<80x16xf32>
    %c0_294 = arith.constant 0 : index
    %c0_295 = arith.constant 0 : index
    %c0_296 = arith.constant 0 : index
    %278 = vector.load %arg5[%c0_294, %c0_295, %c0_296] : memref<9x16x32xf32, #tpu.memory_space<vmem>>, vector<1x16x32xf32>
    %279 = vector.shape_cast %278 : vector<1x16x32xf32> to vector<16x32xf32>
    %cst_297 = arith.constant dense<0.000000e+00> : vector<80x32xf32>
    %280 = tpu.matmul %277, %279, %cst_297 {dimension_numbers = #tpu.dot_dimension_numbers<[1], [0], [0], [1], [0, 0, 1, 1], [], []>} : vector<80x16xf32>, vector<16x32xf32>, vector<80x32xf32> -> vector<80x32xf32>
    %c1_298 = arith.constant 1 : index
    %c0_299 = arith.constant 0 : index
    %281 = vector.load %arg20[%c1_298, %c0_299] : memref<102x16xf32, #tpu.memory_space<vmem>>, vector<80x16xf32>
    %c1_300 = arith.constant 1 : index
    %c0_301 = arith.constant 0 : index
    %c0_302 = arith.constant 0 : index
    %282 = vector.load %arg5[%c1_300, %c0_301, %c0_302] : memref<9x16x32xf32, #tpu.memory_space<vmem>>, vector<1x16x32xf32>
    %283 = vector.shape_cast %282 : vector<1x16x32xf32> to vector<16x32xf32>
    %cst_303 = arith.constant dense<0.000000e+00> : vector<80x32xf32>
    %284 = tpu.matmul %281, %283, %cst_303 {dimension_numbers = #tpu.dot_dimension_numbers<[1], [0], [0], [1], [0, 0, 1, 1], [], []>} : vector<80x16xf32>, vector<16x32xf32>, vector<80x32xf32> -> vector<80x32xf32>
    %285 = arith.addf %280, %284 : vector<80x32xf32>
    %c2_304 = arith.constant 2 : index
    %c0_305 = arith.constant 0 : index
    %286 = vector.load %arg20[%c2_304, %c0_305] : memref<102x16xf32, #tpu.memory_space<vmem>>, vector<80x16xf32>
    %c2_306 = arith.constant 2 : index
    %c0_307 = arith.constant 0 : index
    %c0_308 = arith.constant 0 : index
    %287 = vector.load %arg5[%c2_306, %c0_307, %c0_308] : memref<9x16x32xf32, #tpu.memory_space<vmem>>, vector<1x16x32xf32>
    %288 = vector.shape_cast %287 : vector<1x16x32xf32> to vector<16x32xf32>
    %cst_309 = arith.constant dense<0.000000e+00> : vector<80x32xf32>
    %289 = tpu.matmul %286, %288, %cst_309 {dimension_numbers = #tpu.dot_dimension_numbers<[1], [0], [0], [1], [0, 0, 1, 1], [], []>} : vector<80x16xf32>, vector<16x32xf32>, vector<80x32xf32> -> vector<80x32xf32>
    %290 = arith.addf %285, %289 : vector<80x32xf32>
    %c10_310 = arith.constant 10 : index
    %c0_311 = arith.constant 0 : index
    %291 = vector.load %arg20[%c10_310, %c0_311] : memref<102x16xf32, #tpu.memory_space<vmem>>, vector<80x16xf32>
    %c3_312 = arith.constant 3 : index
    %c0_313 = arith.constant 0 : index
    %c0_314 = arith.constant 0 : index
    %292 = vector.load %arg5[%c3_312, %c0_313, %c0_314] : memref<9x16x32xf32, #tpu.memory_space<vmem>>, vector<1x16x32xf32>
    %293 = vector.shape_cast %292 : vector<1x16x32xf32> to vector<16x32xf32>
    %cst_315 = arith.constant dense<0.000000e+00> : vector<80x32xf32>
    %294 = tpu.matmul %291, %293, %cst_315 {dimension_numbers = #tpu.dot_dimension_numbers<[1], [0], [0], [1], [0, 0, 1, 1], [], []>} : vector<80x16xf32>, vector<16x32xf32>, vector<80x32xf32> -> vector<80x32xf32>
    %295 = arith.addf %290, %294 : vector<80x32xf32>
    %c11_316 = arith.constant 11 : index
    %c0_317 = arith.constant 0 : index
    %296 = vector.load %arg20[%c11_316, %c0_317] : memref<102x16xf32, #tpu.memory_space<vmem>>, vector<80x16xf32>
    %c4_318 = arith.constant 4 : index
    %c0_319 = arith.constant 0 : index
    %c0_320 = arith.constant 0 : index
    %297 = vector.load %arg5[%c4_318, %c0_319, %c0_320] : memref<9x16x32xf32, #tpu.memory_space<vmem>>, vector<1x16x32xf32>
    %298 = vector.shape_cast %297 : vector<1x16x32xf32> to vector<16x32xf32>
    %cst_321 = arith.constant dense<0.000000e+00> : vector<80x32xf32>
    %299 = tpu.matmul %296, %298, %cst_321 {dimension_numbers = #tpu.dot_dimension_numbers<[1], [0], [0], [1], [0, 0, 1, 1], [], []>} : vector<80x16xf32>, vector<16x32xf32>, vector<80x32xf32> -> vector<80x32xf32>
    %300 = arith.addf %295, %299 : vector<80x32xf32>
    %c12_322 = arith.constant 12 : index
    %c0_323 = arith.constant 0 : index
    %301 = vector.load %arg20[%c12_322, %c0_323] : memref<102x16xf32, #tpu.memory_space<vmem>>, vector<80x16xf32>
    %c5_324 = arith.constant 5 : index
    %c0_325 = arith.constant 0 : index
    %c0_326 = arith.constant 0 : index
    %302 = vector.load %arg5[%c5_324, %c0_325, %c0_326] : memref<9x16x32xf32, #tpu.memory_space<vmem>>, vector<1x16x32xf32>
    %303 = vector.shape_cast %302 : vector<1x16x32xf32> to vector<16x32xf32>
    %cst_327 = arith.constant dense<0.000000e+00> : vector<80x32xf32>
    %304 = tpu.matmul %301, %303, %cst_327 {dimension_numbers = #tpu.dot_dimension_numbers<[1], [0], [0], [1], [0, 0, 1, 1], [], []>} : vector<80x16xf32>, vector<16x32xf32>, vector<80x32xf32> -> vector<80x32xf32>
    %305 = arith.addf %300, %304 : vector<80x32xf32>
    %c20_328 = arith.constant 20 : index
    %c0_329 = arith.constant 0 : index
    %306 = vector.load %arg20[%c20_328, %c0_329] : memref<102x16xf32, #tpu.memory_space<vmem>>, vector<80x16xf32>
    %c6_330 = arith.constant 6 : index
    %c0_331 = arith.constant 0 : index
    %c0_332 = arith.constant 0 : index
    %307 = vector.load %arg5[%c6_330, %c0_331, %c0_332] : memref<9x16x32xf32, #tpu.memory_space<vmem>>, vector<1x16x32xf32>
    %308 = vector.shape_cast %307 : vector<1x16x32xf32> to vector<16x32xf32>
    %cst_333 = arith.constant dense<0.000000e+00> : vector<80x32xf32>
    %309 = tpu.matmul %306, %308, %cst_333 {dimension_numbers = #tpu.dot_dimension_numbers<[1], [0], [0], [1], [0, 0, 1, 1], [], []>} : vector<80x16xf32>, vector<16x32xf32>, vector<80x32xf32> -> vector<80x32xf32>
    %310 = arith.addf %305, %309 : vector<80x32xf32>
    %c21_334 = arith.constant 21 : index
    %c0_335 = arith.constant 0 : index
    %311 = vector.load %arg20[%c21_334, %c0_335] : memref<102x16xf32, #tpu.memory_space<vmem>>, vector<80x16xf32>
    %c7_336 = arith.constant 7 : index
    %c0_337 = arith.constant 0 : index
    %c0_338 = arith.constant 0 : index
    %312 = vector.load %arg5[%c7_336, %c0_337, %c0_338] : memref<9x16x32xf32, #tpu.memory_space<vmem>>, vector<1x16x32xf32>
    %313 = vector.shape_cast %312 : vector<1x16x32xf32> to vector<16x32xf32>
    %cst_339 = arith.constant dense<0.000000e+00> : vector<80x32xf32>
    %314 = tpu.matmul %311, %313, %cst_339 {dimension_numbers = #tpu.dot_dimension_numbers<[1], [0], [0], [1], [0, 0, 1, 1], [], []>} : vector<80x16xf32>, vector<16x32xf32>, vector<80x32xf32> -> vector<80x32xf32>
    %315 = arith.addf %310, %314 : vector<80x32xf32>
    %c22 = arith.constant 22 : index
    %c0_340 = arith.constant 0 : index
    %316 = vector.load %arg20[%c22, %c0_340] : memref<102x16xf32, #tpu.memory_space<vmem>>, vector<80x16xf32>
    %c8_341 = arith.constant 8 : index
    %c0_342 = arith.constant 0 : index
    %c0_343 = arith.constant 0 : index
    %317 = vector.load %arg5[%c8_341, %c0_342, %c0_343] : memref<9x16x32xf32, #tpu.memory_space<vmem>>, vector<1x16x32xf32>
    %318 = vector.shape_cast %317 : vector<1x16x32xf32> to vector<16x32xf32>
    %cst_344 = arith.constant dense<0.000000e+00> : vector<80x32xf32>
    %319 = tpu.matmul %316, %318, %cst_344 {dimension_numbers = #tpu.dot_dimension_numbers<[1], [0], [0], [1], [0, 0, 1, 1], [], []>} : vector<80x16xf32>, vector<16x32xf32>, vector<80x32xf32> -> vector<80x32xf32>
    %320 = arith.addf %315, %319 : vector<80x32xf32>
    %321 = vector.broadcast %275 : vector<1x32xf32> to vector<80x32xf32>
    %322 = arith.mulf %320, %321 : vector<80x32xf32>
    %323 = vector.broadcast %276 : vector<1x32xf32> to vector<80x32xf32>
    %324 = arith.addf %322, %323 : vector<80x32xf32>
    %cst_345 = arith.constant 0.000000e+00 : f32
    %325 = vector.broadcast %cst_345 : f32 to vector<80x32xf32>
    %326 = arith.maximumf %324, %325 : vector<80x32xf32>
    %c0_346 = arith.constant 0 : index
    %c0_347 = arith.constant 0 : index
    %327 = vector.load %arg24[%c0_346, %c0_347] : memref<80x32xf32, #tpu.memory_space<vmem>>, vector<80x32xf32>
    tpu.vector_store %arg24[%c0_346, %c0_347], %326 {strides = array<i32>} : memref<80x32xf32, #tpu.memory_space<vmem>>, vector<80x32xf32>,
    %c0_348 = arith.constant 0 : index
    %c0_349 = arith.constant 0 : index
    %328 = tpu.strided_load %arg24[%c0_348, %c0_349] {strides = array<i32: 2, 1>} : memref<80x32xf32, #tpu.memory_space<vmem>>, vector<4x32xf32>
    %c1_350 = arith.constant 1 : index
    %c0_351 = arith.constant 0 : index
    %329 = tpu.strided_load %arg24[%c1_350, %c0_351] {strides = array<i32: 2, 1>} : memref<80x32xf32, #tpu.memory_space<vmem>>, vector<4x32xf32>
    %330 = arith.maximumf %328, %329 : vector<4x32xf32>
    %c10_352 = arith.constant 10 : index
    %c0_353 = arith.constant 0 : index
    %331 = tpu.strided_load %arg24[%c10_352, %c0_353] {strides = array<i32: 2, 1>} : memref<80x32xf32, #tpu.memory_space<vmem>>, vector<4x32xf32>
    %c11_354 = arith.constant 11 : index
    %c0_355 = arith.constant 0 : index
    %332 = tpu.strided_load %arg24[%c11_354, %c0_355] {strides = array<i32: 2, 1>} : memref<80x32xf32, #tpu.memory_space<vmem>>, vector<4x32xf32>
    %333 = arith.maximumf %331, %332 : vector<4x32xf32>
    %334 = arith.maximumf %330, %333 : vector<4x32xf32>
    %c7_356 = arith.constant 7 : index
    %c0_357 = arith.constant 0 : index
    %335 = vector.load %arg21[%c7_356, %c0_357] : memref<38x32xf32, #tpu.memory_space<vmem>>, vector<4x32xf32>
    tpu.vector_store %arg21[%c7_356, %c0_357], %334 {strides = array<i32>} : memref<38x32xf32, #tpu.memory_space<vmem>>, vector<4x32xf32>,
    %c20_358 = arith.constant 20 : index
    %c0_359 = arith.constant 0 : index
    %336 = tpu.strided_load %arg24[%c20_358, %c0_359] {strides = array<i32: 2, 1>} : memref<80x32xf32, #tpu.memory_space<vmem>>, vector<4x32xf32>
    %c21_360 = arith.constant 21 : index
    %c0_361 = arith.constant 0 : index
    %337 = tpu.strided_load %arg24[%c21_360, %c0_361] {strides = array<i32: 2, 1>} : memref<80x32xf32, #tpu.memory_space<vmem>>, vector<4x32xf32>
    %338 = arith.maximumf %336, %337 : vector<4x32xf32>
    %c30 = arith.constant 30 : index
    %c0_362 = arith.constant 0 : index
    %339 = tpu.strided_load %arg24[%c30, %c0_362] {strides = array<i32: 2, 1>} : memref<80x32xf32, #tpu.memory_space<vmem>>, vector<4x32xf32>
    %c31_363 = arith.constant 31 : index
    %c0_364 = arith.constant 0 : index
    %340 = tpu.strided_load %arg24[%c31_363, %c0_364] {strides = array<i32: 2, 1>} : memref<80x32xf32, #tpu.memory_space<vmem>>, vector<4x32xf32>
    %341 = arith.maximumf %339, %340 : vector<4x32xf32>
    %342 = arith.maximumf %338, %341 : vector<4x32xf32>
    %c13_365 = arith.constant 13 : index
    %c0_366 = arith.constant 0 : index
    %343 = vector.load %arg21[%c13_365, %c0_366] : memref<38x32xf32, #tpu.memory_space<vmem>>, vector<4x32xf32>
    tpu.vector_store %arg21[%c13_365, %c0_366], %342 {strides = array<i32>} : memref<38x32xf32, #tpu.memory_space<vmem>>, vector<4x32xf32>,
    %c40 = arith.constant 40 : index
    %c0_367 = arith.constant 0 : index
    %344 = tpu.strided_load %arg24[%c40, %c0_367] {strides = array<i32: 2, 1>} : memref<80x32xf32, #tpu.memory_space<vmem>>, vector<4x32xf32>
    %c41_368 = arith.constant 41 : index
    %c0_369 = arith.constant 0 : index
    %345 = tpu.strided_load %arg24[%c41_368, %c0_369] {strides = array<i32: 2, 1>} : memref<80x32xf32, #tpu.memory_space<vmem>>, vector<4x32xf32>
    %346 = arith.maximumf %344, %345 : vector<4x32xf32>
    %c50 = arith.constant 50 : index
    %c0_370 = arith.constant 0 : index
    %347 = tpu.strided_load %arg24[%c50, %c0_370] {strides = array<i32: 2, 1>} : memref<80x32xf32, #tpu.memory_space<vmem>>, vector<4x32xf32>
    %c51_371 = arith.constant 51 : index
    %c0_372 = arith.constant 0 : index
    %348 = tpu.strided_load %arg24[%c51_371, %c0_372] {strides = array<i32: 2, 1>} : memref<80x32xf32, #tpu.memory_space<vmem>>, vector<4x32xf32>
    %349 = arith.maximumf %347, %348 : vector<4x32xf32>
    %350 = arith.maximumf %346, %349 : vector<4x32xf32>
    %c19_373 = arith.constant 19 : index
    %c0_374 = arith.constant 0 : index
    %351 = vector.load %arg21[%c19_373, %c0_374] : memref<38x32xf32, #tpu.memory_space<vmem>>, vector<4x32xf32>
    tpu.vector_store %arg21[%c19_373, %c0_374], %350 {strides = array<i32>} : memref<38x32xf32, #tpu.memory_space<vmem>>, vector<4x32xf32>,
    %c60 = arith.constant 60 : index
    %c0_375 = arith.constant 0 : index
    %352 = tpu.strided_load %arg24[%c60, %c0_375] {strides = array<i32: 2, 1>} : memref<80x32xf32, #tpu.memory_space<vmem>>, vector<4x32xf32>
    %c61_376 = arith.constant 61 : index
    %c0_377 = arith.constant 0 : index
    %353 = tpu.strided_load %arg24[%c61_376, %c0_377] {strides = array<i32: 2, 1>} : memref<80x32xf32, #tpu.memory_space<vmem>>, vector<4x32xf32>
    %354 = arith.maximumf %352, %353 : vector<4x32xf32>
    %c70 = arith.constant 70 : index
    %c0_378 = arith.constant 0 : index
    %355 = tpu.strided_load %arg24[%c70, %c0_378] {strides = array<i32: 2, 1>} : memref<80x32xf32, #tpu.memory_space<vmem>>, vector<4x32xf32>
    %c71_379 = arith.constant 71 : index
    %c0_380 = arith.constant 0 : index
    %356 = tpu.strided_load %arg24[%c71_379, %c0_380] {strides = array<i32: 2, 1>} : memref<80x32xf32, #tpu.memory_space<vmem>>, vector<4x32xf32>
    %357 = arith.maximumf %355, %356 : vector<4x32xf32>
    %358 = arith.maximumf %354, %357 : vector<4x32xf32>
    %c25 = arith.constant 25 : index
    %c0_381 = arith.constant 0 : index
    %359 = vector.load %arg21[%c25, %c0_381] : memref<38x32xf32, #tpu.memory_space<vmem>>, vector<4x32xf32>
    tpu.vector_store %arg21[%c25, %c0_381], %358 {strides = array<i32>} : memref<38x32xf32, #tpu.memory_space<vmem>>, vector<4x32xf32>,
    %c0_382 = arith.constant 0 : index
    %c0_383 = arith.constant 0 : index
    %360 = vector.load %arg9[%c0_382, %c0_383] : memref<1x64xf32, #tpu.memory_space<vmem>>, vector<1x64xf32>
    %c0_384 = arith.constant 0 : index
    %c0_385 = arith.constant 0 : index
    %361 = vector.load %arg10[%c0_384, %c0_385] : memref<1x64xf32, #tpu.memory_space<vmem>>, vector<1x64xf32>
    %c0_386 = arith.constant 0 : index
    %c0_387 = arith.constant 0 : index
    %362 = vector.load %arg21[%c0_386, %c0_387] : memref<38x32xf32, #tpu.memory_space<vmem>>, vector<24x32xf32>
    %c0_388 = arith.constant 0 : index
    %c0_389 = arith.constant 0 : index
    %c0_390 = arith.constant 0 : index
    %363 = vector.load %arg8[%c0_388, %c0_389, %c0_390] : memref<9x32x64xf32, #tpu.memory_space<vmem>>, vector<1x32x64xf32>
    %364 = vector.shape_cast %363 : vector<1x32x64xf32> to vector<32x64xf32>
    %cst_391 = arith.constant dense<0.000000e+00> : vector<24x64xf32>
    %365 = tpu.matmul %362, %364, %cst_391 {dimension_numbers = #tpu.dot_dimension_numbers<[1], [0], [0], [1], [0, 0, 1, 1], [], []>} : vector<24x32xf32>, vector<32x64xf32>, vector<24x64xf32> -> vector<24x64xf32>
    %c1_392 = arith.constant 1 : index
    %c0_393 = arith.constant 0 : index
    %366 = vector.load %arg21[%c1_392, %c0_393] : memref<38x32xf32, #tpu.memory_space<vmem>>, vector<24x32xf32>
    %c1_394 = arith.constant 1 : index
    %c0_395 = arith.constant 0 : index
    %c0_396 = arith.constant 0 : index
    %367 = vector.load %arg8[%c1_394, %c0_395, %c0_396] : memref<9x32x64xf32, #tpu.memory_space<vmem>>, vector<1x32x64xf32>
    %368 = vector.shape_cast %367 : vector<1x32x64xf32> to vector<32x64xf32>
    %cst_397 = arith.constant dense<0.000000e+00> : vector<24x64xf32>
    %369 = tpu.matmul %366, %368, %cst_397 {dimension_numbers = #tpu.dot_dimension_numbers<[1], [0], [0], [1], [0, 0, 1, 1], [], []>} : vector<24x32xf32>, vector<32x64xf32>, vector<24x64xf32> -> vector<24x64xf32>
    %370 = arith.addf %365, %369 : vector<24x64xf32>
    %c2_398 = arith.constant 2 : index
    %c0_399 = arith.constant 0 : index
    %371 = vector.load %arg21[%c2_398, %c0_399] : memref<38x32xf32, #tpu.memory_space<vmem>>, vector<24x32xf32>
    %c2_400 = arith.constant 2 : index
    %c0_401 = arith.constant 0 : index
    %c0_402 = arith.constant 0 : index
    %372 = vector.load %arg8[%c2_400, %c0_401, %c0_402] : memref<9x32x64xf32, #tpu.memory_space<vmem>>, vector<1x32x64xf32>
    %373 = vector.shape_cast %372 : vector<1x32x64xf32> to vector<32x64xf32>
    %cst_403 = arith.constant dense<0.000000e+00> : vector<24x64xf32>
    %374 = tpu.matmul %371, %373, %cst_403 {dimension_numbers = #tpu.dot_dimension_numbers<[1], [0], [0], [1], [0, 0, 1, 1], [], []>} : vector<24x32xf32>, vector<32x64xf32>, vector<24x64xf32> -> vector<24x64xf32>
    %375 = arith.addf %370, %374 : vector<24x64xf32>
    %c6_404 = arith.constant 6 : index
    %c0_405 = arith.constant 0 : index
    %376 = vector.load %arg21[%c6_404, %c0_405] : memref<38x32xf32, #tpu.memory_space<vmem>>, vector<24x32xf32>
    %c3_406 = arith.constant 3 : index
    %c0_407 = arith.constant 0 : index
    %c0_408 = arith.constant 0 : index
    %377 = vector.load %arg8[%c3_406, %c0_407, %c0_408] : memref<9x32x64xf32, #tpu.memory_space<vmem>>, vector<1x32x64xf32>
    %378 = vector.shape_cast %377 : vector<1x32x64xf32> to vector<32x64xf32>
    %cst_409 = arith.constant dense<0.000000e+00> : vector<24x64xf32>
    %379 = tpu.matmul %376, %378, %cst_409 {dimension_numbers = #tpu.dot_dimension_numbers<[1], [0], [0], [1], [0, 0, 1, 1], [], []>} : vector<24x32xf32>, vector<32x64xf32>, vector<24x64xf32> -> vector<24x64xf32>
    %380 = arith.addf %375, %379 : vector<24x64xf32>
    %c7_410 = arith.constant 7 : index
    %c0_411 = arith.constant 0 : index
    %381 = vector.load %arg21[%c7_410, %c0_411] : memref<38x32xf32, #tpu.memory_space<vmem>>, vector<24x32xf32>
    %c4_412 = arith.constant 4 : index
    %c0_413 = arith.constant 0 : index
    %c0_414 = arith.constant 0 : index
    %382 = vector.load %arg8[%c4_412, %c0_413, %c0_414] : memref<9x32x64xf32, #tpu.memory_space<vmem>>, vector<1x32x64xf32>
    %383 = vector.shape_cast %382 : vector<1x32x64xf32> to vector<32x64xf32>
    %cst_415 = arith.constant dense<0.000000e+00> : vector<24x64xf32>
    %384 = tpu.matmul %381, %383, %cst_415 {dimension_numbers = #tpu.dot_dimension_numbers<[1], [0], [0], [1], [0, 0, 1, 1], [], []>} : vector<24x32xf32>, vector<32x64xf32>, vector<24x64xf32> -> vector<24x64xf32>
    %385 = arith.addf %380, %384 : vector<24x64xf32>
    %c8_416 = arith.constant 8 : index
    %c0_417 = arith.constant 0 : index
    %386 = vector.load %arg21[%c8_416, %c0_417] : memref<38x32xf32, #tpu.memory_space<vmem>>, vector<24x32xf32>
    %c5_418 = arith.constant 5 : index
    %c0_419 = arith.constant 0 : index
    %c0_420 = arith.constant 0 : index
    %387 = vector.load %arg8[%c5_418, %c0_419, %c0_420] : memref<9x32x64xf32, #tpu.memory_space<vmem>>, vector<1x32x64xf32>
    %388 = vector.shape_cast %387 : vector<1x32x64xf32> to vector<32x64xf32>
    %cst_421 = arith.constant dense<0.000000e+00> : vector<24x64xf32>
    %389 = tpu.matmul %386, %388, %cst_421 {dimension_numbers = #tpu.dot_dimension_numbers<[1], [0], [0], [1], [0, 0, 1, 1], [], []>} : vector<24x32xf32>, vector<32x64xf32>, vector<24x64xf32> -> vector<24x64xf32>
    %390 = arith.addf %385, %389 : vector<24x64xf32>
    %c12_422 = arith.constant 12 : index
    %c0_423 = arith.constant 0 : index
    %391 = vector.load %arg21[%c12_422, %c0_423] : memref<38x32xf32, #tpu.memory_space<vmem>>, vector<24x32xf32>
    %c6_424 = arith.constant 6 : index
    %c0_425 = arith.constant 0 : index
    %c0_426 = arith.constant 0 : index
    %392 = vector.load %arg8[%c6_424, %c0_425, %c0_426] : memref<9x32x64xf32, #tpu.memory_space<vmem>>, vector<1x32x64xf32>
    %393 = vector.shape_cast %392 : vector<1x32x64xf32> to vector<32x64xf32>
    %cst_427 = arith.constant dense<0.000000e+00> : vector<24x64xf32>
    %394 = tpu.matmul %391, %393, %cst_427 {dimension_numbers = #tpu.dot_dimension_numbers<[1], [0], [0], [1], [0, 0, 1, 1], [], []>} : vector<24x32xf32>, vector<32x64xf32>, vector<24x64xf32> -> vector<24x64xf32>
    %395 = arith.addf %390, %394 : vector<24x64xf32>
    %c13_428 = arith.constant 13 : index
    %c0_429 = arith.constant 0 : index
    %396 = vector.load %arg21[%c13_428, %c0_429] : memref<38x32xf32, #tpu.memory_space<vmem>>, vector<24x32xf32>
    %c7_430 = arith.constant 7 : index
    %c0_431 = arith.constant 0 : index
    %c0_432 = arith.constant 0 : index
    %397 = vector.load %arg8[%c7_430, %c0_431, %c0_432] : memref<9x32x64xf32, #tpu.memory_space<vmem>>, vector<1x32x64xf32>
    %398 = vector.shape_cast %397 : vector<1x32x64xf32> to vector<32x64xf32>
    %cst_433 = arith.constant dense<0.000000e+00> : vector<24x64xf32>
    %399 = tpu.matmul %396, %398, %cst_433 {dimension_numbers = #tpu.dot_dimension_numbers<[1], [0], [0], [1], [0, 0, 1, 1], [], []>} : vector<24x32xf32>, vector<32x64xf32>, vector<24x64xf32> -> vector<24x64xf32>
    %400 = arith.addf %395, %399 : vector<24x64xf32>
    %c14_434 = arith.constant 14 : index
    %c0_435 = arith.constant 0 : index
    %401 = vector.load %arg21[%c14_434, %c0_435] : memref<38x32xf32, #tpu.memory_space<vmem>>, vector<24x32xf32>
    %c8_436 = arith.constant 8 : index
    %c0_437 = arith.constant 0 : index
    %c0_438 = arith.constant 0 : index
    %402 = vector.load %arg8[%c8_436, %c0_437, %c0_438] : memref<9x32x64xf32, #tpu.memory_space<vmem>>, vector<1x32x64xf32>
    %403 = vector.shape_cast %402 : vector<1x32x64xf32> to vector<32x64xf32>
    %cst_439 = arith.constant dense<0.000000e+00> : vector<24x64xf32>
    %404 = tpu.matmul %401, %403, %cst_439 {dimension_numbers = #tpu.dot_dimension_numbers<[1], [0], [0], [1], [0, 0, 1, 1], [], []>} : vector<24x32xf32>, vector<32x64xf32>, vector<24x64xf32> -> vector<24x64xf32>
    %405 = arith.addf %400, %404 : vector<24x64xf32>
    %406 = vector.broadcast %360 : vector<1x64xf32> to vector<24x64xf32>
    %407 = arith.mulf %405, %406 : vector<24x64xf32>
    %408 = vector.broadcast %361 : vector<1x64xf32> to vector<24x64xf32>
    %409 = arith.addf %407, %408 : vector<24x64xf32>
    %cst_440 = arith.constant 0.000000e+00 : f32
    %410 = vector.broadcast %cst_440 : f32 to vector<24x64xf32>
    %411 = arith.maximumf %409, %410 : vector<24x64xf32>
    %c0_441 = arith.constant 0 : index
    %c0_442 = arith.constant 0 : index
    %412 = vector.load %arg25[%c0_441, %c0_442] : memref<24x64xf32, #tpu.memory_space<vmem>>, vector<24x64xf32>
    tpu.vector_store %arg25[%c0_441, %c0_442], %411 {strides = array<i32>} : memref<24x64xf32, #tpu.memory_space<vmem>>, vector<24x64xf32>,
    %c0_443 = arith.constant 0 : index
    %c0_444 = arith.constant 0 : index
    %413 = tpu.strided_load %arg25[%c0_443, %c0_444] {strides = array<i32: 2, 1>} : memref<24x64xf32, #tpu.memory_space<vmem>>, vector<2x64xf32>
    %c1_445 = arith.constant 1 : index
    %c0_446 = arith.constant 0 : index
    %414 = tpu.strided_load %arg25[%c1_445, %c0_446] {strides = array<i32: 2, 1>} : memref<24x64xf32, #tpu.memory_space<vmem>>, vector<2x64xf32>
    %415 = arith.maximumf %413, %414 : vector<2x64xf32>
    %c6_447 = arith.constant 6 : index
    %c0_448 = arith.constant 0 : index
    %416 = tpu.strided_load %arg25[%c6_447, %c0_448] {strides = array<i32: 2, 1>} : memref<24x64xf32, #tpu.memory_space<vmem>>, vector<2x64xf32>
    %c7_449 = arith.constant 7 : index
    %c0_450 = arith.constant 0 : index
    %417 = tpu.strided_load %arg25[%c7_449, %c0_450] {strides = array<i32: 2, 1>} : memref<24x64xf32, #tpu.memory_space<vmem>>, vector<2x64xf32>
    %418 = arith.maximumf %416, %417 : vector<2x64xf32>
    %419 = arith.maximumf %415, %418 : vector<2x64xf32>
    %c5_451 = arith.constant 5 : index
    %c0_452 = arith.constant 0 : index
    %420 = vector.load %arg22[%c5_451, %c0_452] : memref<18x64xf32, #tpu.memory_space<vmem>>, vector<2x64xf32>
    tpu.vector_store %arg22[%c5_451, %c0_452], %419 {strides = array<i32>} : memref<18x64xf32, #tpu.memory_space<vmem>>, vector<2x64xf32>,
    %c12_453 = arith.constant 12 : index
    %c0_454 = arith.constant 0 : index
    %421 = tpu.strided_load %arg25[%c12_453, %c0_454] {strides = array<i32: 2, 1>} : memref<24x64xf32, #tpu.memory_space<vmem>>, vector<2x64xf32>
    %c13_455 = arith.constant 13 : index
    %c0_456 = arith.constant 0 : index
    %422 = tpu.strided_load %arg25[%c13_455, %c0_456] {strides = array<i32: 2, 1>} : memref<24x64xf32, #tpu.memory_space<vmem>>, vector<2x64xf32>
    %423 = arith.maximumf %421, %422 : vector<2x64xf32>
    %c18_457 = arith.constant 18 : index
    %c0_458 = arith.constant 0 : index
    %424 = tpu.strided_load %arg25[%c18_457, %c0_458] {strides = array<i32: 2, 1>} : memref<24x64xf32, #tpu.memory_space<vmem>>, vector<2x64xf32>
    %c19_459 = arith.constant 19 : index
    %c0_460 = arith.constant 0 : index
    %425 = tpu.strided_load %arg25[%c19_459, %c0_460] {strides = array<i32: 2, 1>} : memref<24x64xf32, #tpu.memory_space<vmem>>, vector<2x64xf32>
    %426 = arith.maximumf %424, %425 : vector<2x64xf32>
    %427 = arith.maximumf %423, %426 : vector<2x64xf32>
    %c9_461 = arith.constant 9 : index
    %c0_462 = arith.constant 0 : index
    %428 = vector.load %arg22[%c9_461, %c0_462] : memref<18x64xf32, #tpu.memory_space<vmem>>, vector<2x64xf32>
    tpu.vector_store %arg22[%c9_461, %c0_462], %427 {strides = array<i32>} : memref<18x64xf32, #tpu.memory_space<vmem>>, vector<2x64xf32>,
    %c0_463 = arith.constant 0 : index
    %c0_464 = arith.constant 0 : index
    %429 = vector.load %arg12[%c0_463, %c0_464] : memref<1x128xf32, #tpu.memory_space<vmem>>, vector<1x128xf32>
    %c0_465 = arith.constant 0 : index
    %c0_466 = arith.constant 0 : index
    %430 = vector.load %arg13[%c0_465, %c0_466] : memref<1x128xf32, #tpu.memory_space<vmem>>, vector<1x128xf32>
    %c0_467 = arith.constant 0 : index
    %c0_468 = arith.constant 0 : index
    %431 = vector.load %arg22[%c0_467, %c0_468] : memref<18x64xf32, #tpu.memory_space<vmem>>, vector<8x64xf32>
    %c0_469 = arith.constant 0 : index
    %c0_470 = arith.constant 0 : index
    %c0_471 = arith.constant 0 : index
    %432 = vector.load %arg11[%c0_469, %c0_470, %c0_471] : memref<9x64x128xf32, #tpu.memory_space<vmem>>, vector<1x64x128xf32>
    %433 = vector.shape_cast %432 : vector<1x64x128xf32> to vector<64x128xf32>
    %cst_472 = arith.constant dense<0.000000e+00> : vector<8x128xf32>
    %434 = tpu.matmul %431, %433, %cst_472 {dimension_numbers = #tpu.dot_dimension_numbers<[1], [0], [0], [1], [0, 0, 1, 1], [], []>} : vector<8x64xf32>, vector<64x128xf32>, vector<8x128xf32> -> vector<8x128xf32>
    %c1_473 = arith.constant 1 : index
    %c0_474 = arith.constant 0 : index
    %435 = vector.load %arg22[%c1_473, %c0_474] : memref<18x64xf32, #tpu.memory_space<vmem>>, vector<8x64xf32>
    %c1_475 = arith.constant 1 : index
    %c0_476 = arith.constant 0 : index
    %c0_477 = arith.constant 0 : index
    %436 = vector.load %arg11[%c1_475, %c0_476, %c0_477] : memref<9x64x128xf32, #tpu.memory_space<vmem>>, vector<1x64x128xf32>
    %437 = vector.shape_cast %436 : vector<1x64x128xf32> to vector<64x128xf32>
    %cst_478 = arith.constant dense<0.000000e+00> : vector<8x128xf32>
    %438 = tpu.matmul %435, %437, %cst_478 {dimension_numbers = #tpu.dot_dimension_numbers<[1], [0], [0], [1], [0, 0, 1, 1], [], []>} : vector<8x64xf32>, vector<64x128xf32>, vector<8x128xf32> -> vector<8x128xf32>
    %439 = arith.addf %434, %438 : vector<8x128xf32>
    %c2_479 = arith.constant 2 : index
    %c0_480 = arith.constant 0 : index
    %440 = vector.load %arg22[%c2_479, %c0_480] : memref<18x64xf32, #tpu.memory_space<vmem>>, vector<8x64xf32>
    %c2_481 = arith.constant 2 : index
    %c0_482 = arith.constant 0 : index
    %c0_483 = arith.constant 0 : index
    %441 = vector.load %arg11[%c2_481, %c0_482, %c0_483] : memref<9x64x128xf32, #tpu.memory_space<vmem>>, vector<1x64x128xf32>
    %442 = vector.shape_cast %441 : vector<1x64x128xf32> to vector<64x128xf32>
    %cst_484 = arith.constant dense<0.000000e+00> : vector<8x128xf32>
    %443 = tpu.matmul %440, %442, %cst_484 {dimension_numbers = #tpu.dot_dimension_numbers<[1], [0], [0], [1], [0, 0, 1, 1], [], []>} : vector<8x64xf32>, vector<64x128xf32>, vector<8x128xf32> -> vector<8x128xf32>
    %444 = arith.addf %439, %443 : vector<8x128xf32>
    %c4_485 = arith.constant 4 : index
    %c0_486 = arith.constant 0 : index
    %445 = vector.load %arg22[%c4_485, %c0_486] : memref<18x64xf32, #tpu.memory_space<vmem>>, vector<8x64xf32>
    %c3_487 = arith.constant 3 : index
    %c0_488 = arith.constant 0 : index
    %c0_489 = arith.constant 0 : index
    %446 = vector.load %arg11[%c3_487, %c0_488, %c0_489] : memref<9x64x128xf32, #tpu.memory_space<vmem>>, vector<1x64x128xf32>
    %447 = vector.shape_cast %446 : vector<1x64x128xf32> to vector<64x128xf32>
    %cst_490 = arith.constant dense<0.000000e+00> : vector<8x128xf32>
    %448 = tpu.matmul %445, %447, %cst_490 {dimension_numbers = #tpu.dot_dimension_numbers<[1], [0], [0], [1], [0, 0, 1, 1], [], []>} : vector<8x64xf32>, vector<64x128xf32>, vector<8x128xf32> -> vector<8x128xf32>
    %449 = arith.addf %444, %448 : vector<8x128xf32>
    %c5_491 = arith.constant 5 : index
    %c0_492 = arith.constant 0 : index
    %450 = vector.load %arg22[%c5_491, %c0_492] : memref<18x64xf32, #tpu.memory_space<vmem>>, vector<8x64xf32>
    %c4_493 = arith.constant 4 : index
    %c0_494 = arith.constant 0 : index
    %c0_495 = arith.constant 0 : index
    %451 = vector.load %arg11[%c4_493, %c0_494, %c0_495] : memref<9x64x128xf32, #tpu.memory_space<vmem>>, vector<1x64x128xf32>
    %452 = vector.shape_cast %451 : vector<1x64x128xf32> to vector<64x128xf32>
    %cst_496 = arith.constant dense<0.000000e+00> : vector<8x128xf32>
    %453 = tpu.matmul %450, %452, %cst_496 {dimension_numbers = #tpu.dot_dimension_numbers<[1], [0], [0], [1], [0, 0, 1, 1], [], []>} : vector<8x64xf32>, vector<64x128xf32>, vector<8x128xf32> -> vector<8x128xf32>
    %454 = arith.addf %449, %453 : vector<8x128xf32>
    %c6_497 = arith.constant 6 : index
    %c0_498 = arith.constant 0 : index
    %455 = vector.load %arg22[%c6_497, %c0_498] : memref<18x64xf32, #tpu.memory_space<vmem>>, vector<8x64xf32>
    %c5_499 = arith.constant 5 : index
    %c0_500 = arith.constant 0 : index
    %c0_501 = arith.constant 0 : index
    %456 = vector.load %arg11[%c5_499, %c0_500, %c0_501] : memref<9x64x128xf32, #tpu.memory_space<vmem>>, vector<1x64x128xf32>
    %457 = vector.shape_cast %456 : vector<1x64x128xf32> to vector<64x128xf32>
    %cst_502 = arith.constant dense<0.000000e+00> : vector<8x128xf32>
    %458 = tpu.matmul %455, %457, %cst_502 {dimension_numbers = #tpu.dot_dimension_numbers<[1], [0], [0], [1], [0, 0, 1, 1], [], []>} : vector<8x64xf32>, vector<64x128xf32>, vector<8x128xf32> -> vector<8x128xf32>
    %459 = arith.addf %454, %458 : vector<8x128xf32>
    %c8_503 = arith.constant 8 : index
    %c0_504 = arith.constant 0 : index
    %460 = vector.load %arg22[%c8_503, %c0_504] : memref<18x64xf32, #tpu.memory_space<vmem>>, vector<8x64xf32>
    %c6_505 = arith.constant 6 : index
    %c0_506 = arith.constant 0 : index
    %c0_507 = arith.constant 0 : index
    %461 = vector.load %arg11[%c6_505, %c0_506, %c0_507] : memref<9x64x128xf32, #tpu.memory_space<vmem>>, vector<1x64x128xf32>
    %462 = vector.shape_cast %461 : vector<1x64x128xf32> to vector<64x128xf32>
    %cst_508 = arith.constant dense<0.000000e+00> : vector<8x128xf32>
    %463 = tpu.matmul %460, %462, %cst_508 {dimension_numbers = #tpu.dot_dimension_numbers<[1], [0], [0], [1], [0, 0, 1, 1], [], []>} : vector<8x64xf32>, vector<64x128xf32>, vector<8x128xf32> -> vector<8x128xf32>
    %464 = arith.addf %459, %463 : vector<8x128xf32>
    %c9_509 = arith.constant 9 : index
    %c0_510 = arith.constant 0 : index
    %465 = vector.load %arg22[%c9_509, %c0_510] : memref<18x64xf32, #tpu.memory_space<vmem>>, vector<8x64xf32>
    %c7_511 = arith.constant 7 : index
    %c0_512 = arith.constant 0 : index
    %c0_513 = arith.constant 0 : index
    %466 = vector.load %arg11[%c7_511, %c0_512, %c0_513] : memref<9x64x128xf32, #tpu.memory_space<vmem>>, vector<1x64x128xf32>
    %467 = vector.shape_cast %466 : vector<1x64x128xf32> to vector<64x128xf32>
    %cst_514 = arith.constant dense<0.000000e+00> : vector<8x128xf32>
    %468 = tpu.matmul %465, %467, %cst_514 {dimension_numbers = #tpu.dot_dimension_numbers<[1], [0], [0], [1], [0, 0, 1, 1], [], []>} : vector<8x64xf32>, vector<64x128xf32>, vector<8x128xf32> -> vector<8x128xf32>
    %469 = arith.addf %464, %468 : vector<8x128xf32>
    %c10_515 = arith.constant 10 : index
    %c0_516 = arith.constant 0 : index
    %470 = vector.load %arg22[%c10_515, %c0_516] : memref<18x64xf32, #tpu.memory_space<vmem>>, vector<8x64xf32>
    %c8_517 = arith.constant 8 : index
    %c0_518 = arith.constant 0 : index
    %c0_519 = arith.constant 0 : index
    %471 = vector.load %arg11[%c8_517, %c0_518, %c0_519] : memref<9x64x128xf32, #tpu.memory_space<vmem>>, vector<1x64x128xf32>
    %472 = vector.shape_cast %471 : vector<1x64x128xf32> to vector<64x128xf32>
    %cst_520 = arith.constant dense<0.000000e+00> : vector<8x128xf32>
    %473 = tpu.matmul %470, %472, %cst_520 {dimension_numbers = #tpu.dot_dimension_numbers<[1], [0], [0], [1], [0, 0, 1, 1], [], []>} : vector<8x64xf32>, vector<64x128xf32>, vector<8x128xf32> -> vector<8x128xf32>
    %474 = arith.addf %469, %473 : vector<8x128xf32>
    %475 = vector.broadcast %429 : vector<1x128xf32> to vector<8x128xf32>
    %476 = arith.mulf %474, %475 : vector<8x128xf32>
    %477 = vector.broadcast %430 : vector<1x128xf32> to vector<8x128xf32>
    %478 = arith.addf %476, %477 : vector<8x128xf32>
    %cst_521 = arith.constant 0.000000e+00 : f32
    %479 = vector.broadcast %cst_521 : f32 to vector<8x128xf32>
    %480 = arith.maximumf %478, %479 : vector<8x128xf32>
    %c0_522 = arith.constant 0 : index
    %c0_523 = arith.constant 0 : index
    %481 = vector.load %arg26[%c0_522, %c0_523] : memref<8x128xf32, #tpu.memory_space<vmem>>, vector<8x128xf32>
    tpu.vector_store %arg26[%c0_522, %c0_523], %480 {strides = array<i32>} : memref<8x128xf32, #tpu.memory_space<vmem>>, vector<8x128xf32>,
    %cst_524 = arith.constant 0.000000e+00 : f32
    %482 = vector.broadcast %cst_524 : f32 to vector<1x128xf32>
    %c0_525 = arith.constant 0 : index
    %c0_526 = arith.constant 0 : index
    %483 = vector.load %arg26[%c0_525, %c0_526] : memref<8x128xf32, #tpu.memory_space<vmem>>, vector<2x128xf32>
    %cst_527 = arith.constant dense<0.000000e+00> : vector<128xf32>
    %484 = vector.multi_reduction <add>, %483, %cst_527 [0] : vector<2x128xf32> to vector<128xf32>
    %485 = vector.shape_cast %484 : vector<128xf32> to vector<1x128xf32>
    %486 = arith.addf %482, %485 : vector<1x128xf32>
    %c4_528 = arith.constant 4 : index
    %c0_529 = arith.constant 0 : index
    %487 = vector.load %arg26[%c4_528, %c0_529] : memref<8x128xf32, #tpu.memory_space<vmem>>, vector<2x128xf32>
    %cst_530 = arith.constant dense<0.000000e+00> : vector<128xf32>
    %488 = vector.multi_reduction <add>, %487, %cst_530 [0] : vector<2x128xf32> to vector<128xf32>
    %489 = vector.shape_cast %488 : vector<128xf32> to vector<1x128xf32>
    %490 = arith.addf %486, %489 : vector<1x128xf32>
    %cst_531 = arith.constant 2.500000e-01 : f32
    %491 = vector.broadcast %cst_531 : f32 to vector<1x128xf32>
    %492 = arith.mulf %490, %491 : vector<1x128xf32>
    %c0_532 = arith.constant 0 : index
    %c0_533 = arith.constant 0 : index
    %493 = vector.load %arg14[%c0_532, %c0_533] : memref<128x64xf32, #tpu.memory_space<vmem>>, vector<128x64xf32>
    %cst_534 = arith.constant dense<0.000000e+00> : vector<1x64xf32>
    %494 = tpu.matmul %492, %493, %cst_534 {dimension_numbers = #tpu.dot_dimension_numbers<[1], [0], [0], [1], [0, 0, 1, 1], [], []>} : vector<1x128xf32>, vector<128x64xf32>, vector<1x64xf32> -> vector<1x64xf32>
    %c0_535 = arith.constant 0 : index
    %c0_536 = arith.constant 0 : index
    %495 = vector.load %arg15[%c0_535, %c0_536] : memref<1x64xf32, #tpu.memory_space<vmem>>, vector<1x64xf32>
    %496 = arith.addf %494, %495 : vector<1x64xf32>
    %cst_537 = arith.constant 0.000000e+00 : f32
    %497 = vector.broadcast %cst_537 : f32 to vector<1x64xf32>
    %498 = arith.maximumf %496, %497 : vector<1x64xf32>
    %c0_538 = arith.constant 0 : index
    %c0_539 = arith.constant 0 : index
    %499 = vector.load %arg16[%c0_538, %c0_539] : memref<64x40xf32, #tpu.memory_space<vmem>>, vector<64x40xf32>
    %cst_540 = arith.constant dense<0.000000e+00> : vector<1x40xf32>
    %500 = tpu.matmul %498, %499, %cst_540 {dimension_numbers = #tpu.dot_dimension_numbers<[1], [0], [0], [1], [0, 0, 1, 1], [], []>} : vector<1x64xf32>, vector<64x40xf32>, vector<1x40xf32> -> vector<1x40xf32>
    %c0_541 = arith.constant 0 : index
    %c0_542 = arith.constant 0 : index
    %501 = vector.load %arg17[%c0_541, %c0_542] : memref<1x40xf32, #tpu.memory_space<vmem>>, vector<1x40xf32>
    %502 = arith.addf %500, %501 : vector<1x40xf32>
    %c0_543 = arith.constant 0 : index
    %c0_544 = arith.constant 0 : index
    %c0_545 = arith.constant 0 : index
    %503 = vector.load %arg18[%c0_543, %c0_544, %c0_545] : memref<1x1x40xf32, #tpu.memory_space<vmem>>, vector<1x1x40xf32>
    %504 = vector.shape_cast %503 : vector<1x1x40xf32> to vector<1x40xf32>
    %505 = vector.shape_cast %502 : vector<1x40xf32> to vector<1x1x40xf32>
    tpu.vector_store %arg18[%c0_543, %c0_544, %c0_545], %505 {strides = array<i32>} : memref<1x1x40xf32, #tpu.memory_space<vmem>>, vector<1x1x40xf32>,
    return
  }
  func.func @transform_0(%arg0: i32) -> (i32, i32, i32, i32) {
    %c0_i32 = arith.constant 0 : i32
    %c0_i32_0 = arith.constant 0 : i32
    %c0_i32_1 = arith.constant 0 : i32
    %c0_i32_2 = arith.constant 0 : i32
    return %arg0, %c0_i32, %c0_i32_0, %c0_i32_1 : i32, i32, i32, i32
  }
  func.func @transform_1(%arg0: i32) -> (i32, i32, i32) {
    %c0_i32 = arith.constant 0 : i32
    %c0_i32_0 = arith.constant 0 : i32
    %c0_i32_1 = arith.constant 0 : i32
    %c0_i32_2 = arith.constant 0 : i32
    return %c0_i32, %c0_i32_0, %c0_i32_1 : i32, i32, i32
  }
  func.func @transform_2(%arg0: i32) -> (i32, i32) {
    %c0_i32 = arith.constant 0 : i32
    %c0_i32_0 = arith.constant 0 : i32
    %c0_i32_1 = arith.constant 0 : i32
    return %c0_i32, %c0_i32_0 : i32, i32
  }
  func.func @transform_3(%arg0: i32) -> (i32, i32) {
    %c0_i32 = arith.constant 0 : i32
    %c0_i32_0 = arith.constant 0 : i32
    %c0_i32_1 = arith.constant 0 : i32
    return %c0_i32, %c0_i32_0 : i32, i32
  }
  func.func @transform_4(%arg0: i32) -> (i32, i32, i32) {
    %c0_i32 = arith.constant 0 : i32
    %c0_i32_0 = arith.constant 0 : i32
    %c0_i32_1 = arith.constant 0 : i32
    %c0_i32_2 = arith.constant 0 : i32
    return %c0_i32, %c0_i32_0, %c0_i32_1 : i32, i32, i32
  }
  func.func @transform_5(%arg0: i32) -> (i32, i32) {
    %c0_i32 = arith.constant 0 : i32
    %c0_i32_0 = arith.constant 0 : i32
    %c0_i32_1 = arith.constant 0 : i32
    return %c0_i32, %c0_i32_0 : i32, i32
  }
  func.func @transform_6(%arg0: i32) -> (i32, i32) {
    %c0_i32 = arith.constant 0 : i32
    %c0_i32_0 = arith.constant 0 : i32
    %c0_i32_1 = arith.constant 0 : i32
    return %c0_i32, %c0_i32_0 : i32, i32
  }
  func.func @transform_7(%arg0: i32) -> (i32, i32, i32) {
    %c0_i32 = arith.constant 0 : i32
    %c0_i32_0 = arith.constant 0 : i32
    %c0_i32_1 = arith.constant 0 : i32
    %c0_i32_2 = arith.constant 0 : i32
    return %c0_i32, %c0_i32_0, %c0_i32_1 : i32, i32, i32
  }
  func.func @transform_8(%arg0: i32) -> (i32, i32) {
    %c0_i32 = arith.constant 0 : i32
    %c0_i32_0 = arith.constant 0 : i32
    %c0_i32_1 = arith.constant 0 : i32
    return %c0_i32, %c0_i32_0 : i32, i32
  }
  func.func @transform_9(%arg0: i32) -> (i32, i32) {
    %c0_i32 = arith.constant 0 : i32
    %c0_i32_0 = arith.constant 0 : i32
    %c0_i32_1 = arith.constant 0 : i32
    return %c0_i32, %c0_i32_0 : i32, i32
  }
  func.func @transform_10(%arg0: i32) -> (i32, i32, i32) {
    %c0_i32 = arith.constant 0 : i32
    %c0_i32_0 = arith.constant 0 : i32
    %c0_i32_1 = arith.constant 0 : i32
    %c0_i32_2 = arith.constant 0 : i32
    return %c0_i32, %c0_i32_0, %c0_i32_1 : i32, i32, i32
  }
  func.func @transform_11(%arg0: i32) -> (i32, i32) {
    %c0_i32 = arith.constant 0 : i32
    %c0_i32_0 = arith.constant 0 : i32
    %c0_i32_1 = arith.constant 0 : i32
    return %c0_i32, %c0_i32_0 : i32, i32
  }
  func.func @transform_12(%arg0: i32) -> (i32, i32) {
    %c0_i32 = arith.constant 0 : i32
    %c0_i32_0 = arith.constant 0 : i32
    %c0_i32_1 = arith.constant 0 : i32
    return %c0_i32, %c0_i32_0 : i32, i32
  }
  func.func @transform_13(%arg0: i32) -> (i32, i32) {
    %c0_i32 = arith.constant 0 : i32
    %c0_i32_0 = arith.constant 0 : i32
    %c0_i32_1 = arith.constant 0 : i32
    return %c0_i32, %c0_i32_0 : i32, i32
  }
  func.func @transform_14(%arg0: i32) -> (i32, i32) {
    %c0_i32 = arith.constant 0 : i32
    %c0_i32_0 = arith.constant 0 : i32
    %c0_i32_1 = arith.constant 0 : i32
    return %c0_i32, %c0_i32_0 : i32, i32
  }
  func.func @transform_15(%arg0: i32) -> (i32, i32) {
    %c0_i32 = arith.constant 0 : i32
    %c0_i32_0 = arith.constant 0 : i32
    %c0_i32_1 = arith.constant 0 : i32
    return %c0_i32, %c0_i32_0 : i32, i32
  }
  func.func @transform_16(%arg0: i32) -> (i32, i32) {
    %c0_i32 = arith.constant 0 : i32
    %c0_i32_0 = arith.constant 0 : i32
    %c0_i32_1 = arith.constant 0 : i32
    return %c0_i32, %c0_i32_0 : i32, i32
  }
  func.func @transform_17(%arg0: i32) -> (i32, i32, i32) {
    %c0_i32 = arith.constant 0 : i32
    %c0_i32_0 = arith.constant 0 : i32
    %c0_i32_1 = arith.constant 0 : i32
    return %arg0, %c0_i32, %c0_i32_0 : i32, i32, i32
  }
}

</mosaic_0001>

<llo_original>
// kernel: tpu_custom_call.1
$region0: #{tpu_custom_call.1}
  #allocation0 [shape = 'u32[]', space=smem, size = 0x4, offset = 0x4, fixed_abs, tag = 'smem constant byte address 0x4 - core index']
  #allocation1 [shape = 'u32[72,128]{1,0:T(1,128)}', space=vmem, size = 0x9000, scoped, tag = 'internal scratch']
  #allocation2 [shape = 'f32[326,4]{1,0:T(8,128)}', space=vmem, size = 0x29000, scoped, tag = 'scratch operand']
  #allocation3 [shape = 'f32[102,16]{1,0:T(8,128)}', space=vmem, size = 0xd000, scoped, tag = 'scratch operand']
  #allocation4 [shape = 'f32[38,32]{1,0:T(8,128)}', space=vmem, size = 0x5000, scoped, tag = 'scratch operand']
  #allocation5 [shape = 'f32[18,64]{1,0:T(8,128)}', space=vmem, size = 0x3000, scoped, tag = 'scratch operand']
  #allocation6 [shape = 'f32[288,16]{1,0:T(8,128)}', space=vmem, size = 0x24000, scoped, tag = 'scratch operand']
  #allocation7 [shape = 'f32[80,32]{1,0:T(8,128)}', space=vmem, size = 0xa000, scoped, tag = 'scratch operand']
  #allocation8 [shape = 'f32[24,64]{1,0:T(8,128)}', space=vmem, size = 0x3000, scoped, tag = 'scratch operand']
  #allocation9 [shape = 'f32[8,128]{1,0:T(8,128)}', space=vmem, size = 0x1000, scoped, tag = 'scratch operand']
  %s0 = inlined_call_operand.vmem [shape: f32[2,16,16,4], index: 0, kind: input, shape index: {}]
  %s1 = inlined_call_operand.vmem [shape: f32[9,4,16], index: 1, kind: input, shape index: {}]
  %s2 = inlined_call_operand.hbm [shape: f32[1,16], index: 2, kind: input, shape index: {}]
  %s3 = inlined_call_operand.hbm [shape: f32[1,16], index: 3, kind: input, shape index: {}]
  %s4 = inlined_call_operand.vmem [shape: f32[9,16,32], index: 4, kind: input, shape index: {}]
  %s5 = inlined_call_operand.hbm [shape: f32[1,32], index: 5, kind: input, shape index: {}]
  %s6 = inlined_call_operand.hbm [shape: f32[1,32], index: 6, kind: input, shape index: {}]
  %s7 = inlined_call_operand.hbm [shape: f32[9,32,64], index: 7, kind: input, shape index: {}]
  %s8 = inlined_call_operand.hbm [shape: f32[1,64], index: 8, kind: input, shape index: {}]
  %s9 = inlined_call_operand.hbm [shape: f32[1,64], index: 9, kind: input, shape index: {}]
  %s10 = inlined_call_operand.vmem [shape: f32[9,64,128], index: 10, kind: input, shape index: {}]
  %s11 = inlined_call_operand.hbm [shape: f32[1,128], index: 11, kind: input, shape index: {}]
  %s12 = inlined_call_operand.hbm [shape: f32[1,128], index: 12, kind: input, shape index: {}]
  %s13 = inlined_call_operand.vmem [shape: f32[128,64], index: 13, kind: input, shape index: {}]
  %s14 = inlined_call_operand.hbm [shape: f32[1,64], index: 14, kind: input, shape index: {}]
  %s15 = inlined_call_operand.vmem [shape: f32[64,40], index: 15, kind: input, shape index: {}]
  %s16 = inlined_call_operand.hbm [shape: f32[1,40], index: 16, kind: input, shape index: {}]
  %s17 = inlined_call_operand.hbm [shape: f32[2,1,40], index: 17, kind: output, shape index: {}]
  %s18 = sld [smem:[#allocation0]]
  $region145: #{tpu_custom_call.1} parent=0
    _
  %s20 = ssub.s32 1, %s18
  %s21 = scalar_select 0, %s20, %s18
  $region1: #{tpu_custom_call.1} parent=0
    #allocation10 [shape = 'u8[512]{0}', space=vmem, size = 0x400, scoped, tag = 'input window, operand 2, single buffered']
    #allocation11 [shape = 's32[2]{0}', space=sflag, size = 0x8, scoped, tag = 'scoped memory for tpu_custom_call.1']
    #allocation12 [shape = 's32[2]{0}', space=sflag, size = 0x8, scoped, tag = 'scoped memory for tpu_custom_call.1']
    #allocation13 [shape = 'u8[512]{0}', space=vmem, size = 0x400, scoped, tag = 'input window, operand 3, single buffered']
    #allocation14 [shape = 's32[1]{0}', space=sflag, size = 0x4, scoped, tag = 'scoped memory for tpu_custom_call.1']
    #allocation15 [shape = 'u8[512]{0}', space=vmem, size = 0x400, scoped, tag = 'input window, operand 5, single buffered']
    #allocation16 [shape = 'u8[512]{0}', space=vmem, size = 0x400, scoped, tag = 'input window, operand 6, single buffered']
    #allocation17 [shape = 's32[1]{0}', space=sflag, size = 0x4, scoped, tag = 'scoped memory for tpu_custom_call.1']
    #allocation18 [shape = 'u8[147456]{0}', space=vmem, size = 0x24000, scoped, tag = 'input window, operand 7, single buffered']
    #allocation19 [shape = 'u8[512]{0}', space=vmem, size = 0x400, scoped, tag = 'input window, operand 8, single buffered']
    #allocation20 [shape = 's32[1]{0}', space=sflag, size = 0x4, scoped, tag = 'scoped memory for tpu_custom_call.1']
    #allocation21 [shape = 'u8[512]{0}', space=vmem, size = 0x400, scoped, tag = 'input window, operand 9, single buffered']
    #allocation22 [shape = 'u8[512]{0}', space=vmem, size = 0x400, scoped, tag = 'input window, operand 11, single buffered']
    #allocation23 [shape = 's32[1]{0}', space=sflag, size = 0x4, scoped, tag = 'scoped memory for tpu_custom_call.1']
    #allocation24 [shape = 'u8[512]{0}', space=vmem, size = 0x400, scoped, tag = 'input window, operand 12, single buffered']
    #allocation25 [shape = 'u8[512]{0}', space=vmem, size = 0x400, scoped, tag = 'input window, operand 14, single buffered']
    #allocation26 [shape = 's32[1]{0}', space=sflag, size = 0x4, scoped, tag = 'scoped memory for tpu_custom_call.1']
    #allocation27 [shape = 'u8[512]{0}', space=vmem, size = 0x400, scoped, tag = 'input window, operand 16, single buffered']
    #allocation28 [shape = 'u8[1024]{0}', space=vmem, size = 0x400, scoped, tag = 'output window, operand 0']
    %22 = vsyncpa [#allocation11], 0
    %23 = vsyncpa [#allocation14], 0
    %24 = vsyncpa [#allocation17], 0
    %25 = vsyncpa [#allocation20], 0
    %26 = vsyncpa [#allocation23], 0
    %27 = vsyncpa [#allocation26], 0
    %28 = vsyncpa [#allocation12], 0
    %s29 = scalar_lea.sflag [#allocation12], 1
    %30 = vsyncpa %s29, 0
    loop: start=0, step=1, limit=4
    $region2: #{tpu_custom_call.1} parent=1 // loop_pre_header
      _
    $region3: #{tpu_custom_call.1} parent=1 // loop_header
      %s32 = sphi 0, %s36
      %p33 = scmp.ge.s32.totalorder %s32, 4
      %s42 = sphi 0, %s44
      %s45 = sphi 0, %s42
      %s46 = sphi 0, %s45
      %s62 = sphi 0, %s46
      %s66 = sphi 0, %s66
      %s68 = sphi 0, %s66
      %s69 = sphi 0, %s68
      %s83 = sphi 0, %s69
      %s87 = sphi 0, %s87
      %s89 = sphi 0, %s87
      %s90 = sphi 0, %s89
      %s104 = sphi 0, %s90
      %s108 = sphi 0, %s108
      %s110 = sphi 0, %s108
      %s111 = sphi 0, %s110
      %s125 = sphi 0, %s111
      %s129 = sphi 0, %s129
      %s131 = sphi 0, %s129
      %s132 = sphi 0, %s131
      %s146 = sphi 0, %s132
      %s150 = sphi 0, %s150
      %s152 = sphi 0, %s150
      %s153 = sphi 0, %s152
      %s167 = sphi 0, %s153
      %s171 = sphi 0, %s171
      %s173 = sphi 0, %s171
      %s174 = sphi 0, %s173
      %s188 = sphi 0, %s174
      %s192 = sphi 0, %s192
      %s194 = sphi 0, %s192
      %s195 = sphi 0, %s194
      %s209 = sphi 0, %s195
      %s213 = sphi 0, %s213
      %s215 = sphi 0, %s213
      %s216 = sphi 0, %s215
      %s230 = sphi 0, %s216
      %s234 = sphi 0, %s234
      %s236 = sphi 0, %s234
      %s237 = sphi 0, %s236
      %s251 = sphi 0, %s237
      %s255 = sphi 0, %s255
      %s257 = sphi 0, %s255
      %s258 = sphi 0, %s257
      %s272 = sphi 0, %s258
      %s276 = sphi 0, %s276
      %s278 = sphi 0, %s276
      %s279 = sphi 0, %s278
      %s293 = sphi 0, %s279
      %s297 = sphi 0, %s297
      %s299 = sphi 0, %s297
      %s300 = sphi 0, %s299
      %s314 = sphi 0, %s300
      %s318 = sphi 0, %s318
      %s320 = sphi 0, %s318
      %s321 = sphi 0, %s320
      %s335 = sphi 0, %s321
      %s339 = sphi 0, %s339
      %s341 = sphi 0, %s339
      %s342 = sphi 0, %s341
      %s356 = sphi 0, %s342
      %s360 = sphi 0, %s360
      %s362 = sphi 0, %s360
      %s363 = sphi 0, %s362
      %s377 = sphi 0, %s363
      %s381 = sphi 0, %s381
      %s383 = sphi 0, %s381
      %s384 = sphi 0, %s383
      %s398 = sphi 0, %s384
      %s404 = sphi 0, %s406
      %s407 = sphi 0, %s404
      %s408 = sphi 0, %s407
      %s424 = sphi 0, %s408
    $region4: #{tpu_custom_call.1} parent=1 // loop_header_branch
      %35 = sbr.rel (%p33) target = $region8
    $region5: #{tpu_custom_call.1} parent=1 // loop_body
      %s37 = ssub.s32 %s32, 1
      %s38 = ssub.s32 %s32, 2
      %s39 = sadd.s32 %s32, 1
      %s40 = ssub.s32 %s32, %s39
      %p41 = scmp.eq.s32.totalorder %s40, 0
      %s43 = sadd.s32 %s42, 1
      %s44 = scalar_select %p41, %s42, %s43
      %p47 = pneg %p41
      %p48 = scmp.eq.s32.totalorder %s32, 1
      %p49 = por %p47, %p48
      %p50 = scmp.ne.s32.totalorder %s42, %s45
      %p51 = scmp.eq.s32.totalorder %s32, 0
      %p52 = por %p50, %p51
      %p53 = scmp.ne.s32.totalorder %s42, %s45
      %p54 = scmp.eq.s32.totalorder %s37, 1
      %p55 = por %p53, %p54
      %p56 = scmp.ne.s32.totalorder %s45, %s46
      %p57 = scmp.eq.s32.totalorder %s37, 0
      %p58 = por %p56, %p57
      %p59 = scmp.ne.s32.totalorder %s45, %s46
      %p60 = scmp.eq.s32.totalorder %s38, 1
      %p61 = por %p59, %p60
      %p63 = scmp.ne.s32.totalorder %s46, %s62
      %p64 = scmp.eq.s32.totalorder %s38, 0
      %p65 = por %p63, %p64
      %s67 = sadd.s32 %s66, 1
      %p70 = scmp.eq.s32.totalorder %s32, 1
      %p71 = scmp.ne.s32.totalorder %s66, %s68
      %p72 = scmp.eq.s32.totalorder %s32, 0
      %p73 = por %p71, %p72
      %p74 = scmp.ne.s32.totalorder %s66, %s68
      %p75 = scmp.eq.s32.totalorder %s37, 1
      %p76 = por %p74, %p75
      %p77 = scmp.ne.s32.totalorder %s68, %s69
      %p78 = scmp.eq.s32.totalorder %s37, 0
      %p79 = por %p77, %p78
      %p80 = scmp.ne.s32.totalorder %s68, %s69
      %p81 = scmp.eq.s32.totalorder %s38, 1
      %p82 = por %p80, %p81
      %p84 = scmp.ne.s32.totalorder %s69, %s83
      %p85 = scmp.eq.s32.totalorder %s38, 0
      %p86 = por %p84, %p85
      %s88 = sadd.s32 %s87, 1
      %p91 = scmp.eq.s32.totalorder %s32, 1
      %p92 = scmp.ne.s32.totalorder %s87, %s89
      %p93 = scmp.eq.s32.totalorder %s32, 0
      %p94 = por %p92, %p93
      %p95 = scmp.ne.s32.totalorder %s87, %s89
      %p96 = scmp.eq.s32.totalorder %s37, 1
      %p97 = por %p95, %p96
      %p98 = scmp.ne.s32.totalorder %s89, %s90
      %p99 = scmp.eq.s32.totalorder %s37, 0
      %p100 = por %p98, %p99
      %p101 = scmp.ne.s32.totalorder %s89, %s90
      %p102 = scmp.eq.s32.totalorder %s38, 1
      %p103 = por %p101, %p102
      %p105 = scmp.ne.s32.totalorder %s90, %s104
      %p106 = scmp.eq.s32.totalorder %s38, 0
      %p107 = por %p105, %p106
      %s109 = sadd.s32 %s108, 1
      %p112 = scmp.eq.s32.totalorder %s32, 1
      %p113 = scmp.ne.s32.totalorder %s108, %s110
      %p114 = scmp.eq.s32.totalorder %s32, 0
      %p115 = por %p113, %p114
      %p116 = scmp.ne.s32.totalorder %s108, %s110
      %p117 = scmp.eq.s32.totalorder %s37, 1
      %p118 = por %p116, %p117
      %p119 = scmp.ne.s32.totalorder %s110, %s111
      %p120 = scmp.eq.s32.totalorder %s37, 0
      %p121 = por %p119, %p120
      %p122 = scmp.ne.s32.totalorder %s110, %s111
      %p123 = scmp.eq.s32.totalorder %s38, 1
      %p124 = por %p122, %p123
      %p126 = scmp.ne.s32.totalorder %s111, %s125
      %p127 = scmp.eq.s32.totalorder %s38, 0
      %p128 = por %p126, %p127
      %s130 = sadd.s32 %s129, 1
      %p133 = scmp.eq.s32.totalorder %s32, 1
      %p134 = scmp.ne.s32.totalorder %s129, %s131
      %p135 = scmp.eq.s32.totalorder %s32, 0
      %p136 = por %p134, %p135
      %p137 = scmp.ne.s32.totalorder %s129, %s131
      %p138 = scmp.eq.s32.totalorder %s37, 1
      %p139 = por %p137, %p138
      %p140 = scmp.ne.s32.totalorder %s131, %s132
      %p141 = scmp.eq.s32.totalorder %s37, 0
      %p142 = por %p140, %p141
      %p143 = scmp.ne.s32.totalorder %s131, %s132
      %p144 = scmp.eq.s32.totalorder %s38, 1
      %p145 = por %p143, %p144
      %p147 = scmp.ne.s32.totalorder %s132, %s146
      %p148 = scmp.eq.s32.totalorder %s38, 0
      %p149 = por %p147, %p148
      %s151 = sadd.s32 %s150, 1
      %p154 = scmp.eq.s32.totalorder %s32, 1
      %p155 = scmp.ne.s32.totalorder %s150, %s152
      %p156 = scmp.eq.s32.totalorder %s32, 0
      %p157 = por %p155, %p156
      %p158 = scmp.ne.s32.totalorder %s150, %s152
      %p159 = scmp.eq.s32.totalorder %s37, 1
      %p160 = por %p158, %p159
      %p161 = scmp.ne.s32.totalorder %s152, %s153
      %p162 = scmp.eq.s32.totalorder %s37, 0
      %p163 = por %p161, %p162
      %p164 = scmp.ne.s32.totalorder %s152, %s153
      %p165 = scmp.eq.s32.totalorder %s38, 1
      %p166 = por %p164, %p165
      %p168 = scmp.ne.s32.totalorder %s153, %s167
      %p169 = scmp.eq.s32.totalorder %s38, 0
      %p170 = por %p168, %p169
      %s172 = sadd.s32 %s171, 1
      %p175 = scmp.eq.s32.totalorder %s32, 1
      %p176 = scmp.ne.s32.totalorder %s171, %s173
      %p177 = scmp.eq.s32.totalorder %s32, 0
      %p178 = por %p176, %p177
      %p179 = scmp.ne.s32.totalorder %s171, %s173
      %p180 = scmp.eq.s32.totalorder %s37, 1
      %p181 = por %p179, %p180
      %p182 = scmp.ne.s32.totalorder %s173, %s174
      %p183 = scmp.eq.s32.totalorder %s37, 0
      %p184 = por %p182, %p183
      %p185 = scmp.ne.s32.totalorder %s173, %s174
      %p186 = scmp.eq.s32.totalorder %s38, 1
      %p187 = por %p185, %p186
      %p189 = scmp.ne.s32.totalorder %s174, %s188
      %p190 = scmp.eq.s32.totalorder %s38, 0
      %p191 = por %p189, %p190
      %s193 = sadd.s32 %s192, 1
      %p196 = scmp.eq.s32.totalorder %s32, 1
      %p197 = scmp.ne.s32.totalorder %s192, %s194
      %p198 = scmp.eq.s32.totalorder %s32, 0
      %p199 = por %p197, %p198
      %p200 = scmp.ne.s32.totalorder %s192, %s194
      %p201 = scmp.eq.s32.totalorder %s37, 1
      %p202 = por %p200, %p201
      %p203 = scmp.ne.s32.totalorder %s194, %s195
      %p204 = scmp.eq.s32.totalorder %s37, 0
      %p205 = por %p203, %p204
      %p206 = scmp.ne.s32.totalorder %s194, %s195
      %p207 = scmp.eq.s32.totalorder %s38, 1
      %p208 = por %p206, %p207
      %p210 = scmp.ne.s32.totalorder %s195, %s209
      %p211 = scmp.eq.s32.totalorder %s38, 0
      %p212 = por %p210, %p211
      %s214 = sadd.s32 %s213, 1
      %p217 = scmp.eq.s32.totalorder %s32, 1
      %p218 = scmp.ne.s32.totalorder %s213, %s215
      %p219 = scmp.eq.s32.totalorder %s32, 0
      %p220 = por %p218, %p219
      %p221 = scmp.ne.s32.totalorder %s213, %s215
      %p222 = scmp.eq.s32.totalorder %s37, 1
      %p223 = por %p221, %p222
      %p224 = scmp.ne.s32.totalorder %s215, %s216
      %p225 = scmp.eq.s32.totalorder %s37, 0
      %p226 = por %p224, %p225
      %p227 = scmp.ne.s32.totalorder %s215, %s216
      %p228 = scmp.eq.s32.totalorder %s38, 1
      %p229 = por %p227, %p228
      %p231 = scmp.ne.s32.totalorder %s216, %s230
      %p232 = scmp.eq.s32.totalorder %s38, 0
      %p233 = por %p231, %p232
      %s235 = sadd.s32 %s234, 1
      %p238 = scmp.eq.s32.totalorder %s32, 1
      %p239 = scmp.ne.s32.totalorder %s234, %s236
      %p240 = scmp.eq.s32.totalorder %s32, 0
      %p241 = por %p239, %p240
      %p242 = scmp.ne.s32.totalorder %s234, %s236
      %p243 = scmp.eq.s32.totalorder %s37, 1
      %p244 = por %p242, %p243
      %p245 = scmp.ne.s32.totalorder %s236, %s237
      %p246 = scmp.eq.s32.totalorder %s37, 0
      %p247 = por %p245, %p246
      %p248 = scmp.ne.s32.totalorder %s236, %s237
      %p249 = scmp.eq.s32.totalorder %s38, 1
      %p250 = por %p248, %p249
      %p252 = scmp.ne.s32.totalorder %s237, %s251
      %p253 = scmp.eq.s32.totalorder %s38, 0
      %p254 = por %p252, %p253
      %s256 = sadd.s32 %s255, 1
      %p259 = scmp.eq.s32.totalorder %s32, 1
      %p260 = scmp.ne.s32.totalorder %s255, %s257
      %p261 = scmp.eq.s32.totalorder %s32, 0
      %p262 = por %p260, %p261
      %p263 = scmp.ne.s32.totalorder %s255, %s257
      %p264 = scmp.eq.s32.totalorder %s37, 1
      %p265 = por %p263, %p264
      %p266 = scmp.ne.s32.totalorder %s257, %s258
      %p267 = scmp.eq.s32.totalorder %s37, 0
      %p268 = por %p266, %p267
      %p269 = scmp.ne.s32.totalorder %s257, %s258
      %p270 = scmp.eq.s32.totalorder %s38, 1
      %p271 = por %p269, %p270
      %p273 = scmp.ne.s32.totalorder %s258, %s272
      %p274 = scmp.eq.s32.totalorder %s38, 0
      %p275 = por %p273, %p274
      %s277 = sadd.s32 %s276, 1
      %p280 = scmp.eq.s32.totalorder %s32, 1
      %p281 = scmp.ne.s32.totalorder %s276, %s278
      %p282 = scmp.eq.s32.totalorder %s32, 0
      %p283 = por %p281, %p282
      %p284 = scmp.ne.s32.totalorder %s276, %s278
      %p285 = scmp.eq.s32.totalorder %s37, 1
      %p286 = por %p284, %p285
      %p287 = scmp.ne.s32.totalorder %s278, %s279
      %p288 = scmp.eq.s32.totalorder %s37, 0
      %p289 = por %p287, %p288
      %p290 = scmp.ne.s32.totalorder %s278, %s279
      %p291 = scmp.eq.s32.totalorder %s38, 1
      %p292 = por %p290, %p291
      %p294 = scmp.ne.s32.totalorder %s279, %s293
      %p295 = scmp.eq.s32.totalorder %s38, 0
      %p296 = por %p294, %p295
      %s298 = sadd.s32 %s297, 1
      %p301 = scmp.eq.s32.totalorder %s32, 1
      %p302 = scmp.ne.s32.totalorder %s297, %s299
      %p303 = scmp.eq.s32.totalorder %s32, 0
      %p304 = por %p302, %p303
      %p305 = scmp.ne.s32.totalorder %s297, %s299
      %p306 = scmp.eq.s32.totalorder %s37, 1
      %p307 = por %p305, %p306
      %p308 = scmp.ne.s32.totalorder %s299, %s300
      %p309 = scmp.eq.s32.totalorder %s37, 0
      %p310 = por %p308, %p309
      %p311 = scmp.ne.s32.totalorder %s299, %s300
      %p312 = scmp.eq.s32.totalorder %s38, 1
      %p313 = por %p311, %p312
      %p315 = scmp.ne.s32.totalorder %s300, %s314
      %p316 = scmp.eq.s32.totalorder %s38, 0
      %p317 = por %p315, %p316
      %s319 = sadd.s32 %s318, 1
      %p322 = scmp.eq.s32.totalorder %s32, 1
      %p323 = scmp.ne.s32.totalorder %s318, %s320
      %p324 = scmp.eq.s32.totalorder %s32, 0
      %p325 = por %p323, %p324
      %p326 = scmp.ne.s32.totalorder %s318, %s320
      %p327 = scmp.eq.s32.totalorder %s37, 1
      %p328 = por %p326, %p327
      %p329 = scmp.ne.s32.totalorder %s320, %s321
      %p330 = scmp.eq.s32.totalorder %s37, 0
      %p331 = por %p329, %p330
      %p332 = scmp.ne.s32.totalorder %s320, %s321
      %p333 = scmp.eq.s32.totalorder %s38, 1
      %p334 = por %p332, %p333
      %p336 = scmp.ne.s32.totalorder %s321, %s335
      %p337 = scmp.eq.s32.totalorder %s38, 0
      %p338 = por %p336, %p337
      %s340 = sadd.s32 %s339, 1
      %p343 = scmp.eq.s32.totalorder %s32, 1
      %p344 = scmp.ne.s32.totalorder %s339, %s341
      %p345 = scmp.eq.s32.totalorder %s32, 0
      %p346 = por %p344, %p345
      %p347 = scmp.ne.s32.totalorder %s339, %s341
      %p348 = scmp.eq.s32.totalorder %s37, 1
      %p349 = por %p347, %p348
      %p350 = scmp.ne.s32.totalorder %s341, %s342
      %p351 = scmp.eq.s32.totalorder %s37, 0
      %p352 = por %p350, %p351
      %p353 = scmp.ne.s32.totalorder %s341, %s342
      %p354 = scmp.eq.s32.totalorder %s38, 1
      %p355 = por %p353, %p354
      %p357 = scmp.ne.s32.totalorder %s342, %s356
      %p358 = scmp.eq.s32.totalorder %s38, 0
      %p359 = por %p357, %p358
      %s361 = sadd.s32 %s360, 1
      %p364 = scmp.eq.s32.totalorder %s32, 1
      %p365 = scmp.ne.s32.totalorder %s360, %s362
      %p366 = scmp.eq.s32.totalorder %s32, 0
      %p367 = por %p365, %p366
      %p368 = scmp.ne.s32.totalorder %s360, %s362
      %p369 = scmp.eq.s32.totalorder %s37, 1
      %p370 = por %p368, %p369
      %p371 = scmp.ne.s32.totalorder %s362, %s363
      %p372 = scmp.eq.s32.totalorder %s37, 0
      %p373 = por %p371, %p372
      %p374 = scmp.ne.s32.totalorder %s362, %s363
      %p375 = scmp.eq.s32.totalorder %s38, 1
      %p376 = por %p374, %p375
      %p378 = scmp.ne.s32.totalorder %s363, %s377
      %p379 = scmp.eq.s32.totalorder %s38, 0
      %p380 = por %p378, %p379
      %s382 = sadd.s32 %s381, 1
      %p385 = scmp.eq.s32.totalorder %s32, 1
      %p386 = scmp.ne.s32.totalorder %s381, %s383
      %p387 = scmp.eq.s32.totalorder %s32, 0
      %p388 = por %p386, %p387
      %p389 = scmp.ne.s32.totalorder %s381, %s383
      %p390 = scmp.eq.s32.totalorder %s37, 1
      %p391 = por %p389, %p390
      %p392 = scmp.ne.s32.totalorder %s383, %s384
      %p393 = scmp.eq.s32.totalorder %s37, 0
      %p394 = por %p392, %p393
      %p395 = scmp.ne.s32.totalorder %s383, %s384
      %p396 = scmp.eq.s32.totalorder %s38, 1
      %p397 = por %p395, %p396
      %p399 = scmp.ne.s32.totalorder %s384, %s398
      %p400 = scmp.eq.s32.totalorder %s38, 0
      %p401 = por %p399, %p400
      %s402 = ssub.s32 %s32, %s39
      %p403 = scmp.eq.s32.totalorder %s402, 0
      %s405 = sadd.s32 %s404, 1
      %s406 = scalar_select %p403, %s404, %s405
      %p409 = pneg %p403
      %p410 = scmp.eq.s32.totalorder %s32, 1
      %p411 = por %p409, %p410
      %p412 = scmp.ne.s32.totalorder %s404, %s407
      %p413 = scmp.eq.s32.totalorder %s32, 0
      %p414 = por %p412, %p413
      %p415 = scmp.ne.s32.totalorder %s404, %s407
      %p416 = scmp.eq.s32.totalorder %s37, 1
      %p417 = por %p415, %p416
      %p418 = scmp.ne.s32.totalorder %s407, %s408
      %p419 = scmp.eq.s32.totalorder %s37, 0
      %p420 = por %p418, %p419
      %p421 = scmp.ne.s32.totalorder %s407, %s408
      %p422 = scmp.eq.s32.totalorder %s38, 1
      %p423 = por %p421, %p422
      %p425 = scmp.ne.s32.totalorder %s408, %s424
      %p426 = scmp.eq.s32.totalorder %s38, 0
      %p427 = por %p425, %p426
      %p428 = scmp.le.s32.totalorder 1, %s32
      %p429 = scmp.lt.s32.totalorder %s32, 3
      %p430 = pnand %p428, %p429
      %p431 = pneg %p430
      // Predicated region
      $region9: #{tpu_custom_call.1} parent=5 // pred_check
        _
      $region10: #{tpu_custom_call.1} parent=5 // pred_check_branch
        %433 = sbr.rel (%p430) target = $region12
      $region11: #{tpu_custom_call.1} parent=5 // pred_region
        %s434 = ssub.s32 %s32, 1
        // Predicated region
        $region13: #{tpu_custom_call.1} parent=11 // pred_check
          %p435 = pneg %p79
        $region14: #{tpu_custom_call.1} parent=11 // pred_check_branch
          %437 = sbr.rel (%p435) target = $region16
        $region15: #{tpu_custom_call.1} parent=11 // pred_region
          _
        $region16: #{tpu_custom_call.1} parent=11 // pred_fallthru
          _
        // Predicated region
        $region17: #{tpu_custom_call.1} parent=11 // pred_check
          %p438 = pneg %p100
        $region18: #{tpu_custom_call.1} parent=11 // pred_check_branch
          %440 = sbr.rel (%p438) target = $region20
        $region19: #{tpu_custom_call.1} parent=11 // pred_region
          %442 = vsyncadd [#allocation11], 0
          %s444 = sshll.u32 %s2, 4
          %s445 = int_to_ptr.hbm [resolvable:$true] %s444
          %s446 = sshll.u32 [#allocation10], 4
          %s447 = int_to_ptr.vmem [resolvable:$true] %s446
          %449 = dma.hbm_to_vmem [thread:$0]  %s445, 16, %s447, [#allocation11]
        $region20: #{tpu_custom_call.1} parent=11 // pred_fallthru
          _
        // Predicated region
        $region21: #{tpu_custom_call.1} parent=11 // pred_check
          %p450 = pneg %p121
        $region22: #{tpu_custom_call.1} parent=11 // pred_check_branch
          %452 = sbr.rel (%p450) target = $region24
        $region23: #{tpu_custom_call.1} parent=11 // pred_region
          %454 = vsyncadd [#allocation14], 0
          %s456 = sshll.u32 %s3, 4
          %s457 = int_to_ptr.hbm [resolvable:$true] %s456
          %s458 = sshll.u32 [#allocation13], 4
          %s459 = int_to_ptr.vmem [resolvable:$true] %s458
          %461 = dma.hbm_to_vmem [thread:$0]  %s457, 16, %s459, [#allocation14]
        $region24: #{tpu_custom_call.1} parent=11 // pred_fallthru
          _
        // Predicated region
        $region25: #{tpu_custom_call.1} parent=11 // pred_check
          %p462 = pneg %p142
        $region26: #{tpu_custom_call.1} parent=11 // pred_check_branch
          %464 = sbr.rel (%p462) target = $region28
        $region27: #{tpu_custom_call.1} parent=11 // pred_region
          _
        $region28: #{tpu_custom_call.1} parent=11 // pred_fallthru
          _
        // Predicated region
        $region29: #{tpu_custom_call.1} parent=11 // pred_check
          %p465 = pneg %p163
        $region30: #{tpu_custom_call.1} parent=11 // pred_check_branch
          %467 = sbr.rel (%p465) target = $region32
        $region31: #{tpu_custom_call.1} parent=11 // pred_region
          %469 = vsyncadd [#allocation14], 0
          %s471 = sshll.u32 %s5, 4
          %s472 = int_to_ptr.hbm [resolvable:$true] %s471
          %s473 = sshll.u32 [#allocation15], 4
          %s474 = int_to_ptr.vmem [resolvable:$true] %s473
          %476 = dma.hbm_to_vmem [thread:$0]  %s472, 16, %s474, [#allocation14]
        $region32: #{tpu_custom_call.1} parent=11 // pred_fallthru
          _
        // Predicated region
        $region33: #{tpu_custom_call.1} parent=11 // pred_check
          %p477 = pneg %p184
        $region34: #{tpu_custom_call.1} parent=11 // pred_check_branch
          %479 = sbr.rel (%p477) target = $region36
        $region35: #{tpu_custom_call.1} parent=11 // pred_region
          %481 = vsyncadd [#allocation17], 0
          %s483 = sshll.u32 %s6, 4
          %s484 = int_to_ptr.hbm [resolvable:$true] %s483
          %s485 = sshll.u32 [#allocation16], 4
          %s486 = int_to_ptr.vmem [resolvable:$true] %s485
          %488 = dma.hbm_to_vmem [thread:$0]  %s484, 16, %s486, [#allocation17]
        $region36: #{tpu_custom_call.1} parent=11 // pred_fallthru
          _
        // Predicated region
        $region37: #{tpu_custom_call.1} parent=11 // pred_check
          %p489 = pneg %p205
        $region38: #{tpu_custom_call.1} parent=11 // pred_check_branch
          %491 = sbr.rel (%p489) target = $region40
        $region39: #{tpu_custom_call.1} parent=11 // pred_region
          %493 = vsyncadd [#allocation17], 0
          %s494 = sshll.u32 %s7, 4
          %s495 = int_to_ptr.hbm [resolvable:$true] %s494
          %s496 = sshll.u32 [#allocation18], 4
          %s497 = int_to_ptr.vmem [resolvable:$true] %s496
          %502 = dma.hbm_to_vmem [thread:$0]  %s495, 4608, %s497, [#allocation17], 128, 128, 8
        $region40: #{tpu_custom_call.1} parent=11 // pred_fallthru
          _
        // Predicated region
        $region41: #{tpu_custom_call.1} parent=11 // pred_check
          %p503 = pneg %p226
        $region42: #{tpu_custom_call.1} parent=11 // pred_check_branch
          %505 = sbr.rel (%p503) target = $region44
        $region43: #{tpu_custom_call.1} parent=11 // pred_region
          %507 = vsyncadd [#allocation20], 0
          %s509 = sshll.u32 %s8, 4
          %s510 = int_to_ptr.hbm [resolvable:$true] %s509
          %s511 = sshll.u32 [#allocation19], 4
          %s512 = int_to_ptr.vmem [resolvable:$true] %s511
          %514 = dma.hbm_to_vmem [thread:$0]  %s510, 16, %s512, [#allocation20]
        $region44: #{tpu_custom_call.1} parent=11 // pred_fallthru
          _
        // Predicated region
        $region45: #{tpu_custom_call.1} parent=11 // pred_check
          %p515 = pneg %p247
        $region46: #{tpu_custom_call.1} parent=11 // pred_check_branch
          %517 = sbr.rel (%p515) target = $region48
        $region47: #{tpu_custom_call.1} parent=11 // pred_region
          %519 = vsyncadd [#allocation20], 0
          %s521 = sshll.u32 %s9, 4
          %s522 = int_to_ptr.hbm [resolvable:$true] %s521
          %s523 = sshll.u32 [#allocation21], 4
          %s524 = int_to_ptr.vmem [resolvable:$true] %s523
          %526 = dma.hbm_to_vmem [thread:$0]  %s522, 16, %s524, [#allocation20]
        $region48: #{tpu_custom_call.1} parent=11 // pred_fallthru
          _
        // Predicated region
        $region49: #{tpu_custom_call.1} parent=11 // pred_check
          %p527 = pneg %p268
        $region50: #{tpu_custom_call.1} parent=11 // pred_check_branch
          %529 = sbr.rel (%p527) target = $region52
        $region51: #{tpu_custom_call.1} parent=11 // pred_region
          _
        $region52: #{tpu_custom_call.1} parent=11 // pred_fallthru
          _
        // Predicated region
        $region53: #{tpu_custom_call.1} parent=11 // pred_check
          %p530 = pneg %p289
        $region54: #{tpu_custom_call.1} parent=11 // pred_check_branch
          %532 = sbr.rel (%p530) target = $region56
        $region55: #{tpu_custom_call.1} parent=11 // pred_region
          %534 = vsyncadd [#allocation23], 0
          %s536 = sshll.u32 %s11, 4
          %s537 = int_to_ptr.hbm [resolvable:$true] %s536
          %s538 = sshll.u32 [#allocation22], 4
          %s539 = int_to_ptr.vmem [resolvable:$true] %s538
          %541 = dma.hbm_to_vmem [thread:$0]  %s537, 16, %s539, [#allocation23]
        $region56: #{tpu_custom_call.1} parent=11 // pred_fallthru
          _
        // Predicated region
        $region57: #{tpu_custom_call.1} parent=11 // pred_check
          %p542 = pneg %p310
        $region58: #{tpu_custom_call.1} parent=11 // pred_check_branch
          %544 = sbr.rel (%p542) target = $region60
        $region59: #{tpu_custom_call.1} parent=11 // pred_region
          %546 = vsyncadd [#allocation23], 0
          %s548 = sshll.u32 %s12, 4
          %s549 = int_to_ptr.hbm [resolvable:$true] %s548
          %s550 = sshll.u32 [#allocation24], 4
          %s551 = int_to_ptr.vmem [resolvable:$true] %s550
          %553 = dma.hbm_to_vmem [thread:$0]  %s549, 16, %s551, [#allocation23]
        $region60: #{tpu_custom_call.1} parent=11 // pred_fallthru
          _
        // Predicated region
        $region61: #{tpu_custom_call.1} parent=11 // pred_check
          %p554 = pneg %p331
        $region62: #{tpu_custom_call.1} parent=11 // pred_check_branch
          %556 = sbr.rel (%p554) target = $region64
        $region63: #{tpu_custom_call.1} parent=11 // pred_region
          _
        $region64: #{tpu_custom_call.1} parent=11 // pred_fallthru
          _
        // Predicated region
        $region65: #{tpu_custom_call.1} parent=11 // pred_check
          %p557 = pneg %p352
        $region66: #{tpu_custom_call.1} parent=11 // pred_check_branch
          %559 = sbr.rel (%p557) target = $region68
        $region67: #{tpu_custom_call.1} parent=11 // pred_region
          %561 = vsyncadd [#allocation26], 0
          %s563 = sshll.u32 %s14, 4
          %s564 = int_to_ptr.hbm [resolvable:$true] %s563
          %s565 = sshll.u32 [#allocation25], 4
          %s566 = int_to_ptr.vmem [resolvable:$true] %s565
          %568 = dma.hbm_to_vmem [thread:$0]  %s564, 16, %s566, [#allocation26]
        $region68: #{tpu_custom_call.1} parent=11 // pred_fallthru
          _
        // Predicated region
        $region69: #{tpu_custom_call.1} parent=11 // pred_check
          %p569 = pneg %p373
        $region70: #{tpu_custom_call.1} parent=11 // pred_check_branch
          %571 = sbr.rel (%p569) target = $region72
        $region71: #{tpu_custom_call.1} parent=11 // pred_region
          _
        $region72: #{tpu_custom_call.1} parent=11 // pred_fallthru
          _
        // Predicated region
        $region73: #{tpu_custom_call.1} parent=11 // pred_check
          %p572 = pneg %p394
        $region74: #{tpu_custom_call.1} parent=11 // pred_check_branch
          %574 = sbr.rel (%p572) target = $region76
        $region75: #{tpu_custom_call.1} parent=11 // pred_region
          %576 = vsyncadd [#allocation26], 0
          %s578 = sshll.u32 %s16, 4
          %s579 = int_to_ptr.hbm [resolvable:$true] %s578
          %s580 = sshll.u32 [#allocation27], 4
          %s581 = int_to_ptr.vmem [resolvable:$true] %s580
          %583 = dma.hbm_to_vmem [thread:$0]  %s579, 16, %s581, [#allocation26]
        $region76: #{tpu_custom_call.1} parent=11 // pred_fallthru
          _
      $region12: #{tpu_custom_call.1} parent=5 // pred_fallthru
        _
      %p584 = scmp.lt.s32.totalorder %s32, 2
      // Predicated region
      $region77: #{tpu_custom_call.1} parent=5 // pred_check
        %p585 = pneg %p584
      $region78: #{tpu_custom_call.1} parent=5 // pred_check_branch
        %587 = sbr.rel (%p585) target = $region80
      $region79: #{tpu_custom_call.1} parent=5 // pred_region
        // Predicated region
        $region81: #{tpu_custom_call.1} parent=79 // pred_check
          %p588 = pneg %p52
        $region82: #{tpu_custom_call.1} parent=79 // pred_check_branch
          %590 = sbr.rel (%p588) target = $region84
        $region83: #{tpu_custom_call.1} parent=79 // pred_region
          %p591 = scmp.lt.s32.totalorder %s32, 1
          %s592 = scalar_select %p591, %s32, 1
          %s593 = smul.addr %s592, 32
          %s594 = smul.addr %s593, 8
          %s595 = scalar_lea.vmem %s0, %s594
        $region84: #{tpu_custom_call.1} parent=79 // pred_fallthru
          _
      $region80: #{tpu_custom_call.1} parent=5 // pred_fallthru
        _
      %p596 = scmp.le.s32.totalorder 1, %s32
      %p597 = scmp.lt.s32.totalorder %s32, 3
      %p598 = pnand %p596, %p597
      %p599 = pneg %p598
      // Predicated region
      $region85: #{tpu_custom_call.1} parent=5 // pred_check
        _
      $region86: #{tpu_custom_call.1} parent=5 // pred_check_branch
        %601 = sbr.rel (%p598) target = $region88
      $region87: #{tpu_custom_call.1} parent=5 // pred_region
        %s602 = ssub.s32 %s32, 1
        // Predicated region
        $region89: #{tpu_custom_call.1} parent=87 // pred_check
          %p603 = pneg %p100
        $region90: #{tpu_custom_call.1} parent=87 // pred_check_branch
          %605 = sbr.rel (%p603) target = $region92
        $region91: #{tpu_custom_call.1} parent=87 // pred_region
          %607 = dma.done [#allocation11], 16
        $region92: #{tpu_custom_call.1} parent=87 // pred_fallthru
          _
        // Predicated region
        $region93: #{tpu_custom_call.1} parent=87 // pred_check
          %p608 = pneg %p121
        $region94: #{tpu_custom_call.1} parent=87 // pred_check_branch
          %610 = sbr.rel (%p608) target = $region96
        $region95: #{tpu_custom_call.1} parent=87 // pred_region
          %612 = dma.done [#allocation14], 16
        $region96: #{tpu_custom_call.1} parent=87 // pred_fallthru
          _
        // Predicated region
        $region97: #{tpu_custom_call.1} parent=87 // pred_check
          %p613 = pneg %p163
        $region98: #{tpu_custom_call.1} parent=87 // pred_check_branch
          %615 = sbr.rel (%p613) target = $region100
        $region99: #{tpu_custom_call.1} parent=87 // pred_region
          %617 = dma.done [#allocation14], 16
        $region100: #{tpu_custom_call.1} parent=87 // pred_fallthru
          _
        // Predicated region
        $region101: #{tpu_custom_call.1} parent=87 // pred_check
          %p618 = pneg %p184
        $region102: #{tpu_custom_call.1} parent=87 // pred_check_branch
          %620 = sbr.rel (%p618) target = $region104
        $region103: #{tpu_custom_call.1} parent=87 // pred_region
          %622 = dma.done [#allocation17], 16
        $region104: #{tpu_custom_call.1} parent=87 // pred_fallthru
          _
        // Predicated region
        $region105: #{tpu_custom_call.1} parent=87 // pred_check
          %p623 = pneg %p205
        $region106: #{tpu_custom_call.1} parent=87 // pred_check_branch
          %625 = sbr.rel (%p623) target = $region108
        $region107: #{tpu_custom_call.1} parent=87 // pred_region
          %627 = dma.done [#allocation17], 4608
        $region108: #{tpu_custom_call.1} parent=87 // pred_fallthru
          _
        // Predicated region
        $region109: #{tpu_custom_call.1} parent=87 // pred_check
          %p628 = pneg %p226
        $region110: #{tpu_custom_call.1} parent=87 // pred_check_branch
          %630 = sbr.rel (%p628) target = $region112
        $region111: #{tpu_custom_call.1} parent=87 // pred_region
          %632 = dma.done [#allocation20], 16
        $region112: #{tpu_custom_call.1} parent=87 // pred_fallthru
          _
        // Predicated region
        $region113: #{tpu_custom_call.1} parent=87 // pred_check
          %p633 = pneg %p247
        $region114: #{tpu_custom_call.1} parent=87 // pred_check_branch
          %635 = sbr.rel (%p633) target = $region116
        $region115: #{tpu_custom_call.1} parent=87 // pred_region
          %637 = dma.done [#allocation20], 16
        $region116: #{tpu_custom_call.1} parent=87 // pred_fallthru
          _
        // Predicated region
        $region117: #{tpu_custom_call.1} parent=87 // pred_check
          %p638 = pneg %p289
        $region118: #{tpu_custom_call.1} parent=87 // pred_check_branch
          %640 = sbr.rel (%p638) target = $region120
        $region119: #{tpu_custom_call.1} parent=87 // pred_region
          %642 = dma.done [#allocation23], 16
        $region120: #{tpu_custom_call.1} parent=87 // pred_fallthru
          _
        // Predicated region
        $region121: #{tpu_custom_call.1} parent=87 // pred_check
          %p643 = pneg %p310
        $region122: #{tpu_custom_call.1} parent=87 // pred_check_branch
          %645 = sbr.rel (%p643) target = $region124
        $region123: #{tpu_custom_call.1} parent=87 // pred_region
          %647 = dma.done [#allocation23], 16
        $region124: #{tpu_custom_call.1} parent=87 // pred_fallthru
          _
        // Predicated region
        $region125: #{tpu_custom_call.1} parent=87 // pred_check
          %p648 = pneg %p352
        $region126: #{tpu_custom_call.1} parent=87 // pred_check_branch
          %650 = sbr.rel (%p648) target = $region128
        $region127: #{tpu_custom_call.1} parent=87 // pred_region
          %652 = dma.done [#allocation26], 16
        $region128: #{tpu_custom_call.1} parent=87 // pred_fallthru
          _
        // Predicated region
        $region129: #{tpu_custom_call.1} parent=87 // pred_check
          %p653 = pneg %p394
        $region130: #{tpu_custom_call.1} parent=87 // pred_check_branch
          %655 = sbr.rel (%p653) target = $region132
        $region131: #{tpu_custom_call.1} parent=87 // pred_region
          %657 = dma.done [#allocation26], 16
        $region132: #{tpu_custom_call.1} parent=87 // pred_fallthru
          _
        %p658 = scmp.lt.s32.totalorder %s37, 1
        %s659 = scalar_select %p658, %s37, 1
        %s660 = smul.addr %s659, 32
        %s661 = smul.addr %s660, 8
        %s662 = scalar_lea.vmem %s0, %s661
        %p663 = pneg %p58
        %p664 = pneg %p55
        %p665 = pneg %p79
        %p666 = pneg %p76
        %p667 = pneg %p100
        %p668 = pneg %p97
        %p669 = pneg %p121
        %p670 = pneg %p118
        %p671 = pneg %p142
        %p672 = pneg %p139
        %p673 = pneg %p163
        %p674 = pneg %p160
        %p675 = pneg %p184
        %p676 = pneg %p181
        %p677 = pneg %p205
        %p678 = pneg %p202
        %p679 = pneg %p226
        %p680 = pneg %p223
        %p681 = pneg %p247
        %p682 = pneg %p244
        %p683 = pneg %p268
        %p684 = pneg %p265
        %p685 = pneg %p289
        %p686 = pneg %p286
        %p687 = pneg %p310
        %p688 = pneg %p307
        %p689 = pneg %p331
        %p690 = pneg %p328
        %p691 = pneg %p352
        %p692 = pneg %p349
        %p693 = pneg %p373
        %p694 = pneg %p370
        %p695 = pneg %p394
        %p696 = pneg %p391
        %p697 = pneg %p420
        %p698 = pneg %p417
        %s699 = sand.u32 %s407, 1
        %s700 = scalar_lea.sflag [#allocation12], %s699
        %s701 = sand.u32 %s407, 1
        %s702 = scalar_lea.vmem [#allocation28], %s701
        %p703 = scmp.lt.s32.totalorder %s37, 1
        %s704 = scalar_select %p703, %s37, 1
        %s705 = smul.addr %s704, 32
        %s706 = smul.addr %s705, 8
        %s707 = scalar_lea.vmem %s0, %s706
        %vm708 = vcmask 31744
        %709 = vst.msk [vmem:[#allocation2] sm:$0xff] %vm708, 0.0
        %710 = vst.msk [vmem:[#allocation2 + $0x8] sm:$0xff] %vm708, 0.0
        %711 = vst.msk [vmem:[#allocation2 + $0x10] sm:$0xff] %vm708, 0.0
        %712 = vst.msk [vmem:[#allocation2 + $0x18] sm:$0xff] %vm708, 0.0
        %713 = vst.msk [vmem:[#allocation2 + $0x20] sm:$0xff] %vm708, 0.0
        %714 = vst.msk [vmem:[#allocation2 + $0x28] sm:$0xff] %vm708, 0.0
        %715 = vst.msk [vmem:[#allocation2 + $0x30] sm:$0xff] %vm708, 0.0
        %716 = vst.msk [vmem:[#allocation2 + $0x38] sm:$0xff] %vm708, 0.0
        %717 = vst.msk [vmem:[#allocation2 + $0x40] sm:$0xff] %vm708, 0.0
        %718 = vst.msk [vmem:[#allocation2 + $0x48] sm:$0xff] %vm708, 0.0
        %719 = vst.msk [vmem:[#allocation2 + $0x50] sm:$0xff] %vm708, 0.0
        %720 = vst.msk [vmem:[#allocation2 + $0x58] sm:$0xff] %vm708, 0.0
        %721 = vst.msk [vmem:[#allocation2 + $0x60] sm:$0xff] %vm708, 0.0
        %722 = vst.msk [vmem:[#allocation2 + $0x68] sm:$0xff] %vm708, 0.0
        %723 = vst.msk [vmem:[#allocation2 + $0x70] sm:$0xff] %vm708, 0.0
        %724 = vst.msk [vmem:[#allocation2 + $0x78] sm:$0xff] %vm708, 0.0
        %725 = vst.msk [vmem:[#allocation2 + $0x80] sm:$0xff] %vm708, 0.0
        %726 = vst.msk [vmem:[#allocation2 + $0x88] sm:$0xff] %vm708, 0.0
        %727 = vst.msk [vmem:[#allocation2 + $0x90] sm:$0xff] %vm708, 0.0
        %728 = vst.msk [vmem:[#allocation2 + $0x98] sm:$0xff] %vm708, 0.0
        %729 = vst.msk [vmem:[#allocation2 + $0xa0] sm:$0xff] %vm708, 0.0
        %730 = vst.msk [vmem:[#allocation2 + $0xa8] sm:$0xff] %vm708, 0.0
        %731 = vst.msk [vmem:[#allocation2 + $0xb0] sm:$0xff] %vm708, 0.0
        %732 = vst.msk [vmem:[#allocation2 + $0xb8] sm:$0xff] %vm708, 0.0
        %733 = vst.msk [vmem:[#allocation2 + $0xc0] sm:$0xff] %vm708, 0.0
        %734 = vst.msk [vmem:[#allocation2 + $0xc8] sm:$0xff] %vm708, 0.0
        %735 = vst.msk [vmem:[#allocation2 + $0xd0] sm:$0xff] %vm708, 0.0
        %736 = vst.msk [vmem:[#allocation2 + $0xd8] sm:$0xff] %vm708, 0.0
        %737 = vst.msk [vmem:[#allocation2 + $0xe0] sm:$0xff] %vm708, 0.0
        %738 = vst.msk [vmem:[#allocation2 + $0xe8] sm:$0xff] %vm708, 0.0
        %739 = vst.msk [vmem:[#allocation2 + $0xf0] sm:$0xff] %vm708, 0.0
        %740 = vst.msk [vmem:[#allocation2 + $0xf8] sm:$0xff] %vm708, 0.0
        %741 = vst.msk [vmem:[#allocation2 + $0x100] sm:$0xff] %vm708, 0.0
        %742 = vst.msk [vmem:[#allocation2 + $0x108] sm:$0xff] %vm708, 0.0
        %743 = vst.msk [vmem:[#allocation2 + $0x110] sm:$0xff] %vm708, 0.0
        %744 = vst.msk [vmem:[#allocation2 + $0x118] sm:$0xff] %vm708, 0.0
        %745 = vst.msk [vmem:[#allocation2 + $0x120] sm:$0xff] %vm708, 0.0
        %746 = vst.msk [vmem:[#allocation2 + $0x128] sm:$0xff] %vm708, 0.0
        %747 = vst.msk [vmem:[#allocation2 + $0x130] sm:$0xff] %vm708, 0.0
        %748 = vst.msk [vmem:[#allocation2 + $0x138] sm:$0xff] %vm708, 0.0
        %vm749 = vcmask 29696
        %750 = vst.msk [vmem:[#allocation2 + $0x140] sm:$0x3f] %vm749, 0.0
        %vm751 = vcmask 130048
        %752 = vst.msk [vmem:[#allocation3] sm:$0xff] %vm751, 0.0
        %753 = vst.msk [vmem:[#allocation3 + $0x8] sm:$0xff] %vm751, 0.0
        %754 = vst.msk [vmem:[#allocation3 + $0x10] sm:$0xff] %vm751, 0.0
        %755 = vst.msk [vmem:[#allocation3 + $0x18] sm:$0xff] %vm751, 0.0
        %756 = vst.msk [vmem:[#allocation3 + $0x20] sm:$0xff] %vm751, 0.0
        %757 = vst.msk [vmem:[#allocation3 + $0x28] sm:$0xff] %vm751, 0.0
        %758 = vst.msk [vmem:[#allocation3 + $0x30] sm:$0xff] %vm751, 0.0
        %759 = vst.msk [vmem:[#allocation3 + $0x38] sm:$0xff] %vm751, 0.0
        %760 = vst.msk [vmem:[#allocation3 + $0x40] sm:$0xff] %vm751, 0.0
        %761 = vst.msk [vmem:[#allocation3 + $0x48] sm:$0xff] %vm751, 0.0
        %762 = vst.msk [vmem:[#allocation3 + $0x50] sm:$0xff] %vm751, 0.0
        %763 = vst.msk [vmem:[#allocation3 + $0x58] sm:$0xff] %vm751, 0.0
        %vm764 = vcmask 128000
        %765 = vst.msk [vmem:[#allocation3 + $0x60] sm:$0x3f] %vm764, 0.0
        %vm766 = vcmask 261120
        %767 = vst.msk [vmem:[#allocation4] sm:$0xff] %vm766, 0.0
        %768 = vst.msk [vmem:[#allocation4 + $0x8] sm:$0xff] %vm766, 0.0
        %769 = vst.msk [vmem:[#allocation4 + $0x10] sm:$0xff] %vm766, 0.0
        %770 = vst.msk [vmem:[#allocation4 + $0x18] sm:$0xff] %vm766, 0.0
        %vm771 = vcmask 259072
        %772 = vst.msk [vmem:[#allocation4 + $0x20] sm:$0x3f] %vm771, 0.0
        %vm773 = vcmask 523264
        %774 = vst.msk [vmem:[#allocation5] sm:$0xff] %vm773, 0.0
        %775 = vst.msk [vmem:[#allocation5 + $0x8] sm:$0xff] %vm773, 0.0
        %vm776 = vcmask 517120
        %777 = vst.msk [vmem:[#allocation5 + $0x10] sm:$0x3] %vm776, 0.0
        %v778 = vld [vmem:[%s707] sm:$0xff]
        %v779 = vld [vmem:[%s707 + $0x8] sm:$0xff]
        %780 = vst.msk [vmem:[#allocation2 + $0x13] sm:$0xff] %vm708, %v778
        %781 = vst.msk [vmem:[#allocation2 + $0x1b] sm:$0xff] %vm708, %v779
        %s782 = scalar_lea.vmem %s707, 16
        %v783 = vld [vmem:[%s782] sm:$0xff]
        %v784 = vld [vmem:[%s782 + $0x8] sm:$0xff]
        %785 = vst.msk [vmem:[#allocation2 + $0x25] sm:$0xff] %vm708, %v783
        %786 = vst.msk [vmem:[#allocation2 + $0x2d] sm:$0xff] %vm708, %v784
        %s787 = scalar_lea.vmem %s707, 32
        %v788 = vld [vmem:[%s787] sm:$0xff]
        %v789 = vld [vmem:[%s787 + $0x8] sm:$0xff]
        %790 = vst.msk [vmem:[#allocation2 + $0x37] sm:$0xff] %vm708, %v788
        %791 = vst.msk [vmem:[#allocation2 + $0x3f] sm:$0xff] %vm708, %v789
        %s792 = scalar_lea.vmem %s707, 48
        %v793 = vld [vmem:[%s792] sm:$0xff]
        %v794 = vld [vmem:[%s792 + $0x8] sm:$0xff]
        %795 = vst.msk [vmem:[#allocation2 + $0x49] sm:$0xff] %vm708, %v793
        %796 = vst.msk [vmem:[#allocation2 + $0x51] sm:$0xff] %vm708, %v794
        %s797 = scalar_lea.vmem %s707, 64
        %v798 = vld [vmem:[%s797] sm:$0xff]
        %v799 = vld [vmem:[%s797 + $0x8] sm:$0xff]
        %800 = vst.msk [vmem:[#allocation2 + $0x5b] sm:$0xff] %vm708, %v798
        %801 = vst.msk [vmem:[#allocation2 + $0x63] sm:$0xff] %vm708, %v799
        %s802 = scalar_lea.vmem %s707, 80
        %v803 = vld [vmem:[%s802] sm:$0xff]
        %v804 = vld [vmem:[%s802 + $0x8] sm:$0xff]
        %805 = vst.msk [vmem:[#allocation2 + $0x6d] sm:$0xff] %vm708, %v803
        %806 = vst.msk [vmem:[#allocation2 + $0x75] sm:$0xff] %vm708, %v804
        %s807 = scalar_lea.vmem %s707, 96
        %v808 = vld [vmem:[%s807] sm:$0xff]
        %v809 = vld [vmem:[%s807 + $0x8] sm:$0xff]
        %810 = vst.msk [vmem:[#allocation2 + $0x7f] sm:$0xff] %vm708, %v808
        %811 = vst.msk [vmem:[#allocation2 + $0x87] sm:$0xff] %vm708, %v809
        %s812 = scalar_lea.vmem %s707, 112
        %v813 = vld [vmem:[%s812] sm:$0xff]
        %v814 = vld [vmem:[%s812 + $0x8] sm:$0xff]
        %815 = vst.msk [vmem:[#allocation2 + $0x91] sm:$0xff] %vm708, %v813
        %816 = vst.msk [vmem:[#allocation2 + $0x99] sm:$0xff] %vm708, %v814
        %s817 = scalar_lea.vmem %s707, 128
        %v818 = vld [vmem:[%s817] sm:$0xff]
        %v819 = vld [vmem:[%s817 + $0x8] sm:$0xff]
        %820 = vst.msk [vmem:[#allocation2 + $0xa3] sm:$0xff] %vm708, %v818
        %821 = vst.msk [vmem:[#allocation2 + $0xab] sm:$0xff] %vm708, %v819
        %s822 = scalar_lea.vmem %s707, 144
        %v823 = vld [vmem:[%s822] sm:$0xff]
        %v824 = vld [vmem:[%s822 + $0x8] sm:$0xff]
        %825 = vst.msk [vmem:[#allocation2 + $0xb5] sm:$0xff] %vm708, %v823
        %826 = vst.msk [vmem:[#allocation2 + $0xbd] sm:$0xff] %vm708, %v824
        %s827 = scalar_lea.vmem %s707, 160
        %v828 = vld [vmem:[%s827] sm:$0xff]
        %v829 = vld [vmem:[%s827 + $0x8] sm:$0xff]
        %830 = vst.msk [vmem:[#allocation2 + $0xc7] sm:$0xff] %vm708, %v828
        %831 = vst.msk [vmem:[#allocation2 + $0xcf] sm:$0xff] %vm708, %v829
        %s832 = scalar_lea.vmem %s707, 176
        %v833 = vld [vmem:[%s832] sm:$0xff]
        %v834 = vld [vmem:[%s832 + $0x8] sm:$0xff]
        %835 = vst.msk [vmem:[#allocation2 + $0xd9] sm:$0xff] %vm708, %v833
        %836 = vst.msk [vmem:[#allocation2 + $0xe1] sm:$0xff] %vm708, %v834
        %s837 = scalar_lea.vmem %s707, 192
        %v838 = vld [vmem:[%s837] sm:$0xff]
        %v839 = vld [vmem:[%s837 + $0x8] sm:$0xff]
        %840 = vst.msk [vmem:[#allocation2 + $0xeb] sm:$0xff] %vm708, %v838
        %841 = vst.msk [vmem:[#allocation2 + $0xf3] sm:$0xff] %vm708, %v839
        %s842 = scalar_lea.vmem %s707, 208
        %v843 = vld [vmem:[%s842] sm:$0xff]
        %v844 = vld [vmem:[%s842 + $0x8] sm:$0xff]
        %845 = vst.msk [vmem:[#allocation2 + $0xfd] sm:$0xff] %vm708, %v843
        %846 = vst.msk [vmem:[#allocation2 + $0x105] sm:$0xff] %vm708, %v844
        %s847 = scalar_lea.vmem %s707, 224
        %v848 = vld [vmem:[%s847] sm:$0xff]
        %v849 = vld [vmem:[%s847 + $0x8] sm:$0xff]
        %850 = vst.msk [vmem:[#allocation2 + $0x10f] sm:$0xff] %vm708, %v848
        %851 = vst.msk [vmem:[#allocation2 + $0x117] sm:$0xff] %vm708, %v849
        %s852 = scalar_lea.vmem %s707, 240
        %v853 = vld [vmem:[%s852] sm:$0xff]
        %v854 = vld [vmem:[%s852 + $0x8] sm:$0xff]
        %855 = vst.msk [vmem:[#allocation2 + $0x121] sm:$0xff] %vm708, %v853
        %856 = vst.msk [vmem:[#allocation2 + $0x129] sm:$0xff] %vm708, %v854
        %v857 = vld [vmem:[#allocation10] sm:$0x1]
        %v858 = vld [vmem:[#allocation13] sm:$0x1]
        %v859 = vld [vmem:[#allocation2] sm:$0xff]
        %v860 = vld [vmem:[#allocation2 + $0x8] sm:$0xff]
        %v861 = vld [vmem:[#allocation2 + $0x10] sm:$0xff]
        %v862 = vld [vmem:[#allocation2 + $0x18] sm:$0xff]
        %v863 = vld [vmem:[#allocation2 + $0x20] sm:$0xff]
        %v864 = vld [vmem:[#allocation2 + $0x28] sm:$0xff]
        %v865 = vld [vmem:[#allocation2 + $0x30] sm:$0xff]
        %v866 = vld [vmem:[#allocation2 + $0x38] sm:$0xff]
        %v867 = vld [vmem:[#allocation2 + $0x40] sm:$0xff]
        %v868 = vld [vmem:[#allocation2 + $0x48] sm:$0xff]
        %v869 = vld [vmem:[#allocation2 + $0x50] sm:$0xff]
        %v870 = vld [vmem:[#allocation2 + $0x58] sm:$0xff]
        %v871 = vld [vmem:[#allocation2 + $0x60] sm:$0xff]
        %v872 = vld [vmem:[#allocation2 + $0x68] sm:$0xff]
        %v873 = vld [vmem:[#allocation2 + $0x70] sm:$0xff]
        %v874 = vld [vmem:[#allocation2 + $0x78] sm:$0xff]
        %v875 = vld [vmem:[%s1] sm:$0xf]
        %v876 = vld [vmem:[#allocation2 + $0x1] sm:$0xff]
        %v877 = vld [vmem:[#allocation2 + $0x9] sm:$0xff]
        %v878 = vld [vmem:[#allocation2 + $0x11] sm:$0xff]
        %v879 = vld [vmem:[#allocation2 + $0x19] sm:$0xff]
        %v880 = vld [vmem:[#allocation2 + $0x21] sm:$0xff]
        %v881 = vld [vmem:[#allocation2 + $0x29] sm:$0xff]
        %v882 = vld [vmem:[#allocation2 + $0x31] sm:$0xff]
        %v883 = vld [vmem:[#allocation2 + $0x39] sm:$0xff]
        %v884 = vld [vmem:[#allocation2 + $0x41] sm:$0xff]
        %v885 = vld [vmem:[#allocation2 + $0x49] sm:$0xff]
        %v886 = vld [vmem:[#allocation2 + $0x51] sm:$0xff]
        %v887 = vld [vmem:[#allocation2 + $0x59] sm:$0xff]
        %v888 = vld [vmem:[#allocation2 + $0x61] sm:$0xff]
        %v889 = vld [vmem:[#allocation2 + $0x69] sm:$0xff]
        %v890 = vld [vmem:[#allocation2 + $0x71] sm:$0xff]
        %v891 = vld [vmem:[#allocation2 + $0x79] sm:$0xff]
        %s892 = scalar_lea.vmem %s1, 4
        %v893 = vld [vmem:[%s892] sm:$0xf]
        %v895 = vsel %vm708, %v876, 0
        %v898 = vsel %vm708, %v877, 0
        %v901 = vsel %vm708, %v878, 0
        %v904 = vsel %vm708, %v879, 0
        %v907 = vsel %vm708, %v880, 0
        %v910 = vsel %vm708, %v881, 0
        %v913 = vsel %vm708, %v882, 0
        %v916 = vsel %vm708, %v883, 0
        %v919 = vsel %vm708, %v884, 0
        %v922 = vsel %vm708, %v885, 0
        %v925 = vsel %vm708, %v886, 0
        %v928 = vsel %vm708, %v887, 0
        %v931 = vsel %vm708, %v888, 0
        %v934 = vsel %vm708, %v889, 0
        %v937 = vsel %vm708, %v890, 0
        %v940 = vsel %vm708, %v891, 0
        %vm942 = vcmask 1043456
        %v944 = vsel %vm942, %v893, 0
        %946 = vmatpush.msra.mxu0 0.0
        %947 = vmatpush.msra.mxu0 0.0
        %948 = vmatpush.msra.mxu0 0.0
        %949 = vmatpush.msra.mxu0 0.0
        %950 = vmatpush.msra.mxu0 0.0
        %951 = vmatpush.msra.mxu0 0.0
        %952 = vmatpush.msra.mxu0 0.0
        %953 = vmatpush.msra.mxu0 0.0
        %954 = vmatpush.msra.mxu0 0.0
        %955 = vmatpush.msra.mxu0 0.0
        %956 = vmatpush.msra.mxu0 0.0
        %957 = vmatpush.msra.mxu0 0.0
        %958 = vmatpush.msra.mxu0 0.0
        %959 = vmatpush.msra.mxu0 0.0
        %960 = vmatpush.msra.mxu0 0.0
        %961 = vmatpush.msra.mxu0 %v944
        %962 = vmatmul.f32.gmra.mxu0 %v895
        %v963 = vpop.f32.mrf.mxu0
        %v964 = vadd.f32 0.0, %v963
        %965 = vmatmul.f32.gmra.mxu0 %v898
        %v966 = vpop.f32.mrf.mxu0
        %v967 = vadd.f32 0.0, %v966
        %968 = vmatmul.f32.gmra.mxu0 %v901
        %v969 = vpop.f32.mrf.mxu0
        %v970 = vadd.f32 0.0, %v969
        %971 = vmatmul.f32.gmra.mxu0 %v904
        %v972 = vpop.f32.mrf.mxu0
        %v973 = vadd.f32 0.0, %v972
        %974 = vmatmul.f32.gmra.mxu0 %v907
        %v975 = vpop.f32.mrf.mxu0
        %v976 = vadd.f32 0.0, %v975
        %977 = vmatmul.f32.gmra.mxu0 %v910
        %v978 = vpop.f32.mrf.mxu0
        %v979 = vadd.f32 0.0, %v978
        %980 = vmatmul.f32.gmra.mxu0 %v913
        %v981 = vpop.f32.mrf.mxu0
        %v982 = vadd.f32 0.0, %v981
        %983 = vmatmul.f32.gmra.mxu0 %v916
        %v984 = vpop.f32.mrf.mxu0
        %v985 = vadd.f32 0.0, %v984
        %986 = vmatmul.f32.gmra.mxu0 %v919
        %v987 = vpop.f32.mrf.mxu0
        %v988 = vadd.f32 0.0, %v987
        %989 = vmatmul.f32.gmra.mxu0 %v922
        %v990 = vpop.f32.mrf.mxu0
        %v991 = vadd.f32 0.0, %v990
        %992 = vmatmul.f32.gmra.mxu0 %v925
        %v993 = vpop.f32.mrf.mxu0
        %v994 = vadd.f32 0.0, %v993
        %995 = vmatmul.f32.gmra.mxu0 %v928
        %v996 = vpop.f32.mrf.mxu0
        %v997 = vadd.f32 0.0, %v996
        %998 = vmatmul.f32.gmra.mxu0 %v931
        %v999 = vpop.f32.mrf.mxu0
        %v1000 = vadd.f32 0.0, %v999
        %1001 = vmatmul.f32.gmra.mxu0 %v934
        %v1002 = vpop.f32.mrf.mxu0
        %v1003 = vadd.f32 0.0, %v1002
        %1004 = vmatmul.f32.gmra.mxu0 %v937
        %v1005 = vpop.f32.mrf.mxu0
        %v1006 = vadd.f32 0.0, %v1005
        %1007 = vmatmul.f32.gmra.mxu0 %v940
        %v1008 = vpop.f32.mrf.mxu0
        %v1009 = vadd.f32 0.0, %v1008
        %1010 = vdwg.mxu0
        %v1012 = vsel %vm708, %v859, 0
        %v1015 = vsel %vm708, %v860, 0
        %v1018 = vsel %vm708, %v861, 0
        %v1021 = vsel %vm708, %v862, 0
        %v1024 = vsel %vm708, %v863, 0
        %v1027 = vsel %vm708, %v864, 0
        %v1030 = vsel %vm708, %v865, 0
        %v1033 = vsel %vm708, %v866, 0
        %v1036 = vsel %vm708, %v867, 0
        %v1039 = vsel %vm708, %v868, 0
        %v1042 = vsel %vm708, %v869, 0
        %v1045 = vsel %vm708, %v870, 0
        %v1048 = vsel %vm708, %v871, 0
        %v1051 = vsel %vm708, %v872, 0
        %v1054 = vsel %vm708, %v873, 0
        %v1057 = vsel %vm708, %v874, 0
        %v1060 = vsel %vm942, %v875, 0
        %1062 = vmatpush.msra.mxu0 0.0
        %1063 = vmatpush.msra.mxu0 0.0
        %1064 = vmatpush.msra.mxu0 0.0
        %1065 = vmatpush.msra.mxu0 0.0
        %1066 = vmatpush.msra.mxu0 0.0
        %1067 = vmatpush.msra.mxu0 0.0
        %1068 = vmatpush.msra.mxu0 0.0
        %1069 = vmatpush.msra.mxu0 0.0
        %1070 = vmatpush.msra.mxu0 0.0
        %1071 = vmatpush.msra.mxu0 0.0
        %1072 = vmatpush.msra.mxu0 0.0
        %1073 = vmatpush.msra.mxu0 0.0
        %1074 = vmatpush.msra.mxu0 0.0
        %1075 = vmatpush.msra.mxu0 0.0
        %1076 = vmatpush.msra.mxu0 0.0
        %1077 = vmatpush.msra.mxu0 %v1060
        %1078 = vmatmul.f32.gmra.mxu0 %v1012
        %v1079 = vpop.f32.mrf.mxu0
        %v1080 = vadd.f32 %v964, %v1079
        %1081 = vmatmul.f32.gmra.mxu0 %v1015
        %v1082 = vpop.f32.mrf.mxu0
        %v1083 = vadd.f32 %v967, %v1082
        %1084 = vmatmul.f32.gmra.mxu0 %v1018
        %v1085 = vpop.f32.mrf.mxu0
        %v1086 = vadd.f32 %v970, %v1085
        %1087 = vmatmul.f32.gmra.mxu0 %v1021
        %v1088 = vpop.f32.mrf.mxu0
        %v1089 = vadd.f32 %v973, %v1088
        %1090 = vmatmul.f32.gmra.mxu0 %v1024
        %v1091 = vpop.f32.mrf.mxu0
        %v1092 = vadd.f32 %v976, %v1091
        %1093 = vmatmul.f32.gmra.mxu0 %v1027
        %v1094 = vpop.f32.mrf.mxu0
        %v1095 = vadd.f32 %v979, %v1094
        %1096 = vmatmul.f32.gmra.mxu0 %v1030
        %v1097 = vpop.f32.mrf.mxu0
        %v1098 = vadd.f32 %v982, %v1097
        %1099 = vmatmul.f32.gmra.mxu0 %v1033
        %v1100 = vpop.f32.mrf.mxu0
        %v1101 = vadd.f32 %v985, %v1100
        %1102 = vmatmul.f32.gmra.mxu0 %v1036
        %v1103 = vpop.f32.mrf.mxu0
        %v1104 = vadd.f32 %v988, %v1103
        %1105 = vmatmul.f32.gmra.mxu0 %v1039
        %v1106 = vpop.f32.mrf.mxu0
        %v1107 = vadd.f32 %v991, %v1106
        %1108 = vmatmul.f32.gmra.mxu0 %v1042
        %v1109 = vpop.f32.mrf.mxu0
        %v1110 = vadd.f32 %v994, %v1109
        %1111 = vmatmul.f32.gmra.mxu0 %v1045
        %v1112 = vpop.f32.mrf.mxu0
        %v1113 = vadd.f32 %v997, %v1112
        %1114 = vmatmul.f32.gmra.mxu0 %v1048
        %v1115 = vpop.f32.mrf.mxu0
        %v1116 = vadd.f32 %v1000, %v1115
        %1117 = vmatmul.f32.gmra.mxu0 %v1051
        %v1118 = vpop.f32.mrf.mxu0
        %v1119 = vadd.f32 %v1003, %v1118
        %1120 = vmatmul.f32.gmra.mxu0 %v1054
        %v1121 = vpop.f32.mrf.mxu0
        %v1122 = vadd.f32 %v1006, %v1121
        %1123 = vmatmul.f32.gmra.mxu0 %v1057
        %v1124 = vpop.f32.mrf.mxu0
        %v1125 = vadd.f32 %v1009, %v1124
        %1126 = vdwg.mxu0
        %v1127 = vld [vmem:[#allocation2 + $0x2] sm:$0xff]
        %v1128 = vld [vmem:[#allocation2 + $0xa] sm:$0xff]
        %v1129 = vld [vmem:[#allocation2 + $0x12] sm:$0xff]
        %v1130 = vld [vmem:[#allocation2 + $0x1a] sm:$0xff]
        %v1131 = vld [vmem:[#allocation2 + $0x22] sm:$0xff]
        %v1132 = vld [vmem:[#allocation2 + $0x2a] sm:$0xff]
        %v1133 = vld [vmem:[#allocation2 + $0x32] sm:$0xff]
        %v1134 = vld [vmem:[#allocation2 + $0x3a] sm:$0xff]
        %v1135 = vld [vmem:[#allocation2 + $0x42] sm:$0xff]
        %v1136 = vld [vmem:[#allocation2 + $0x4a] sm:$0xff]
        %v1137 = vld [vmem:[#allocation2 + $0x52] sm:$0xff]
        %v1138 = vld [vmem:[#allocation2 + $0x5a] sm:$0xff]
        %v1139 = vld [vmem:[#allocation2 + $0x62] sm:$0xff]
        %v1140 = vld [vmem:[#allocation2 + $0x6a] sm:$0xff]
        %v1141 = vld [vmem:[#allocation2 + $0x72] sm:$0xff]
        %v1142 = vld [vmem:[#allocation2 + $0x7a] sm:$0xff]
        %s1143 = scalar_lea.vmem %s1, 8
        %v1144 = vld [vmem:[%s1143] sm:$0xf]
        %v1146 = vsel %vm708, %v1127, 0
        %v1149 = vsel %vm708, %v1128, 0
        %v1152 = vsel %vm708, %v1129, 0
        %v1155 = vsel %vm708, %v1130, 0
        %v1158 = vsel %vm708, %v1131, 0
        %v1161 = vsel %vm708, %v1132, 0
        %v1164 = vsel %vm708, %v1133, 0
        %v1167 = vsel %vm708, %v1134, 0
        %v1170 = vsel %vm708, %v1135, 0
        %v1173 = vsel %vm708, %v1136, 0
        %v1176 = vsel %vm708, %v1137, 0
        %v1179 = vsel %vm708, %v1138, 0
        %v1182 = vsel %vm708, %v1139, 0
        %v1185 = vsel %vm708, %v1140, 0
        %v1188 = vsel %vm708, %v1141, 0
        %v1191 = vsel %vm708, %v1142, 0
        %v1194 = vsel %vm942, %v1144, 0
        %1196 = vmatpush.msra.mxu0 0.0
        %1197 = vmatpush.msra.mxu0 0.0
        %1198 = vmatpush.msra.mxu0 0.0
        %1199 = vmatpush.msra.mxu0 0.0
        %1200 = vmatpush.msra.mxu0 0.0
        %1201 = vmatpush.msra.mxu0 0.0
        %1202 = vmatpush.msra.mxu0 0.0
        %1203 = vmatpush.msra.mxu0 0.0
        %1204 = vmatpush.msra.mxu0 0.0
        %1205 = vmatpush.msra.mxu0 0.0
        %1206 = vmatpush.msra.mxu0 0.0
        %1207 = vmatpush.msra.mxu0 0.0
        %1208 = vmatpush.msra.mxu0 0.0
        %1209 = vmatpush.msra.mxu0 0.0
        %1210 = vmatpush.msra.mxu0 0.0
        %1211 = vmatpush.msra.mxu0 %v1194
        %1212 = vmatmul.f32.gmra.mxu0 %v1146
        %v1213 = vpop.f32.mrf.mxu0
        %v1214 = vadd.f32 0.0, %v1213
        %1215 = vmatmul.f32.gmra.mxu0 %v1149
        %v1216 = vpop.f32.mrf.mxu0
        %v1217 = vadd.f32 0.0, %v1216
        %1218 = vmatmul.f32.gmra.mxu0 %v1152
        %v1219 = vpop.f32.mrf.mxu0
        %v1220 = vadd.f32 0.0, %v1219
        %1221 = vmatmul.f32.gmra.mxu0 %v1155
        %v1222 = vpop.f32.mrf.mxu0
        %v1223 = vadd.f32 0.0, %v1222
        %1224 = vmatmul.f32.gmra.mxu0 %v1158
        %v1225 = vpop.f32.mrf.mxu0
        %v1226 = vadd.f32 0.0, %v1225
        %1227 = vmatmul.f32.gmra.mxu0 %v1161
        %v1228 = vpop.f32.mrf.mxu0
        %v1229 = vadd.f32 0.0, %v1228
        %1230 = vmatmul.f32.gmra.mxu0 %v1164
        %v1231 = vpop.f32.mrf.mxu0
        %v1232 = vadd.f32 0.0, %v1231
        %1233 = vmatmul.f32.gmra.mxu0 %v1167
        %v1234 = vpop.f32.mrf.mxu0
        %v1235 = vadd.f32 0.0, %v1234
        %1236 = vmatmul.f32.gmra.mxu0 %v1170
        %v1237 = vpop.f32.mrf.mxu0
        %v1238 = vadd.f32 0.0, %v1237
        %1239 = vmatmul.f32.gmra.mxu0 %v1173
        %v1240 = vpop.f32.mrf.mxu0
        %v1241 = vadd.f32 0.0, %v1240
        %1242 = vmatmul.f32.gmra.mxu0 %v1176
        %v1243 = vpop.f32.mrf.mxu0
        %v1244 = vadd.f32 0.0, %v1243
        %1245 = vmatmul.f32.gmra.mxu0 %v1179
        %v1246 = vpop.f32.mrf.mxu0
        %v1247 = vadd.f32 0.0, %v1246
        %1248 = vmatmul.f32.gmra.mxu0 %v1182
        %v1249 = vpop.f32.mrf.mxu0
        %v1250 = vadd.f32 0.0, %v1249
        %1251 = vmatmul.f32.gmra.mxu0 %v1185
        %v1252 = vpop.f32.mrf.mxu0
        %v1253 = vadd.f32 0.0, %v1252
        %1254 = vmatmul.f32.gmra.mxu0 %v1188
        %v1255 = vpop.f32.mrf.mxu0
        %v1256 = vadd.f32 0.0, %v1255
        %1257 = vmatmul.f32.gmra.mxu0 %v1191
        %v1258 = vpop.f32.mrf.mxu0
        %v1259 = vadd.f32 0.0, %v1258
        %1260 = vdwg.mxu0
        %v1261 = vadd.f32 %v1080, %v1214
        %v1262 = vadd.f32 %v1083, %v1217
        %v1263 = vadd.f32 %v1086, %v1220
        %v1264 = vadd.f32 %v1089, %v1223
        %v1265 = vadd.f32 %v1092, %v1226
        %v1266 = vadd.f32 %v1095, %v1229
        %v1267 = vadd.f32 %v1098, %v1232
        %v1268 = vadd.f32 %v1101, %v1235
        %v1269 = vadd.f32 %v1104, %v1238
        %v1270 = vadd.f32 %v1107, %v1241
        %v1271 = vadd.f32 %v1110, %v1244
        %v1272 = vadd.f32 %v1113, %v1247
        %v1273 = vadd.f32 %v1116, %v1250
        %v1274 = vadd.f32 %v1119, %v1253
        %v1275 = vadd.f32 %v1122, %v1256
        %v1276 = vadd.f32 %v1125, %v1259
        %v1277 = vld [vmem:[#allocation2 + $0x12] sm:$0xff]
        %v1278 = vld [vmem:[#allocation2 + $0x1a] sm:$0xff]
        %v1279 = vld [vmem:[#allocation2 + $0x22] sm:$0xff]
        %v1280 = vld [vmem:[#allocation2 + $0x2a] sm:$0xff]
        %v1281 = vld [vmem:[#allocation2 + $0x32] sm:$0xff]
        %v1282 = vld [vmem:[#allocation2 + $0x3a] sm:$0xff]
        %v1283 = vld [vmem:[#allocation2 + $0x42] sm:$0xff]
        %v1284 = vld [vmem:[#allocation2 + $0x4a] sm:$0xff]
        %v1285 = vld [vmem:[#allocation2 + $0x52] sm:$0xff]
        %v1286 = vld [vmem:[#allocation2 + $0x5a] sm:$0xff]
        %v1287 = vld [vmem:[#allocation2 + $0x62] sm:$0xff]
        %v1288 = vld [vmem:[#allocation2 + $0x6a] sm:$0xff]
        %v1289 = vld [vmem:[#allocation2 + $0x72] sm:$0xff]
        %v1290 = vld [vmem:[#allocation2 + $0x7a] sm:$0xff]
        %v1291 = vld [vmem:[#allocation2 + $0x82] sm:$0xff]
        %v1292 = vld [vmem:[#allocation2 + $0x8a] sm:$0xff]
        %s1293 = scalar_lea.vmem %s1, 12
        %v1294 = vld [vmem:[%s1293] sm:$0xf]
        %v1296 = vsel %vm708, %v1277, 0
        %v1299 = vsel %vm708, %v1278, 0
        %v1302 = vsel %vm708, %v1279, 0
        %v1305 = vsel %vm708, %v1280, 0
        %v1308 = vsel %vm708, %v1281, 0
        %v1311 = vsel %vm708, %v1282, 0
        %v1314 = vsel %vm708, %v1283, 0
        %v1317 = vsel %vm708, %v1284, 0
        %v1320 = vsel %vm708, %v1285, 0
        %v1323 = vsel %vm708, %v1286, 0
        %v1326 = vsel %vm708, %v1287, 0
        %v1329 = vsel %vm708, %v1288, 0
        %v1332 = vsel %vm708, %v1289, 0
        %v1335 = vsel %vm708, %v1290, 0
        %v1338 = vsel %vm708, %v1291, 0
        %v1341 = vsel %vm708, %v1292, 0
        %v1344 = vsel %vm942, %v1294, 0
        %1346 = vmatpush.msra.mxu0 0.0
        %1347 = vmatpush.msra.mxu0 0.0
        %1348 = vmatpush.msra.mxu0 0.0
        %1349 = vmatpush.msra.mxu0 0.0
        %1350 = vmatpush.msra.mxu0 0.0
        %1351 = vmatpush.msra.mxu0 0.0
        %1352 = vmatpush.msra.mxu0 0.0
        %1353 = vmatpush.msra.mxu0 0.0
        %1354 = vmatpush.msra.mxu0 0.0
        %1355 = vmatpush.msra.mxu0 0.0
        %1356 = vmatpush.msra.mxu0 0.0
        %1357 = vmatpush.msra.mxu0 0.0
        %1358 = vmatpush.msra.mxu0 0.0
        %1359 = vmatpush.msra.mxu0 0.0
        %1360 = vmatpush.msra.mxu0 0.0
        %1361 = vmatpush.msra.mxu0 %v1344
        %1362 = vmatmul.f32.gmra.mxu0 %v1296
        %v1363 = vpop.f32.mrf.mxu0
        %v1364 = vadd.f32 0.0, %v1363
        %1365 = vmatmul.f32.gmra.mxu0 %v1299
        %v1366 = vpop.f32.mrf.mxu0
        %v1367 = vadd.f32 0.0, %v1366
        %1368 = vmatmul.f32.gmra.mxu0 %v1302
        %v1369 = vpop.f32.mrf.mxu0
        %v1370 = vadd.f32 0.0, %v1369
        %1371 = vmatmul.f32.gmra.mxu0 %v1305
        %v1372 = vpop.f32.mrf.mxu0
        %v1373 = vadd.f32 0.0, %v1372
        %1374 = vmatmul.f32.gmra.mxu0 %v1308
        %v1375 = vpop.f32.mrf.mxu0
        %v1376 = vadd.f32 0.0, %v1375
        %1377 = vmatmul.f32.gmra.mxu0 %v1311
        %v1378 = vpop.f32.mrf.mxu0
        %v1379 = vadd.f32 0.0, %v1378
        %1380 = vmatmul.f32.gmra.mxu0 %v1314
        %v1381 = vpop.f32.mrf.mxu0
        %v1382 = vadd.f32 0.0, %v1381
        %1383 = vmatmul.f32.gmra.mxu0 %v1317
        %v1384 = vpop.f32.mrf.mxu0
        %v1385 = vadd.f32 0.0, %v1384
        %1386 = vmatmul.f32.gmra.mxu0 %v1320
        %v1387 = vpop.f32.mrf.mxu0
        %v1388 = vadd.f32 0.0, %v1387
        %1389 = vmatmul.f32.gmra.mxu0 %v1323
        %v1390 = vpop.f32.mrf.mxu0
        %v1391 = vadd.f32 0.0, %v1390
        %1392 = vmatmul.f32.gmra.mxu0 %v1326
        %v1393 = vpop.f32.mrf.mxu0
        %v1394 = vadd.f32 0.0, %v1393
        %1395 = vmatmul.f32.gmra.mxu0 %v1329
        %v1396 = vpop.f32.mrf.mxu0
        %v1397 = vadd.f32 0.0, %v1396
        %1398 = vmatmul.f32.gmra.mxu0 %v1332
        %v1399 = vpop.f32.mrf.mxu0
        %v1400 = vadd.f32 0.0, %v1399
        %1401 = vmatmul.f32.gmra.mxu0 %v1335
        %v1402 = vpop.f32.mrf.mxu0
        %v1403 = vadd.f32 0.0, %v1402
        %1404 = vmatmul.f32.gmra.mxu0 %v1338
        %v1405 = vpop.f32.mrf.mxu0
        %v1406 = vadd.f32 0.0, %v1405
        %1407 = vmatmul.f32.gmra.mxu0 %v1341
        %v1408 = vpop.f32.mrf.mxu0
        %v1409 = vadd.f32 0.0, %v1408
        %1410 = vdwg.mxu0
        %v1411 = vadd.f32 %v1261, %v1364
        %v1412 = vadd.f32 %v1262, %v1367
        %v1413 = vadd.f32 %v1263, %v1370
        %v1414 = vadd.f32 %v1264, %v1373
        %v1415 = vadd.f32 %v1265, %v1376
        %v1416 = vadd.f32 %v1266, %v1379
        %v1417 = vadd.f32 %v1267, %v1382
        %v1418 = vadd.f32 %v1268, %v1385
        %v1419 = vadd.f32 %v1269, %v1388
        %v1420 = vadd.f32 %v1270, %v1391
        %v1421 = vadd.f32 %v1271, %v1394
        %v1422 = vadd.f32 %v1272, %v1397
        %v1423 = vadd.f32 %v1273, %v1400
        %v1424 = vadd.f32 %v1274, %v1403
        %v1425 = vadd.f32 %v1275, %v1406
        %v1426 = vadd.f32 %v1276, %v1409
        %v1427 = vld [vmem:[#allocation2 + $0x13] sm:$0xff]
        %v1428 = vld [vmem:[#allocation2 + $0x1b] sm:$0xff]
        %v1429 = vld [vmem:[#allocation2 + $0x23] sm:$0xff]
        %v1430 = vld [vmem:[#allocation2 + $0x2b] sm:$0xff]
        %v1431 = vld [vmem:[#allocation2 + $0x33] sm:$0xff]
        %v1432 = vld [vmem:[#allocation2 + $0x3b] sm:$0xff]
        %v1433 = vld [vmem:[#allocation2 + $0x43] sm:$0xff]
        %v1434 = vld [vmem:[#allocation2 + $0x4b] sm:$0xff]
        %v1435 = vld [vmem:[#allocation2 + $0x53] sm:$0xff]
        %v1436 = vld [vmem:[#allocation2 + $0x5b] sm:$0xff]
        %v1437 = vld [vmem:[#allocation2 + $0x63] sm:$0xff]
        %v1438 = vld [vmem:[#allocation2 + $0x6b] sm:$0xff]
        %v1439 = vld [vmem:[#allocation2 + $0x73] sm:$0xff]
        %v1440 = vld [vmem:[#allocation2 + $0x7b] sm:$0xff]
        %v1441 = vld [vmem:[#allocation2 + $0x83] sm:$0xff]
        %v1442 = vld [vmem:[#allocation2 + $0x8b] sm:$0xff]
        %s1443 = scalar_lea.vmem %s1, 16
        %v1444 = vld [vmem:[%s1443] sm:$0xf]
        %v1446 = vsel %vm708, %v1427, 0
        %v1449 = vsel %vm708, %v1428, 0
        %v1452 = vsel %vm708, %v1429, 0
        %v1455 = vsel %vm708, %v1430, 0
        %v1458 = vsel %vm708, %v1431, 0
        %v1461 = vsel %vm708, %v1432, 0
        %v1464 = vsel %vm708, %v1433, 0
        %v1467 = vsel %vm708, %v1434, 0
        %v1470 = vsel %vm708, %v1435, 0
        %v1473 = vsel %vm708, %v1436, 0
        %v1476 = vsel %vm708, %v1437, 0
        %v1479 = vsel %vm708, %v1438, 0
        %v1482 = vsel %vm708, %v1439, 0
        %v1485 = vsel %vm708, %v1440, 0
        %v1488 = vsel %vm708, %v1441, 0
        %v1491 = vsel %vm708, %v1442, 0
        %v1494 = vsel %vm942, %v1444, 0
        %1496 = vmatpush.msra.mxu0 0.0
        %1497 = vmatpush.msra.mxu0 0.0
        %1498 = vmatpush.msra.mxu0 0.0
        %1499 = vmatpush.msra.mxu0 0.0
        %1500 = vmatpush.msra.mxu0 0.0
        %1501 = vmatpush.msra.mxu0 0.0
        %1502 = vmatpush.msra.mxu0 0.0
        %1503 = vmatpush.msra.mxu0 0.0
        %1504 = vmatpush.msra.mxu0 0.0
        %1505 = vmatpush.msra.mxu0 0.0
        %1506 = vmatpush.msra.mxu0 0.0
        %1507 = vmatpush.msra.mxu0 0.0
        %1508 = vmatpush.msra.mxu0 0.0
        %1509 = vmatpush.msra.mxu0 0.0
        %1510 = vmatpush.msra.mxu0 0.0
        %1511 = vmatpush.msra.mxu0 %v1494
        %1512 = vmatmul.f32.gmra.mxu0 %v1446
        %v1513 = vpop.f32.mrf.mxu0
        %v1514 = vadd.f32 0.0, %v1513
        %1515 = vmatmul.f32.gmra.mxu0 %v1449
        %v1516 = vpop.f32.mrf.mxu0
        %v1517 = vadd.f32 0.0, %v1516
        %1518 = vmatmul.f32.gmra.mxu0 %v1452
        %v1519 = vpop.f32.mrf.mxu0
        %v1520 = vadd.f32 0.0, %v1519
        %1521 = vmatmul.f32.gmra.mxu0 %v1455
        %v1522 = vpop.f32.mrf.mxu0
        %v1523 = vadd.f32 0.0, %v1522
        %1524 = vmatmul.f32.gmra.mxu0 %v1458
        %v1525 = vpop.f32.mrf.mxu0
        %v1526 = vadd.f32 0.0, %v1525
        %1527 = vmatmul.f32.gmra.mxu0 %v1461
        %v1528 = vpop.f32.mrf.mxu0
        %v1529 = vadd.f32 0.0, %v1528
        %1530 = vmatmul.f32.gmra.mxu0 %v1464
        %v1531 = vpop.f32.mrf.mxu0
        %v1532 = vadd.f32 0.0, %v1531
        %1533 = vmatmul.f32.gmra.mxu0 %v1467
        %v1534 = vpop.f32.mrf.mxu0
        %v1535 = vadd.f32 0.0, %v1534
        %1536 = vmatmul.f32.gmra.mxu0 %v1470
        %v1537 = vpop.f32.mrf.mxu0
        %v1538 = vadd.f32 0.0, %v1537
        %1539 = vmatmul.f32.gmra.mxu0 %v1473
        %v1540 = vpop.f32.mrf.mxu0
        %v1541 = vadd.f32 0.0, %v1540
        %1542 = vmatmul.f32.gmra.mxu0 %v1476
        %v1543 = vpop.f32.mrf.mxu0
        %v1544 = vadd.f32 0.0, %v1543
        %1545 = vmatmul.f32.gmra.mxu0 %v1479
        %v1546 = vpop.f32.mrf.mxu0
        %v1547 = vadd.f32 0.0, %v1546
        %1548 = vmatmul.f32.gmra.mxu0 %v1482
        %v1549 = vpop.f32.mrf.mxu0
        %v1550 = vadd.f32 0.0, %v1549
        %1551 = vmatmul.f32.gmra.mxu0 %v1485
        %v1552 = vpop.f32.mrf.mxu0
        %v1553 = vadd.f32 0.0, %v1552
        %1554 = vmatmul.f32.gmra.mxu0 %v1488
        %v1555 = vpop.f32.mrf.mxu0
        %v1556 = vadd.f32 0.0, %v1555
        %1557 = vmatmul.f32.gmra.mxu0 %v1491
        %v1558 = vpop.f32.mrf.mxu0
        %v1559 = vadd.f32 0.0, %v1558
        %1560 = vdwg.mxu0
        %v1561 = vadd.f32 %v1411, %v1514
        %v1562 = vadd.f32 %v1412, %v1517
        %v1563 = vadd.f32 %v1413, %v1520
        %v1564 = vadd.f32 %v1414, %v1523
        %v1565 = vadd.f32 %v1415, %v1526
        %v1566 = vadd.f32 %v1416, %v1529
        %v1567 = vadd.f32 %v1417, %v1532
        %v1568 = vadd.f32 %v1418, %v1535
        %v1569 = vadd.f32 %v1419, %v1538
        %v1570 = vadd.f32 %v1420, %v1541
        %v1571 = vadd.f32 %v1421, %v1544
        %v1572 = vadd.f32 %v1422, %v1547
        %v1573 = vadd.f32 %v1423, %v1550
        %v1574 = vadd.f32 %v1424, %v1553
        %v1575 = vadd.f32 %v1425, %v1556
        %v1576 = vadd.f32 %v1426, %v1559
        %v1577 = vld [vmem:[#allocation2 + $0x14] sm:$0xff]
        %v1578 = vld [vmem:[#allocation2 + $0x1c] sm:$0xff]
        %v1579 = vld [vmem:[#allocation2 + $0x24] sm:$0xff]
        %v1580 = vld [vmem:[#allocation2 + $0x2c] sm:$0xff]
        %v1581 = vld [vmem:[#allocation2 + $0x34] sm:$0xff]
        %v1582 = vld [vmem:[#allocation2 + $0x3c] sm:$0xff]
        %v1583 = vld [vmem:[#allocation2 + $0x44] sm:$0xff]
        %v1584 = vld [vmem:[#allocation2 + $0x4c] sm:$0xff]
        %v1585 = vld [vmem:[#allocation2 + $0x54] sm:$0xff]
        %v1586 = vld [vmem:[#allocation2 + $0x5c] sm:$0xff]
        %v1587 = vld [vmem:[#allocation2 + $0x64] sm:$0xff]
        %v1588 = vld [vmem:[#allocation2 + $0x6c] sm:$0xff]
        %v1589 = vld [vmem:[#allocation2 + $0x74] sm:$0xff]
        %v1590 = vld [vmem:[#allocation2 + $0x7c] sm:$0xff]
        %v1591 = vld [vmem:[#allocation2 + $0x84] sm:$0xff]
        %v1592 = vld [vmem:[#allocation2 + $0x8c] sm:$0xff]
        %s1593 = scalar_lea.vmem %s1, 20
        %v1594 = vld [vmem:[%s1593] sm:$0xf]
        %v1596 = vsel %vm708, %v1577, 0
        %v1599 = vsel %vm708, %v1578, 0
        %v1602 = vsel %vm708, %v1579, 0
        %v1605 = vsel %vm708, %v1580, 0
        %v1608 = vsel %vm708, %v1581, 0
        %v1611 = vsel %vm708, %v1582, 0
        %v1614 = vsel %vm708, %v1583, 0
        %v1617 = vsel %vm708, %v1584, 0
        %v1620 = vsel %vm708, %v1585, 0
        %v1623 = vsel %vm708, %v1586, 0
        %v1626 = vsel %vm708, %v1587, 0
        %v1629 = vsel %vm708, %v1588, 0
        %v1632 = vsel %vm708, %v1589, 0
        %v1635 = vsel %vm708, %v1590, 0
        %v1638 = vsel %vm708, %v1591, 0
        %v1641 = vsel %vm708, %v1592, 0
        %v1644 = vsel %vm942, %v1594, 0
        %1646 = vmatpush.msra.mxu0 0.0
        %1647 = vmatpush.msra.mxu0 0.0
        %1648 = vmatpush.msra.mxu0 0.0
        %1649 = vmatpush.msra.mxu0 0.0
        %1650 = vmatpush.msra.mxu0 0.0
        %1651 = vmatpush.msra.mxu0 0.0
        %1652 = vmatpush.msra.mxu0 0.0
        %1653 = vmatpush.msra.mxu0 0.0
        %1654 = vmatpush.msra.mxu0 0.0
        %1655 = vmatpush.msra.mxu0 0.0
        %1656 = vmatpush.msra.mxu0 0.0
        %1657 = vmatpush.msra.mxu0 0.0
        %1658 = vmatpush.msra.mxu0 0.0
        %1659 = vmatpush.msra.mxu0 0.0
        %1660 = vmatpush.msra.mxu0 0.0
        %1661 = vmatpush.msra.mxu0 %v1644
        %1662 = vmatmul.f32.gmra.mxu0 %v1596
        %v1663 = vpop.f32.mrf.mxu0
        %v1664 = vadd.f32 0.0, %v1663
        %1665 = vmatmul.f32.gmra.mxu0 %v1599
        %v1666 = vpop.f32.mrf.mxu0
        %v1667 = vadd.f32 0.0, %v1666
        %1668 = vmatmul.f32.gmra.mxu0 %v1602
        %v1669 = vpop.f32.mrf.mxu0
        %v1670 = vadd.f32 0.0, %v1669
        %1671 = vmatmul.f32.gmra.mxu0 %v1605
        %v1672 = vpop.f32.mrf.mxu0
        %v1673 = vadd.f32 0.0, %v1672
        %1674 = vmatmul.f32.gmra.mxu0 %v1608
        %v1675 = vpop.f32.mrf.mxu0
        %v1676 = vadd.f32 0.0, %v1675
        %1677 = vmatmul.f32.gmra.mxu0 %v1611
        %v1678 = vpop.f32.mrf.mxu0
        %v1679 = vadd.f32 0.0, %v1678
        %1680 = vmatmul.f32.gmra.mxu0 %v1614
        %v1681 = vpop.f32.mrf.mxu0
        %v1682 = vadd.f32 0.0, %v1681
        %1683 = vmatmul.f32.gmra.mxu0 %v1617
        %v1684 = vpop.f32.mrf.mxu0
        %v1685 = vadd.f32 0.0, %v1684
        %1686 = vmatmul.f32.gmra.mxu0 %v1620
        %v1687 = vpop.f32.mrf.mxu0
        %v1688 = vadd.f32 0.0, %v1687
        %1689 = vmatmul.f32.gmra.mxu0 %v1623
        %v1690 = vpop.f32.mrf.mxu0
        %v1691 = vadd.f32 0.0, %v1690
        %1692 = vmatmul.f32.gmra.mxu0 %v1626
        %v1693 = vpop.f32.mrf.mxu0
        %v1694 = vadd.f32 0.0, %v1693
        %1695 = vmatmul.f32.gmra.mxu0 %v1629
        %v1696 = vpop.f32.mrf.mxu0
        %v1697 = vadd.f32 0.0, %v1696
        %1698 = vmatmul.f32.gmra.mxu0 %v1632
        %v1699 = vpop.f32.mrf.mxu0
        %v1700 = vadd.f32 0.0, %v1699
        %1701 = vmatmul.f32.gmra.mxu0 %v1635
        %v1702 = vpop.f32.mrf.mxu0
        %v1703 = vadd.f32 0.0, %v1702
        %1704 = vmatmul.f32.gmra.mxu0 %v1638
        %v1705 = vpop.f32.mrf.mxu0
        %v1706 = vadd.f32 0.0, %v1705
        %1707 = vmatmul.f32.gmra.mxu0 %v1641
        %v1708 = vpop.f32.mrf.mxu0
        %v1709 = vadd.f32 0.0, %v1708
        %1710 = vdwg.mxu0
        %v1711 = vadd.f32 %v1561, %v1664
        %v1712 = vadd.f32 %v1562, %v1667
        %v1713 = vadd.f32 %v1563, %v1670
        %v1714 = vadd.f32 %v1564, %v1673
        %v1715 = vadd.f32 %v1565, %v1676
        %v1716 = vadd.f32 %v1566, %v1679
        %v1717 = vadd.f32 %v1567, %v1682
        %v1718 = vadd.f32 %v1568, %v1685
        %v1719 = vadd.f32 %v1569, %v1688
        %v1720 = vadd.f32 %v1570, %v1691
        %v1721 = vadd.f32 %v1571, %v1694
        %v1722 = vadd.f32 %v1572, %v1697
        %v1723 = vadd.f32 %v1573, %v1700
        %v1724 = vadd.f32 %v1574, %v1703
        %v1725 = vadd.f32 %v1575, %v1706
        %v1726 = vadd.f32 %v1576, %v1709
        %v1727 = vld [vmem:[#allocation2 + $0x24] sm:$0xff]
        %v1728 = vld [vmem:[#allocation2 + $0x2c] sm:$0xff]
        %v1729 = vld [vmem:[#allocation2 + $0x34] sm:$0xff]
        %v1730 = vld [vmem:[#allocation2 + $0x3c] sm:$0xff]
        %v1731 = vld [vmem:[#allocation2 + $0x44] sm:$0xff]
        %v1732 = vld [vmem:[#allocation2 + $0x4c] sm:$0xff]
        %v1733 = vld [vmem:[#allocation2 + $0x54] sm:$0xff]
        %v1734 = vld [vmem:[#allocation2 + $0x5c] sm:$0xff]
        %v1735 = vld [vmem:[#allocation2 + $0x64] sm:$0xff]
        %v1736 = vld [vmem:[#allocation2 + $0x6c] sm:$0xff]
        %v1737 = vld [vmem:[#allocation2 + $0x74] sm:$0xff]
        %v1738 = vld [vmem:[#allocation2 + $0x7c] sm:$0xff]
        %v1739 = vld [vmem:[#allocation2 + $0x84] sm:$0xff]
        %v1740 = vld [vmem:[#allocation2 + $0x8c] sm:$0xff]
        %v1741 = vld [vmem:[#allocation2 + $0x94] sm:$0xff]
        %v1742 = vld [vmem:[#allocation2 + $0x9c] sm:$0xff]
        %s1743 = scalar_lea.vmem %s1, 24
        %v1744 = vld [vmem:[%s1743] sm:$0xf]
        %v1746 = vsel %vm708, %v1727, 0
        %v1749 = vsel %vm708, %v1728, 0
        %v1752 = vsel %vm708, %v1729, 0
        %v1755 = vsel %vm708, %v1730, 0
        %v1758 = vsel %vm708, %v1731, 0
        %v1761 = vsel %vm708, %v1732, 0
        %v1764 = vsel %vm708, %v1733, 0
        %v1767 = vsel %vm708, %v1734, 0
        %v1770 = vsel %vm708, %v1735, 0
        %v1773 = vsel %vm708, %v1736, 0
        %v1776 = vsel %vm708, %v1737, 0
        %v1779 = vsel %vm708, %v1738, 0
        %v1782 = vsel %vm708, %v1739, 0
        %v1785 = vsel %vm708, %v1740, 0
        %v1788 = vsel %vm708, %v1741, 0
        %v1791 = vsel %vm708, %v1742, 0
        %v1794 = vsel %vm942, %v1744, 0
        %1796 = vmatpush.msra.mxu0 0.0
        %1797 = vmatpush.msra.mxu0 0.0
        %1798 = vmatpush.msra.mxu0 0.0
        %1799 = vmatpush.msra.mxu0 0.0
        %1800 = vmatpush.msra.mxu0 0.0
        %1801 = vmatpush.msra.mxu0 0.0
        %1802 = vmatpush.msra.mxu0 0.0
        %1803 = vmatpush.msra.mxu0 0.0
        %1804 = vmatpush.msra.mxu0 0.0
        %1805 = vmatpush.msra.mxu0 0.0
        %1806 = vmatpush.msra.mxu0 0.0
        %1807 = vmatpush.msra.mxu0 0.0
        %1808 = vmatpush.msra.mxu0 0.0
        %1809 = vmatpush.msra.mxu0 0.0
        %1810 = vmatpush.msra.mxu0 0.0
        %1811 = vmatpush.msra.mxu0 %v1794
        %1812 = vmatmul.f32.gmra.mxu0 %v1746
        %v1813 = vpop.f32.mrf.mxu0
        %v1814 = vadd.f32 0.0, %v1813
        %1815 = vmatmul.f32.gmra.mxu0 %v1749
        %v1816 = vpop.f32.mrf.mxu0
        %v1817 = vadd.f32 0.0, %v1816
        %1818 = vmatmul.f32.gmra.mxu0 %v1752
        %v1819 = vpop.f32.mrf.mxu0
        %v1820 = vadd.f32 0.0, %v1819
        %1821 = vmatmul.f32.gmra.mxu0 %v1755
        %v1822 = vpop.f32.mrf.mxu0
        %v1823 = vadd.f32 0.0, %v1822
        %1824 = vmatmul.f32.gmra.mxu0 %v1758
        %v1825 = vpop.f32.mrf.mxu0
        %v1826 = vadd.f32 0.0, %v1825
        %1827 = vmatmul.f32.gmra.mxu0 %v1761
        %v1828 = vpop.f32.mrf.mxu0
        %v1829 = vadd.f32 0.0, %v1828
        %1830 = vmatmul.f32.gmra.mxu0 %v1764
        %v1831 = vpop.f32.mrf.mxu0
        %v1832 = vadd.f32 0.0, %v1831
        %1833 = vmatmul.f32.gmra.mxu0 %v1767
        %v1834 = vpop.f32.mrf.mxu0
        %v1835 = vadd.f32 0.0, %v1834
        %1836 = vmatmul.f32.gmra.mxu0 %v1770
        %v1837 = vpop.f32.mrf.mxu0
        %v1838 = vadd.f32 0.0, %v1837
        %1839 = vmatmul.f32.gmra.mxu0 %v1773
        %v1840 = vpop.f32.mrf.mxu0
        %v1841 = vadd.f32 0.0, %v1840
        %1842 = vmatmul.f32.gmra.mxu0 %v1776
        %v1843 = vpop.f32.mrf.mxu0
        %v1844 = vadd.f32 0.0, %v1843
        %1845 = vmatmul.f32.gmra.mxu0 %v1779
        %v1846 = vpop.f32.mrf.mxu0
        %v1847 = vadd.f32 0.0, %v1846
        %1848 = vmatmul.f32.gmra.mxu0 %v1782
        %v1849 = vpop.f32.mrf.mxu0
        %v1850 = vadd.f32 0.0, %v1849
        %1851 = vmatmul.f32.gmra.mxu0 %v1785
        %v1852 = vpop.f32.mrf.mxu0
        %v1853 = vadd.f32 0.0, %v1852
        %1854 = vmatmul.f32.gmra.mxu0 %v1788
        %v1855 = vpop.f32.mrf.mxu0
        %v1856 = vadd.f32 0.0, %v1855
        %1857 = vmatmul.f32.gmra.mxu0 %v1791
        %v1858 = vpop.f32.mrf.mxu0
        %v1859 = vadd.f32 0.0, %v1858
        %1860 = vdwg.mxu0
        %v1861 = vadd.f32 %v1711, %v1814
        %v1862 = vadd.f32 %v1712, %v1817
        %v1863 = vadd.f32 %v1713, %v1820
        %v1864 = vadd.f32 %v1714, %v1823
        %v1865 = vadd.f32 %v1715, %v1826
        %v1866 = vadd.f32 %v1716, %v1829
        %v1867 = vadd.f32 %v1717, %v1832
        %v1868 = vadd.f32 %v1718, %v1835
        %v1869 = vadd.f32 %v1719, %v1838
        %v1870 = vadd.f32 %v1720, %v1841
        %v1871 = vadd.f32 %v1721, %v1844
        %v1872 = vadd.f32 %v1722, %v1847
        %v1873 = vadd.f32 %v1723, %v1850
        %v1874 = vadd.f32 %v1724, %v1853
        %v1875 = vadd.f32 %v1725, %v1856
        %v1876 = vadd.f32 %v1726, %v1859
        %v1877 = vld [vmem:[#allocation2 + $0x25] sm:$0xff]
        %v1878 = vld [vmem:[#allocation2 + $0x2d] sm:$0xff]
        %v1879 = vld [vmem:[#allocation2 + $0x35] sm:$0xff]
        %v1880 = vld [vmem:[#allocation2 + $0x3d] sm:$0xff]
        %v1881 = vld [vmem:[#allocation2 + $0x45] sm:$0xff]
        %v1882 = vld [vmem:[#allocation2 + $0x4d] sm:$0xff]
        %v1883 = vld [vmem:[#allocation2 + $0x55] sm:$0xff]
        %v1884 = vld [vmem:[#allocation2 + $0x5d] sm:$0xff]
        %v1885 = vld [vmem:[#allocation2 + $0x65] sm:$0xff]
        %v1886 = vld [vmem:[#allocation2 + $0x6d] sm:$0xff]
        %v1887 = vld [vmem:[#allocation2 + $0x75] sm:$0xff]
        %v1888 = vld [vmem:[#allocation2 + $0x7d] sm:$0xff]
        %v1889 = vld [vmem:[#allocation2 + $0x85] sm:$0xff]
        %v1890 = vld [vmem:[#allocation2 + $0x8d] sm:$0xff]
        %v1891 = vld [vmem:[#allocation2 + $0x95] sm:$0xff]
        %v1892 = vld [vmem:[#allocation2 + $0x9d] sm:$0xff]
        %s1893 = scalar_lea.vmem %s1, 28
        %v1894 = vld [vmem:[%s1893] sm:$0xf]
        %v1896 = vsel %vm708, %v1877, 0
        %v1899 = vsel %vm708, %v1878, 0
        %v1902 = vsel %vm708, %v1879, 0
        %v1905 = vsel %vm708, %v1880, 0
        %v1908 = vsel %vm708, %v1881, 0
        %v1911 = vsel %vm708, %v1882, 0
        %v1914 = vsel %vm708, %v1883, 0
        %v1917 = vsel %vm708, %v1884, 0
        %v1920 = vsel %vm708, %v1885, 0
        %v1923 = vsel %vm708, %v1886, 0
        %v1926 = vsel %vm708, %v1887, 0
        %v1929 = vsel %vm708, %v1888, 0
        %v1932 = vsel %vm708, %v1889, 0
        %v1935 = vsel %vm708, %v1890, 0
        %v1938 = vsel %vm708, %v1891, 0
        %v1941 = vsel %vm708, %v1892, 0
        %v1944 = vsel %vm942, %v1894, 0
        %1946 = vmatpush.msra.mxu0 0.0
        %1947 = vmatpush.msra.mxu0 0.0
        %1948 = vmatpush.msra.mxu0 0.0
        %1949 = vmatpush.msra.mxu0 0.0
        %1950 = vmatpush.msra.mxu0 0.0
        %1951 = vmatpush.msra.mxu0 0.0
        %1952 = vmatpush.msra.mxu0 0.0
        %1953 = vmatpush.msra.mxu0 0.0
        %1954 = vmatpush.msra.mxu0 0.0
        %1955 = vmatpush.msra.mxu0 0.0
        %1956 = vmatpush.msra.mxu0 0.0
        %1957 = vmatpush.msra.mxu0 0.0
        %1958 = vmatpush.msra.mxu0 0.0
        %1959 = vmatpush.msra.mxu0 0.0
        %1960 = vmatpush.msra.mxu0 0.0
        %1961 = vmatpush.msra.mxu0 %v1944
        %1962 = vmatmul.f32.gmra.mxu0 %v1896
        %v1963 = vpop.f32.mrf.mxu0
        %v1964 = vadd.f32 0.0, %v1963
        %1965 = vmatmul.f32.gmra.mxu0 %v1899
        %v1966 = vpop.f32.mrf.mxu0
        %v1967 = vadd.f32 0.0, %v1966
        %1968 = vmatmul.f32.gmra.mxu0 %v1902
        %v1969 = vpop.f32.mrf.mxu0
        %v1970 = vadd.f32 0.0, %v1969
        %1971 = vmatmul.f32.gmra.mxu0 %v1905
        %v1972 = vpop.f32.mrf.mxu0
        %v1973 = vadd.f32 0.0, %v1972
        %1974 = vmatmul.f32.gmra.mxu0 %v1908
        %v1975 = vpop.f32.mrf.mxu0
        %v1976 = vadd.f32 0.0, %v1975
        %1977 = vmatmul.f32.gmra.mxu0 %v1911
        %v1978 = vpop.f32.mrf.mxu0
        %v1979 = vadd.f32 0.0, %v1978
        %1980 = vmatmul.f32.gmra.mxu0 %v1914
        %v1981 = vpop.f32.mrf.mxu0
        %v1982 = vadd.f32 0.0, %v1981
        %1983 = vmatmul.f32.gmra.mxu0 %v1917
        %v1984 = vpop.f32.mrf.mxu0
        %v1985 = vadd.f32 0.0, %v1984
        %1986 = vmatmul.f32.gmra.mxu0 %v1920
        %v1987 = vpop.f32.mrf.mxu0
        %v1988 = vadd.f32 0.0, %v1987
        %1989 = vmatmul.f32.gmra.mxu0 %v1923
        %v1990 = vpop.f32.mrf.mxu0
        %v1991 = vadd.f32 0.0, %v1990
        %1992 = vmatmul.f32.gmra.mxu0 %v1926
        %v1993 = vpop.f32.mrf.mxu0
        %v1994 = vadd.f32 0.0, %v1993
        %1995 = vmatmul.f32.gmra.mxu0 %v1929
        %v1996 = vpop.f32.mrf.mxu0
        %v1997 = vadd.f32 0.0, %v1996
        %1998 = vmatmul.f32.gmra.mxu0 %v1932
        %v1999 = vpop.f32.mrf.mxu0
        %v2000 = vadd.f32 0.0, %v1999
        %2001 = vmatmul.f32.gmra.mxu0 %v1935
        %v2002 = vpop.f32.mrf.mxu0
        %v2003 = vadd.f32 0.0, %v2002
        %2004 = vmatmul.f32.gmra.mxu0 %v1938
        %v2005 = vpop.f32.mrf.mxu0
        %v2006 = vadd.f32 0.0, %v2005
        %2007 = vmatmul.f32.gmra.mxu0 %v1941
        %v2008 = vpop.f32.mrf.mxu0
        %v2009 = vadd.f32 0.0, %v2008
        %2010 = vdwg.mxu0
        %v2011 = vadd.f32 %v1861, %v1964
        %v2012 = vadd.f32 %v1862, %v1967
        %v2013 = vadd.f32 %v1863, %v1970
        %v2014 = vadd.f32 %v1864, %v1973
        %v2015 = vadd.f32 %v1865, %v1976
        %v2016 = vadd.f32 %v1866, %v1979
        %v2017 = vadd.f32 %v1867, %v1982
        %v2018 = vadd.f32 %v1868, %v1985
        %v2019 = vadd.f32 %v1869, %v1988
        %v2020 = vadd.f32 %v1870, %v1991
        %v2021 = vadd.f32 %v1871, %v1994
        %v2022 = vadd.f32 %v1872, %v1997
        %v2023 = vadd.f32 %v1873, %v2000
        %v2024 = vadd.f32 %v1874, %v2003
        %v2025 = vadd.f32 %v1875, %v2006
        %v2026 = vadd.f32 %v1876, %v2009
        %v2027 = vld [vmem:[#allocation2 + $0x26] sm:$0xff]
        %v2028 = vld [vmem:[#allocation2 + $0x2e] sm:$0xff]
        %v2029 = vld [vmem:[#allocation2 + $0x36] sm:$0xff]
        %v2030 = vld [vmem:[#allocation2 + $0x3e] sm:$0xff]
        %v2031 = vld [vmem:[#allocation2 + $0x46] sm:$0xff]
        %v2032 = vld [vmem:[#allocation2 + $0x4e] sm:$0xff]
        %v2033 = vld [vmem:[#allocation2 + $0x56] sm:$0xff]
        %v2034 = vld [vmem:[#allocation2 + $0x5e] sm:$0xff]
        %v2035 = vld [vmem:[#allocation2 + $0x66] sm:$0xff]
        %v2036 = vld [vmem:[#allocation2 + $0x6e] sm:$0xff]
        %v2037 = vld [vmem:[#allocation2 + $0x76] sm:$0xff]
        %v2038 = vld [vmem:[#allocation2 + $0x7e] sm:$0xff]
        %v2039 = vld [vmem:[#allocation2 + $0x86] sm:$0xff]
        %v2040 = vld [vmem:[#allocation2 + $0x8e] sm:$0xff]
        %v2041 = vld [vmem:[#allocation2 + $0x96] sm:$0xff]
        %v2042 = vld [vmem:[#allocation2 + $0x9e] sm:$0xff]
        %s2043 = scalar_lea.vmem %s1, 32
        %v2044 = vld [vmem:[%s2043] sm:$0xf]
        %v2046 = vsel %vm708, %v2027, 0
        %v2049 = vsel %vm708, %v2028, 0
        %v2052 = vsel %vm708, %v2029, 0
        %v2055 = vsel %vm708, %v2030, 0
        %v2058 = vsel %vm708, %v2031, 0
        %v2061 = vsel %vm708, %v2032, 0
        %v2064 = vsel %vm708, %v2033, 0
        %v2067 = vsel %vm708, %v2034, 0
        %v2070 = vsel %vm708, %v2035, 0
        %v2073 = vsel %vm708, %v2036, 0
        %v2076 = vsel %vm708, %v2037, 0
        %v2079 = vsel %vm708, %v2038, 0
        %v2082 = vsel %vm708, %v2039, 0
        %v2085 = vsel %vm708, %v2040, 0
        %v2088 = vsel %vm708, %v2041, 0
        %v2091 = vsel %vm708, %v2042, 0
        %v2094 = vsel %vm942, %v2044, 0
        %2096 = vmatpush.msra.mxu0 0.0
        %2097 = vmatpush.msra.mxu0 0.0
        %2098 = vmatpush.msra.mxu0 0.0
        %2099 = vmatpush.msra.mxu0 0.0
        %2100 = vmatpush.msra.mxu0 0.0
        %2101 = vmatpush.msra.mxu0 0.0
        %2102 = vmatpush.msra.mxu0 0.0
        %2103 = vmatpush.msra.mxu0 0.0
        %2104 = vmatpush.msra.mxu0 0.0
        %2105 = vmatpush.msra.mxu0 0.0
        %2106 = vmatpush.msra.mxu0 0.0
        %2107 = vmatpush.msra.mxu0 0.0
        %2108 = vmatpush.msra.mxu0 0.0
        %2109 = vmatpush.msra.mxu0 0.0
        %2110 = vmatpush.msra.mxu0 0.0
        %2111 = vmatpush.msra.mxu0 %v2094
        %2112 = vmatmul.f32.gmra.mxu0 %v2046
        %v2113 = vpop.f32.mrf.mxu0
        %v2114 = vadd.f32 0.0, %v2113
        %2115 = vmatmul.f32.gmra.mxu0 %v2049
        %v2116 = vpop.f32.mrf.mxu0
        %v2117 = vadd.f32 0.0, %v2116
        %2118 = vmatmul.f32.gmra.mxu0 %v2052
        %v2119 = vpop.f32.mrf.mxu0
        %v2120 = vadd.f32 0.0, %v2119
        %2121 = vmatmul.f32.gmra.mxu0 %v2055
        %v2122 = vpop.f32.mrf.mxu0
        %v2123 = vadd.f32 0.0, %v2122
        %2124 = vmatmul.f32.gmra.mxu0 %v2058
        %v2125 = vpop.f32.mrf.mxu0
        %v2126 = vadd.f32 0.0, %v2125
        %2127 = vmatmul.f32.gmra.mxu0 %v2061
        %v2128 = vpop.f32.mrf.mxu0
        %v2129 = vadd.f32 0.0, %v2128
        %2130 = vmatmul.f32.gmra.mxu0 %v2064
        %v2131 = vpop.f32.mrf.mxu0
        %v2132 = vadd.f32 0.0, %v2131
        %2133 = vmatmul.f32.gmra.mxu0 %v2067
        %v2134 = vpop.f32.mrf.mxu0
        %v2135 = vadd.f32 0.0, %v2134
        %2136 = vmatmul.f32.gmra.mxu0 %v2070
        %v2137 = vpop.f32.mrf.mxu0
        %v2138 = vadd.f32 0.0, %v2137
        %2139 = vmatmul.f32.gmra.mxu0 %v2073
        %v2140 = vpop.f32.mrf.mxu0
        %v2141 = vadd.f32 0.0, %v2140
        %2142 = vmatmul.f32.gmra.mxu0 %v2076
        %v2143 = vpop.f32.mrf.mxu0
        %v2144 = vadd.f32 0.0, %v2143
        %2145 = vmatmul.f32.gmra.mxu0 %v2079
        %v2146 = vpop.f32.mrf.mxu0
        %v2147 = vadd.f32 0.0, %v2146
        %2148 = vmatmul.f32.gmra.mxu0 %v2082
        %v2149 = vpop.f32.mrf.mxu0
        %v2150 = vadd.f32 0.0, %v2149
        %2151 = vmatmul.f32.gmra.mxu0 %v2085
        %v2152 = vpop.f32.mrf.mxu0
        %v2153 = vadd.f32 0.0, %v2152
        %2154 = vmatmul.f32.gmra.mxu0 %v2088
        %v2155 = vpop.f32.mrf.mxu0
        %v2156 = vadd.f32 0.0, %v2155
        %2157 = vmatmul.f32.gmra.mxu0 %v2091
        %v2158 = vpop.f32.mrf.mxu0
        %v2159 = vadd.f32 0.0, %v2158
        %2160 = vdwg.mxu0
        %v2161 = vadd.f32 %v2011, %v2114
        %v2162 = vadd.f32 %v2012, %v2117
        %v2163 = vadd.f32 %v2013, %v2120
        %v2164 = vadd.f32 %v2014, %v2123
        %v2165 = vadd.f32 %v2015, %v2126
        %v2166 = vadd.f32 %v2016, %v2129
        %v2167 = vadd.f32 %v2017, %v2132
        %v2168 = vadd.f32 %v2018, %v2135
        %v2169 = vadd.f32 %v2019, %v2138
        %v2170 = vadd.f32 %v2020, %v2141
        %v2171 = vadd.f32 %v2021, %v2144
        %v2172 = vadd.f32 %v2022, %v2147
        %v2173 = vadd.f32 %v2023, %v2150
        %v2174 = vadd.f32 %v2024, %v2153
        %v2175 = vadd.f32 %v2025, %v2156
        %v2176 = vadd.f32 %v2026, %v2159
        %v2178 = vperm.slane %v857, 0
        %v2180 = vmul.f32 %v2161, %v2178
        %v2181 = vmul.f32 %v2162, %v2178
        %v2182 = vmul.f32 %v2163, %v2178
        %v2183 = vmul.f32 %v2164, %v2178
        %v2184 = vmul.f32 %v2165, %v2178
        %v2185 = vmul.f32 %v2166, %v2178
        %v2186 = vmul.f32 %v2167, %v2178
        %v2187 = vmul.f32 %v2168, %v2178
        %v2188 = vmul.f32 %v2169, %v2178
        %v2189 = vmul.f32 %v2170, %v2178
        %v2190 = vmul.f32 %v2171, %v2178
        %v2191 = vmul.f32 %v2172, %v2178
        %v2192 = vmul.f32 %v2173, %v2178
        %v2193 = vmul.f32 %v2174, %v2178
        %v2194 = vmul.f32 %v2175, %v2178
        %v2195 = vmul.f32 %v2176, %v2178
        %v2197 = vperm.slane %v858, 0
        %v2199 = vadd.f32 %v2180, %v2197
        %v2200 = vadd.f32 %v2181, %v2197
        %v2201 = vadd.f32 %v2182, %v2197
        %v2202 = vadd.f32 %v2183, %v2197
        %v2203 = vadd.f32 %v2184, %v2197
        %v2204 = vadd.f32 %v2185, %v2197
        %v2205 = vadd.f32 %v2186, %v2197
        %v2206 = vadd.f32 %v2187, %v2197
        %v2207 = vadd.f32 %v2188, %v2197
        %v2208 = vadd.f32 %v2189, %v2197
        %v2209 = vadd.f32 %v2190, %v2197
        %v2210 = vadd.f32 %v2191, %v2197
        %v2211 = vadd.f32 %v2192, %v2197
        %v2212 = vadd.f32 %v2193, %v2197
        %v2213 = vadd.f32 %v2194, %v2197
        %v2214 = vadd.f32 %v2195, %v2197
        %v2215 = vmax.f32 %v2199, 0.0
        %v2216 = vmax.f32 %v2200, 0.0
        %v2217 = vmax.f32 %v2201, 0.0
        %v2218 = vmax.f32 %v2202, 0.0
        %v2219 = vmax.f32 %v2203, 0.0
        %v2220 = vmax.f32 %v2204, 0.0
        %v2221 = vmax.f32 %v2205, 0.0
        %v2222 = vmax.f32 %v2206, 0.0
        %v2223 = vmax.f32 %v2207, 0.0
        %v2224 = vmax.f32 %v2208, 0.0
        %v2225 = vmax.f32 %v2209, 0.0
        %v2226 = vmax.f32 %v2210, 0.0
        %v2227 = vmax.f32 %v2211, 0.0
        %v2228 = vmax.f32 %v2212, 0.0
        %v2229 = vmax.f32 %v2213, 0.0
        %v2230 = vmax.f32 %v2214, 0.0
        %2231 = vst.msk [vmem:[#allocation6] sm:$0xff] %vm751, %v2215
        %2232 = vst.msk [vmem:[#allocation6 + $0x8] sm:$0xff] %vm751, %v2216
        %2233 = vst.msk [vmem:[#allocation6 + $0x10] sm:$0xff] %vm751, %v2217
        %2234 = vst.msk [vmem:[#allocation6 + $0x18] sm:$0xff] %vm751, %v2218
        %2235 = vst.msk [vmem:[#allocation6 + $0x20] sm:$0xff] %vm751, %v2219
        %2236 = vst.msk [vmem:[#allocation6 + $0x28] sm:$0xff] %vm751, %v2220
        %2237 = vst.msk [vmem:[#allocation6 + $0x30] sm:$0xff] %vm751, %v2221
        %2238 = vst.msk [vmem:[#allocation6 + $0x38] sm:$0xff] %vm751, %v2222
        %2239 = vst.msk [vmem:[#allocation6 + $0x40] sm:$0xff] %vm751, %v2223
        %2240 = vst.msk [vmem:[#allocation6 + $0x48] sm:$0xff] %vm751, %v2224
        %2241 = vst.msk [vmem:[#allocation6 + $0x50] sm:$0xff] %vm751, %v2225
        %2242 = vst.msk [vmem:[#allocation6 + $0x58] sm:$0xff] %vm751, %v2226
        %2243 = vst.msk [vmem:[#allocation6 + $0x60] sm:$0xff] %vm751, %v2227
        %2244 = vst.msk [vmem:[#allocation6 + $0x68] sm:$0xff] %vm751, %v2228
        %2245 = vst.msk [vmem:[#allocation6 + $0x70] sm:$0xff] %vm751, %v2229
        %2246 = vst.msk [vmem:[#allocation6 + $0x78] sm:$0xff] %vm751, %v2230
        %v2247 = vld [vmem:[#allocation2 + $0x80] sm:$0xff]
        %v2248 = vld [vmem:[#allocation2 + $0x88] sm:$0xff]
        %v2249 = vld [vmem:[#allocation2 + $0x90] sm:$0xff]
        %v2250 = vld [vmem:[#allocation2 + $0x98] sm:$0xff]
        %v2251 = vld [vmem:[#allocation2 + $0xa0] sm:$0xff]
        %v2252 = vld [vmem:[#allocation2 + $0xa8] sm:$0xff]
        %v2253 = vld [vmem:[#allocation2 + $0xb0] sm:$0xff]
        %v2254 = vld [vmem:[#allocation2 + $0xb8] sm:$0xff]
        %v2255 = vld [vmem:[#allocation2 + $0xc0] sm:$0xff]
        %v2256 = vld [vmem:[#allocation2 + $0xc8] sm:$0xff]
        %v2257 = vld [vmem:[#allocation2 + $0xd0] sm:$0xff]
        %v2258 = vld [vmem:[#allocation2 + $0xd8] sm:$0xff]
        %v2259 = vld [vmem:[#allocation2 + $0xe0] sm:$0xff]
        %v2260 = vld [vmem:[#allocation2 + $0xe8] sm:$0xff]
        %v2261 = vld [vmem:[#allocation2 + $0xf0] sm:$0xff]
        %v2262 = vld [vmem:[#allocation2 + $0xf8] sm:$0xff]
        %v2263 = vld [vmem:[%s1] sm:$0xf]
        %v2264 = vld [vmem:[#allocation2 + $0x81] sm:$0xff]
        %v2265 = vld [vmem:[#allocation2 + $0x89] sm:$0xff]
        %v2266 = vld [vmem:[#allocation2 + $0x91] sm:$0xff]
        %v2267 = vld [vmem:[#allocation2 + $0x99] sm:$0xff]
        %v2268 = vld [vmem:[#allocation2 + $0xa1] sm:$0xff]
        %v2269 = vld [vmem:[#allocation2 + $0xa9] sm:$0xff]
        %v2270 = vld [vmem:[#allocation2 + $0xb1] sm:$0xff]
        %v2271 = vld [vmem:[#allocation2 + $0xb9] sm:$0xff]
        %v2272 = vld [vmem:[#allocation2 + $0xc1] sm:$0xff]
        %v2273 = vld [vmem:[#allocation2 + $0xc9] sm:$0xff]
        %v2274 = vld [vmem:[#allocation2 + $0xd1] sm:$0xff]
        %v2275 = vld [vmem:[#allocation2 + $0xd9] sm:$0xff]
        %v2276 = vld [vmem:[#allocation2 + $0xe1] sm:$0xff]
        %v2277 = vld [vmem:[#allocation2 + $0xe9] sm:$0xff]
        %v2278 = vld [vmem:[#allocation2 + $0xf1] sm:$0xff]
        %v2279 = vld [vmem:[#allocation2 + $0xf9] sm:$0xff]
        %v2280 = vld [vmem:[%s892] sm:$0xf]
        %v2282 = vsel %vm708, %v2264, 0
        %v2285 = vsel %vm708, %v2265, 0
        %v2288 = vsel %vm708, %v2266, 0
        %v2291 = vsel %vm708, %v2267, 0
        %v2294 = vsel %vm708, %v2268, 0
        %v2297 = vsel %vm708, %v2269, 0
        %v2300 = vsel %vm708, %v2270, 0
        %v2303 = vsel %vm708, %v2271, 0
        %v2306 = vsel %vm708, %v2272, 0
        %v2309 = vsel %vm708, %v2273, 0
        %v2312 = vsel %vm708, %v2274, 0
        %v2315 = vsel %vm708, %v2275, 0
        %v2318 = vsel %vm708, %v2276, 0
        %v2321 = vsel %vm708, %v2277, 0
        %v2324 = vsel %vm708, %v2278, 0
        %v2327 = vsel %vm708, %v2279, 0
        %v2330 = vsel %vm942, %v2280, 0
        %2332 = vmatpush.msra.mxu0 0.0
        %2333 = vmatpush.msra.mxu0 0.0
        %2334 = vmatpush.msra.mxu0 0.0
        %2335 = vmatpush.msra.mxu0 0.0
        %2336 = vmatpush.msra.mxu0 0.0
        %2337 = vmatpush.msra.mxu0 0.0
        %2338 = vmatpush.msra.mxu0 0.0
        %2339 = vmatpush.msra.mxu0 0.0
        %2340 = vmatpush.msra.mxu0 0.0
        %2341 = vmatpush.msra.mxu0 0.0
        %2342 = vmatpush.msra.mxu0 0.0
        %2343 = vmatpush.msra.mxu0 0.0
        %2344 = vmatpush.msra.mxu0 0.0
        %2345 = vmatpush.msra.mxu0 0.0
        %2346 = vmatpush.msra.mxu0 0.0
        %2347 = vmatpush.msra.mxu0 %v2330
        %2348 = vmatmul.f32.gmra.mxu0 %v2282
        %v2349 = vpop.f32.mrf.mxu0
        %v2350 = vadd.f32 0.0, %v2349
        %2351 = vmatmul.f32.gmra.mxu0 %v2285
        %v2352 = vpop.f32.mrf.mxu0
        %v2353 = vadd.f32 0.0, %v2352
        %2354 = vmatmul.f32.gmra.mxu0 %v2288
        %v2355 = vpop.f32.mrf.mxu0
        %v2356 = vadd.f32 0.0, %v2355
        %2357 = vmatmul.f32.gmra.mxu0 %v2291
        %v2358 = vpop.f32.mrf.mxu0
        %v2359 = vadd.f32 0.0, %v2358
        %2360 = vmatmul.f32.gmra.mxu0 %v2294
        %v2361 = vpop.f32.mrf.mxu0
        %v2362 = vadd.f32 0.0, %v2361
        %2363 = vmatmul.f32.gmra.mxu0 %v2297
        %v2364 = vpop.f32.mrf.mxu0
        %v2365 = vadd.f32 0.0, %v2364
        %2366 = vmatmul.f32.gmra.mxu0 %v2300
        %v2367 = vpop.f32.mrf.mxu0
        %v2368 = vadd.f32 0.0, %v2367
        %2369 = vmatmul.f32.gmra.mxu0 %v2303
        %v2370 = vpop.f32.mrf.mxu0
        %v2371 = vadd.f32 0.0, %v2370
        %2372 = vmatmul.f32.gmra.mxu0 %v2306
        %v2373 = vpop.f32.mrf.mxu0
        %v2374 = vadd.f32 0.0, %v2373
        %2375 = vmatmul.f32.gmra.mxu0 %v2309
        %v2376 = vpop.f32.mrf.mxu0
        %v2377 = vadd.f32 0.0, %v2376
        %2378 = vmatmul.f32.gmra.mxu0 %v2312
        %v2379 = vpop.f32.mrf.mxu0
        %v2380 = vadd.f32 0.0, %v2379
        %2381 = vmatmul.f32.gmra.mxu0 %v2315
        %v2382 = vpop.f32.mrf.mxu0
        %v2383 = vadd.f32 0.0, %v2382
        %2384 = vmatmul.f32.gmra.mxu0 %v2318
        %v2385 = vpop.f32.mrf.mxu0
        %v2386 = vadd.f32 0.0, %v2385
        %2387 = vmatmul.f32.gmra.mxu0 %v2321
        %v2388 = vpop.f32.mrf.mxu0
        %v2389 = vadd.f32 0.0, %v2388
        %2390 = vmatmul.f32.gmra.mxu0 %v2324
        %v2391 = vpop.f32.mrf.mxu0
        %v2392 = vadd.f32 0.0, %v2391
        %2393 = vmatmul.f32.gmra.mxu0 %v2327
        %v2394 = vpop.f32.mrf.mxu0
        %v2395 = vadd.f32 0.0, %v2394
        %2396 = vdwg.mxu0
        %v2398 = vsel %vm708, %v2247, 0
        %v2401 = vsel %vm708, %v2248, 0
        %v2404 = vsel %vm708, %v2249, 0
        %v2407 = vsel %vm708, %v2250, 0
        %v2410 = vsel %vm708, %v2251, 0
        %v2413 = vsel %vm708, %v2252, 0
        %v2416 = vsel %vm708, %v2253, 0
        %v2419 = vsel %vm708, %v2254, 0
        %v2422 = vsel %vm708, %v2255, 0
        %v2425 = vsel %vm708, %v2256, 0
        %v2428 = vsel %vm708, %v2257, 0
        %v2431 = vsel %vm708, %v2258, 0
        %v2434 = vsel %vm708, %v2259, 0
        %v2437 = vsel %vm708, %v2260, 0
        %v2440 = vsel %vm708, %v2261, 0
        %v2443 = vsel %vm708, %v2262, 0
        %v2446 = vsel %vm942, %v2263, 0
        %2448 = vmatpush.msra.mxu0 0.0
        %2449 = vmatpush.msra.mxu0 0.0
        %2450 = vmatpush.msra.mxu0 0.0
        %2451 = vmatpush.msra.mxu0 0.0
        %2452 = vmatpush.msra.mxu0 0.0
        %2453 = vmatpush.msra.mxu0 0.0
        %2454 = vmatpush.msra.mxu0 0.0
        %2455 = vmatpush.msra.mxu0 0.0
        %2456 = vmatpush.msra.mxu0 0.0
        %2457 = vmatpush.msra.mxu0 0.0
        %2458 = vmatpush.msra.mxu0 0.0
        %2459 = vmatpush.msra.mxu0 0.0
        %2460 = vmatpush.msra.mxu0 0.0
        %2461 = vmatpush.msra.mxu0 0.0
        %2462 = vmatpush.msra.mxu0 0.0
        %2463 = vmatpush.msra.mxu0 %v2446
        %2464 = vmatmul.f32.gmra.mxu0 %v2398
        %v2465 = vpop.f32.mrf.mxu0
        %v2466 = vadd.f32 %v2350, %v2465
        %2467 = vmatmul.f32.gmra.mxu0 %v2401
        %v2468 = vpop.f32.mrf.mxu0
        %v2469 = vadd.f32 %v2353, %v2468
        %2470 = vmatmul.f32.gmra.mxu0 %v2404
        %v2471 = vpop.f32.mrf.mxu0
        %v2472 = vadd.f32 %v2356, %v2471
        %2473 = vmatmul.f32.gmra.mxu0 %v2407
        %v2474 = vpop.f32.mrf.mxu0
        %v2475 = vadd.f32 %v2359, %v2474
        %2476 = vmatmul.f32.gmra.mxu0 %v2410
        %v2477 = vpop.f32.mrf.mxu0
        %v2478 = vadd.f32 %v2362, %v2477
        %2479 = vmatmul.f32.gmra.mxu0 %v2413
        %v2480 = vpop.f32.mrf.mxu0
        %v2481 = vadd.f32 %v2365, %v2480
        %2482 = vmatmul.f32.gmra.mxu0 %v2416
        %v2483 = vpop.f32.mrf.mxu0
        %v2484 = vadd.f32 %v2368, %v2483
        %2485 = vmatmul.f32.gmra.mxu0 %v2419
        %v2486 = vpop.f32.mrf.mxu0
        %v2487 = vadd.f32 %v2371, %v2486
        %2488 = vmatmul.f32.gmra.mxu0 %v2422
        %v2489 = vpop.f32.mrf.mxu0
        %v2490 = vadd.f32 %v2374, %v2489
        %2491 = vmatmul.f32.gmra.mxu0 %v2425
        %v2492 = vpop.f32.mrf.mxu0
        %v2493 = vadd.f32 %v2377, %v2492
        %2494 = vmatmul.f32.gmra.mxu0 %v2428
        %v2495 = vpop.f32.mrf.mxu0
        %v2496 = vadd.f32 %v2380, %v2495
        %2497 = vmatmul.f32.gmra.mxu0 %v2431
        %v2498 = vpop.f32.mrf.mxu0
        %v2499 = vadd.f32 %v2383, %v2498
        %2500 = vmatmul.f32.gmra.mxu0 %v2434
        %v2501 = vpop.f32.mrf.mxu0
        %v2502 = vadd.f32 %v2386, %v2501
        %2503 = vmatmul.f32.gmra.mxu0 %v2437
        %v2504 = vpop.f32.mrf.mxu0
        %v2505 = vadd.f32 %v2389, %v2504
        %2506 = vmatmul.f32.gmra.mxu0 %v2440
        %v2507 = vpop.f32.mrf.mxu0
        %v2508 = vadd.f32 %v2392, %v2507
        %2509 = vmatmul.f32.gmra.mxu0 %v2443
        %v2510 = vpop.f32.mrf.mxu0
        %v2511 = vadd.f32 %v2395, %v2510
        %2512 = vdwg.mxu0
        %v2513 = vld [vmem:[#allocation2 + $0x82] sm:$0xff]
        %v2514 = vld [vmem:[#allocation2 + $0x8a] sm:$0xff]
        %v2515 = vld [vmem:[#allocation2 + $0x92] sm:$0xff]
        %v2516 = vld [vmem:[#allocation2 + $0x9a] sm:$0xff]
        %v2517 = vld [vmem:[#allocation2 + $0xa2] sm:$0xff]
        %v2518 = vld [vmem:[#allocation2 + $0xaa] sm:$0xff]
        %v2519 = vld [vmem:[#allocation2 + $0xb2] sm:$0xff]
        %v2520 = vld [vmem:[#allocation2 + $0xba] sm:$0xff]
        %v2521 = vld [vmem:[#allocation2 + $0xc2] sm:$0xff]
        %v2522 = vld [vmem:[#allocation2 + $0xca] sm:$0xff]
        %v2523 = vld [vmem:[#allocation2 + $0xd2] sm:$0xff]
        %v2524 = vld [vmem:[#allocation2 + $0xda] sm:$0xff]
        %v2525 = vld [vmem:[#allocation2 + $0xe2] sm:$0xff]
        %v2526 = vld [vmem:[#allocation2 + $0xea] sm:$0xff]
        %v2527 = vld [vmem:[#allocation2 + $0xf2] sm:$0xff]
        %v2528 = vld [vmem:[#allocation2 + $0xfa] sm:$0xff]
        %v2529 = vld [vmem:[%s1143] sm:$0xf]
        %v2531 = vsel %vm708, %v2513, 0
        %v2534 = vsel %vm708, %v2514, 0
        %v2537 = vsel %vm708, %v2515, 0
        %v2540 = vsel %vm708, %v2516, 0
        %v2543 = vsel %vm708, %v2517, 0
        %v2546 = vsel %vm708, %v2518, 0
        %v2549 = vsel %vm708, %v2519, 0
        %v2552 = vsel %vm708, %v2520, 0
        %v2555 = vsel %vm708, %v2521, 0
        %v2558 = vsel %vm708, %v2522, 0
        %v2561 = vsel %vm708, %v2523, 0
        %v2564 = vsel %vm708, %v2524, 0
        %v2567 = vsel %vm708, %v2525, 0
        %v2570 = vsel %vm708, %v2526, 0
        %v2573 = vsel %vm708, %v2527, 0
        %v2576 = vsel %vm708, %v2528, 0
        %v2579 = vsel %vm942, %v2529, 0
        %2581 = vmatpush.msra.mxu0 0.0
        %2582 = vmatpush.msra.mxu0 0.0
        %2583 = vmatpush.msra.mxu0 0.0
        %2584 = vmatpush.msra.mxu0 0.0
        %2585 = vmatpush.msra.mxu0 0.0
        %2586 = vmatpush.msra.mxu0 0.0
        %2587 = vmatpush.msra.mxu0 0.0
        %2588 = vmatpush.msra.mxu0 0.0
        %2589 = vmatpush.msra.mxu0 0.0
        %2590 = vmatpush.msra.mxu0 0.0
        %2591 = vmatpush.msra.mxu0 0.0
        %2592 = vmatpush.msra.mxu0 0.0
        %2593 = vmatpush.msra.mxu0 0.0
        %2594 = vmatpush.msra.mxu0 0.0
        %2595 = vmatpush.msra.mxu0 0.0
        %2596 = vmatpush.msra.mxu0 %v2579
        %2597 = vmatmul.f32.gmra.mxu0 %v2531
        %v2598 = vpop.f32.mrf.mxu0
        %v2599 = vadd.f32 0.0, %v2598
        %2600 = vmatmul.f32.gmra.mxu0 %v2534
        %v2601 = vpop.f32.mrf.mxu0
        %v2602 = vadd.f32 0.0, %v2601
        %2603 = vmatmul.f32.gmra.mxu0 %v2537
        %v2604 = vpop.f32.mrf.mxu0
        %v2605 = vadd.f32 0.0, %v2604
        %2606 = vmatmul.f32.gmra.mxu0 %v2540
        %v2607 = vpop.f32.mrf.mxu0
        %v2608 = vadd.f32 0.0, %v2607
        %2609 = vmatmul.f32.gmra.mxu0 %v2543
        %v2610 = vpop.f32.mrf.mxu0
        %v2611 = vadd.f32 0.0, %v2610
        %2612 = vmatmul.f32.gmra.mxu0 %v2546
        %v2613 = vpop.f32.mrf.mxu0
        %v2614 = vadd.f32 0.0, %v2613
        %2615 = vmatmul.f32.gmra.mxu0 %v2549
        %v2616 = vpop.f32.mrf.mxu0
        %v2617 = vadd.f32 0.0, %v2616
        %2618 = vmatmul.f32.gmra.mxu0 %v2552
        %v2619 = vpop.f32.mrf.mxu0
        %v2620 = vadd.f32 0.0, %v2619
        %2621 = vmatmul.f32.gmra.mxu0 %v2555
        %v2622 = vpop.f32.mrf.mxu0
        %v2623 = vadd.f32 0.0, %v2622
        %2624 = vmatmul.f32.gmra.mxu0 %v2558
        %v2625 = vpop.f32.mrf.mxu0
        %v2626 = vadd.f32 0.0, %v2625
        %2627 = vmatmul.f32.gmra.mxu0 %v2561
        %v2628 = vpop.f32.mrf.mxu0
        %v2629 = vadd.f32 0.0, %v2628
        %2630 = vmatmul.f32.gmra.mxu0 %v2564
        %v2631 = vpop.f32.mrf.mxu0
        %v2632 = vadd.f32 0.0, %v2631
        %2633 = vmatmul.f32.gmra.mxu0 %v2567
        %v2634 = vpop.f32.mrf.mxu0
        %v2635 = vadd.f32 0.0, %v2634
        %2636 = vmatmul.f32.gmra.mxu0 %v2570
        %v2637 = vpop.f32.mrf.mxu0
        %v2638 = vadd.f32 0.0, %v2637
        %2639 = vmatmul.f32.gmra.mxu0 %v2573
        %v2640 = vpop.f32.mrf.mxu0
        %v2641 = vadd.f32 0.0, %v2640
        %2642 = vmatmul.f32.gmra.mxu0 %v2576
        %v2643 = vpop.f32.mrf.mxu0
        %v2644 = vadd.f32 0.0, %v2643
        %2645 = vdwg.mxu0
        %v2646 = vadd.f32 %v2466, %v2599
        %v2647 = vadd.f32 %v2469, %v2602
        %v2648 = vadd.f32 %v2472, %v2605
        %v2649 = vadd.f32 %v2475, %v2608
        %v2650 = vadd.f32 %v2478, %v2611
        %v2651 = vadd.f32 %v2481, %v2614
        %v2652 = vadd.f32 %v2484, %v2617
        %v2653 = vadd.f32 %v2487, %v2620
        %v2654 = vadd.f32 %v2490, %v2623
        %v2655 = vadd.f32 %v2493, %v2626
        %v2656 = vadd.f32 %v2496, %v2629
        %v2657 = vadd.f32 %v2499, %v2632
        %v2658 = vadd.f32 %v2502, %v2635
        %v2659 = vadd.f32 %v2505, %v2638
        %v2660 = vadd.f32 %v2508, %v2641
        %v2661 = vadd.f32 %v2511, %v2644
        %v2662 = vld [vmem:[#allocation2 + $0x92] sm:$0xff]
        %v2663 = vld [vmem:[#allocation2 + $0x9a] sm:$0xff]
        %v2664 = vld [vmem:[#allocation2 + $0xa2] sm:$0xff]
        %v2665 = vld [vmem:[#allocation2 + $0xaa] sm:$0xff]
        %v2666 = vld [vmem:[#allocation2 + $0xb2] sm:$0xff]
        %v2667 = vld [vmem:[#allocation2 + $0xba] sm:$0xff]
        %v2668 = vld [vmem:[#allocation2 + $0xc2] sm:$0xff]
        %v2669 = vld [vmem:[#allocation2 + $0xca] sm:$0xff]
        %v2670 = vld [vmem:[#allocation2 + $0xd2] sm:$0xff]
        %v2671 = vld [vmem:[#allocation2 + $0xda] sm:$0xff]
        %v2672 = vld [vmem:[#allocation2 + $0xe2] sm:$0xff]
        %v2673 = vld [vmem:[#allocation2 + $0xea] sm:$0xff]
        %v2674 = vld [vmem:[#allocation2 + $0xf2] sm:$0xff]
        %v2675 = vld [vmem:[#allocation2 + $0xfa] sm:$0xff]
        %v2676 = vld [vmem:[#allocation2 + $0x102] sm:$0xff]
        %v2677 = vld [vmem:[#allocation2 + $0x10a] sm:$0xff]
        %v2678 = vld [vmem:[%s1293] sm:$0xf]
        %v2680 = vsel %vm708, %v2662, 0
        %v2683 = vsel %vm708, %v2663, 0
        %v2686 = vsel %vm708, %v2664, 0
        %v2689 = vsel %vm708, %v2665, 0
        %v2692 = vsel %vm708, %v2666, 0
        %v2695 = vsel %vm708, %v2667, 0
        %v2698 = vsel %vm708, %v2668, 0
        %v2701 = vsel %vm708, %v2669, 0
        %v2704 = vsel %vm708, %v2670, 0
        %v2707 = vsel %vm708, %v2671, 0
        %v2710 = vsel %vm708, %v2672, 0
        %v2713 = vsel %vm708, %v2673, 0
        %v2716 = vsel %vm708, %v2674, 0
        %v2719 = vsel %vm708, %v2675, 0
        %v2722 = vsel %vm708, %v2676, 0
        %v2725 = vsel %vm708, %v2677, 0
        %v2728 = vsel %vm942, %v2678, 0
        %2730 = vmatpush.msra.mxu0 0.0
        %2731 = vmatpush.msra.mxu0 0.0
        %2732 = vmatpush.msra.mxu0 0.0
        %2733 = vmatpush.msra.mxu0 0.0
        %2734 = vmatpush.msra.mxu0 0.0
        %2735 = vmatpush.msra.mxu0 0.0
        %2736 = vmatpush.msra.mxu0 0.0
        %2737 = vmatpush.msra.mxu0 0.0
        %2738 = vmatpush.msra.mxu0 0.0
        %2739 = vmatpush.msra.mxu0 0.0
        %2740 = vmatpush.msra.mxu0 0.0
        %2741 = vmatpush.msra.mxu0 0.0
        %2742 = vmatpush.msra.mxu0 0.0
        %2743 = vmatpush.msra.mxu0 0.0
        %2744 = vmatpush.msra.mxu0 0.0
        %2745 = vmatpush.msra.mxu0 %v2728
        %2746 = vmatmul.f32.gmra.mxu0 %v2680
        %v2747 = vpop.f32.mrf.mxu0
        %v2748 = vadd.f32 0.0, %v2747
        %2749 = vmatmul.f32.gmra.mxu0 %v2683
        %v2750 = vpop.f32.mrf.mxu0
        %v2751 = vadd.f32 0.0, %v2750
        %2752 = vmatmul.f32.gmra.mxu0 %v2686
        %v2753 = vpop.f32.mrf.mxu0
        %v2754 = vadd.f32 0.0, %v2753
        %2755 = vmatmul.f32.gmra.mxu0 %v2689
        %v2756 = vpop.f32.mrf.mxu0
        %v2757 = vadd.f32 0.0, %v2756
        %2758 = vmatmul.f32.gmra.mxu0 %v2692
        %v2759 = vpop.f32.mrf.mxu0
        %v2760 = vadd.f32 0.0, %v2759
        %2761 = vmatmul.f32.gmra.mxu0 %v2695
        %v2762 = vpop.f32.mrf.mxu0
        %v2763 = vadd.f32 0.0, %v2762
        %2764 = vmatmul.f32.gmra.mxu0 %v2698
        %v2765 = vpop.f32.mrf.mxu0
        %v2766 = vadd.f32 0.0, %v2765
        %2767 = vmatmul.f32.gmra.mxu0 %v2701
        %v2768 = vpop.f32.mrf.mxu0
        %v2769 = vadd.f32 0.0, %v2768
        %2770 = vmatmul.f32.gmra.mxu0 %v2704
        %v2771 = vpop.f32.mrf.mxu0
        %v2772 = vadd.f32 0.0, %v2771
        %2773 = vmatmul.f32.gmra.mxu0 %v2707
        %v2774 = vpop.f32.mrf.mxu0
        %v2775 = vadd.f32 0.0, %v2774
        %2776 = vmatmul.f32.gmra.mxu0 %v2710
        %v2777 = vpop.f32.mrf.mxu0
        %v2778 = vadd.f32 0.0, %v2777
        %2779 = vmatmul.f32.gmra.mxu0 %v2713
        %v2780 = vpop.f32.mrf.mxu0
        %v2781 = vadd.f32 0.0, %v2780
        %2782 = vmatmul.f32.gmra.mxu0 %v2716
        %v2783 = vpop.f32.mrf.mxu0
        %v2784 = vadd.f32 0.0, %v2783
        %2785 = vmatmul.f32.gmra.mxu0 %v2719
        %v2786 = vpop.f32.mrf.mxu0
        %v2787 = vadd.f32 0.0, %v2786
        %2788 = vmatmul.f32.gmra.mxu0 %v2722
        %v2789 = vpop.f32.mrf.mxu0
        %v2790 = vadd.f32 0.0, %v2789
        %2791 = vmatmul.f32.gmra.mxu0 %v2725
        %v2792 = vpop.f32.mrf.mxu0
        %v2793 = vadd.f32 0.0, %v2792
        %2794 = vdwg.mxu0
        %v2795 = vadd.f32 %v2646, %v2748
        %v2796 = vadd.f32 %v2647, %v2751
        %v2797 = vadd.f32 %v2648, %v2754
        %v2798 = vadd.f32 %v2649, %v2757
        %v2799 = vadd.f32 %v2650, %v2760
        %v2800 = vadd.f32 %v2651, %v2763
        %v2801 = vadd.f32 %v2652, %v2766
        %v2802 = vadd.f32 %v2653, %v2769
        %v2803 = vadd.f32 %v2654, %v2772
        %v2804 = vadd.f32 %v2655, %v2775
        %v2805 = vadd.f32 %v2656, %v2778
        %v2806 = vadd.f32 %v2657, %v2781
        %v2807 = vadd.f32 %v2658, %v2784
        %v2808 = vadd.f32 %v2659, %v2787
        %v2809 = vadd.f32 %v2660, %v2790
        %v2810 = vadd.f32 %v2661, %v2793
        %v2811 = vld [vmem:[#allocation2 + $0x93] sm:$0xff]
        %v2812 = vld [vmem:[#allocation2 + $0x9b] sm:$0xff]
        %v2813 = vld [vmem:[#allocation2 + $0xa3] sm:$0xff]
        %v2814 = vld [vmem:[#allocation2 + $0xab] sm:$0xff]
        %v2815 = vld [vmem:[#allocation2 + $0xb3] sm:$0xff]
        %v2816 = vld [vmem:[#allocation2 + $0xbb] sm:$0xff]
        %v2817 = vld [vmem:[#allocation2 + $0xc3] sm:$0xff]
        %v2818 = vld [vmem:[#allocation2 + $0xcb] sm:$0xff]
        %v2819 = vld [vmem:[#allocation2 + $0xd3] sm:$0xff]
        %v2820 = vld [vmem:[#allocation2 + $0xdb] sm:$0xff]
        %v2821 = vld [vmem:[#allocation2 + $0xe3] sm:$0xff]
        %v2822 = vld [vmem:[#allocation2 + $0xeb] sm:$0xff]
        %v2823 = vld [vmem:[#allocation2 + $0xf3] sm:$0xff]
        %v2824 = vld [vmem:[#allocation2 + $0xfb] sm:$0xff]
        %v2825 = vld [vmem:[#allocation2 + $0x103] sm:$0xff]
        %v2826 = vld [vmem:[#allocation2 + $0x10b] sm:$0xff]
        %v2827 = vld [vmem:[%s1443] sm:$0xf]
        %v2829 = vsel %vm708, %v2811, 0
        %v2832 = vsel %vm708, %v2812, 0
        %v2835 = vsel %vm708, %v2813, 0
        %v2838 = vsel %vm708, %v2814, 0
        %v2841 = vsel %vm708, %v2815, 0
        %v2844 = vsel %vm708, %v2816, 0
        %v2847 = vsel %vm708, %v2817, 0
        %v2850 = vsel %vm708, %v2818, 0
        %v2853 = vsel %vm708, %v2819, 0
        %v2856 = vsel %vm708, %v2820, 0
        %v2859 = vsel %vm708, %v2821, 0
        %v2862 = vsel %vm708, %v2822, 0
        %v2865 = vsel %vm708, %v2823, 0
        %v2868 = vsel %vm708, %v2824, 0
        %v2871 = vsel %vm708, %v2825, 0
        %v2874 = vsel %vm708, %v2826, 0
        %v2877 = vsel %vm942, %v2827, 0
        %2879 = vmatpush.msra.mxu0 0.0
        %2880 = vmatpush.msra.mxu0 0.0
        %2881 = vmatpush.msra.mxu0 0.0
        %2882 = vmatpush.msra.mxu0 0.0
        %2883 = vmatpush.msra.mxu0 0.0
        %2884 = vmatpush.msra.mxu0 0.0
        %2885 = vmatpush.msra.mxu0 0.0
        %2886 = vmatpush.msra.mxu0 0.0
        %2887 = vmatpush.msra.mxu0 0.0
        %2888 = vmatpush.msra.mxu0 0.0
        %2889 = vmatpush.msra.mxu0 0.0
        %2890 = vmatpush.msra.mxu0 0.0
        %2891 = vmatpush.msra.mxu0 0.0
        %2892 = vmatpush.msra.mxu0 0.0
        %2893 = vmatpush.msra.mxu0 0.0
        %2894 = vmatpush.msra.mxu0 %v2877
        %2895 = vmatmul.f32.gmra.mxu0 %v2829
        %v2896 = vpop.f32.mrf.mxu0
        %v2897 = vadd.f32 0.0, %v2896
        %2898 = vmatmul.f32.gmra.mxu0 %v2832
        %v2899 = vpop.f32.mrf.mxu0
        %v2900 = vadd.f32 0.0, %v2899
        %2901 = vmatmul.f32.gmra.mxu0 %v2835
        %v2902 = vpop.f32.mrf.mxu0
        %v2903 = vadd.f32 0.0, %v2902
        %2904 = vmatmul.f32.gmra.mxu0 %v2838
        %v2905 = vpop.f32.mrf.mxu0
        %v2906 = vadd.f32 0.0, %v2905
        %2907 = vmatmul.f32.gmra.mxu0 %v2841
        %v2908 = vpop.f32.mrf.mxu0
        %v2909 = vadd.f32 0.0, %v2908
        %2910 = vmatmul.f32.gmra.mxu0 %v2844
        %v2911 = vpop.f32.mrf.mxu0
        %v2912 = vadd.f32 0.0, %v2911
        %2913 = vmatmul.f32.gmra.mxu0 %v2847
        %v2914 = vpop.f32.mrf.mxu0
        %v2915 = vadd.f32 0.0, %v2914
        %2916 = vmatmul.f32.gmra.mxu0 %v2850
        %v2917 = vpop.f32.mrf.mxu0
        %v2918 = vadd.f32 0.0, %v2917
        %2919 = vmatmul.f32.gmra.mxu0 %v2853
        %v2920 = vpop.f32.mrf.mxu0
        %v2921 = vadd.f32 0.0, %v2920
        %2922 = vmatmul.f32.gmra.mxu0 %v2856
        %v2923 = vpop.f32.mrf.mxu0
        %v2924 = vadd.f32 0.0, %v2923
        %2925 = vmatmul.f32.gmra.mxu0 %v2859
        %v2926 = vpop.f32.mrf.mxu0
        %v2927 = vadd.f32 0.0, %v2926
        %2928 = vmatmul.f32.gmra.mxu0 %v2862
        %v2929 = vpop.f32.mrf.mxu0
        %v2930 = vadd.f32 0.0, %v2929
        %2931 = vmatmul.f32.gmra.mxu0 %v2865
        %v2932 = vpop.f32.mrf.mxu0
        %v2933 = vadd.f32 0.0, %v2932
        %2934 = vmatmul.f32.gmra.mxu0 %v2868
        %v2935 = vpop.f32.mrf.mxu0
        %v2936 = vadd.f32 0.0, %v2935
        %2937 = vmatmul.f32.gmra.mxu0 %v2871
        %v2938 = vpop.f32.mrf.mxu0
        %v2939 = vadd.f32 0.0, %v2938
        %2940 = vmatmul.f32.gmra.mxu0 %v2874
        %v2941 = vpop.f32.mrf.mxu0
        %v2942 = vadd.f32 0.0, %v2941
        %2943 = vdwg.mxu0
        %v2944 = vadd.f32 %v2795, %v2897
        %v2945 = vadd.f32 %v2796, %v2900
        %v2946 = vadd.f32 %v2797, %v2903
        %v2947 = vadd.f32 %v2798, %v2906
        %v2948 = vadd.f32 %v2799, %v2909
        %v2949 = vadd.f32 %v2800, %v2912
        %v2950 = vadd.f32 %v2801, %v2915
        %v2951 = vadd.f32 %v2802, %v2918
        %v2952 = vadd.f32 %v2803, %v2921
        %v2953 = vadd.f32 %v2804, %v2924
        %v2954 = vadd.f32 %v2805, %v2927
        %v2955 = vadd.f32 %v2806, %v2930
        %v2956 = vadd.f32 %v2807, %v2933
        %v2957 = vadd.f32 %v2808, %v2936
        %v2958 = vadd.f32 %v2809, %v2939
        %v2959 = vadd.f32 %v2810, %v2942
        %v2960 = vld [vmem:[#allocation2 + $0x94] sm:$0xff]
        %v2961 = vld [vmem:[#allocation2 + $0x9c] sm:$0xff]
        %v2962 = vld [vmem:[#allocation2 + $0xa4] sm:$0xff]
        %v2963 = vld [vmem:[#allocation2 + $0xac] sm:$0xff]
        %v2964 = vld [vmem:[#allocation2 + $0xb4] sm:$0xff]
        %v2965 = vld [vmem:[#allocation2 + $0xbc] sm:$0xff]
        %v2966 = vld [vmem:[#allocation2 + $0xc4] sm:$0xff]
        %v2967 = vld [vmem:[#allocation2 + $0xcc] sm:$0xff]
        %v2968 = vld [vmem:[#allocation2 + $0xd4] sm:$0xff]
        %v2969 = vld [vmem:[#allocation2 + $0xdc] sm:$0xff]
        %v2970 = vld [vmem:[#allocation2 + $0xe4] sm:$0xff]
        %v2971 = vld [vmem:[#allocation2 + $0xec] sm:$0xff]
        %v2972 = vld [vmem:[#allocation2 + $0xf4] sm:$0xff]
        %v2973 = vld [vmem:[#allocation2 + $0xfc] sm:$0xff]
        %v2974 = vld [vmem:[#allocation2 + $0x104] sm:$0xff]
        %v2975 = vld [vmem:[#allocation2 + $0x10c] sm:$0xff]
        %v2976 = vld [vmem:[%s1593] sm:$0xf]
        %v2978 = vsel %vm708, %v2960, 0
        %v2981 = vsel %vm708, %v2961, 0
        %v2984 = vsel %vm708, %v2962, 0
        %v2987 = vsel %vm708, %v2963, 0
        %v2990 = vsel %vm708, %v2964, 0
        %v2993 = vsel %vm708, %v2965, 0
        %v2996 = vsel %vm708, %v2966, 0
        %v2999 = vsel %vm708, %v2967, 0
        %v3002 = vsel %vm708, %v2968, 0
        %v3005 = vsel %vm708, %v2969, 0
        %v3008 = vsel %vm708, %v2970, 0
        %v3011 = vsel %vm708, %v2971, 0
        %v3014 = vsel %vm708, %v2972, 0
        %v3017 = vsel %vm708, %v2973, 0
        %v3020 = vsel %vm708, %v2974, 0
        %v3023 = vsel %vm708, %v2975, 0
        %v3026 = vsel %vm942, %v2976, 0
        %3028 = vmatpush.msra.mxu0 0.0
        %3029 = vmatpush.msra.mxu0 0.0
        %3030 = vmatpush.msra.mxu0 0.0
        %3031 = vmatpush.msra.mxu0 0.0
        %3032 = vmatpush.msra.mxu0 0.0
        %3033 = vmatpush.msra.mxu0 0.0
        %3034 = vmatpush.msra.mxu0 0.0
        %3035 = vmatpush.msra.mxu0 0.0
        %3036 = vmatpush.msra.mxu0 0.0
        %3037 = vmatpush.msra.mxu0 0.0
        %3038 = vmatpush.msra.mxu0 0.0
        %3039 = vmatpush.msra.mxu0 0.0
        %3040 = vmatpush.msra.mxu0 0.0
        %3041 = vmatpush.msra.mxu0 0.0
        %3042 = vmatpush.msra.mxu0 0.0
        %3043 = vmatpush.msra.mxu0 %v3026
        %3044 = vmatmul.f32.gmra.mxu0 %v2978
        %v3045 = vpop.f32.mrf.mxu0
        %v3046 = vadd.f32 0.0, %v3045
        %3047 = vmatmul.f32.gmra.mxu0 %v2981
        %v3048 = vpop.f32.mrf.mxu0
        %v3049 = vadd.f32 0.0, %v3048
        %3050 = vmatmul.f32.gmra.mxu0 %v2984
        %v3051 = vpop.f32.mrf.mxu0
        %v3052 = vadd.f32 0.0, %v3051
        %3053 = vmatmul.f32.gmra.mxu0 %v2987
        %v3054 = vpop.f32.mrf.mxu0
        %v3055 = vadd.f32 0.0, %v3054
        %3056 = vmatmul.f32.gmra.mxu0 %v2990
        %v3057 = vpop.f32.mrf.mxu0
        %v3058 = vadd.f32 0.0, %v3057
        %3059 = vmatmul.f32.gmra.mxu0 %v2993
        %v3060 = vpop.f32.mrf.mxu0
        %v3061 = vadd.f32 0.0, %v3060
        %3062 = vmatmul.f32.gmra.mxu0 %v2996
        %v3063 = vpop.f32.mrf.mxu0
        %v3064 = vadd.f32 0.0, %v3063
        %3065 = vmatmul.f32.gmra.mxu0 %v2999
        %v3066 = vpop.f32.mrf.mxu0
        %v3067 = vadd.f32 0.0, %v3066
        %3068 = vmatmul.f32.gmra.mxu0 %v3002
        %v3069 = vpop.f32.mrf.mxu0
        %v3070 = vadd.f32 0.0, %v3069
        %3071 = vmatmul.f32.gmra.mxu0 %v3005
        %v3072 = vpop.f32.mrf.mxu0
        %v3073 = vadd.f32 0.0, %v3072
        %3074 = vmatmul.f32.gmra.mxu0 %v3008
        %v3075 = vpop.f32.mrf.mxu0
        %v3076 = vadd.f32 0.0, %v3075
        %3077 = vmatmul.f32.gmra.mxu0 %v3011
        %v3078 = vpop.f32.mrf.mxu0
        %v3079 = vadd.f32 0.0, %v3078
        %3080 = vmatmul.f32.gmra.mxu0 %v3014
        %v3081 = vpop.f32.mrf.mxu0
        %v3082 = vadd.f32 0.0, %v3081
        %3083 = vmatmul.f32.gmra.mxu0 %v3017
        %v3084 = vpop.f32.mrf.mxu0
        %v3085 = vadd.f32 0.0, %v3084
        %3086 = vmatmul.f32.gmra.mxu0 %v3020
        %v3087 = vpop.f32.mrf.mxu0
        %v3088 = vadd.f32 0.0, %v3087
        %3089 = vmatmul.f32.gmra.mxu0 %v3023
        %v3090 = vpop.f32.mrf.mxu0
        %v3091 = vadd.f32 0.0, %v3090
        %3092 = vdwg.mxu0
        %v3093 = vadd.f32 %v2944, %v3046
        %v3094 = vadd.f32 %v2945, %v3049
        %v3095 = vadd.f32 %v2946, %v3052
        %v3096 = vadd.f32 %v2947, %v3055
        %v3097 = vadd.f32 %v2948, %v3058
        %v3098 = vadd.f32 %v2949, %v3061
        %v3099 = vadd.f32 %v2950, %v3064
        %v3100 = vadd.f32 %v2951, %v3067
        %v3101 = vadd.f32 %v2952, %v3070
        %v3102 = vadd.f32 %v2953, %v3073
        %v3103 = vadd.f32 %v2954, %v3076
        %v3104 = vadd.f32 %v2955, %v3079
        %v3105 = vadd.f32 %v2956, %v3082
        %v3106 = vadd.f32 %v2957, %v3085
        %v3107 = vadd.f32 %v2958, %v3088
        %v3108 = vadd.f32 %v2959, %v3091
        %v3109 = vld [vmem:[#allocation2 + $0xa4] sm:$0xff]
        %v3110 = vld [vmem:[#allocation2 + $0xac] sm:$0xff]
        %v3111 = vld [vmem:[#allocation2 + $0xb4] sm:$0xff]
        %v3112 = vld [vmem:[#allocation2 + $0xbc] sm:$0xff]
        %v3113 = vld [vmem:[#allocation2 + $0xc4] sm:$0xff]
        %v3114 = vld [vmem:[#allocation2 + $0xcc] sm:$0xff]
        %v3115 = vld [vmem:[#allocation2 + $0xd4] sm:$0xff]
        %v3116 = vld [vmem:[#allocation2 + $0xdc] sm:$0xff]
        %v3117 = vld [vmem:[#allocation2 + $0xe4] sm:$0xff]
        %v3118 = vld [vmem:[#allocation2 + $0xec] sm:$0xff]
        %v3119 = vld [vmem:[#allocation2 + $0xf4] sm:$0xff]
        %v3120 = vld [vmem:[#allocation2 + $0xfc] sm:$0xff]
        %v3121 = vld [vmem:[#allocation2 + $0x104] sm:$0xff]
        %v3122 = vld [vmem:[#allocation2 + $0x10c] sm:$0xff]
        %v3123 = vld [vmem:[#allocation2 + $0x114] sm:$0xff]
        %v3124 = vld [vmem:[#allocation2 + $0x11c] sm:$0xff]
        %v3125 = vld [vmem:[%s1743] sm:$0xf]
        %v3127 = vsel %vm708, %v3109, 0
        %v3130 = vsel %vm708, %v3110, 0
        %v3133 = vsel %vm708, %v3111, 0
        %v3136 = vsel %vm708, %v3112, 0
        %v3139 = vsel %vm708, %v3113, 0
        %v3142 = vsel %vm708, %v3114, 0
        %v3145 = vsel %vm708, %v3115, 0
        %v3148 = vsel %vm708, %v3116, 0
        %v3151 = vsel %vm708, %v3117, 0
        %v3154 = vsel %vm708, %v3118, 0
        %v3157 = vsel %vm708, %v3119, 0
        %v3160 = vsel %vm708, %v3120, 0
        %v3163 = vsel %vm708, %v3121, 0
        %v3166 = vsel %vm708, %v3122, 0
        %v3169 = vsel %vm708, %v3123, 0
        %v3172 = vsel %vm708, %v3124, 0
        %v3175 = vsel %vm942, %v3125, 0
        %3177 = vmatpush.msra.mxu0 0.0
        %3178 = vmatpush.msra.mxu0 0.0
        %3179 = vmatpush.msra.mxu0 0.0
        %3180 = vmatpush.msra.mxu0 0.0
        %3181 = vmatpush.msra.mxu0 0.0
        %3182 = vmatpush.msra.mxu0 0.0
        %3183 = vmatpush.msra.mxu0 0.0
        %3184 = vmatpush.msra.mxu0 0.0
        %3185 = vmatpush.msra.mxu0 0.0
        %3186 = vmatpush.msra.mxu0 0.0
        %3187 = vmatpush.msra.mxu0 0.0
        %3188 = vmatpush.msra.mxu0 0.0
        %3189 = vmatpush.msra.mxu0 0.0
        %3190 = vmatpush.msra.mxu0 0.0
        %3191 = vmatpush.msra.mxu0 0.0
        %3192 = vmatpush.msra.mxu0 %v3175
        %3193 = vmatmul.f32.gmra.mxu0 %v3127
        %v3194 = vpop.f32.mrf.mxu0
        %v3195 = vadd.f32 0.0, %v3194
        %3196 = vmatmul.f32.gmra.mxu0 %v3130
        %v3197 = vpop.f32.mrf.mxu0
        %v3198 = vadd.f32 0.0, %v3197
        %3199 = vmatmul.f32.gmra.mxu0 %v3133
        %v3200 = vpop.f32.mrf.mxu0
        %v3201 = vadd.f32 0.0, %v3200
        %3202 = vmatmul.f32.gmra.mxu0 %v3136
        %v3203 = vpop.f32.mrf.mxu0
        %v3204 = vadd.f32 0.0, %v3203
        %3205 = vmatmul.f32.gmra.mxu0 %v3139
        %v3206 = vpop.f32.mrf.mxu0
        %v3207 = vadd.f32 0.0, %v3206
        %3208 = vmatmul.f32.gmra.mxu0 %v3142
        %v3209 = vpop.f32.mrf.mxu0
        %v3210 = vadd.f32 0.0, %v3209
        %3211 = vmatmul.f32.gmra.mxu0 %v3145
        %v3212 = vpop.f32.mrf.mxu0
        %v3213 = vadd.f32 0.0, %v3212
        %3214 = vmatmul.f32.gmra.mxu0 %v3148
        %v3215 = vpop.f32.mrf.mxu0
        %v3216 = vadd.f32 0.0, %v3215
        %3217 = vmatmul.f32.gmra.mxu0 %v3151
        %v3218 = vpop.f32.mrf.mxu0
        %v3219 = vadd.f32 0.0, %v3218
        %3220 = vmatmul.f32.gmra.mxu0 %v3154
        %v3221 = vpop.f32.mrf.mxu0
        %v3222 = vadd.f32 0.0, %v3221
        %3223 = vmatmul.f32.gmra.mxu0 %v3157
        %v3224 = vpop.f32.mrf.mxu0
        %v3225 = vadd.f32 0.0, %v3224
        %3226 = vmatmul.f32.gmra.mxu0 %v3160
        %v3227 = vpop.f32.mrf.mxu0
        %v3228 = vadd.f32 0.0, %v3227
        %3229 = vmatmul.f32.gmra.mxu0 %v3163
        %v3230 = vpop.f32.mrf.mxu0
        %v3231 = vadd.f32 0.0, %v3230
        %3232 = vmatmul.f32.gmra.mxu0 %v3166
        %v3233 = vpop.f32.mrf.mxu0
        %v3234 = vadd.f32 0.0, %v3233
        %3235 = vmatmul.f32.gmra.mxu0 %v3169
        %v3236 = vpop.f32.mrf.mxu0
        %v3237 = vadd.f32 0.0, %v3236
        %3238 = vmatmul.f32.gmra.mxu0 %v3172
        %v3239 = vpop.f32.mrf.mxu0
        %v3240 = vadd.f32 0.0, %v3239
        %3241 = vdwg.mxu0
        %v3242 = vadd.f32 %v3093, %v3195
        %v3243 = vadd.f32 %v3094, %v3198
        %v3244 = vadd.f32 %v3095, %v3201
        %v3245 = vadd.f32 %v3096, %v3204
        %v3246 = vadd.f32 %v3097, %v3207
        %v3247 = vadd.f32 %v3098, %v3210
        %v3248 = vadd.f32 %v3099, %v3213
        %v3249 = vadd.f32 %v3100, %v3216
        %v3250 = vadd.f32 %v3101, %v3219
        %v3251 = vadd.f32 %v3102, %v3222
        %v3252 = vadd.f32 %v3103, %v3225
        %v3253 = vadd.f32 %v3104, %v3228
        %v3254 = vadd.f32 %v3105, %v3231
        %v3255 = vadd.f32 %v3106, %v3234
        %v3256 = vadd.f32 %v3107, %v3237
        %v3257 = vadd.f32 %v3108, %v3240
        %v3258 = vld [vmem:[#allocation2 + $0xa5] sm:$0xff]
        %v3259 = vld [vmem:[#allocation2 + $0xad] sm:$0xff]
        %v3260 = vld [vmem:[#allocation2 + $0xb5] sm:$0xff]
        %v3261 = vld [vmem:[#allocation2 + $0xbd] sm:$0xff]
        %v3262 = vld [vmem:[#allocation2 + $0xc5] sm:$0xff]
        %v3263 = vld [vmem:[#allocation2 + $0xcd] sm:$0xff]
        %v3264 = vld [vmem:[#allocation2 + $0xd5] sm:$0xff]
        %v3265 = vld [vmem:[#allocation2 + $0xdd] sm:$0xff]
        %v3266 = vld [vmem:[#allocation2 + $0xe5] sm:$0xff]
        %v3267 = vld [vmem:[#allocation2 + $0xed] sm:$0xff]
        %v3268 = vld [vmem:[#allocation2 + $0xf5] sm:$0xff]
        %v3269 = vld [vmem:[#allocation2 + $0xfd] sm:$0xff]
        %v3270 = vld [vmem:[#allocation2 + $0x105] sm:$0xff]
        %v3271 = vld [vmem:[#allocation2 + $0x10d] sm:$0xff]
        %v3272 = vld [vmem:[#allocation2 + $0x115] sm:$0xff]
        %v3273 = vld [vmem:[#allocation2 + $0x11d] sm:$0xff]
        %v3274 = vld [vmem:[%s1893] sm:$0xf]
        %v3276 = vsel %vm708, %v3258, 0
        %v3279 = vsel %vm708, %v3259, 0
        %v3282 = vsel %vm708, %v3260, 0
        %v3285 = vsel %vm708, %v3261, 0
        %v3288 = vsel %vm708, %v3262, 0
        %v3291 = vsel %vm708, %v3263, 0
        %v3294 = vsel %vm708, %v3264, 0
        %v3297 = vsel %vm708, %v3265, 0
        %v3300 = vsel %vm708, %v3266, 0
        %v3303 = vsel %vm708, %v3267, 0
        %v3306 = vsel %vm708, %v3268, 0
        %v3309 = vsel %vm708, %v3269, 0
        %v3312 = vsel %vm708, %v3270, 0
        %v3315 = vsel %vm708, %v3271, 0
        %v3318 = vsel %vm708, %v3272, 0
        %v3321 = vsel %vm708, %v3273, 0
        %v3324 = vsel %vm942, %v3274, 0
        %3326 = vmatpush.msra.mxu0 0.0
        %3327 = vmatpush.msra.mxu0 0.0
        %3328 = vmatpush.msra.mxu0 0.0
        %3329 = vmatpush.msra.mxu0 0.0
        %3330 = vmatpush.msra.mxu0 0.0
        %3331 = vmatpush.msra.mxu0 0.0
        %3332 = vmatpush.msra.mxu0 0.0
        %3333 = vmatpush.msra.mxu0 0.0
        %3334 = vmatpush.msra.mxu0 0.0
        %3335 = vmatpush.msra.mxu0 0.0
        %3336 = vmatpush.msra.mxu0 0.0
        %3337 = vmatpush.msra.mxu0 0.0
        %3338 = vmatpush.msra.mxu0 0.0
        %3339 = vmatpush.msra.mxu0 0.0
        %3340 = vmatpush.msra.mxu0 0.0
        %3341 = vmatpush.msra.mxu0 %v3324
        %3342 = vmatmul.f32.gmra.mxu0 %v3276
        %v3343 = vpop.f32.mrf.mxu0
        %v3344 = vadd.f32 0.0, %v3343
        %3345 = vmatmul.f32.gmra.mxu0 %v3279
        %v3346 = vpop.f32.mrf.mxu0
        %v3347 = vadd.f32 0.0, %v3346
        %3348 = vmatmul.f32.gmra.mxu0 %v3282
        %v3349 = vpop.f32.mrf.mxu0
        %v3350 = vadd.f32 0.0, %v3349
        %3351 = vmatmul.f32.gmra.mxu0 %v3285
        %v3352 = vpop.f32.mrf.mxu0
        %v3353 = vadd.f32 0.0, %v3352
        %3354 = vmatmul.f32.gmra.mxu0 %v3288
        %v3355 = vpop.f32.mrf.mxu0
        %v3356 = vadd.f32 0.0, %v3355
        %3357 = vmatmul.f32.gmra.mxu0 %v3291
        %v3358 = vpop.f32.mrf.mxu0
        %v3359 = vadd.f32 0.0, %v3358
        %3360 = vmatmul.f32.gmra.mxu0 %v3294
        %v3361 = vpop.f32.mrf.mxu0
        %v3362 = vadd.f32 0.0, %v3361
        %3363 = vmatmul.f32.gmra.mxu0 %v3297
        %v3364 = vpop.f32.mrf.mxu0
        %v3365 = vadd.f32 0.0, %v3364
        %3366 = vmatmul.f32.gmra.mxu0 %v3300
        %v3367 = vpop.f32.mrf.mxu0
        %v3368 = vadd.f32 0.0, %v3367
        %3369 = vmatmul.f32.gmra.mxu0 %v3303
        %v3370 = vpop.f32.mrf.mxu0
        %v3371 = vadd.f32 0.0, %v3370
        %3372 = vmatmul.f32.gmra.mxu0 %v3306
        %v3373 = vpop.f32.mrf.mxu0
        %v3374 = vadd.f32 0.0, %v3373
        %3375 = vmatmul.f32.gmra.mxu0 %v3309
        %v3376 = vpop.f32.mrf.mxu0
        %v3377 = vadd.f32 0.0, %v3376
        %3378 = vmatmul.f32.gmra.mxu0 %v3312
        %v3379 = vpop.f32.mrf.mxu0
        %v3380 = vadd.f32 0.0, %v3379
        %3381 = vmatmul.f32.gmra.mxu0 %v3315
        %v3382 = vpop.f32.mrf.mxu0
        %v3383 = vadd.f32 0.0, %v3382
        %3384 = vmatmul.f32.gmra.mxu0 %v3318
        %v3385 = vpop.f32.mrf.mxu0
        %v3386 = vadd.f32 0.0, %v3385
        %3387 = vmatmul.f32.gmra.mxu0 %v3321
        %v3388 = vpop.f32.mrf.mxu0
        %v3389 = vadd.f32 0.0, %v3388
        %3390 = vdwg.mxu0
        %v3391 = vadd.f32 %v3242, %v3344
        %v3392 = vadd.f32 %v3243, %v3347
        %v3393 = vadd.f32 %v3244, %v3350
        %v3394 = vadd.f32 %v3245, %v3353
        %v3395 = vadd.f32 %v3246, %v3356
        %v3396 = vadd.f32 %v3247, %v3359
        %v3397 = vadd.f32 %v3248, %v3362
        %v3398 = vadd.f32 %v3249, %v3365
        %v3399 = vadd.f32 %v3250, %v3368
        %v3400 = vadd.f32 %v3251, %v3371
        %v3401 = vadd.f32 %v3252, %v3374
        %v3402 = vadd.f32 %v3253, %v3377
        %v3403 = vadd.f32 %v3254, %v3380
        %v3404 = vadd.f32 %v3255, %v3383
        %v3405 = vadd.f32 %v3256, %v3386
        %v3406 = vadd.f32 %v3257, %v3389
        %v3407 = vld [vmem:[#allocation2 + $0xa6] sm:$0xff]
        %v3408 = vld [vmem:[#allocation2 + $0xae] sm:$0xff]
        %v3409 = vld [vmem:[#allocation2 + $0xb6] sm:$0xff]
        %v3410 = vld [vmem:[#allocation2 + $0xbe] sm:$0xff]
        %v3411 = vld [vmem:[#allocation2 + $0xc6] sm:$0xff]
        %v3412 = vld [vmem:[#allocation2 + $0xce] sm:$0xff]
        %v3413 = vld [vmem:[#allocation2 + $0xd6] sm:$0xff]
        %v3414 = vld [vmem:[#allocation2 + $0xde] sm:$0xff]
        %v3415 = vld [vmem:[#allocation2 + $0xe6] sm:$0xff]
        %v3416 = vld [vmem:[#allocation2 + $0xee] sm:$0xff]
        %v3417 = vld [vmem:[#allocation2 + $0xf6] sm:$0xff]
        %v3418 = vld [vmem:[#allocation2 + $0xfe] sm:$0xff]
        %v3419 = vld [vmem:[#allocation2 + $0x106] sm:$0xff]
        %v3420 = vld [vmem:[#allocation2 + $0x10e] sm:$0xff]
        %v3421 = vld [vmem:[#allocation2 + $0x116] sm:$0xff]
        %v3422 = vld [vmem:[#allocation2 + $0x11e] sm:$0xff]
        %v3423 = vld [vmem:[%s2043] sm:$0xf]
        %v3425 = vsel %vm708, %v3407, 0
        %v3428 = vsel %vm708, %v3408, 0
        %v3431 = vsel %vm708, %v3409, 0
        %v3434 = vsel %vm708, %v3410, 0
        %v3437 = vsel %vm708, %v3411, 0
        %v3440 = vsel %vm708, %v3412, 0
        %v3443 = vsel %vm708, %v3413, 0
        %v3446 = vsel %vm708, %v3414, 0
        %v3449 = vsel %vm708, %v3415, 0
        %v3452 = vsel %vm708, %v3416, 0
        %v3455 = vsel %vm708, %v3417, 0
        %v3458 = vsel %vm708, %v3418, 0
        %v3461 = vsel %vm708, %v3419, 0
        %v3464 = vsel %vm708, %v3420, 0
        %v3467 = vsel %vm708, %v3421, 0
        %v3470 = vsel %vm708, %v3422, 0
        %v3473 = vsel %vm942, %v3423, 0
        %3475 = vmatpush.msra.mxu0 0.0
        %3476 = vmatpush.msra.mxu0 0.0
        %3477 = vmatpush.msra.mxu0 0.0
        %3478 = vmatpush.msra.mxu0 0.0
        %3479 = vmatpush.msra.mxu0 0.0
        %3480 = vmatpush.msra.mxu0 0.0
        %3481 = vmatpush.msra.mxu0 0.0
        %3482 = vmatpush.msra.mxu0 0.0
        %3483 = vmatpush.msra.mxu0 0.0
        %3484 = vmatpush.msra.mxu0 0.0
        %3485 = vmatpush.msra.mxu0 0.0
        %3486 = vmatpush.msra.mxu0 0.0
        %3487 = vmatpush.msra.mxu0 0.0
        %3488 = vmatpush.msra.mxu0 0.0
        %3489 = vmatpush.msra.mxu0 0.0
        %3490 = vmatpush.msra.mxu0 %v3473
        %3491 = vmatmul.f32.gmra.mxu0 %v3425
        %v3492 = vpop.f32.mrf.mxu0
        %v3493 = vadd.f32 0.0, %v3492
        %3494 = vmatmul.f32.gmra.mxu0 %v3428
        %v3495 = vpop.f32.mrf.mxu0
        %v3496 = vadd.f32 0.0, %v3495
        %3497 = vmatmul.f32.gmra.mxu0 %v3431
        %v3498 = vpop.f32.mrf.mxu0
        %v3499 = vadd.f32 0.0, %v3498
        %3500 = vmatmul.f32.gmra.mxu0 %v3434
        %v3501 = vpop.f32.mrf.mxu0
        %v3502 = vadd.f32 0.0, %v3501
        %3503 = vmatmul.f32.gmra.mxu0 %v3437
        %v3504 = vpop.f32.mrf.mxu0
        %v3505 = vadd.f32 0.0, %v3504
        %3506 = vmatmul.f32.gmra.mxu0 %v3440
        %v3507 = vpop.f32.mrf.mxu0
        %v3508 = vadd.f32 0.0, %v3507
        %3509 = vmatmul.f32.gmra.mxu0 %v3443
        %v3510 = vpop.f32.mrf.mxu0
        %v3511 = vadd.f32 0.0, %v3510
        %3512 = vmatmul.f32.gmra.mxu0 %v3446
        %v3513 = vpop.f32.mrf.mxu0
        %v3514 = vadd.f32 0.0, %v3513
        %3515 = vmatmul.f32.gmra.mxu0 %v3449
        %v3516 = vpop.f32.mrf.mxu0
        %v3517 = vadd.f32 0.0, %v3516
        %3518 = vmatmul.f32.gmra.mxu0 %v3452
        %v3519 = vpop.f32.mrf.mxu0
        %v3520 = vadd.f32 0.0, %v3519
        %3521 = vmatmul.f32.gmra.mxu0 %v3455
        %v3522 = vpop.f32.mrf.mxu0
        %v3523 = vadd.f32 0.0, %v3522
        %3524 = vmatmul.f32.gmra.mxu0 %v3458
        %v3525 = vpop.f32.mrf.mxu0
        %v3526 = vadd.f32 0.0, %v3525
        %3527 = vmatmul.f32.gmra.mxu0 %v3461
        %v3528 = vpop.f32.mrf.mxu0
        %v3529 = vadd.f32 0.0, %v3528
        %3530 = vmatmul.f32.gmra.mxu0 %v3464
        %v3531 = vpop.f32.mrf.mxu0
        %v3532 = vadd.f32 0.0, %v3531
        %3533 = vmatmul.f32.gmra.mxu0 %v3467
        %v3534 = vpop.f32.mrf.mxu0
        %v3535 = vadd.f32 0.0, %v3534
        %3536 = vmatmul.f32.gmra.mxu0 %v3470
        %v3537 = vpop.f32.mrf.mxu0
        %v3538 = vadd.f32 0.0, %v3537
        %3539 = vdwg.mxu0
        %v3540 = vadd.f32 %v3391, %v3493
        %v3541 = vadd.f32 %v3392, %v3496
        %v3542 = vadd.f32 %v3393, %v3499
        %v3543 = vadd.f32 %v3394, %v3502
        %v3544 = vadd.f32 %v3395, %v3505
        %v3545 = vadd.f32 %v3396, %v3508
        %v3546 = vadd.f32 %v3397, %v3511
        %v3547 = vadd.f32 %v3398, %v3514
        %v3548 = vadd.f32 %v3399, %v3517
        %v3549 = vadd.f32 %v3400, %v3520
        %v3550 = vadd.f32 %v3401, %v3523
        %v3551 = vadd.f32 %v3402, %v3526
        %v3552 = vadd.f32 %v3403, %v3529
        %v3553 = vadd.f32 %v3404, %v3532
        %v3554 = vadd.f32 %v3405, %v3535
        %v3555 = vadd.f32 %v3406, %v3538
        %v3556 = vmul.f32 %v3540, %v2178
        %v3557 = vmul.f32 %v3541, %v2178
        %v3558 = vmul.f32 %v3542, %v2178
        %v3559 = vmul.f32 %v3543, %v2178
        %v3560 = vmul.f32 %v3544, %v2178
        %v3561 = vmul.f32 %v3545, %v2178
        %v3562 = vmul.f32 %v3546, %v2178
        %v3563 = vmul.f32 %v3547, %v2178
        %v3564 = vmul.f32 %v3548, %v2178
        %v3565 = vmul.f32 %v3549, %v2178
        %v3566 = vmul.f32 %v3550, %v2178
        %v3567 = vmul.f32 %v3551, %v2178
        %v3568 = vmul.f32 %v3552, %v2178
        %v3569 = vmul.f32 %v3553, %v2178
        %v3570 = vmul.f32 %v3554, %v2178
        %v3571 = vmul.f32 %v3555, %v2178
        %v3572 = vadd.f32 %v3556, %v2197
        %v3573 = vadd.f32 %v3557, %v2197
        %v3574 = vadd.f32 %v3558, %v2197
        %v3575 = vadd.f32 %v3559, %v2197
        %v3576 = vadd.f32 %v3560, %v2197
        %v3577 = vadd.f32 %v3561, %v2197
        %v3578 = vadd.f32 %v3562, %v2197
        %v3579 = vadd.f32 %v3563, %v2197
        %v3580 = vadd.f32 %v3564, %v2197
        %v3581 = vadd.f32 %v3565, %v2197
        %v3582 = vadd.f32 %v3566, %v2197
        %v3583 = vadd.f32 %v3567, %v2197
        %v3584 = vadd.f32 %v3568, %v2197
        %v3585 = vadd.f32 %v3569, %v2197
        %v3586 = vadd.f32 %v3570, %v2197
        %v3587 = vadd.f32 %v3571, %v2197
        %v3588 = vmax.f32 %v3572, 0.0
        %v3589 = vmax.f32 %v3573, 0.0
        %v3590 = vmax.f32 %v3574, 0.0
        %v3591 = vmax.f32 %v3575, 0.0
        %v3592 = vmax.f32 %v3576, 0.0
        %v3593 = vmax.f32 %v3577, 0.0
        %v3594 = vmax.f32 %v3578, 0.0
        %v3595 = vmax.f32 %v3579, 0.0
        %v3596 = vmax.f32 %v3580, 0.0
        %v3597 = vmax.f32 %v3581, 0.0
        %v3598 = vmax.f32 %v3582, 0.0
        %v3599 = vmax.f32 %v3583, 0.0
        %v3600 = vmax.f32 %v3584, 0.0
        %v3601 = vmax.f32 %v3585, 0.0
        %v3602 = vmax.f32 %v3586, 0.0
        %v3603 = vmax.f32 %v3587, 0.0
        %3604 = vst.msk [vmem:[#allocation6 + $0x80] sm:$0xff] %vm751, %v3588
        %3605 = vst.msk [vmem:[#allocation6 + $0x88] sm:$0xff] %vm751, %v3589
        %3606 = vst.msk [vmem:[#allocation6 + $0x90] sm:$0xff] %vm751, %v3590
        %3607 = vst.msk [vmem:[#allocation6 + $0x98] sm:$0xff] %vm751, %v3591
        %3608 = vst.msk [vmem:[#allocation6 + $0xa0] sm:$0xff] %vm751, %v3592
        %3609 = vst.msk [vmem:[#allocation6 + $0xa8] sm:$0xff] %vm751, %v3593
        %3610 = vst.msk [vmem:[#allocation6 + $0xb0] sm:$0xff] %vm751, %v3594
        %3611 = vst.msk [vmem:[#allocation6 + $0xb8] sm:$0xff] %vm751, %v3595
        %3612 = vst.msk [vmem:[#allocation6 + $0xc0] sm:$0xff] %vm751, %v3596
        %3613 = vst.msk [vmem:[#allocation6 + $0xc8] sm:$0xff] %vm751, %v3597
        %3614 = vst.msk [vmem:[#allocation6 + $0xd0] sm:$0xff] %vm751, %v3598
        %3615 = vst.msk [vmem:[#allocation6 + $0xd8] sm:$0xff] %vm751, %v3599
        %3616 = vst.msk [vmem:[#allocation6 + $0xe0] sm:$0xff] %vm751, %v3600
        %3617 = vst.msk [vmem:[#allocation6 + $0xe8] sm:$0xff] %vm751, %v3601
        %3618 = vst.msk [vmem:[#allocation6 + $0xf0] sm:$0xff] %vm751, %v3602
        %3619 = vst.msk [vmem:[#allocation6 + $0xf8] sm:$0xff] %vm751, %v3603
        %v3620 = vld [vmem:[#allocation2 + $0x100] sm:$0xff]
        %v3621 = vld [vmem:[#allocation2 + $0x108] sm:$0xff]
        %v3622 = vld [vmem:[#allocation2 + $0x110] sm:$0xff]
        %v3623 = vld [vmem:[#allocation2 + $0x118] sm:$0xff]
        %v3624 = vld [vmem:[%s1] sm:$0xf]
        %v3625 = vld [vmem:[#allocation2 + $0x101] sm:$0xff]
        %v3626 = vld [vmem:[#allocation2 + $0x109] sm:$0xff]
        %v3627 = vld [vmem:[#allocation2 + $0x111] sm:$0xff]
        %v3628 = vld [vmem:[#allocation2 + $0x119] sm:$0xff]
        %v3629 = vld [vmem:[%s892] sm:$0xf]
        %v3631 = vsel %vm708, %v3625, 0
        %v3634 = vsel %vm708, %v3626, 0
        %v3637 = vsel %vm708, %v3627, 0
        %v3640 = vsel %vm708, %v3628, 0
        %v3643 = vsel %vm942, %v3629, 0
        %3645 = vmatpush.msra.mxu0 0.0
        %3646 = vmatpush.msra.mxu0 0.0
        %3647 = vmatpush.msra.mxu0 0.0
        %3648 = vmatpush.msra.mxu0 0.0
        %3649 = vmatpush.msra.mxu0 0.0
        %3650 = vmatpush.msra.mxu0 0.0
        %3651 = vmatpush.msra.mxu0 0.0
        %3652 = vmatpush.msra.mxu0 0.0
        %3653 = vmatpush.msra.mxu0 0.0
        %3654 = vmatpush.msra.mxu0 0.0
        %3655 = vmatpush.msra.mxu0 0.0
        %3656 = vmatpush.msra.mxu0 0.0
        %3657 = vmatpush.msra.mxu0 0.0
        %3658 = vmatpush.msra.mxu0 0.0
        %3659 = vmatpush.msra.mxu0 0.0
        %3660 = vmatpush.msra.mxu0 %v3643
        %3661 = vmatmul.f32.gmra.mxu0 %v3631
        %v3662 = vpop.f32.mrf.mxu0
        %v3663 = vadd.f32 0.0, %v3662
        %3664 = vmatmul.f32.gmra.mxu0 %v3634
        %v3665 = vpop.f32.mrf.mxu0
        %v3666 = vadd.f32 0.0, %v3665
        %3667 = vmatmul.f32.gmra.mxu0 %v3637
        %v3668 = vpop.f32.mrf.mxu0
        %v3669 = vadd.f32 0.0, %v3668
        %3670 = vmatmul.f32.gmra.mxu0 %v3640
        %v3671 = vpop.f32.mrf.mxu0
        %v3672 = vadd.f32 0.0, %v3671
        %3673 = vdwg.mxu0
        %v3675 = vsel %vm708, %v3620, 0
        %v3678 = vsel %vm708, %v3621, 0
        %v3681 = vsel %vm708, %v3622, 0
        %v3684 = vsel %vm708, %v3623, 0
        %v3687 = vsel %vm942, %v3624, 0
        %3689 = vmatpush.msra.mxu0 0.0
        %3690 = vmatpush.msra.mxu0 0.0
        %3691 = vmatpush.msra.mxu0 0.0
        %3692 = vmatpush.msra.mxu0 0.0
        %3693 = vmatpush.msra.mxu0 0.0
        %3694 = vmatpush.msra.mxu0 0.0
        %3695 = vmatpush.msra.mxu0 0.0
        %3696 = vmatpush.msra.mxu0 0.0
        %3697 = vmatpush.msra.mxu0 0.0
        %3698 = vmatpush.msra.mxu0 0.0
        %3699 = vmatpush.msra.mxu0 0.0
        %3700 = vmatpush.msra.mxu0 0.0
        %3701 = vmatpush.msra.mxu0 0.0
        %3702 = vmatpush.msra.mxu0 0.0
        %3703 = vmatpush.msra.mxu0 0.0
        %3704 = vmatpush.msra.mxu0 %v3687
        %3705 = vmatmul.f32.gmra.mxu0 %v3675
        %v3706 = vpop.f32.mrf.mxu0
        %v3707 = vadd.f32 %v3663, %v3706
        %3708 = vmatmul.f32.gmra.mxu0 %v3678
        %v3709 = vpop.f32.mrf.mxu0
        %v3710 = vadd.f32 %v3666, %v3709
        %3711 = vmatmul.f32.gmra.mxu0 %v3681
        %v3712 = vpop.f32.mrf.mxu0
        %v3713 = vadd.f32 %v3669, %v3712
        %3714 = vmatmul.f32.gmra.mxu0 %v3684
        %v3715 = vpop.f32.mrf.mxu0
        %v3716 = vadd.f32 %v3672, %v3715
        %3717 = vdwg.mxu0
        %v3718 = vld [vmem:[#allocation2 + $0x102] sm:$0xff]
        %v3719 = vld [vmem:[#allocation2 + $0x10a] sm:$0xff]
        %v3720 = vld [vmem:[#allocation2 + $0x112] sm:$0xff]
        %v3721 = vld [vmem:[#allocation2 + $0x11a] sm:$0xff]
        %v3722 = vld [vmem:[%s1143] sm:$0xf]
        %v3724 = vsel %vm708, %v3718, 0
        %v3727 = vsel %vm708, %v3719, 0
        %v3730 = vsel %vm708, %v3720, 0
        %v3733 = vsel %vm708, %v3721, 0
        %v3736 = vsel %vm942, %v3722, 0
        %3738 = vmatpush.msra.mxu0 0.0
        %3739 = vmatpush.msra.mxu0 0.0
        %3740 = vmatpush.msra.mxu0 0.0
        %3741 = vmatpush.msra.mxu0 0.0
        %3742 = vmatpush.msra.mxu0 0.0
        %3743 = vmatpush.msra.mxu0 0.0
        %3744 = vmatpush.msra.mxu0 0.0
        %3745 = vmatpush.msra.mxu0 0.0
        %3746 = vmatpush.msra.mxu0 0.0
        %3747 = vmatpush.msra.mxu0 0.0
        %3748 = vmatpush.msra.mxu0 0.0
        %3749 = vmatpush.msra.mxu0 0.0
        %3750 = vmatpush.msra.mxu0 0.0
        %3751 = vmatpush.msra.mxu0 0.0
        %3752 = vmatpush.msra.mxu0 0.0
        %3753 = vmatpush.msra.mxu0 %v3736
        %3754 = vmatmul.f32.gmra.mxu0 %v3724
        %v3755 = vpop.f32.mrf.mxu0
        %v3756 = vadd.f32 0.0, %v3755
        %3757 = vmatmul.f32.gmra.mxu0 %v3727
        %v3758 = vpop.f32.mrf.mxu0
        %v3759 = vadd.f32 0.0, %v3758
        %3760 = vmatmul.f32.gmra.mxu0 %v3730
        %v3761 = vpop.f32.mrf.mxu0
        %v3762 = vadd.f32 0.0, %v3761
        %3763 = vmatmul.f32.gmra.mxu0 %v3733
        %v3764 = vpop.f32.mrf.mxu0
        %v3765 = vadd.f32 0.0, %v3764
        %3766 = vdwg.mxu0
        %v3767 = vadd.f32 %v3707, %v3756
        %v3768 = vadd.f32 %v3710, %v3759
        %v3769 = vadd.f32 %v3713, %v3762
        %v3770 = vadd.f32 %v3716, %v3765
        %v3771 = vld [vmem:[#allocation2 + $0x112] sm:$0xff]
        %v3772 = vld [vmem:[#allocation2 + $0x11a] sm:$0xff]
        %v3773 = vld [vmem:[#allocation2 + $0x122] sm:$0xff]
        %v3774 = vld [vmem:[#allocation2 + $0x12a] sm:$0xff]
        %v3775 = vld [vmem:[%s1293] sm:$0xf]
        %v3777 = vsel %vm708, %v3771, 0
        %v3780 = vsel %vm708, %v3772, 0
        %v3783 = vsel %vm708, %v3773, 0
        %v3786 = vsel %vm708, %v3774, 0
        %v3789 = vsel %vm942, %v3775, 0
        %3791 = vmatpush.msra.mxu0 0.0
        %3792 = vmatpush.msra.mxu0 0.0
        %3793 = vmatpush.msra.mxu0 0.0
        %3794 = vmatpush.msra.mxu0 0.0
        %3795 = vmatpush.msra.mxu0 0.0
        %3796 = vmatpush.msra.mxu0 0.0
        %3797 = vmatpush.msra.mxu0 0.0
        %3798 = vmatpush.msra.mxu0 0.0
        %3799 = vmatpush.msra.mxu0 0.0
        %3800 = vmatpush.msra.mxu0 0.0
        %3801 = vmatpush.msra.mxu0 0.0
        %3802 = vmatpush.msra.mxu0 0.0
        %3803 = vmatpush.msra.mxu0 0.0
        %3804 = vmatpush.msra.mxu0 0.0
        %3805 = vmatpush.msra.mxu0 0.0
        %3806 = vmatpush.msra.mxu0 %v3789
        %3807 = vmatmul.f32.gmra.mxu0 %v3777
        %v3808 = vpop.f32.mrf.mxu0
        %v3809 = vadd.f32 0.0, %v3808
        %3810 = vmatmul.f32.gmra.mxu0 %v3780
        %v3811 = vpop.f32.mrf.mxu0
        %v3812 = vadd.f32 0.0, %v3811
        %3813 = vmatmul.f32.gmra.mxu0 %v3783
        %v3814 = vpop.f32.mrf.mxu0
        %v3815 = vadd.f32 0.0, %v3814
        %3816 = vmatmul.f32.gmra.mxu0 %v3786
        %v3817 = vpop.f32.mrf.mxu0
        %v3818 = vadd.f32 0.0, %v3817
        %3819 = vdwg.mxu0
        %v3820 = vadd.f32 %v3767, %v3809
        %v3821 = vadd.f32 %v3768, %v3812
        %v3822 = vadd.f32 %v3769, %v3815
        %v3823 = vadd.f32 %v3770, %v3818
        %v3824 = vld [vmem:[#allocation2 + $0x113] sm:$0xff]
        %v3825 = vld [vmem:[#allocation2 + $0x11b] sm:$0xff]
        %v3826 = vld [vmem:[#allocation2 + $0x123] sm:$0xff]
        %v3827 = vld [vmem:[#allocation2 + $0x12b] sm:$0xff]
        %v3828 = vld [vmem:[%s1443] sm:$0xf]
        %v3830 = vsel %vm708, %v3824, 0
        %v3833 = vsel %vm708, %v3825, 0
        %v3836 = vsel %vm708, %v3826, 0
        %v3839 = vsel %vm708, %v3827, 0
        %v3842 = vsel %vm942, %v3828, 0
        %3844 = vmatpush.msra.mxu0 0.0
        %3845 = vmatpush.msra.mxu0 0.0
        %3846 = vmatpush.msra.mxu0 0.0
        %3847 = vmatpush.msra.mxu0 0.0
        %3848 = vmatpush.msra.mxu0 0.0
        %3849 = vmatpush.msra.mxu0 0.0
        %3850 = vmatpush.msra.mxu0 0.0
        %3851 = vmatpush.msra.mxu0 0.0
        %3852 = vmatpush.msra.mxu0 0.0
        %3853 = vmatpush.msra.mxu0 0.0
        %3854 = vmatpush.msra.mxu0 0.0
        %3855 = vmatpush.msra.mxu0 0.0
        %3856 = vmatpush.msra.mxu0 0.0
        %3857 = vmatpush.msra.mxu0 0.0
        %3858 = vmatpush.msra.mxu0 0.0
        %3859 = vmatpush.msra.mxu0 %v3842
        %3860 = vmatmul.f32.gmra.mxu0 %v3830
        %v3861 = vpop.f32.mrf.mxu0
        %v3862 = vadd.f32 0.0, %v3861
        %3863 = vmatmul.f32.gmra.mxu0 %v3833
        %v3864 = vpop.f32.mrf.mxu0
        %v3865 = vadd.f32 0.0, %v3864
        %3866 = vmatmul.f32.gmra.mxu0 %v3836
        %v3867 = vpop.f32.mrf.mxu0
        %v3868 = vadd.f32 0.0, %v3867
        %3869 = vmatmul.f32.gmra.mxu0 %v3839
        %v3870 = vpop.f32.mrf.mxu0
        %v3871 = vadd.f32 0.0, %v3870
        %3872 = vdwg.mxu0
        %v3873 = vadd.f32 %v3820, %v3862
        %v3874 = vadd.f32 %v3821, %v3865
        %v3875 = vadd.f32 %v3822, %v3868
        %v3876 = vadd.f32 %v3823, %v3871
        %v3877 = vld [vmem:[#allocation2 + $0x114] sm:$0xff]
        %v3878 = vld [vmem:[#allocation2 + $0x11c] sm:$0xff]
        %v3879 = vld [vmem:[#allocation2 + $0x124] sm:$0xff]
        %v3880 = vld [vmem:[#allocation2 + $0x12c] sm:$0xff]
        %v3881 = vld [vmem:[%s1593] sm:$0xf]
        %v3883 = vsel %vm708, %v3877, 0
        %v3886 = vsel %vm708, %v3878, 0
        %v3889 = vsel %vm708, %v3879, 0
        %v3892 = vsel %vm708, %v3880, 0
        %v3895 = vsel %vm942, %v3881, 0
        %3897 = vmatpush.msra.mxu0 0.0
        %3898 = vmatpush.msra.mxu0 0.0
        %3899 = vmatpush.msra.mxu0 0.0
        %3900 = vmatpush.msra.mxu0 0.0
        %3901 = vmatpush.msra.mxu0 0.0
        %3902 = vmatpush.msra.mxu0 0.0
        %3903 = vmatpush.msra.mxu0 0.0
        %3904 = vmatpush.msra.mxu0 0.0
        %3905 = vmatpush.msra.mxu0 0.0
        %3906 = vmatpush.msra.mxu0 0.0
        %3907 = vmatpush.msra.mxu0 0.0
        %3908 = vmatpush.msra.mxu0 0.0
        %3909 = vmatpush.msra.mxu0 0.0
        %3910 = vmatpush.msra.mxu0 0.0
        %3911 = vmatpush.msra.mxu0 0.0
        %3912 = vmatpush.msra.mxu0 %v3895
        %3913 = vmatmul.f32.gmra.mxu0 %v3883
        %v3914 = vpop.f32.mrf.mxu0
        %v3915 = vadd.f32 0.0, %v3914
        %3916 = vmatmul.f32.gmra.mxu0 %v3886
        %v3917 = vpop.f32.mrf.mxu0
        %v3918 = vadd.f32 0.0, %v3917
        %3919 = vmatmul.f32.gmra.mxu0 %v3889
        %v3920 = vpop.f32.mrf.mxu0
        %v3921 = vadd.f32 0.0, %v3920
        %3922 = vmatmul.f32.gmra.mxu0 %v3892
        %v3923 = vpop.f32.mrf.mxu0
        %v3924 = vadd.f32 0.0, %v3923
        %3925 = vdwg.mxu0
        %v3926 = vadd.f32 %v3873, %v3915
        %v3927 = vadd.f32 %v3874, %v3918
        %v3928 = vadd.f32 %v3875, %v3921
        %v3929 = vadd.f32 %v3876, %v3924
        %v3930 = vld [vmem:[#allocation2 + $0x124] sm:$0xff]
        %v3931 = vld [vmem:[#allocation2 + $0x12c] sm:$0xff]
        %v3932 = vld [vmem:[#allocation2 + $0x134] sm:$0xff]
        %v3933 = vld [vmem:[#allocation2 + $0x13c] sm:$0xff]
        %v3934 = vld [vmem:[%s1743] sm:$0xf]
        %v3936 = vsel %vm708, %v3930, 0
        %v3939 = vsel %vm708, %v3931, 0
        %v3942 = vsel %vm708, %v3932, 0
        %v3945 = vsel %vm708, %v3933, 0
        %v3948 = vsel %vm942, %v3934, 0
        %3950 = vmatpush.msra.mxu0 0.0
        %3951 = vmatpush.msra.mxu0 0.0
        %3952 = vmatpush.msra.mxu0 0.0
        %3953 = vmatpush.msra.mxu0 0.0
        %3954 = vmatpush.msra.mxu0 0.0
        %3955 = vmatpush.msra.mxu0 0.0
        %3956 = vmatpush.msra.mxu0 0.0
        %3957 = vmatpush.msra.mxu0 0.0
        %3958 = vmatpush.msra.mxu0 0.0
        %3959 = vmatpush.msra.mxu0 0.0
        %3960 = vmatpush.msra.mxu0 0.0
        %3961 = vmatpush.msra.mxu0 0.0
        %3962 = vmatpush.msra.mxu0 0.0
        %3963 = vmatpush.msra.mxu0 0.0
        %3964 = vmatpush.msra.mxu0 0.0
        %3965 = vmatpush.msra.mxu0 %v3948
        %3966 = vmatmul.f32.gmra.mxu0 %v3936
        %v3967 = vpop.f32.mrf.mxu0
        %v3968 = vadd.f32 0.0, %v3967
        %3969 = vmatmul.f32.gmra.mxu0 %v3939
        %v3970 = vpop.f32.mrf.mxu0
        %v3971 = vadd.f32 0.0, %v3970
        %3972 = vmatmul.f32.gmra.mxu0 %v3942
        %v3973 = vpop.f32.mrf.mxu0
        %v3974 = vadd.f32 0.0, %v3973
        %3975 = vmatmul.f32.gmra.mxu0 %v3945
        %v3976 = vpop.f32.mrf.mxu0
        %v3977 = vadd.f32 0.0, %v3976
        %3978 = vdwg.mxu0
        %v3979 = vadd.f32 %v3926, %v3968
        %v3980 = vadd.f32 %v3927, %v3971
        %v3981 = vadd.f32 %v3928, %v3974
        %v3982 = vadd.f32 %v3929, %v3977
        %v3983 = vld [vmem:[#allocation2 + $0x125] sm:$0xff]
        %v3984 = vld [vmem:[#allocation2 + $0x12d] sm:$0xff]
        %v3985 = vld [vmem:[#allocation2 + $0x135] sm:$0xff]
        %v3986 = vld [vmem:[#allocation2 + $0x13d] sm:$0xff]
        %v3987 = vld [vmem:[%s1893] sm:$0xf]
        %v3989 = vsel %vm708, %v3983, 0
        %v3992 = vsel %vm708, %v3984, 0
        %v3995 = vsel %vm708, %v3985, 0
        %v3998 = vsel %vm708, %v3986, 0
        %v4001 = vsel %vm942, %v3987, 0
        %4003 = vmatpush.msra.mxu0 0.0
        %4004 = vmatpush.msra.mxu0 0.0
        %4005 = vmatpush.msra.mxu0 0.0
        %4006 = vmatpush.msra.mxu0 0.0
        %4007 = vmatpush.msra.mxu0 0.0
        %4008 = vmatpush.msra.mxu0 0.0
        %4009 = vmatpush.msra.mxu0 0.0
        %4010 = vmatpush.msra.mxu0 0.0
        %4011 = vmatpush.msra.mxu0 0.0
        %4012 = vmatpush.msra.mxu0 0.0
        %4013 = vmatpush.msra.mxu0 0.0
        %4014 = vmatpush.msra.mxu0 0.0
        %4015 = vmatpush.msra.mxu0 0.0
        %4016 = vmatpush.msra.mxu0 0.0
        %4017 = vmatpush.msra.mxu0 0.0
        %4018 = vmatpush.msra.mxu0 %v4001
        %4019 = vmatmul.f32.gmra.mxu0 %v3989
        %v4020 = vpop.f32.mrf.mxu0
        %v4021 = vadd.f32 0.0, %v4020
        %4022 = vmatmul.f32.gmra.mxu0 %v3992
        %v4023 = vpop.f32.mrf.mxu0
        %v4024 = vadd.f32 0.0, %v4023
        %4025 = vmatmul.f32.gmra.mxu0 %v3995
        %v4026 = vpop.f32.mrf.mxu0
        %v4027 = vadd.f32 0.0, %v4026
        %4028 = vmatmul.f32.gmra.mxu0 %v3998
        %v4029 = vpop.f32.mrf.mxu0
        %v4030 = vadd.f32 0.0, %v4029
        %4031 = vdwg.mxu0
        %v4032 = vadd.f32 %v3979, %v4021
        %v4033 = vadd.f32 %v3980, %v4024
        %v4034 = vadd.f32 %v3981, %v4027
        %v4035 = vadd.f32 %v3982, %v4030
        %v4036 = vld [vmem:[#allocation2 + $0x126] sm:$0xff]
        %v4037 = vld [vmem:[#allocation2 + $0x12e] sm:$0xff]
        %v4038 = vld [vmem:[#allocation2 + $0x136] sm:$0xff]
        %v4039 = vld [vmem:[#allocation2 + $0x13e] sm:$0xff]
        %v4040 = vld [vmem:[%s2043] sm:$0xf]
        %v4042 = vsel %vm708, %v4036, 0
        %v4045 = vsel %vm708, %v4037, 0
        %v4048 = vsel %vm708, %v4038, 0
        %v4051 = vsel %vm708, %v4039, 0
        %v4054 = vsel %vm942, %v4040, 0
        %4056 = vmatpush.msra.mxu0 0.0
        %4057 = vmatpush.msra.mxu0 0.0
        %4058 = vmatpush.msra.mxu0 0.0
        %4059 = vmatpush.msra.mxu0 0.0
        %4060 = vmatpush.msra.mxu0 0.0
        %4061 = vmatpush.msra.mxu0 0.0
        %4062 = vmatpush.msra.mxu0 0.0
        %4063 = vmatpush.msra.mxu0 0.0
        %4064 = vmatpush.msra.mxu0 0.0
        %4065 = vmatpush.msra.mxu0 0.0
        %4066 = vmatpush.msra.mxu0 0.0
        %4067 = vmatpush.msra.mxu0 0.0
        %4068 = vmatpush.msra.mxu0 0.0
        %4069 = vmatpush.msra.mxu0 0.0
        %4070 = vmatpush.msra.mxu0 0.0
        %4071 = vmatpush.msra.mxu0 %v4054
        %4072 = vmatmul.f32.gmra.mxu0 %v4042
        %v4073 = vpop.f32.mrf.mxu0
        %v4074 = vadd.f32 0.0, %v4073
        %4075 = vmatmul.f32.gmra.mxu0 %v4045
        %v4076 = vpop.f32.mrf.mxu0
        %v4077 = vadd.f32 0.0, %v4076
        %4078 = vmatmul.f32.gmra.mxu0 %v4048
        %v4079 = vpop.f32.mrf.mxu0
        %v4080 = vadd.f32 0.0, %v4079
        %4081 = vmatmul.f32.gmra.mxu0 %v4051
        %v4082 = vpop.f32.mrf.mxu0
        %v4083 = vadd.f32 0.0, %v4082
        %4084 = vdwg.mxu0
        %v4085 = vadd.f32 %v4032, %v4074
        %v4086 = vadd.f32 %v4033, %v4077
        %v4087 = vadd.f32 %v4034, %v4080
        %v4088 = vadd.f32 %v4035, %v4083
        %v4089 = vmul.f32 %v4085, %v2178
        %v4090 = vmul.f32 %v4086, %v2178
        %v4091 = vmul.f32 %v4087, %v2178
        %v4092 = vmul.f32 %v4088, %v2178
        %v4093 = vadd.f32 %v4089, %v2197
        %v4094 = vadd.f32 %v4090, %v2197
        %v4095 = vadd.f32 %v4091, %v2197
        %v4096 = vadd.f32 %v4092, %v2197
        %v4097 = vmax.f32 %v4093, 0.0
        %v4098 = vmax.f32 %v4094, 0.0
        %v4099 = vmax.f32 %v4095, 0.0
        %v4100 = vmax.f32 %v4096, 0.0
        %4101 = vst.msk [vmem:[#allocation6 + $0x100] sm:$0xff] %vm751, %v4097
        %4102 = vst.msk [vmem:[#allocation6 + $0x108] sm:$0xff] %vm751, %v4098
        %4103 = vst.msk [vmem:[#allocation6 + $0x110] sm:$0xff] %vm751, %v4099
        %4104 = vst.msk [vmem:[#allocation6 + $0x118] sm:$0xff] %vm751, %v4100
        %v4105 = vld [vmem:[#allocation6] ss:$2 sm:$0xff]
        %s4106 = scalar_lea.vmem [#allocation6], 1
        %v4107 = vld [vmem:[%s4106] ss:$2 sm:$0xff]
        %v4108 = vmax.f32 %v4105, %v4107
        %s4109 = scalar_lea.vmem [#allocation6], 18
        %v4110 = vld [vmem:[%s4109] ss:$2 sm:$0xff]
        %s4111 = scalar_lea.vmem [#allocation6], 19
        %v4112 = vld [vmem:[%s4111] ss:$2 sm:$0xff]
        %v4113 = vmax.f32 %v4110, %v4112
        %v4114 = vmax.f32 %v4108, %v4113
        %4115 = vst.msk [vmem:[#allocation3 + $0xb] sm:$0xff] %vm751, %v4114
        %s4116 = scalar_lea.vmem [#allocation6], 36
        %v4117 = vld [vmem:[%s4116] ss:$2 sm:$0xff]
        %s4118 = scalar_lea.vmem [#allocation6], 37
        %v4119 = vld [vmem:[%s4118] ss:$2 sm:$0xff]
        %v4120 = vmax.f32 %v4117, %v4119
        %s4121 = scalar_lea.vmem [#allocation6], 54
        %v4122 = vld [vmem:[%s4121] ss:$2 sm:$0xff]
        %s4123 = scalar_lea.vmem [#allocation6], 55
        %v4124 = vld [vmem:[%s4123] ss:$2 sm:$0xff]
        %v4125 = vmax.f32 %v4122, %v4124
        %v4126 = vmax.f32 %v4120, %v4125
        %4127 = vst.msk [vmem:[#allocation3 + $0x15] sm:$0xff] %vm751, %v4126
        %s4128 = scalar_lea.vmem [#allocation6], 72
        %v4129 = vld [vmem:[%s4128] ss:$2 sm:$0xff]
        %s4130 = scalar_lea.vmem [#allocation6], 73
        %v4131 = vld [vmem:[%s4130] ss:$2 sm:$0xff]
        %v4132 = vmax.f32 %v4129, %v4131
        %s4133 = scalar_lea.vmem [#allocation6], 90
        %v4134 = vld [vmem:[%s4133] ss:$2 sm:$0xff]
        %s4135 = scalar_lea.vmem [#allocation6], 91
        %v4136 = vld [vmem:[%s4135] ss:$2 sm:$0xff]
        %v4137 = vmax.f32 %v4134, %v4136
        %v4138 = vmax.f32 %v4132, %v4137
        %4139 = vst.msk [vmem:[#allocation3 + $0x1f] sm:$0xff] %vm751, %v4138
        %s4140 = scalar_lea.vmem [#allocation6], 108
        %v4141 = vld [vmem:[%s4140] ss:$2 sm:$0xff]
        %s4142 = scalar_lea.vmem [#allocation6], 109
        %v4143 = vld [vmem:[%s4142] ss:$2 sm:$0xff]
        %v4144 = vmax.f32 %v4141, %v4143
        %s4145 = scalar_lea.vmem [#allocation6], 126
        %v4146 = vld [vmem:[%s4145] ss:$2 sm:$0xff]
        %s4147 = scalar_lea.vmem [#allocation6], 127
        %v4148 = vld [vmem:[%s4147] ss:$2 sm:$0xff]
        %v4149 = vmax.f32 %v4146, %v4148
        %v4150 = vmax.f32 %v4144, %v4149
        %4151 = vst.msk [vmem:[#allocation3 + $0x29] sm:$0xff] %vm751, %v4150
        %s4152 = scalar_lea.vmem [#allocation6], 144
        %v4153 = vld [vmem:[%s4152] ss:$2 sm:$0xff]
        %s4154 = scalar_lea.vmem [#allocation6], 145
        %v4155 = vld [vmem:[%s4154] ss:$2 sm:$0xff]
        %v4156 = vmax.f32 %v4153, %v4155
        %s4157 = scalar_lea.vmem [#allocation6], 162
        %v4158 = vld [vmem:[%s4157] ss:$2 sm:$0xff]
        %s4159 = scalar_lea.vmem [#allocation6], 163
        %v4160 = vld [vmem:[%s4159] ss:$2 sm:$0xff]
        %v4161 = vmax.f32 %v4158, %v4160
        %v4162 = vmax.f32 %v4156, %v4161
        %4163 = vst.msk [vmem:[#allocation3 + $0x33] sm:$0xff] %vm751, %v4162
        %s4164 = scalar_lea.vmem [#allocation6], 180
        %v4165 = vld [vmem:[%s4164] ss:$2 sm:$0xff]
        %s4166 = scalar_lea.vmem [#allocation6], 181
        %v4167 = vld [vmem:[%s4166] ss:$2 sm:$0xff]
        %v4168 = vmax.f32 %v4165, %v4167
        %s4169 = scalar_lea.vmem [#allocation6], 198
        %v4170 = vld [vmem:[%s4169] ss:$2 sm:$0xff]
        %s4171 = scalar_lea.vmem [#allocation6], 199
        %v4172 = vld [vmem:[%s4171] ss:$2 sm:$0xff]
        %v4173 = vmax.f32 %v4170, %v4172
        %v4174 = vmax.f32 %v4168, %v4173
        %4175 = vst.msk [vmem:[#allocation3 + $0x3d] sm:$0xff] %vm751, %v4174
        %s4176 = scalar_lea.vmem [#allocation6], 216
        %v4177 = vld [vmem:[%s4176] ss:$2 sm:$0xff]
        %s4178 = scalar_lea.vmem [#allocation6], 217
        %v4179 = vld [vmem:[%s4178] ss:$2 sm:$0xff]
        %v4180 = vmax.f32 %v4177, %v4179
        %s4181 = scalar_lea.vmem [#allocation6], 234
        %v4182 = vld [vmem:[%s4181] ss:$2 sm:$0xff]
        %s4183 = scalar_lea.vmem [#allocation6], 235
        %v4184 = vld [vmem:[%s4183] ss:$2 sm:$0xff]
        %v4185 = vmax.f32 %v4182, %v4184
        %v4186 = vmax.f32 %v4180, %v4185
        %4187 = vst.msk [vmem:[#allocation3 + $0x47] sm:$0xff] %vm751, %v4186
        %s4188 = scalar_lea.vmem [#allocation6], 252
        %v4189 = vld [vmem:[%s4188] ss:$2 sm:$0xff]
        %s4190 = scalar_lea.vmem [#allocation6], 253
        %v4191 = vld [vmem:[%s4190] ss:$2 sm:$0xff]
        %v4192 = vmax.f32 %v4189, %v4191
        %s4193 = scalar_lea.vmem [#allocation6], 270
        %v4194 = vld [vmem:[%s4193] ss:$2 sm:$0xff]
        %s4195 = scalar_lea.vmem [#allocation6], 271
        %v4196 = vld [vmem:[%s4195] ss:$2 sm:$0xff]
        %v4197 = vmax.f32 %v4194, %v4196
        %v4198 = vmax.f32 %v4192, %v4197
        %4199 = vst.msk [vmem:[#allocation3 + $0x51] sm:$0xff] %vm751, %v4198
        %v4200 = vld [vmem:[#allocation15] sm:$0x1]
        %v4201 = vld [vmem:[#allocation16] sm:$0x1]
        %v4202 = vld [vmem:[#allocation3] sm:$0xff]
        %v4203 = vld [vmem:[#allocation3 + $0x8] sm:$0xff]
        %v4204 = vld [vmem:[#allocation3 + $0x10] sm:$0xff]
        %v4205 = vld [vmem:[#allocation3 + $0x18] sm:$0xff]
        %v4206 = vld [vmem:[#allocation3 + $0x20] sm:$0xff]
        %v4207 = vld [vmem:[#allocation3 + $0x28] sm:$0xff]
        %v4208 = vld [vmem:[#allocation3 + $0x30] sm:$0xff]
        %v4209 = vld [vmem:[#allocation3 + $0x38] sm:$0xff]
        %v4210 = vld [vmem:[#allocation3 + $0x40] sm:$0xff]
        %v4211 = vld [vmem:[#allocation3 + $0x48] sm:$0xff]
        %v4212 = vld [vmem:[%s4] sm:$0xff]
        %v4213 = vld [vmem:[%s4 + $0x8] sm:$0xff]
        %v4214 = vld [vmem:[#allocation3 + $0x1] sm:$0xff]
        %v4215 = vld [vmem:[#allocation3 + $0x9] sm:$0xff]
        %v4216 = vld [vmem:[#allocation3 + $0x11] sm:$0xff]
        %v4217 = vld [vmem:[#allocation3 + $0x19] sm:$0xff]
        %v4218 = vld [vmem:[#allocation3 + $0x21] sm:$0xff]
        %v4219 = vld [vmem:[#allocation3 + $0x29] sm:$0xff]
        %v4220 = vld [vmem:[#allocation3 + $0x31] sm:$0xff]
        %v4221 = vld [vmem:[#allocation3 + $0x39] sm:$0xff]
        %v4222 = vld [vmem:[#allocation3 + $0x41] sm:$0xff]
        %v4223 = vld [vmem:[#allocation3 + $0x49] sm:$0xff]
        %s4224 = scalar_lea.vmem %s4, 16
        %v4225 = vld [vmem:[%s4224] sm:$0xff]
        %v4226 = vld [vmem:[%s4224 + $0x8] sm:$0xff]
        %v4228 = vsel %vm751, %v4214, 0
        %v4231 = vsel %vm751, %v4215, 0
        %v4234 = vsel %vm751, %v4216, 0
        %v4237 = vsel %vm751, %v4217, 0
        %v4240 = vsel %vm751, %v4218, 0
        %v4243 = vsel %vm751, %v4219, 0
        %v4246 = vsel %vm751, %v4220, 0
        %v4249 = vsel %vm751, %v4221, 0
        %v4252 = vsel %vm751, %v4222, 0
        %v4255 = vsel %vm751, %v4223, 0
        %4257 = vmatpush.msra.mxu0 0.0
        %4258 = vmatpush.msra.mxu0 0.0
        %4259 = vmatpush.msra.mxu0 0.0
        %4260 = vmatpush.msra.mxu0 0.0
        %4261 = vmatpush.msra.mxu0 0.0
        %4262 = vmatpush.msra.mxu0 0.0
        %4263 = vmatpush.msra.mxu0 0.0
        %4264 = vmatpush.msra.mxu0 0.0
        %4265 = vmatpush.msra.mxu0 0.0
        %4266 = vmatpush.msra.mxu0 0.0
        %4267 = vmatpush.msra.mxu0 0.0
        %4268 = vmatpush.msra.mxu0 0.0
        %4269 = vmatpush.msra.mxu0 0.0
        %4270 = vmatpush.msra.mxu0 0.0
        %4271 = vmatpush.msra.mxu0 %v4226
        %4272 = vmatpush.msra.mxu0 %v4225
        %4273 = vmatmul.f32.gmra.mxu0 %v4228
        %v4274 = vpop.f32.mrf.mxu0
        %v4275 = vadd.f32 0.0, %v4274
        %4276 = vmatmul.f32.gmra.mxu0 %v4231
        %v4277 = vpop.f32.mrf.mxu0
        %v4278 = vadd.f32 0.0, %v4277
        %4279 = vmatmul.f32.gmra.mxu0 %v4234
        %v4280 = vpop.f32.mrf.mxu0
        %v4281 = vadd.f32 0.0, %v4280
        %4282 = vmatmul.f32.gmra.mxu0 %v4237
        %v4283 = vpop.f32.mrf.mxu0
        %v4284 = vadd.f32 0.0, %v4283
        %4285 = vmatmul.f32.gmra.mxu0 %v4240
        %v4286 = vpop.f32.mrf.mxu0
        %v4287 = vadd.f32 0.0, %v4286
        %4288 = vmatmul.f32.gmra.mxu0 %v4243
        %v4289 = vpop.f32.mrf.mxu0
        %v4290 = vadd.f32 0.0, %v4289
        %4291 = vmatmul.f32.gmra.mxu0 %v4246
        %v4292 = vpop.f32.mrf.mxu0
        %v4293 = vadd.f32 0.0, %v4292
        %4294 = vmatmul.f32.gmra.mxu0 %v4249
        %v4295 = vpop.f32.mrf.mxu0
        %v4296 = vadd.f32 0.0, %v4295
        %4297 = vmatmul.f32.gmra.mxu0 %v4252
        %v4298 = vpop.f32.mrf.mxu0
        %v4299 = vadd.f32 0.0, %v4298
        %4300 = vmatmul.f32.gmra.mxu0 %v4255
        %v4301 = vpop.f32.mrf.mxu0
        %v4302 = vadd.f32 0.0, %v4301
        %4303 = vdwg.mxu0
        %v4305 = vsel %vm751, %v4202, 0
        %v4308 = vsel %vm751, %v4203, 0
        %v4311 = vsel %vm751, %v4204, 0
        %v4314 = vsel %vm751, %v4205, 0
        %v4317 = vsel %vm751, %v4206, 0
        %v4320 = vsel %vm751, %v4207, 0
        %v4323 = vsel %vm751, %v4208, 0
        %v4326 = vsel %vm751, %v4209, 0
        %v4329 = vsel %vm751, %v4210, 0
        %v4332 = vsel %vm751, %v4211, 0
        %4334 = vmatpush.msra.mxu0 0.0
        %4335 = vmatpush.msra.mxu0 0.0
        %4336 = vmatpush.msra.mxu0 0.0
        %4337 = vmatpush.msra.mxu0 0.0
        %4338 = vmatpush.msra.mxu0 0.0
        %4339 = vmatpush.msra.mxu0 0.0
        %4340 = vmatpush.msra.mxu0 0.0
        %4341 = vmatpush.msra.mxu0 0.0
        %4342 = vmatpush.msra.mxu0 0.0
        %4343 = vmatpush.msra.mxu0 0.0
        %4344 = vmatpush.msra.mxu0 0.0
        %4345 = vmatpush.msra.mxu0 0.0
        %4346 = vmatpush.msra.mxu0 0.0
        %4347 = vmatpush.msra.mxu0 0.0
        %4348 = vmatpush.msra.mxu0 %v4213
        %4349 = vmatpush.msra.mxu0 %v4212
        %4350 = vmatmul.f32.gmra.mxu0 %v4305
        %v4351 = vpop.f32.mrf.mxu0
        %v4352 = vadd.f32 %v4275, %v4351
        %4353 = vmatmul.f32.gmra.mxu0 %v4308
        %v4354 = vpop.f32.mrf.mxu0
        %v4355 = vadd.f32 %v4278, %v4354
        %4356 = vmatmul.f32.gmra.mxu0 %v4311
        %v4357 = vpop.f32.mrf.mxu0
        %v4358 = vadd.f32 %v4281, %v4357
        %4359 = vmatmul.f32.gmra.mxu0 %v4314
        %v4360 = vpop.f32.mrf.mxu0
        %v4361 = vadd.f32 %v4284, %v4360
        %4362 = vmatmul.f32.gmra.mxu0 %v4317
        %v4363 = vpop.f32.mrf.mxu0
        %v4364 = vadd.f32 %v4287, %v4363
        %4365 = vmatmul.f32.gmra.mxu0 %v4320
        %v4366 = vpop.f32.mrf.mxu0
        %v4367 = vadd.f32 %v4290, %v4366
        %4368 = vmatmul.f32.gmra.mxu0 %v4323
        %v4369 = vpop.f32.mrf.mxu0
        %v4370 = vadd.f32 %v4293, %v4369
        %4371 = vmatmul.f32.gmra.mxu0 %v4326
        %v4372 = vpop.f32.mrf.mxu0
        %v4373 = vadd.f32 %v4296, %v4372
        %4374 = vmatmul.f32.gmra.mxu0 %v4329
        %v4375 = vpop.f32.mrf.mxu0
        %v4376 = vadd.f32 %v4299, %v4375
        %4377 = vmatmul.f32.gmra.mxu0 %v4332
        %v4378 = vpop.f32.mrf.mxu0
        %v4379 = vadd.f32 %v4302, %v4378
        %4380 = vdwg.mxu0
        %v4381 = vld [vmem:[#allocation3 + $0x2] sm:$0xff]
        %v4382 = vld [vmem:[#allocation3 + $0xa] sm:$0xff]
        %v4383 = vld [vmem:[#allocation3 + $0x12] sm:$0xff]
        %v4384 = vld [vmem:[#allocation3 + $0x1a] sm:$0xff]
        %v4385 = vld [vmem:[#allocation3 + $0x22] sm:$0xff]
        %v4386 = vld [vmem:[#allocation3 + $0x2a] sm:$0xff]
        %v4387 = vld [vmem:[#allocation3 + $0x32] sm:$0xff]
        %v4388 = vld [vmem:[#allocation3 + $0x3a] sm:$0xff]
        %v4389 = vld [vmem:[#allocation3 + $0x42] sm:$0xff]
        %v4390 = vld [vmem:[#allocation3 + $0x4a] sm:$0xff]
        %s4391 = scalar_lea.vmem %s4, 32
        %v4392 = vld [vmem:[%s4391] sm:$0xff]
        %v4393 = vld [vmem:[%s4391 + $0x8] sm:$0xff]
        %v4395 = vsel %vm751, %v4381, 0
        %v4398 = vsel %vm751, %v4382, 0
        %v4401 = vsel %vm751, %v4383, 0
        %v4404 = vsel %vm751, %v4384, 0
        %v4407 = vsel %vm751, %v4385, 0
        %v4410 = vsel %vm751, %v4386, 0
        %v4413 = vsel %vm751, %v4387, 0
        %v4416 = vsel %vm751, %v4388, 0
        %v4419 = vsel %vm751, %v4389, 0
        %v4422 = vsel %vm751, %v4390, 0
        %4424 = vmatpush.msra.mxu0 0.0
        %4425 = vmatpush.msra.mxu0 0.0
        %4426 = vmatpush.msra.mxu0 0.0
        %4427 = vmatpush.msra.mxu0 0.0
        %4428 = vmatpush.msra.mxu0 0.0
        %4429 = vmatpush.msra.mxu0 0.0
        %4430 = vmatpush.msra.mxu0 0.0
        %4431 = vmatpush.msra.mxu0 0.0
        %4432 = vmatpush.msra.mxu0 0.0
        %4433 = vmatpush.msra.mxu0 0.0
        %4434 = vmatpush.msra.mxu0 0.0
        %4435 = vmatpush.msra.mxu0 0.0
        %4436 = vmatpush.msra.mxu0 0.0
        %4437 = vmatpush.msra.mxu0 0.0
        %4438 = vmatpush.msra.mxu0 %v4393
        %4439 = vmatpush.msra.mxu0 %v4392
        %4440 = vmatmul.f32.gmra.mxu0 %v4395
        %v4441 = vpop.f32.mrf.mxu0
        %v4442 = vadd.f32 0.0, %v4441
        %4443 = vmatmul.f32.gmra.mxu0 %v4398
        %v4444 = vpop.f32.mrf.mxu0
        %v4445 = vadd.f32 0.0, %v4444
        %4446 = vmatmul.f32.gmra.mxu0 %v4401
        %v4447 = vpop.f32.mrf.mxu0
        %v4448 = vadd.f32 0.0, %v4447
        %4449 = vmatmul.f32.gmra.mxu0 %v4404
        %v4450 = vpop.f32.mrf.mxu0
        %v4451 = vadd.f32 0.0, %v4450
        %4452 = vmatmul.f32.gmra.mxu0 %v4407
        %v4453 = vpop.f32.mrf.mxu0
        %v4454 = vadd.f32 0.0, %v4453
        %4455 = vmatmul.f32.gmra.mxu0 %v4410
        %v4456 = vpop.f32.mrf.mxu0
        %v4457 = vadd.f32 0.0, %v4456
        %4458 = vmatmul.f32.gmra.mxu0 %v4413
        %v4459 = vpop.f32.mrf.mxu0
        %v4460 = vadd.f32 0.0, %v4459
        %4461 = vmatmul.f32.gmra.mxu0 %v4416
        %v4462 = vpop.f32.mrf.mxu0
        %v4463 = vadd.f32 0.0, %v4462
        %4464 = vmatmul.f32.gmra.mxu0 %v4419
        %v4465 = vpop.f32.mrf.mxu0
        %v4466 = vadd.f32 0.0, %v4465
        %4467 = vmatmul.f32.gmra.mxu0 %v4422
        %v4468 = vpop.f32.mrf.mxu0
        %v4469 = vadd.f32 0.0, %v4468
        %4470 = vdwg.mxu0
        %v4471 = vadd.f32 %v4352, %v4442
        %v4472 = vadd.f32 %v4355, %v4445
        %v4473 = vadd.f32 %v4358, %v4448
        %v4474 = vadd.f32 %v4361, %v4451
        %v4475 = vadd.f32 %v4364, %v4454
        %v4476 = vadd.f32 %v4367, %v4457
        %v4477 = vadd.f32 %v4370, %v4460
        %v4478 = vadd.f32 %v4373, %v4463
        %v4479 = vadd.f32 %v4376, %v4466
        %v4480 = vadd.f32 %v4379, %v4469
        %v4481 = vld [vmem:[#allocation3 + $0xa] sm:$0xff]
        %v4482 = vld [vmem:[#allocation3 + $0x12] sm:$0xff]
        %v4483 = vld [vmem:[#allocation3 + $0x1a] sm:$0xff]
        %v4484 = vld [vmem:[#allocation3 + $0x22] sm:$0xff]
        %v4485 = vld [vmem:[#allocation3 + $0x2a] sm:$0xff]
        %v4486 = vld [vmem:[#allocation3 + $0x32] sm:$0xff]
        %v4487 = vld [vmem:[#allocation3 + $0x3a] sm:$0xff]
        %v4488 = vld [vmem:[#allocation3 + $0x42] sm:$0xff]
        %v4489 = vld [vmem:[#allocation3 + $0x4a] sm:$0xff]
        %v4490 = vld [vmem:[#allocation3 + $0x52] sm:$0xff]
        %s4491 = scalar_lea.vmem %s4, 48
        %v4492 = vld [vmem:[%s4491] sm:$0xff]
        %v4493 = vld [vmem:[%s4491 + $0x8] sm:$0xff]
        %v4495 = vsel %vm751, %v4481, 0
        %v4498 = vsel %vm751, %v4482, 0
        %v4501 = vsel %vm751, %v4483, 0
        %v4504 = vsel %vm751, %v4484, 0
        %v4507 = vsel %vm751, %v4485, 0
        %v4510 = vsel %vm751, %v4486, 0
        %v4513 = vsel %vm751, %v4487, 0
        %v4516 = vsel %vm751, %v4488, 0
        %v4519 = vsel %vm751, %v4489, 0
        %v4522 = vsel %vm751, %v4490, 0
        %4524 = vmatpush.msra.mxu0 0.0
        %4525 = vmatpush.msra.mxu0 0.0
        %4526 = vmatpush.msra.mxu0 0.0
        %4527 = vmatpush.msra.mxu0 0.0
        %4528 = vmatpush.msra.mxu0 0.0
        %4529 = vmatpush.msra.mxu0 0.0
        %4530 = vmatpush.msra.mxu0 0.0
        %4531 = vmatpush.msra.mxu0 0.0
        %4532 = vmatpush.msra.mxu0 0.0
        %4533 = vmatpush.msra.mxu0 0.0
        %4534 = vmatpush.msra.mxu0 0.0
        %4535 = vmatpush.msra.mxu0 0.0
        %4536 = vmatpush.msra.mxu0 0.0
        %4537 = vmatpush.msra.mxu0 0.0
        %4538 = vmatpush.msra.mxu0 %v4493
        %4539 = vmatpush.msra.mxu0 %v4492
        %4540 = vmatmul.f32.gmra.mxu0 %v4495
        %v4541 = vpop.f32.mrf.mxu0
        %v4542 = vadd.f32 0.0, %v4541
        %4543 = vmatmul.f32.gmra.mxu0 %v4498
        %v4544 = vpop.f32.mrf.mxu0
        %v4545 = vadd.f32 0.0, %v4544
        %4546 = vmatmul.f32.gmra.mxu0 %v4501
        %v4547 = vpop.f32.mrf.mxu0
        %v4548 = vadd.f32 0.0, %v4547
        %4549 = vmatmul.f32.gmra.mxu0 %v4504
        %v4550 = vpop.f32.mrf.mxu0
        %v4551 = vadd.f32 0.0, %v4550
        %4552 = vmatmul.f32.gmra.mxu0 %v4507
        %v4553 = vpop.f32.mrf.mxu0
        %v4554 = vadd.f32 0.0, %v4553
        %4555 = vmatmul.f32.gmra.mxu0 %v4510
        %v4556 = vpop.f32.mrf.mxu0
        %v4557 = vadd.f32 0.0, %v4556
        %4558 = vmatmul.f32.gmra.mxu0 %v4513
        %v4559 = vpop.f32.mrf.mxu0
        %v4560 = vadd.f32 0.0, %v4559
        %4561 = vmatmul.f32.gmra.mxu0 %v4516
        %v4562 = vpop.f32.mrf.mxu0
        %v4563 = vadd.f32 0.0, %v4562
        %4564 = vmatmul.f32.gmra.mxu0 %v4519
        %v4565 = vpop.f32.mrf.mxu0
        %v4566 = vadd.f32 0.0, %v4565
        %4567 = vmatmul.f32.gmra.mxu0 %v4522
        %v4568 = vpop.f32.mrf.mxu0
        %v4569 = vadd.f32 0.0, %v4568
        %4570 = vdwg.mxu0
        %v4571 = vadd.f32 %v4471, %v4542
        %v4572 = vadd.f32 %v4472, %v4545
        %v4573 = vadd.f32 %v4473, %v4548
        %v4574 = vadd.f32 %v4474, %v4551
        %v4575 = vadd.f32 %v4475, %v4554
        %v4576 = vadd.f32 %v4476, %v4557
        %v4577 = vadd.f32 %v4477, %v4560
        %v4578 = vadd.f32 %v4478, %v4563
        %v4579 = vadd.f32 %v4479, %v4566
        %v4580 = vadd.f32 %v4480, %v4569
        %v4581 = vld [vmem:[#allocation3 + $0xb] sm:$0xff]
        %v4582 = vld [vmem:[#allocation3 + $0x13] sm:$0xff]
        %v4583 = vld [vmem:[#allocation3 + $0x1b] sm:$0xff]
        %v4584 = vld [vmem:[#allocation3 + $0x23] sm:$0xff]
        %v4585 = vld [vmem:[#allocation3 + $0x2b] sm:$0xff]
        %v4586 = vld [vmem:[#allocation3 + $0x33] sm:$0xff]
        %v4587 = vld [vmem:[#allocation3 + $0x3b] sm:$0xff]
        %v4588 = vld [vmem:[#allocation3 + $0x43] sm:$0xff]
        %v4589 = vld [vmem:[#allocation3 + $0x4b] sm:$0xff]
        %v4590 = vld [vmem:[#allocation3 + $0x53] sm:$0xff]
        %s4591 = scalar_lea.vmem %s4, 64
        %v4592 = vld [vmem:[%s4591] sm:$0xff]
        %v4593 = vld [vmem:[%s4591 + $0x8] sm:$0xff]
        %v4595 = vsel %vm751, %v4581, 0
        %v4598 = vsel %vm751, %v4582, 0
        %v4601 = vsel %vm751, %v4583, 0
        %v4604 = vsel %vm751, %v4584, 0
        %v4607 = vsel %vm751, %v4585, 0
        %v4610 = vsel %vm751, %v4586, 0
        %v4613 = vsel %vm751, %v4587, 0
        %v4616 = vsel %vm751, %v4588, 0
        %v4619 = vsel %vm751, %v4589, 0
        %v4622 = vsel %vm751, %v4590, 0
        %4624 = vmatpush.msra.mxu0 0.0
        %4625 = vmatpush.msra.mxu0 0.0
        %4626 = vmatpush.msra.mxu0 0.0
        %4627 = vmatpush.msra.mxu0 0.0
        %4628 = vmatpush.msra.mxu0 0.0
        %4629 = vmatpush.msra.mxu0 0.0
        %4630 = vmatpush.msra.mxu0 0.0
        %4631 = vmatpush.msra.mxu0 0.0
        %4632 = vmatpush.msra.mxu0 0.0
        %4633 = vmatpush.msra.mxu0 0.0
        %4634 = vmatpush.msra.mxu0 0.0
        %4635 = vmatpush.msra.mxu0 0.0
        %4636 = vmatpush.msra.mxu0 0.0
        %4637 = vmatpush.msra.mxu0 0.0
        %4638 = vmatpush.msra.mxu0 %v4593
        %4639 = vmatpush.msra.mxu0 %v4592
        %4640 = vmatmul.f32.gmra.mxu0 %v4595
        %v4641 = vpop.f32.mrf.mxu0
        %v4642 = vadd.f32 0.0, %v4641
        %4643 = vmatmul.f32.gmra.mxu0 %v4598
        %v4644 = vpop.f32.mrf.mxu0
        %v4645 = vadd.f32 0.0, %v4644
        %4646 = vmatmul.f32.gmra.mxu0 %v4601
        %v4647 = vpop.f32.mrf.mxu0
        %v4648 = vadd.f32 0.0, %v4647
        %4649 = vmatmul.f32.gmra.mxu0 %v4604
        %v4650 = vpop.f32.mrf.mxu0
        %v4651 = vadd.f32 0.0, %v4650
        %4652 = vmatmul.f32.gmra.mxu0 %v4607
        %v4653 = vpop.f32.mrf.mxu0
        %v4654 = vadd.f32 0.0, %v4653
        %4655 = vmatmul.f32.gmra.mxu0 %v4610
        %v4656 = vpop.f32.mrf.mxu0
        %v4657 = vadd.f32 0.0, %v4656
        %4658 = vmatmul.f32.gmra.mxu0 %v4613
        %v4659 = vpop.f32.mrf.mxu0
        %v4660 = vadd.f32 0.0, %v4659
        %4661 = vmatmul.f32.gmra.mxu0 %v4616
        %v4662 = vpop.f32.mrf.mxu0
        %v4663 = vadd.f32 0.0, %v4662
        %4664 = vmatmul.f32.gmra.mxu0 %v4619
        %v4665 = vpop.f32.mrf.mxu0
        %v4666 = vadd.f32 0.0, %v4665
        %4667 = vmatmul.f32.gmra.mxu0 %v4622
        %v4668 = vpop.f32.mrf.mxu0
        %v4669 = vadd.f32 0.0, %v4668
        %4670 = vdwg.mxu0
        %v4671 = vadd.f32 %v4571, %v4642
        %v4672 = vadd.f32 %v4572, %v4645
        %v4673 = vadd.f32 %v4573, %v4648
        %v4674 = vadd.f32 %v4574, %v4651
        %v4675 = vadd.f32 %v4575, %v4654
        %v4676 = vadd.f32 %v4576, %v4657
        %v4677 = vadd.f32 %v4577, %v4660
        %v4678 = vadd.f32 %v4578, %v4663
        %v4679 = vadd.f32 %v4579, %v4666
        %v4680 = vadd.f32 %v4580, %v4669
        %v4681 = vld [vmem:[#allocation3 + $0xc] sm:$0xff]
        %v4682 = vld [vmem:[#allocation3 + $0x14] sm:$0xff]
        %v4683 = vld [vmem:[#allocation3 + $0x1c] sm:$0xff]
        %v4684 = vld [vmem:[#allocation3 + $0x24] sm:$0xff]
        %v4685 = vld [vmem:[#allocation3 + $0x2c] sm:$0xff]
        %v4686 = vld [vmem:[#allocation3 + $0x34] sm:$0xff]
        %v4687 = vld [vmem:[#allocation3 + $0x3c] sm:$0xff]
        %v4688 = vld [vmem:[#allocation3 + $0x44] sm:$0xff]
        %v4689 = vld [vmem:[#allocation3 + $0x4c] sm:$0xff]
        %v4690 = vld [vmem:[#allocation3 + $0x54] sm:$0xff]
        %s4691 = scalar_lea.vmem %s4, 80
        %v4692 = vld [vmem:[%s4691] sm:$0xff]
        %v4693 = vld [vmem:[%s4691 + $0x8] sm:$0xff]
        %v4695 = vsel %vm751, %v4681, 0
        %v4698 = vsel %vm751, %v4682, 0
        %v4701 = vsel %vm751, %v4683, 0
        %v4704 = vsel %vm751, %v4684, 0
        %v4707 = vsel %vm751, %v4685, 0
        %v4710 = vsel %vm751, %v4686, 0
        %v4713 = vsel %vm751, %v4687, 0
        %v4716 = vsel %vm751, %v4688, 0
        %v4719 = vsel %vm751, %v4689, 0
        %v4722 = vsel %vm751, %v4690, 0
        %4724 = vmatpush.msra.mxu0 0.0
        %4725 = vmatpush.msra.mxu0 0.0
        %4726 = vmatpush.msra.mxu0 0.0
        %4727 = vmatpush.msra.mxu0 0.0
        %4728 = vmatpush.msra.mxu0 0.0
        %4729 = vmatpush.msra.mxu0 0.0
        %4730 = vmatpush.msra.mxu0 0.0
        %4731 = vmatpush.msra.mxu0 0.0
        %4732 = vmatpush.msra.mxu0 0.0
        %4733 = vmatpush.msra.mxu0 0.0
        %4734 = vmatpush.msra.mxu0 0.0
        %4735 = vmatpush.msra.mxu0 0.0
        %4736 = vmatpush.msra.mxu0 0.0
        %4737 = vmatpush.msra.mxu0 0.0
        %4738 = vmatpush.msra.mxu0 %v4693
        %4739 = vmatpush.msra.mxu0 %v4692
        %4740 = vmatmul.f32.gmra.mxu0 %v4695
        %v4741 = vpop.f32.mrf.mxu0
        %v4742 = vadd.f32 0.0, %v4741
        %4743 = vmatmul.f32.gmra.mxu0 %v4698
        %v4744 = vpop.f32.mrf.mxu0
        %v4745 = vadd.f32 0.0, %v4744
        %4746 = vmatmul.f32.gmra.mxu0 %v4701
        %v4747 = vpop.f32.mrf.mxu0
        %v4748 = vadd.f32 0.0, %v4747
        %4749 = vmatmul.f32.gmra.mxu0 %v4704
        %v4750 = vpop.f32.mrf.mxu0
        %v4751 = vadd.f32 0.0, %v4750
        %4752 = vmatmul.f32.gmra.mxu0 %v4707
        %v4753 = vpop.f32.mrf.mxu0
        %v4754 = vadd.f32 0.0, %v4753
        %4755 = vmatmul.f32.gmra.mxu0 %v4710
        %v4756 = vpop.f32.mrf.mxu0
        %v4757 = vadd.f32 0.0, %v4756
        %4758 = vmatmul.f32.gmra.mxu0 %v4713
        %v4759 = vpop.f32.mrf.mxu0
        %v4760 = vadd.f32 0.0, %v4759
        %4761 = vmatmul.f32.gmra.mxu0 %v4716
        %v4762 = vpop.f32.mrf.mxu0
        %v4763 = vadd.f32 0.0, %v4762
        %4764 = vmatmul.f32.gmra.mxu0 %v4719
        %v4765 = vpop.f32.mrf.mxu0
        %v4766 = vadd.f32 0.0, %v4765
        %4767 = vmatmul.f32.gmra.mxu0 %v4722
        %v4768 = vpop.f32.mrf.mxu0
        %v4769 = vadd.f32 0.0, %v4768
        %4770 = vdwg.mxu0
        %v4771 = vadd.f32 %v4671, %v4742
        %v4772 = vadd.f32 %v4672, %v4745
        %v4773 = vadd.f32 %v4673, %v4748
        %v4774 = vadd.f32 %v4674, %v4751
        %v4775 = vadd.f32 %v4675, %v4754
        %v4776 = vadd.f32 %v4676, %v4757
        %v4777 = vadd.f32 %v4677, %v4760
        %v4778 = vadd.f32 %v4678, %v4763
        %v4779 = vadd.f32 %v4679, %v4766
        %v4780 = vadd.f32 %v4680, %v4769
        %v4781 = vld [vmem:[#allocation3 + $0x14] sm:$0xff]
        %v4782 = vld [vmem:[#allocation3 + $0x1c] sm:$0xff]
        %v4783 = vld [vmem:[#allocation3 + $0x24] sm:$0xff]
        %v4784 = vld [vmem:[#allocation3 + $0x2c] sm:$0xff]
        %v4785 = vld [vmem:[#allocation3 + $0x34] sm:$0xff]
        %v4786 = vld [vmem:[#allocation3 + $0x3c] sm:$0xff]
        %v4787 = vld [vmem:[#allocation3 + $0x44] sm:$0xff]
        %v4788 = vld [vmem:[#allocation3 + $0x4c] sm:$0xff]
        %v4789 = vld [vmem:[#allocation3 + $0x54] sm:$0xff]
        %v4790 = vld [vmem:[#allocation3 + $0x5c] sm:$0xff]
        %s4791 = scalar_lea.vmem %s4, 96
        %v4792 = vld [vmem:[%s4791] sm:$0xff]
        %v4793 = vld [vmem:[%s4791 + $0x8] sm:$0xff]
        %v4795 = vsel %vm751, %v4781, 0
        %v4798 = vsel %vm751, %v4782, 0
        %v4801 = vsel %vm751, %v4783, 0
        %v4804 = vsel %vm751, %v4784, 0
        %v4807 = vsel %vm751, %v4785, 0
        %v4810 = vsel %vm751, %v4786, 0
        %v4813 = vsel %vm751, %v4787, 0
        %v4816 = vsel %vm751, %v4788, 0
        %v4819 = vsel %vm751, %v4789, 0
        %v4822 = vsel %vm751, %v4790, 0
        %4824 = vmatpush.msra.mxu0 0.0
        %4825 = vmatpush.msra.mxu0 0.0
        %4826 = vmatpush.msra.mxu0 0.0
        %4827 = vmatpush.msra.mxu0 0.0
        %4828 = vmatpush.msra.mxu0 0.0
        %4829 = vmatpush.msra.mxu0 0.0
        %4830 = vmatpush.msra.mxu0 0.0
        %4831 = vmatpush.msra.mxu0 0.0
        %4832 = vmatpush.msra.mxu0 0.0
        %4833 = vmatpush.msra.mxu0 0.0
        %4834 = vmatpush.msra.mxu0 0.0
        %4835 = vmatpush.msra.mxu0 0.0
        %4836 = vmatpush.msra.mxu0 0.0
        %4837 = vmatpush.msra.mxu0 0.0
        %4838 = vmatpush.msra.mxu0 %v4793
        %4839 = vmatpush.msra.mxu0 %v4792
        %4840 = vmatmul.f32.gmra.mxu0 %v4795
        %v4841 = vpop.f32.mrf.mxu0
        %v4842 = vadd.f32 0.0, %v4841
        %4843 = vmatmul.f32.gmra.mxu0 %v4798
        %v4844 = vpop.f32.mrf.mxu0
        %v4845 = vadd.f32 0.0, %v4844
        %4846 = vmatmul.f32.gmra.mxu0 %v4801
        %v4847 = vpop.f32.mrf.mxu0
        %v4848 = vadd.f32 0.0, %v4847
        %4849 = vmatmul.f32.gmra.mxu0 %v4804
        %v4850 = vpop.f32.mrf.mxu0
        %v4851 = vadd.f32 0.0, %v4850
        %4852 = vmatmul.f32.gmra.mxu0 %v4807
        %v4853 = vpop.f32.mrf.mxu0
        %v4854 = vadd.f32 0.0, %v4853
        %4855 = vmatmul.f32.gmra.mxu0 %v4810
        %v4856 = vpop.f32.mrf.mxu0
        %v4857 = vadd.f32 0.0, %v4856
        %4858 = vmatmul.f32.gmra.mxu0 %v4813
        %v4859 = vpop.f32.mrf.mxu0
        %v4860 = vadd.f32 0.0, %v4859
        %4861 = vmatmul.f32.gmra.mxu0 %v4816
        %v4862 = vpop.f32.mrf.mxu0
        %v4863 = vadd.f32 0.0, %v4862
        %4864 = vmatmul.f32.gmra.mxu0 %v4819
        %v4865 = vpop.f32.mrf.mxu0
        %v4866 = vadd.f32 0.0, %v4865
        %4867 = vmatmul.f32.gmra.mxu0 %v4822
        %v4868 = vpop.f32.mrf.mxu0
        %v4869 = vadd.f32 0.0, %v4868
        %4870 = vdwg.mxu0
        %v4871 = vadd.f32 %v4771, %v4842
        %v4872 = vadd.f32 %v4772, %v4845
        %v4873 = vadd.f32 %v4773, %v4848
        %v4874 = vadd.f32 %v4774, %v4851
        %v4875 = vadd.f32 %v4775, %v4854
        %v4876 = vadd.f32 %v4776, %v4857
        %v4877 = vadd.f32 %v4777, %v4860
        %v4878 = vadd.f32 %v4778, %v4863
        %v4879 = vadd.f32 %v4779, %v4866
        %v4880 = vadd.f32 %v4780, %v4869
        %v4881 = vld [vmem:[#allocation3 + $0x15] sm:$0xff]
        %v4882 = vld [vmem:[#allocation3 + $0x1d] sm:$0xff]
        %v4883 = vld [vmem:[#allocation3 + $0x25] sm:$0xff]
        %v4884 = vld [vmem:[#allocation3 + $0x2d] sm:$0xff]
        %v4885 = vld [vmem:[#allocation3 + $0x35] sm:$0xff]
        %v4886 = vld [vmem:[#allocation3 + $0x3d] sm:$0xff]
        %v4887 = vld [vmem:[#allocation3 + $0x45] sm:$0xff]
        %v4888 = vld [vmem:[#allocation3 + $0x4d] sm:$0xff]
        %v4889 = vld [vmem:[#allocation3 + $0x55] sm:$0xff]
        %v4890 = vld [vmem:[#allocation3 + $0x5d] sm:$0xff]
        %s4891 = scalar_lea.vmem %s4, 112
        %v4892 = vld [vmem:[%s4891] sm:$0xff]
        %v4893 = vld [vmem:[%s4891 + $0x8] sm:$0xff]
        %v4895 = vsel %vm751, %v4881, 0
        %v4898 = vsel %vm751, %v4882, 0
        %v4901 = vsel %vm751, %v4883, 0
        %v4904 = vsel %vm751, %v4884, 0
        %v4907 = vsel %vm751, %v4885, 0
        %v4910 = vsel %vm751, %v4886, 0
        %v4913 = vsel %vm751, %v4887, 0
        %v4916 = vsel %vm751, %v4888, 0
        %v4919 = vsel %vm751, %v4889, 0
        %v4922 = vsel %vm751, %v4890, 0
        %4924 = vmatpush.msra.mxu0 0.0
        %4925 = vmatpush.msra.mxu0 0.0
        %4926 = vmatpush.msra.mxu0 0.0
        %4927 = vmatpush.msra.mxu0 0.0
        %4928 = vmatpush.msra.mxu0 0.0
        %4929 = vmatpush.msra.mxu0 0.0
        %4930 = vmatpush.msra.mxu0 0.0
        %4931 = vmatpush.msra.mxu0 0.0
        %4932 = vmatpush.msra.mxu0 0.0
        %4933 = vmatpush.msra.mxu0 0.0
        %4934 = vmatpush.msra.mxu0 0.0
        %4935 = vmatpush.msra.mxu0 0.0
        %4936 = vmatpush.msra.mxu0 0.0
        %4937 = vmatpush.msra.mxu0 0.0
        %4938 = vmatpush.msra.mxu0 %v4893
        %4939 = vmatpush.msra.mxu0 %v4892
        %4940 = vmatmul.f32.gmra.mxu0 %v4895
        %v4941 = vpop.f32.mrf.mxu0
        %v4942 = vadd.f32 0.0, %v4941
        %4943 = vmatmul.f32.gmra.mxu0 %v4898
        %v4944 = vpop.f32.mrf.mxu0
        %v4945 = vadd.f32 0.0, %v4944
        %4946 = vmatmul.f32.gmra.mxu0 %v4901
        %v4947 = vpop.f32.mrf.mxu0
        %v4948 = vadd.f32 0.0, %v4947
        %4949 = vmatmul.f32.gmra.mxu0 %v4904
        %v4950 = vpop.f32.mrf.mxu0
        %v4951 = vadd.f32 0.0, %v4950
        %4952 = vmatmul.f32.gmra.mxu0 %v4907
        %v4953 = vpop.f32.mrf.mxu0
        %v4954 = vadd.f32 0.0, %v4953
        %4955 = vmatmul.f32.gmra.mxu0 %v4910
        %v4956 = vpop.f32.mrf.mxu0
        %v4957 = vadd.f32 0.0, %v4956
        %4958 = vmatmul.f32.gmra.mxu0 %v4913
        %v4959 = vpop.f32.mrf.mxu0
        %v4960 = vadd.f32 0.0, %v4959
        %4961 = vmatmul.f32.gmra.mxu0 %v4916
        %v4962 = vpop.f32.mrf.mxu0
        %v4963 = vadd.f32 0.0, %v4962
        %4964 = vmatmul.f32.gmra.mxu0 %v4919
        %v4965 = vpop.f32.mrf.mxu0
        %v4966 = vadd.f32 0.0, %v4965
        %4967 = vmatmul.f32.gmra.mxu0 %v4922
        %v4968 = vpop.f32.mrf.mxu0
        %v4969 = vadd.f32 0.0, %v4968
        %4970 = vdwg.mxu0
        %v4971 = vadd.f32 %v4871, %v4942
        %v4972 = vadd.f32 %v4872, %v4945
        %v4973 = vadd.f32 %v4873, %v4948
        %v4974 = vadd.f32 %v4874, %v4951
        %v4975 = vadd.f32 %v4875, %v4954
        %v4976 = vadd.f32 %v4876, %v4957
        %v4977 = vadd.f32 %v4877, %v4960
        %v4978 = vadd.f32 %v4878, %v4963
        %v4979 = vadd.f32 %v4879, %v4966
        %v4980 = vadd.f32 %v4880, %v4969
        %v4981 = vld [vmem:[#allocation3 + $0x16] sm:$0xff]
        %v4982 = vld [vmem:[#allocation3 + $0x1e] sm:$0xff]
        %v4983 = vld [vmem:[#allocation3 + $0x26] sm:$0xff]
        %v4984 = vld [vmem:[#allocation3 + $0x2e] sm:$0xff]
        %v4985 = vld [vmem:[#allocation3 + $0x36] sm:$0xff]
        %v4986 = vld [vmem:[#allocation3 + $0x3e] sm:$0xff]
        %v4987 = vld [vmem:[#allocation3 + $0x46] sm:$0xff]
        %v4988 = vld [vmem:[#allocation3 + $0x4e] sm:$0xff]
        %v4989 = vld [vmem:[#allocation3 + $0x56] sm:$0xff]
        %v4990 = vld [vmem:[#allocation3 + $0x5e] sm:$0xff]
        %s4991 = scalar_lea.vmem %s4, 128
        %v4992 = vld [vmem:[%s4991] sm:$0xff]
        %v4993 = vld [vmem:[%s4991 + $0x8] sm:$0xff]
        %v4995 = vsel %vm751, %v4981, 0
        %v4998 = vsel %vm751, %v4982, 0
        %v5001 = vsel %vm751, %v4983, 0
        %v5004 = vsel %vm751, %v4984, 0
        %v5007 = vsel %vm751, %v4985, 0
        %v5010 = vsel %vm751, %v4986, 0
        %v5013 = vsel %vm751, %v4987, 0
        %v5016 = vsel %vm751, %v4988, 0
        %v5019 = vsel %vm751, %v4989, 0
        %v5022 = vsel %vm751, %v4990, 0
        %5024 = vmatpush.msra.mxu0 0.0
        %5025 = vmatpush.msra.mxu0 0.0
        %5026 = vmatpush.msra.mxu0 0.0
        %5027 = vmatpush.msra.mxu0 0.0
        %5028 = vmatpush.msra.mxu0 0.0
        %5029 = vmatpush.msra.mxu0 0.0
        %5030 = vmatpush.msra.mxu0 0.0
        %5031 = vmatpush.msra.mxu0 0.0
        %5032 = vmatpush.msra.mxu0 0.0
        %5033 = vmatpush.msra.mxu0 0.0
        %5034 = vmatpush.msra.mxu0 0.0
        %5035 = vmatpush.msra.mxu0 0.0
        %5036 = vmatpush.msra.mxu0 0.0
        %5037 = vmatpush.msra.mxu0 0.0
        %5038 = vmatpush.msra.mxu0 %v4993
        %5039 = vmatpush.msra.mxu0 %v4992
        %5040 = vmatmul.f32.gmra.mxu0 %v4995
        %v5041 = vpop.f32.mrf.mxu0
        %v5042 = vadd.f32 0.0, %v5041
        %5043 = vmatmul.f32.gmra.mxu0 %v4998
        %v5044 = vpop.f32.mrf.mxu0
        %v5045 = vadd.f32 0.0, %v5044
        %5046 = vmatmul.f32.gmra.mxu0 %v5001
        %v5047 = vpop.f32.mrf.mxu0
        %v5048 = vadd.f32 0.0, %v5047
        %5049 = vmatmul.f32.gmra.mxu0 %v5004
        %v5050 = vpop.f32.mrf.mxu0
        %v5051 = vadd.f32 0.0, %v5050
        %5052 = vmatmul.f32.gmra.mxu0 %v5007
        %v5053 = vpop.f32.mrf.mxu0
        %v5054 = vadd.f32 0.0, %v5053
        %5055 = vmatmul.f32.gmra.mxu0 %v5010
        %v5056 = vpop.f32.mrf.mxu0
        %v5057 = vadd.f32 0.0, %v5056
        %5058 = vmatmul.f32.gmra.mxu0 %v5013
        %v5059 = vpop.f32.mrf.mxu0
        %v5060 = vadd.f32 0.0, %v5059
        %5061 = vmatmul.f32.gmra.mxu0 %v5016
        %v5062 = vpop.f32.mrf.mxu0
        %v5063 = vadd.f32 0.0, %v5062
        %5064 = vmatmul.f32.gmra.mxu0 %v5019
        %v5065 = vpop.f32.mrf.mxu0
        %v5066 = vadd.f32 0.0, %v5065
        %5067 = vmatmul.f32.gmra.mxu0 %v5022
        %v5068 = vpop.f32.mrf.mxu0
        %v5069 = vadd.f32 0.0, %v5068
        %5070 = vdwg.mxu0
        %v5071 = vadd.f32 %v4971, %v5042
        %v5072 = vadd.f32 %v4972, %v5045
        %v5073 = vadd.f32 %v4973, %v5048
        %v5074 = vadd.f32 %v4974, %v5051
        %v5075 = vadd.f32 %v4975, %v5054
        %v5076 = vadd.f32 %v4976, %v5057
        %v5077 = vadd.f32 %v4977, %v5060
        %v5078 = vadd.f32 %v4978, %v5063
        %v5079 = vadd.f32 %v4979, %v5066
        %v5080 = vadd.f32 %v4980, %v5069
        %v5082 = vperm.slane %v4200, 0
        %v5084 = vmul.f32 %v5071, %v5082
        %v5085 = vmul.f32 %v5072, %v5082
        %v5086 = vmul.f32 %v5073, %v5082
        %v5087 = vmul.f32 %v5074, %v5082
        %v5088 = vmul.f32 %v5075, %v5082
        %v5089 = vmul.f32 %v5076, %v5082
        %v5090 = vmul.f32 %v5077, %v5082
        %v5091 = vmul.f32 %v5078, %v5082
        %v5092 = vmul.f32 %v5079, %v5082
        %v5093 = vmul.f32 %v5080, %v5082
        %v5095 = vperm.slane %v4201, 0
        %v5097 = vadd.f32 %v5084, %v5095
        %v5098 = vadd.f32 %v5085, %v5095
        %v5099 = vadd.f32 %v5086, %v5095
        %v5100 = vadd.f32 %v5087, %v5095
        %v5101 = vadd.f32 %v5088, %v5095
        %v5102 = vadd.f32 %v5089, %v5095
        %v5103 = vadd.f32 %v5090, %v5095
        %v5104 = vadd.f32 %v5091, %v5095
        %v5105 = vadd.f32 %v5092, %v5095
        %v5106 = vadd.f32 %v5093, %v5095
        %v5107 = vmax.f32 %v5097, 0.0
        %v5108 = vmax.f32 %v5098, 0.0
        %v5109 = vmax.f32 %v5099, 0.0
        %v5110 = vmax.f32 %v5100, 0.0
        %v5111 = vmax.f32 %v5101, 0.0
        %v5112 = vmax.f32 %v5102, 0.0
        %v5113 = vmax.f32 %v5103, 0.0
        %v5114 = vmax.f32 %v5104, 0.0
        %v5115 = vmax.f32 %v5105, 0.0
        %v5116 = vmax.f32 %v5106, 0.0
        %5117 = vst.msk [vmem:[#allocation7] sm:$0xff] %vm766, %v5107
        %5118 = vst.msk [vmem:[#allocation7 + $0x8] sm:$0xff] %vm766, %v5108
        %5119 = vst.msk [vmem:[#allocation7 + $0x10] sm:$0xff] %vm766, %v5109
        %5120 = vst.msk [vmem:[#allocation7 + $0x18] sm:$0xff] %vm766, %v5110
        %5121 = vst.msk [vmem:[#allocation7 + $0x20] sm:$0xff] %vm766, %v5111
        %5122 = vst.msk [vmem:[#allocation7 + $0x28] sm:$0xff] %vm766, %v5112
        %5123 = vst.msk [vmem:[#allocation7 + $0x30] sm:$0xff] %vm766, %v5113
        %5124 = vst.msk [vmem:[#allocation7 + $0x38] sm:$0xff] %vm766, %v5114
        %5125 = vst.msk [vmem:[#allocation7 + $0x40] sm:$0xff] %vm766, %v5115
        %5126 = vst.msk [vmem:[#allocation7 + $0x48] sm:$0xff] %vm766, %v5116
        %v5127 = vld [vmem:[#allocation7] ss:$2 sm:$0xf]
        %s5128 = scalar_lea.vmem [#allocation7], 1
        %v5129 = vld [vmem:[%s5128] ss:$2 sm:$0xf]
        %v5130 = vmax.f32 %v5127, %v5129
        %s5131 = scalar_lea.vmem [#allocation7], 10
        %v5132 = vld [vmem:[%s5131] ss:$2 sm:$0xf]
        %s5133 = scalar_lea.vmem [#allocation7], 11
        %v5134 = vld [vmem:[%s5133] ss:$2 sm:$0xf]
        %v5135 = vmax.f32 %v5132, %v5134
        %v5136 = vmax.f32 %v5130, %v5135
        %vm5137 = vcmask 257024
        %5138 = vst.msk [vmem:[#allocation4 + $0x7] sm:$0xf] %vm5137, %v5136
        %s5139 = scalar_lea.vmem [#allocation7], 20
        %v5140 = vld [vmem:[%s5139] ss:$2 sm:$0xf]
        %s5141 = scalar_lea.vmem [#allocation7], 21
        %v5142 = vld [vmem:[%s5141] ss:$2 sm:$0xf]
        %v5143 = vmax.f32 %v5140, %v5142
        %s5144 = scalar_lea.vmem [#allocation7], 30
        %v5145 = vld [vmem:[%s5144] ss:$2 sm:$0xf]
        %s5146 = scalar_lea.vmem [#allocation7], 31
        %v5147 = vld [vmem:[%s5146] ss:$2 sm:$0xf]
        %v5148 = vmax.f32 %v5145, %v5147
        %v5149 = vmax.f32 %v5143, %v5148
        %5150 = vst.msk [vmem:[#allocation4 + $0xd] sm:$0xf] %vm5137, %v5149
        %s5151 = scalar_lea.vmem [#allocation7], 40
        %v5152 = vld [vmem:[%s5151] ss:$2 sm:$0xf]
        %s5153 = scalar_lea.vmem [#allocation7], 41
        %v5154 = vld [vmem:[%s5153] ss:$2 sm:$0xf]
        %v5155 = vmax.f32 %v5152, %v5154
        %s5156 = scalar_lea.vmem [#allocation7], 50
        %v5157 = vld [vmem:[%s5156] ss:$2 sm:$0xf]
        %s5158 = scalar_lea.vmem [#allocation7], 51
        %v5159 = vld [vmem:[%s5158] ss:$2 sm:$0xf]
        %v5160 = vmax.f32 %v5157, %v5159
        %v5161 = vmax.f32 %v5155, %v5160
        %5162 = vst.msk [vmem:[#allocation4 + $0x13] sm:$0xf] %vm5137, %v5161
        %s5163 = scalar_lea.vmem [#allocation7], 60
        %v5164 = vld [vmem:[%s5163] ss:$2 sm:$0xf]
        %s5165 = scalar_lea.vmem [#allocation7], 61
        %v5166 = vld [vmem:[%s5165] ss:$2 sm:$0xf]
        %v5167 = vmax.f32 %v5164, %v5166
        %s5168 = scalar_lea.vmem [#allocation7], 70
        %v5169 = vld [vmem:[%s5168] ss:$2 sm:$0xf]
        %s5170 = scalar_lea.vmem [#allocation7], 71
        %v5171 = vld [vmem:[%s5170] ss:$2 sm:$0xf]
        %v5172 = vmax.f32 %v5169, %v5171
        %v5173 = vmax.f32 %v5167, %v5172
        %5174 = vst.msk [vmem:[#allocation4 + $0x19] sm:$0xf] %vm5137, %v5173
        %v5175 = vld [vmem:[#allocation19] sm:$0x1]
        %v5176 = vld [vmem:[#allocation21] sm:$0x1]
        %v5177 = vld [vmem:[#allocation4] sm:$0xff]
        %v5178 = vld [vmem:[#allocation4 + $0x8] sm:$0xff]
        %v5179 = vld [vmem:[#allocation4 + $0x10] sm:$0xff]
        %v5180 = vld [vmem:[#allocation18] sm:$0xff]
        %v5181 = vld [vmem:[#allocation18 + $0x8] sm:$0xff]
        %v5182 = vld [vmem:[#allocation18 + $0x10] sm:$0xff]
        %v5183 = vld [vmem:[#allocation18 + $0x18] sm:$0xff]
        %v5184 = vld [vmem:[#allocation4 + $0x1] sm:$0xff]
        %v5185 = vld [vmem:[#allocation4 + $0x9] sm:$0xff]
        %v5186 = vld [vmem:[#allocation4 + $0x11] sm:$0xff]
        %s5187 = scalar_lea.vmem [#allocation18], 32
        %v5188 = vld [vmem:[%s5187] sm:$0xff]
        %v5189 = vld [vmem:[%s5187 + $0x8] sm:$0xff]
        %v5190 = vld [vmem:[%s5187 + $0x10] sm:$0xff]
        %v5191 = vld [vmem:[%s5187 + $0x18] sm:$0xff]
        %v5193 = vsel %vm766, %v5184, 0
        %v5196 = vsel %vm766, %v5185, 0
        %v5199 = vsel %vm766, %v5186, 0
        %5201 = vmatpush.msra.mxu0 0.0
        %5202 = vmatpush.msra.mxu0 0.0
        %5203 = vmatpush.msra.mxu0 0.0
        %5204 = vmatpush.msra.mxu0 0.0
        %5205 = vmatpush.msra.mxu0 0.0
        %5206 = vmatpush.msra.mxu0 0.0
        %5207 = vmatpush.msra.mxu0 0.0
        %5208 = vmatpush.msra.mxu0 0.0
        %5209 = vmatpush.msra.mxu0 0.0
        %5210 = vmatpush.msra.mxu0 0.0
        %5211 = vmatpush.msra.mxu0 0.0
        %5212 = vmatpush.msra.mxu0 0.0
        %5213 = vmatpush.msra.mxu0 %v5191
        %5214 = vmatpush.msra.mxu0 %v5190
        %5215 = vmatpush.msra.mxu0 %v5189
        %5216 = vmatpush.msra.mxu0 %v5188
        %5217 = vmatmul.f32.gmra.mxu0 %v5193
        %v5218 = vpop.f32.mrf.mxu0
        %v5219 = vadd.f32 0.0, %v5218
        %5220 = vmatmul.f32.gmra.mxu0 %v5196
        %v5221 = vpop.f32.mrf.mxu0
        %v5222 = vadd.f32 0.0, %v5221
        %5223 = vmatmul.f32.gmra.mxu0 %v5199
        %v5224 = vpop.f32.mrf.mxu0
        %v5225 = vadd.f32 0.0, %v5224
        %5226 = vdwg.mxu0
        %v5228 = vsel %vm766, %v5177, 0
        %v5231 = vsel %vm766, %v5178, 0
        %v5234 = vsel %vm766, %v5179, 0
        %5236 = vmatpush.msra.mxu0 0.0
        %5237 = vmatpush.msra.mxu0 0.0
        %5238 = vmatpush.msra.mxu0 0.0
        %5239 = vmatpush.msra.mxu0 0.0
        %5240 = vmatpush.msra.mxu0 0.0
        %5241 = vmatpush.msra.mxu0 0.0
        %5242 = vmatpush.msra.mxu0 0.0
        %5243 = vmatpush.msra.mxu0 0.0
        %5244 = vmatpush.msra.mxu0 0.0
        %5245 = vmatpush.msra.mxu0 0.0
        %5246 = vmatpush.msra.mxu0 0.0
        %5247 = vmatpush.msra.mxu0 0.0
        %5248 = vmatpush.msra.mxu0 %v5183
        %5249 = vmatpush.msra.mxu0 %v5182
        %5250 = vmatpush.msra.mxu0 %v5181
        %5251 = vmatpush.msra.mxu0 %v5180
        %5252 = vmatmul.f32.gmra.mxu0 %v5228
        %v5253 = vpop.f32.mrf.mxu0
        %v5254 = vadd.f32 %v5219, %v5253
        %5255 = vmatmul.f32.gmra.mxu0 %v5231
        %v5256 = vpop.f32.mrf.mxu0
        %v5257 = vadd.f32 %v5222, %v5256
        %5258 = vmatmul.f32.gmra.mxu0 %v5234
        %v5259 = vpop.f32.mrf.mxu0
        %v5260 = vadd.f32 %v5225, %v5259
        %5261 = vdwg.mxu0
        %v5262 = vld [vmem:[#allocation4 + $0x2] sm:$0xff]
        %v5263 = vld [vmem:[#allocation4 + $0xa] sm:$0xff]
        %v5264 = vld [vmem:[#allocation4 + $0x12] sm:$0xff]
        %s5265 = scalar_lea.vmem [#allocation18], 64
        %v5266 = vld [vmem:[%s5265] sm:$0xff]
        %v5267 = vld [vmem:[%s5265 + $0x8] sm:$0xff]
        %v5268 = vld [vmem:[%s5265 + $0x10] sm:$0xff]
        %v5269 = vld [vmem:[%s5265 + $0x18] sm:$0xff]
        %v5271 = vsel %vm766, %v5262, 0
        %v5274 = vsel %vm766, %v5263, 0
        %v5277 = vsel %vm766, %v5264, 0
        %5279 = vmatpush.msra.mxu0 0.0
        %5280 = vmatpush.msra.mxu0 0.0
        %5281 = vmatpush.msra.mxu0 0.0
        %5282 = vmatpush.msra.mxu0 0.0
        %5283 = vmatpush.msra.mxu0 0.0
        %5284 = vmatpush.msra.mxu0 0.0
        %5285 = vmatpush.msra.mxu0 0.0
        %5286 = vmatpush.msra.mxu0 0.0
        %5287 = vmatpush.msra.mxu0 0.0
        %5288 = vmatpush.msra.mxu0 0.0
        %5289 = vmatpush.msra.mxu0 0.0
        %5290 = vmatpush.msra.mxu0 0.0
        %5291 = vmatpush.msra.mxu0 %v5269
        %5292 = vmatpush.msra.mxu0 %v5268
        %5293 = vmatpush.msra.mxu0 %v5267
        %5294 = vmatpush.msra.mxu0 %v5266
        %5295 = vmatmul.f32.gmra.mxu0 %v5271
        %v5296 = vpop.f32.mrf.mxu0
        %v5297 = vadd.f32 0.0, %v5296
        %5298 = vmatmul.f32.gmra.mxu0 %v5274
        %v5299 = vpop.f32.mrf.mxu0
        %v5300 = vadd.f32 0.0, %v5299
        %5301 = vmatmul.f32.gmra.mxu0 %v5277
        %v5302 = vpop.f32.mrf.mxu0
        %v5303 = vadd.f32 0.0, %v5302
        %5304 = vdwg.mxu0
        %v5305 = vadd.f32 %v5254, %v5297
        %v5306 = vadd.f32 %v5257, %v5300
        %v5307 = vadd.f32 %v5260, %v5303
        %v5308 = vld [vmem:[#allocation4 + $0x6] sm:$0xff]
        %v5309 = vld [vmem:[#allocation4 + $0xe] sm:$0xff]
        %v5310 = vld [vmem:[#allocation4 + $0x16] sm:$0xff]
        %s5311 = scalar_lea.vmem [#allocation18], 96
        %v5312 = vld [vmem:[%s5311] sm:$0xff]
        %v5313 = vld [vmem:[%s5311 + $0x8] sm:$0xff]
        %v5314 = vld [vmem:[%s5311 + $0x10] sm:$0xff]
        %v5315 = vld [vmem:[%s5311 + $0x18] sm:$0xff]
        %v5317 = vsel %vm766, %v5308, 0
        %v5320 = vsel %vm766, %v5309, 0
        %v5323 = vsel %vm766, %v5310, 0
        %5325 = vmatpush.msra.mxu0 0.0
        %5326 = vmatpush.msra.mxu0 0.0
        %5327 = vmatpush.msra.mxu0 0.0
        %5328 = vmatpush.msra.mxu0 0.0
        %5329 = vmatpush.msra.mxu0 0.0
        %5330 = vmatpush.msra.mxu0 0.0
        %5331 = vmatpush.msra.mxu0 0.0
        %5332 = vmatpush.msra.mxu0 0.0
        %5333 = vmatpush.msra.mxu0 0.0
        %5334 = vmatpush.msra.mxu0 0.0
        %5335 = vmatpush.msra.mxu0 0.0
        %5336 = vmatpush.msra.mxu0 0.0
        %5337 = vmatpush.msra.mxu0 %v5315
        %5338 = vmatpush.msra.mxu0 %v5314
        %5339 = vmatpush.msra.mxu0 %v5313
        %5340 = vmatpush.msra.mxu0 %v5312
        %5341 = vmatmul.f32.gmra.mxu0 %v5317
        %v5342 = vpop.f32.mrf.mxu0
        %v5343 = vadd.f32 0.0, %v5342
        %5344 = vmatmul.f32.gmra.mxu0 %v5320
        %v5345 = vpop.f32.mrf.mxu0
        %v5346 = vadd.f32 0.0, %v5345
        %5347 = vmatmul.f32.gmra.mxu0 %v5323
        %v5348 = vpop.f32.mrf.mxu0
        %v5349 = vadd.f32 0.0, %v5348
        %5350 = vdwg.mxu0
        %v5351 = vadd.f32 %v5305, %v5343
        %v5352 = vadd.f32 %v5306, %v5346
        %v5353 = vadd.f32 %v5307, %v5349
        %v5354 = vld [vmem:[#allocation4 + $0x7] sm:$0xff]
        %v5355 = vld [vmem:[#allocation4 + $0xf] sm:$0xff]
        %v5356 = vld [vmem:[#allocation4 + $0x17] sm:$0xff]
        %s5357 = scalar_lea.vmem [#allocation18], 128
        %v5358 = vld [vmem:[%s5357] sm:$0xff]
        %v5359 = vld [vmem:[%s5357 + $0x8] sm:$0xff]
        %v5360 = vld [vmem:[%s5357 + $0x10] sm:$0xff]
        %v5361 = vld [vmem:[%s5357 + $0x18] sm:$0xff]
        %v5363 = vsel %vm766, %v5354, 0
        %v5366 = vsel %vm766, %v5355, 0
        %v5369 = vsel %vm766, %v5356, 0
        %5371 = vmatpush.msra.mxu0 0.0
        %5372 = vmatpush.msra.mxu0 0.0
        %5373 = vmatpush.msra.mxu0 0.0
        %5374 = vmatpush.msra.mxu0 0.0
        %5375 = vmatpush.msra.mxu0 0.0
        %5376 = vmatpush.msra.mxu0 0.0
        %5377 = vmatpush.msra.mxu0 0.0
        %5378 = vmatpush.msra.mxu0 0.0
        %5379 = vmatpush.msra.mxu0 0.0
        %5380 = vmatpush.msra.mxu0 0.0
        %5381 = vmatpush.msra.mxu0 0.0
        %5382 = vmatpush.msra.mxu0 0.0
        %5383 = vmatpush.msra.mxu0 %v5361
        %5384 = vmatpush.msra.mxu0 %v5360
        %5385 = vmatpush.msra.mxu0 %v5359
        %5386 = vmatpush.msra.mxu0 %v5358
        %5387 = vmatmul.f32.gmra.mxu0 %v5363
        %v5388 = vpop.f32.mrf.mxu0
        %v5389 = vadd.f32 0.0, %v5388
        %5390 = vmatmul.f32.gmra.mxu0 %v5366
        %v5391 = vpop.f32.mrf.mxu0
        %v5392 = vadd.f32 0.0, %v5391
        %5393 = vmatmul.f32.gmra.mxu0 %v5369
        %v5394 = vpop.f32.mrf.mxu0
        %v5395 = vadd.f32 0.0, %v5394
        %5396 = vdwg.mxu0
        %v5397 = vadd.f32 %v5351, %v5389
        %v5398 = vadd.f32 %v5352, %v5392
        %v5399 = vadd.f32 %v5353, %v5395
        %v5400 = vld [vmem:[#allocation4 + $0x8] sm:$0xff]
        %v5401 = vld [vmem:[#allocation4 + $0x10] sm:$0xff]
        %v5402 = vld [vmem:[#allocation4 + $0x18] sm:$0xff]
        %s5403 = scalar_lea.vmem [#allocation18], 160
        %v5404 = vld [vmem:[%s5403] sm:$0xff]
        %v5405 = vld [vmem:[%s5403 + $0x8] sm:$0xff]
        %v5406 = vld [vmem:[%s5403 + $0x10] sm:$0xff]
        %v5407 = vld [vmem:[%s5403 + $0x18] sm:$0xff]
        %v5409 = vsel %vm766, %v5400, 0
        %v5412 = vsel %vm766, %v5401, 0
        %v5415 = vsel %vm766, %v5402, 0
        %5417 = vmatpush.msra.mxu0 0.0
        %5418 = vmatpush.msra.mxu0 0.0
        %5419 = vmatpush.msra.mxu0 0.0
        %5420 = vmatpush.msra.mxu0 0.0
        %5421 = vmatpush.msra.mxu0 0.0
        %5422 = vmatpush.msra.mxu0 0.0
        %5423 = vmatpush.msra.mxu0 0.0
        %5424 = vmatpush.msra.mxu0 0.0
        %5425 = vmatpush.msra.mxu0 0.0
        %5426 = vmatpush.msra.mxu0 0.0
        %5427 = vmatpush.msra.mxu0 0.0
        %5428 = vmatpush.msra.mxu0 0.0
        %5429 = vmatpush.msra.mxu0 %v5407
        %5430 = vmatpush.msra.mxu0 %v5406
        %5431 = vmatpush.msra.mxu0 %v5405
        %5432 = vmatpush.msra.mxu0 %v5404
        %5433 = vmatmul.f32.gmra.mxu0 %v5409
        %v5434 = vpop.f32.mrf.mxu0
        %v5435 = vadd.f32 0.0, %v5434
        %5436 = vmatmul.f32.gmra.mxu0 %v5412
        %v5437 = vpop.f32.mrf.mxu0
        %v5438 = vadd.f32 0.0, %v5437
        %5439 = vmatmul.f32.gmra.mxu0 %v5415
        %v5440 = vpop.f32.mrf.mxu0
        %v5441 = vadd.f32 0.0, %v5440
        %5442 = vdwg.mxu0
        %v5443 = vadd.f32 %v5397, %v5435
        %v5444 = vadd.f32 %v5398, %v5438
        %v5445 = vadd.f32 %v5399, %v5441
        %v5446 = vld [vmem:[#allocation4 + $0xc] sm:$0xff]
        %v5447 = vld [vmem:[#allocation4 + $0x14] sm:$0xff]
        %v5448 = vld [vmem:[#allocation4 + $0x1c] sm:$0xff]
        %s5449 = scalar_lea.vmem [#allocation18], 192
        %v5450 = vld [vmem:[%s5449] sm:$0xff]
        %v5451 = vld [vmem:[%s5449 + $0x8] sm:$0xff]
        %v5452 = vld [vmem:[%s5449 + $0x10] sm:$0xff]
        %v5453 = vld [vmem:[%s5449 + $0x18] sm:$0xff]
        %v5455 = vsel %vm766, %v5446, 0
        %v5458 = vsel %vm766, %v5447, 0
        %v5461 = vsel %vm766, %v5448, 0
        %5463 = vmatpush.msra.mxu0 0.0
        %5464 = vmatpush.msra.mxu0 0.0
        %5465 = vmatpush.msra.mxu0 0.0
        %5466 = vmatpush.msra.mxu0 0.0
        %5467 = vmatpush.msra.mxu0 0.0
        %5468 = vmatpush.msra.mxu0 0.0
        %5469 = vmatpush.msra.mxu0 0.0
        %5470 = vmatpush.msra.mxu0 0.0
        %5471 = vmatpush.msra.mxu0 0.0
        %5472 = vmatpush.msra.mxu0 0.0
        %5473 = vmatpush.msra.mxu0 0.0
        %5474 = vmatpush.msra.mxu0 0.0
        %5475 = vmatpush.msra.mxu0 %v5453
        %5476 = vmatpush.msra.mxu0 %v5452
        %5477 = vmatpush.msra.mxu0 %v5451
        %5478 = vmatpush.msra.mxu0 %v5450
        %5479 = vmatmul.f32.gmra.mxu0 %v5455
        %v5480 = vpop.f32.mrf.mxu0
        %v5481 = vadd.f32 0.0, %v5480
        %5482 = vmatmul.f32.gmra.mxu0 %v5458
        %v5483 = vpop.f32.mrf.mxu0
        %v5484 = vadd.f32 0.0, %v5483
        %5485 = vmatmul.f32.gmra.mxu0 %v5461
        %v5486 = vpop.f32.mrf.mxu0
        %v5487 = vadd.f32 0.0, %v5486
        %5488 = vdwg.mxu0
        %v5489 = vadd.f32 %v5443, %v5481
        %v5490 = vadd.f32 %v5444, %v5484
        %v5491 = vadd.f32 %v5445, %v5487
        %v5492 = vld [vmem:[#allocation4 + $0xd] sm:$0xff]
        %v5493 = vld [vmem:[#allocation4 + $0x15] sm:$0xff]
        %v5494 = vld [vmem:[#allocation4 + $0x1d] sm:$0xff]
        %s5495 = scalar_lea.vmem [#allocation18], 224
        %v5496 = vld [vmem:[%s5495] sm:$0xff]
        %v5497 = vld [vmem:[%s5495 + $0x8] sm:$0xff]
        %v5498 = vld [vmem:[%s5495 + $0x10] sm:$0xff]
        %v5499 = vld [vmem:[%s5495 + $0x18] sm:$0xff]
        %v5501 = vsel %vm766, %v5492, 0
        %v5504 = vsel %vm766, %v5493, 0
        %v5507 = vsel %vm766, %v5494, 0
        %5509 = vmatpush.msra.mxu0 0.0
        %5510 = vmatpush.msra.mxu0 0.0
        %5511 = vmatpush.msra.mxu0 0.0
        %5512 = vmatpush.msra.mxu0 0.0
        %5513 = vmatpush.msra.mxu0 0.0
        %5514 = vmatpush.msra.mxu0 0.0
        %5515 = vmatpush.msra.mxu0 0.0
        %5516 = vmatpush.msra.mxu0 0.0
        %5517 = vmatpush.msra.mxu0 0.0
        %5518 = vmatpush.msra.mxu0 0.0
        %5519 = vmatpush.msra.mxu0 0.0
        %5520 = vmatpush.msra.mxu0 0.0
        %5521 = vmatpush.msra.mxu0 %v5499
        %5522 = vmatpush.msra.mxu0 %v5498
        %5523 = vmatpush.msra.mxu0 %v5497
        %5524 = vmatpush.msra.mxu0 %v5496
        %5525 = vmatmul.f32.gmra.mxu0 %v5501
        %v5526 = vpop.f32.mrf.mxu0
        %v5527 = vadd.f32 0.0, %v5526
        %5528 = vmatmul.f32.gmra.mxu0 %v5504
        %v5529 = vpop.f32.mrf.mxu0
        %v5530 = vadd.f32 0.0, %v5529
        %5531 = vmatmul.f32.gmra.mxu0 %v5507
        %v5532 = vpop.f32.mrf.mxu0
        %v5533 = vadd.f32 0.0, %v5532
        %5534 = vdwg.mxu0
        %v5535 = vadd.f32 %v5489, %v5527
        %v5536 = vadd.f32 %v5490, %v5530
        %v5537 = vadd.f32 %v5491, %v5533
        %v5538 = vld [vmem:[#allocation4 + $0xe] sm:$0xff]
        %v5539 = vld [vmem:[#allocation4 + $0x16] sm:$0xff]
        %v5540 = vld [vmem:[#allocation4 + $0x1e] sm:$0xff]
        %s5541 = scalar_lea.vmem [#allocation18], 256
        %v5542 = vld [vmem:[%s5541] sm:$0xff]
        %v5543 = vld [vmem:[%s5541 + $0x8] sm:$0xff]
        %v5544 = vld [vmem:[%s5541 + $0x10] sm:$0xff]
        %v5545 = vld [vmem:[%s5541 + $0x18] sm:$0xff]
        %v5547 = vsel %vm766, %v5538, 0
        %v5550 = vsel %vm766, %v5539, 0
        %v5553 = vsel %vm766, %v5540, 0
        %5555 = vmatpush.msra.mxu0 0.0
        %5556 = vmatpush.msra.mxu0 0.0
        %5557 = vmatpush.msra.mxu0 0.0
        %5558 = vmatpush.msra.mxu0 0.0
        %5559 = vmatpush.msra.mxu0 0.0
        %5560 = vmatpush.msra.mxu0 0.0
        %5561 = vmatpush.msra.mxu0 0.0
        %5562 = vmatpush.msra.mxu0 0.0
        %5563 = vmatpush.msra.mxu0 0.0
        %5564 = vmatpush.msra.mxu0 0.0
        %5565 = vmatpush.msra.mxu0 0.0
        %5566 = vmatpush.msra.mxu0 0.0
        %5567 = vmatpush.msra.mxu0 %v5545
        %5568 = vmatpush.msra.mxu0 %v5544
        %5569 = vmatpush.msra.mxu0 %v5543
        %5570 = vmatpush.msra.mxu0 %v5542
        %5571 = vmatmul.f32.gmra.mxu0 %v5547
        %v5572 = vpop.f32.mrf.mxu0
        %v5573 = vadd.f32 0.0, %v5572
        %5574 = vmatmul.f32.gmra.mxu0 %v5550
        %v5575 = vpop.f32.mrf.mxu0
        %v5576 = vadd.f32 0.0, %v5575
        %5577 = vmatmul.f32.gmra.mxu0 %v5553
        %v5578 = vpop.f32.mrf.mxu0
        %v5579 = vadd.f32 0.0, %v5578
        %5580 = vdwg.mxu0
        %v5581 = vadd.f32 %v5535, %v5573
        %v5582 = vadd.f32 %v5536, %v5576
        %v5583 = vadd.f32 %v5537, %v5579
        %v5585 = vperm.slane %v5175, 0
        %v5587 = vmul.f32 %v5581, %v5585
        %v5588 = vmul.f32 %v5582, %v5585
        %v5589 = vmul.f32 %v5583, %v5585
        %v5591 = vperm.slane %v5176, 0
        %v5593 = vadd.f32 %v5587, %v5591
        %v5594 = vadd.f32 %v5588, %v5591
        %v5595 = vadd.f32 %v5589, %v5591
        %v5596 = vmax.f32 %v5593, 0.0
        %v5597 = vmax.f32 %v5594, 0.0
        %v5598 = vmax.f32 %v5595, 0.0
        %5599 = vst.msk [vmem:[#allocation8] sm:$0xff] %vm773, %v5596
        %5600 = vst.msk [vmem:[#allocation8 + $0x8] sm:$0xff] %vm773, %v5597
        %5601 = vst.msk [vmem:[#allocation8 + $0x10] sm:$0xff] %vm773, %v5598
        %v5602 = vld [vmem:[#allocation8] ss:$2 sm:$0x3]
        %s5603 = scalar_lea.vmem [#allocation8], 1
        %v5604 = vld [vmem:[%s5603] ss:$2 sm:$0x3]
        %v5605 = vmax.f32 %v5602, %v5604
        %s5606 = scalar_lea.vmem [#allocation8], 6
        %v5607 = vld [vmem:[%s5606] ss:$2 sm:$0x3]
        %s5608 = scalar_lea.vmem [#allocation8], 7
        %v5609 = vld [vmem:[%s5608] ss:$2 sm:$0x3]
        %v5610 = vmax.f32 %v5607, %v5609
        %v5611 = vmax.f32 %v5605, %v5610
        %5612 = vst.msk [vmem:[#allocation5 + $0x5] sm:$0x3] %vm776, %v5611
        %s5613 = scalar_lea.vmem [#allocation8], 12
        %v5614 = vld [vmem:[%s5613] ss:$2 sm:$0x3]
        %s5615 = scalar_lea.vmem [#allocation8], 13
        %v5616 = vld [vmem:[%s5615] ss:$2 sm:$0x3]
        %v5617 = vmax.f32 %v5614, %v5616
        %s5618 = scalar_lea.vmem [#allocation8], 18
        %v5619 = vld [vmem:[%s5618] ss:$2 sm:$0x3]
        %s5620 = scalar_lea.vmem [#allocation8], 19
        %v5621 = vld [vmem:[%s5620] ss:$2 sm:$0x3]
        %v5622 = vmax.f32 %v5619, %v5621
        %v5623 = vmax.f32 %v5617, %v5622
        %5624 = vst.msk [vmem:[#allocation5 + $0x9] sm:$0x3] %vm776, %v5623
        %v5625 = vld [vmem:[#allocation22] sm:$0x1]
        %v5626 = vld [vmem:[#allocation24] sm:$0x1]
        %v5627 = vld [vmem:[#allocation5] sm:$0xff]
        %v5628 = vld [vmem:[%s10] sm:$0xff]
        %v5629 = vld [vmem:[%s10 + $0x8] sm:$0xff]
        %v5630 = vld [vmem:[%s10 + $0x10] sm:$0xff]
        %v5631 = vld [vmem:[%s10 + $0x18] sm:$0xff]
        %v5632 = vld [vmem:[%s10 + $0x20] sm:$0xff]
        %v5633 = vld [vmem:[%s10 + $0x28] sm:$0xff]
        %v5634 = vld [vmem:[%s10 + $0x30] sm:$0xff]
        %v5635 = vld [vmem:[%s10 + $0x38] sm:$0xff]
        %v5636 = vld [vmem:[#allocation5 + $0x1] sm:$0xff]
        %s5637 = scalar_lea.vmem %s10, 64
        %v5638 = vld [vmem:[%s5637] sm:$0xff]
        %v5639 = vld [vmem:[%s5637 + $0x8] sm:$0xff]
        %v5640 = vld [vmem:[%s5637 + $0x10] sm:$0xff]
        %v5641 = vld [vmem:[%s5637 + $0x18] sm:$0xff]
        %v5642 = vld [vmem:[%s5637 + $0x20] sm:$0xff]
        %v5643 = vld [vmem:[%s5637 + $0x28] sm:$0xff]
        %v5644 = vld [vmem:[%s5637 + $0x30] sm:$0xff]
        %v5645 = vld [vmem:[%s5637 + $0x38] sm:$0xff]
        %v5647 = vsel %vm773, %v5636, 0
        %5649 = vmatpush.msra.mxu0 0.0
        %5650 = vmatpush.msra.mxu0 0.0
        %5651 = vmatpush.msra.mxu0 0.0
        %5652 = vmatpush.msra.mxu0 0.0
        %5653 = vmatpush.msra.mxu0 0.0
        %5654 = vmatpush.msra.mxu0 0.0
        %5655 = vmatpush.msra.mxu0 0.0
        %5656 = vmatpush.msra.mxu0 0.0
        %5657 = vmatpush.msra.mxu0 %v5645
        %5658 = vmatpush.msra.mxu0 %v5644
        %5659 = vmatpush.msra.mxu0 %v5643
        %5660 = vmatpush.msra.mxu0 %v5642
        %5661 = vmatpush.msra.mxu0 %v5641
        %5662 = vmatpush.msra.mxu0 %v5640
        %5663 = vmatpush.msra.mxu0 %v5639
        %5664 = vmatpush.msra.mxu0 %v5638
        %5665 = vmatmul.f32.gmra.mxu0 %v5647
        %v5666 = vpop.f32.mrf.mxu0
        %v5667 = vadd.f32 0.0, %v5666
        %5668 = vdwg.mxu0
        %v5670 = vsel %vm773, %v5627, 0
        %5672 = vmatpush.msra.mxu0 0.0
        %5673 = vmatpush.msra.mxu0 0.0
        %5674 = vmatpush.msra.mxu0 0.0
        %5675 = vmatpush.msra.mxu0 0.0
        %5676 = vmatpush.msra.mxu0 0.0
        %5677 = vmatpush.msra.mxu0 0.0
        %5678 = vmatpush.msra.mxu0 0.0
        %5679 = vmatpush.msra.mxu0 0.0
        %5680 = vmatpush.msra.mxu0 %v5635
        %5681 = vmatpush.msra.mxu0 %v5634
        %5682 = vmatpush.msra.mxu0 %v5633
        %5683 = vmatpush.msra.mxu0 %v5632
        %5684 = vmatpush.msra.mxu0 %v5631
        %5685 = vmatpush.msra.mxu0 %v5630
        %5686 = vmatpush.msra.mxu0 %v5629
        %5687 = vmatpush.msra.mxu0 %v5628
        %5688 = vmatmul.f32.gmra.mxu0 %v5670
        %v5689 = vpop.f32.mrf.mxu0
        %v5690 = vadd.f32 %v5667, %v5689
        %5691 = vdwg.mxu0
        %v5692 = vld [vmem:[#allocation5 + $0x2] sm:$0xff]
        %s5693 = scalar_lea.vmem %s10, 128
        %v5694 = vld [vmem:[%s5693] sm:$0xff]
        %v5695 = vld [vmem:[%s5693 + $0x8] sm:$0xff]
        %v5696 = vld [vmem:[%s5693 + $0x10] sm:$0xff]
        %v5697 = vld [vmem:[%s5693 + $0x18] sm:$0xff]
        %v5698 = vld [vmem:[%s5693 + $0x20] sm:$0xff]
        %v5699 = vld [vmem:[%s5693 + $0x28] sm:$0xff]
        %v5700 = vld [vmem:[%s5693 + $0x30] sm:$0xff]
        %v5701 = vld [vmem:[%s5693 + $0x38] sm:$0xff]
        %v5703 = vsel %vm773, %v5692, 0
        %5705 = vmatpush.msra.mxu0 0.0
        %5706 = vmatpush.msra.mxu0 0.0
        %5707 = vmatpush.msra.mxu0 0.0
        %5708 = vmatpush.msra.mxu0 0.0
        %5709 = vmatpush.msra.mxu0 0.0
        %5710 = vmatpush.msra.mxu0 0.0
        %5711 = vmatpush.msra.mxu0 0.0
        %5712 = vmatpush.msra.mxu0 0.0
        %5713 = vmatpush.msra.mxu0 %v5701
        %5714 = vmatpush.msra.mxu0 %v5700
        %5715 = vmatpush.msra.mxu0 %v5699
        %5716 = vmatpush.msra.mxu0 %v5698
        %5717 = vmatpush.msra.mxu0 %v5697
        %5718 = vmatpush.msra.mxu0 %v5696
        %5719 = vmatpush.msra.mxu0 %v5695
        %5720 = vmatpush.msra.mxu0 %v5694
        %5721 = vmatmul.f32.gmra.mxu0 %v5703
        %v5722 = vpop.f32.mrf.mxu0
        %v5723 = vadd.f32 0.0, %v5722
        %5724 = vdwg.mxu0
        %v5725 = vadd.f32 %v5690, %v5723
        %v5726 = vld [vmem:[#allocation5 + $0x4] sm:$0xff]
        %s5727 = scalar_lea.vmem %s10, 192
        %v5728 = vld [vmem:[%s5727] sm:$0xff]
        %v5729 = vld [vmem:[%s5727 + $0x8] sm:$0xff]
        %v5730 = vld [vmem:[%s5727 + $0x10] sm:$0xff]
        %v5731 = vld [vmem:[%s5727 + $0x18] sm:$0xff]
        %v5732 = vld [vmem:[%s5727 + $0x20] sm:$0xff]
        %v5733 = vld [vmem:[%s5727 + $0x28] sm:$0xff]
        %v5734 = vld [vmem:[%s5727 + $0x30] sm:$0xff]
        %v5735 = vld [vmem:[%s5727 + $0x38] sm:$0xff]
        %v5737 = vsel %vm773, %v5726, 0
        %5739 = vmatpush.msra.mxu0 0.0
        %5740 = vmatpush.msra.mxu0 0.0
        %5741 = vmatpush.msra.mxu0 0.0
        %5742 = vmatpush.msra.mxu0 0.0
        %5743 = vmatpush.msra.mxu0 0.0
        %5744 = vmatpush.msra.mxu0 0.0
        %5745 = vmatpush.msra.mxu0 0.0
        %5746 = vmatpush.msra.mxu0 0.0
        %5747 = vmatpush.msra.mxu0 %v5735
        %5748 = vmatpush.msra.mxu0 %v5734
        %5749 = vmatpush.msra.mxu0 %v5733
        %5750 = vmatpush.msra.mxu0 %v5732
        %5751 = vmatpush.msra.mxu0 %v5731
        %5752 = vmatpush.msra.mxu0 %v5730
        %5753 = vmatpush.msra.mxu0 %v5729
        %5754 = vmatpush.msra.mxu0 %v5728
        %5755 = vmatmul.f32.gmra.mxu0 %v5737
        %v5756 = vpop.f32.mrf.mxu0
        %v5757 = vadd.f32 0.0, %v5756
        %5758 = vdwg.mxu0
        %v5759 = vadd.f32 %v5725, %v5757
        %v5760 = vld [vmem:[#allocation5 + $0x5] sm:$0xff]
        %s5761 = scalar_lea.vmem %s10, 256
        %v5762 = vld [vmem:[%s5761] sm:$0xff]
        %v5763 = vld [vmem:[%s5761 + $0x8] sm:$0xff]
        %v5764 = vld [vmem:[%s5761 + $0x10] sm:$0xff]
        %v5765 = vld [vmem:[%s5761 + $0x18] sm:$0xff]
        %v5766 = vld [vmem:[%s5761 + $0x20] sm:$0xff]
        %v5767 = vld [vmem:[%s5761 + $0x28] sm:$0xff]
        %v5768 = vld [vmem:[%s5761 + $0x30] sm:$0xff]
        %v5769 = vld [vmem:[%s5761 + $0x38] sm:$0xff]
        %v5771 = vsel %vm773, %v5760, 0
        %5773 = vmatpush.msra.mxu0 0.0
        %5774 = vmatpush.msra.mxu0 0.0
        %5775 = vmatpush.msra.mxu0 0.0
        %5776 = vmatpush.msra.mxu0 0.0
        %5777 = vmatpush.msra.mxu0 0.0
        %5778 = vmatpush.msra.mxu0 0.0
        %5779 = vmatpush.msra.mxu0 0.0
        %5780 = vmatpush.msra.mxu0 0.0
        %5781 = vmatpush.msra.mxu0 %v5769
        %5782 = vmatpush.msra.mxu0 %v5768
        %5783 = vmatpush.msra.mxu0 %v5767
        %5784 = vmatpush.msra.mxu0 %v5766
        %5785 = vmatpush.msra.mxu0 %v5765
        %5786 = vmatpush.msra.mxu0 %v5764
        %5787 = vmatpush.msra.mxu0 %v5763
        %5788 = vmatpush.msra.mxu0 %v5762
        %5789 = vmatmul.f32.gmra.mxu0 %v5771
        %v5790 = vpop.f32.mrf.mxu0
        %v5791 = vadd.f32 0.0, %v5790
        %5792 = vdwg.mxu0
        %v5793 = vadd.f32 %v5759, %v5791
        %v5794 = vld [vmem:[#allocation5 + $0x6] sm:$0xff]
        %s5795 = scalar_lea.vmem %s10, 320
        %v5796 = vld [vmem:[%s5795] sm:$0xff]
        %v5797 = vld [vmem:[%s5795 + $0x8] sm:$0xff]
        %v5798 = vld [vmem:[%s5795 + $0x10] sm:$0xff]
        %v5799 = vld [vmem:[%s5795 + $0x18] sm:$0xff]
        %v5800 = vld [vmem:[%s5795 + $0x20] sm:$0xff]
        %v5801 = vld [vmem:[%s5795 + $0x28] sm:$0xff]
        %v5802 = vld [vmem:[%s5795 + $0x30] sm:$0xff]
        %v5803 = vld [vmem:[%s5795 + $0x38] sm:$0xff]
        %v5805 = vsel %vm773, %v5794, 0
        %5807 = vmatpush.msra.mxu0 0.0
        %5808 = vmatpush.msra.mxu0 0.0
        %5809 = vmatpush.msra.mxu0 0.0
        %5810 = vmatpush.msra.mxu0 0.0
        %5811 = vmatpush.msra.mxu0 0.0
        %5812 = vmatpush.msra.mxu0 0.0
        %5813 = vmatpush.msra.mxu0 0.0
        %5814 = vmatpush.msra.mxu0 0.0
        %5815 = vmatpush.msra.mxu0 %v5803
        %5816 = vmatpush.msra.mxu0 %v5802
        %5817 = vmatpush.msra.mxu0 %v5801
        %5818 = vmatpush.msra.mxu0 %v5800
        %5819 = vmatpush.msra.mxu0 %v5799
        %5820 = vmatpush.msra.mxu0 %v5798
        %5821 = vmatpush.msra.mxu0 %v5797
        %5822 = vmatpush.msra.mxu0 %v5796
        %5823 = vmatmul.f32.gmra.mxu0 %v5805
        %v5824 = vpop.f32.mrf.mxu0
        %v5825 = vadd.f32 0.0, %v5824
        %5826 = vdwg.mxu0
        %v5827 = vadd.f32 %v5793, %v5825
        %v5828 = vld [vmem:[#allocation5 + $0x8] sm:$0xff]
        %s5829 = scalar_lea.vmem %s10, 384
        %v5830 = vld [vmem:[%s5829] sm:$0xff]
        %v5831 = vld [vmem:[%s5829 + $0x8] sm:$0xff]
        %v5832 = vld [vmem:[%s5829 + $0x10] sm:$0xff]
        %v5833 = vld [vmem:[%s5829 + $0x18] sm:$0xff]
        %v5834 = vld [vmem:[%s5829 + $0x20] sm:$0xff]
        %v5835 = vld [vmem:[%s5829 + $0x28] sm:$0xff]
        %v5836 = vld [vmem:[%s5829 + $0x30] sm:$0xff]
        %v5837 = vld [vmem:[%s5829 + $0x38] sm:$0xff]
        %v5839 = vsel %vm773, %v5828, 0
        %5841 = vmatpush.msra.mxu0 0.0
        %5842 = vmatpush.msra.mxu0 0.0
        %5843 = vmatpush.msra.mxu0 0.0
        %5844 = vmatpush.msra.mxu0 0.0
        %5845 = vmatpush.msra.mxu0 0.0
        %5846 = vmatpush.msra.mxu0 0.0
        %5847 = vmatpush.msra.mxu0 0.0
        %5848 = vmatpush.msra.mxu0 0.0
        %5849 = vmatpush.msra.mxu0 %v5837
        %5850 = vmatpush.msra.mxu0 %v5836
        %5851 = vmatpush.msra.mxu0 %v5835
        %5852 = vmatpush.msra.mxu0 %v5834
        %5853 = vmatpush.msra.mxu0 %v5833
        %5854 = vmatpush.msra.mxu0 %v5832
        %5855 = vmatpush.msra.mxu0 %v5831
        %5856 = vmatpush.msra.mxu0 %v5830
        %5857 = vmatmul.f32.gmra.mxu0 %v5839
        %v5858 = vpop.f32.mrf.mxu0
        %v5859 = vadd.f32 0.0, %v5858
        %5860 = vdwg.mxu0
        %v5861 = vadd.f32 %v5827, %v5859
        %v5862 = vld [vmem:[#allocation5 + $0x9] sm:$0xff]
        %s5863 = scalar_lea.vmem %s10, 448
        %v5864 = vld [vmem:[%s5863] sm:$0xff]
        %v5865 = vld [vmem:[%s5863 + $0x8] sm:$0xff]
        %v5866 = vld [vmem:[%s5863 + $0x10] sm:$0xff]
        %v5867 = vld [vmem:[%s5863 + $0x18] sm:$0xff]
        %v5868 = vld [vmem:[%s5863 + $0x20] sm:$0xff]
        %v5869 = vld [vmem:[%s5863 + $0x28] sm:$0xff]
        %v5870 = vld [vmem:[%s5863 + $0x30] sm:$0xff]
        %v5871 = vld [vmem:[%s5863 + $0x38] sm:$0xff]
        %v5873 = vsel %vm773, %v5862, 0
        %5875 = vmatpush.msra.mxu0 0.0
        %5876 = vmatpush.msra.mxu0 0.0
        %5877 = vmatpush.msra.mxu0 0.0
        %5878 = vmatpush.msra.mxu0 0.0
        %5879 = vmatpush.msra.mxu0 0.0
        %5880 = vmatpush.msra.mxu0 0.0
        %5881 = vmatpush.msra.mxu0 0.0
        %5882 = vmatpush.msra.mxu0 0.0
        %5883 = vmatpush.msra.mxu0 %v5871
        %5884 = vmatpush.msra.mxu0 %v5870
        %5885 = vmatpush.msra.mxu0 %v5869
        %5886 = vmatpush.msra.mxu0 %v5868
        %5887 = vmatpush.msra.mxu0 %v5867
        %5888 = vmatpush.msra.mxu0 %v5866
        %5889 = vmatpush.msra.mxu0 %v5865
        %5890 = vmatpush.msra.mxu0 %v5864
        %5891 = vmatmul.f32.gmra.mxu0 %v5873
        %v5892 = vpop.f32.mrf.mxu0
        %v5893 = vadd.f32 0.0, %v5892
        %5894 = vdwg.mxu0
        %v5895 = vadd.f32 %v5861, %v5893
        %v5896 = vld [vmem:[#allocation5 + $0xa] sm:$0xff]
        %s5897 = scalar_lea.vmem %s10, 512
        %v5898 = vld [vmem:[%s5897] sm:$0xff]
        %v5899 = vld [vmem:[%s5897 + $0x8] sm:$0xff]
        %v5900 = vld [vmem:[%s5897 + $0x10] sm:$0xff]
        %v5901 = vld [vmem:[%s5897 + $0x18] sm:$0xff]
        %v5902 = vld [vmem:[%s5897 + $0x20] sm:$0xff]
        %v5903 = vld [vmem:[%s5897 + $0x28] sm:$0xff]
        %v5904 = vld [vmem:[%s5897 + $0x30] sm:$0xff]
        %v5905 = vld [vmem:[%s5897 + $0x38] sm:$0xff]
        %v5907 = vsel %vm773, %v5896, 0
        %5909 = vmatpush.msra.mxu0 0.0
        %5910 = vmatpush.msra.mxu0 0.0
        %5911 = vmatpush.msra.mxu0 0.0
        %5912 = vmatpush.msra.mxu0 0.0
        %5913 = vmatpush.msra.mxu0 0.0
        %5914 = vmatpush.msra.mxu0 0.0
        %5915 = vmatpush.msra.mxu0 0.0
        %5916 = vmatpush.msra.mxu0 0.0
        %5917 = vmatpush.msra.mxu0 %v5905
        %5918 = vmatpush.msra.mxu0 %v5904
        %5919 = vmatpush.msra.mxu0 %v5903
        %5920 = vmatpush.msra.mxu0 %v5902
        %5921 = vmatpush.msra.mxu0 %v5901
        %5922 = vmatpush.msra.mxu0 %v5900
        %5923 = vmatpush.msra.mxu0 %v5899
        %5924 = vmatpush.msra.mxu0 %v5898
        %5925 = vmatmul.f32.gmra.mxu0 %v5907
        %v5926 = vpop.f32.mrf.mxu0
        %v5927 = vadd.f32 0.0, %v5926
        %5928 = vdwg.mxu0
        %v5929 = vadd.f32 %v5895, %v5927
        %v5931 = vperm.slane %v5625, 0
        %v5933 = vmul.f32 %v5929, %v5931
        %v5935 = vperm.slane %v5626, 0
        %v5937 = vadd.f32 %v5933, %v5935
        %v5938 = vmax.f32 %v5937, 0.0
        %5939 = vst [vmem:[#allocation9] sm:$0xff] %v5938
        %v5940 = vld [vmem:[#allocation9] sm:$0x3]
        %vm5941 = vcmask 1041408
        %v5942 = vsel %vm5941, %v5940, 0.0
        %v5943 = vrot.slane %v5942, 4
        %v5944 = vadd.f32 %v5942, %v5943
        %v5945 = vrot.slane %v5944, 2
        %v5946 = vadd.f32 %v5944, %v5945
        %v5947 = vrot.slane %v5946, 1
        %v5948 = vadd.f32 %v5946, %v5947
        %v5949 = vadd.f32 %v5948, 0.0
        %v5950 = vld [vmem:[#allocation9 + $0x4] sm:$0x3]
        %v5951 = vsel %vm5941, %v5950, 0.0
        %v5952 = vrot.slane %v5951, 4
        %v5953 = vadd.f32 %v5951, %v5952
        %v5954 = vrot.slane %v5953, 2
        %v5955 = vadd.f32 %v5953, %v5954
        %v5956 = vrot.slane %v5955, 1
        %v5957 = vadd.f32 %v5955, %v5956
        %v5958 = vadd.f32 %v5949, %v5957
        %v5959 = vmul.f32 %v5958, 0.25
        %v5960 = vld [vmem:[%s13] sm:$0xff]
        %v5961 = vld [vmem:[%s13 + $0x8] sm:$0xff]
        %v5962 = vld [vmem:[%s13 + $0x10] sm:$0xff]
        %v5963 = vld [vmem:[%s13 + $0x18] sm:$0xff]
        %v5964 = vld [vmem:[%s13 + $0x20] sm:$0xff]
        %v5965 = vld [vmem:[%s13 + $0x28] sm:$0xff]
        %v5966 = vld [vmem:[%s13 + $0x30] sm:$0xff]
        %v5967 = vld [vmem:[%s13 + $0x38] sm:$0xff]
        %v5968 = vld [vmem:[%s13 + $0x40] sm:$0xff]
        %v5969 = vld [vmem:[%s13 + $0x48] sm:$0xff]
        %v5970 = vld [vmem:[%s13 + $0x50] sm:$0xff]
        %v5971 = vld [vmem:[%s13 + $0x58] sm:$0xff]
        %v5972 = vld [vmem:[%s13 + $0x60] sm:$0xff]
        %v5973 = vld [vmem:[%s13 + $0x68] sm:$0xff]
        %v5974 = vld [vmem:[%s13 + $0x70] sm:$0xff]
        %v5975 = vld [vmem:[%s13 + $0x78] sm:$0xff]
        %v5976 = vld [vmem:[#allocation25] sm:$0x1]
        %5977 = vmatpush.msra.mxu0 %v5975
        %5978 = vmatpush.msra.mxu0 %v5974
        %5979 = vmatpush.msra.mxu0 %v5973
        %5980 = vmatpush.msra.mxu0 %v5972
        %5981 = vmatpush.msra.mxu0 %v5971
        %5982 = vmatpush.msra.mxu0 %v5970
        %5983 = vmatpush.msra.mxu0 %v5969
        %5984 = vmatpush.msra.mxu0 %v5968
        %5985 = vmatpush.msra.mxu0 %v5967
        %5986 = vmatpush.msra.mxu0 %v5966
        %5987 = vmatpush.msra.mxu0 %v5965
        %5988 = vmatpush.msra.mxu0 %v5964
        %5989 = vmatpush.msra.mxu0 %v5963
        %5990 = vmatpush.msra.mxu0 %v5962
        %5991 = vmatpush.msra.mxu0 %v5961
        %5992 = vmatpush.msra.mxu0 %v5960
        %5993 = vmatmul.f32.gmra.mxu0 %v5959
        %v5994 = vpop.f32.mrf.mxu0
        %v5995 = vadd.f32 %v5976, %v5994
        %5996 = vdwg.mxu0
        %v5997 = vmax.f32 %v5995, 0.0
        %v5998 = vld [vmem:[%s15] sm:$0xff]
        %v5999 = vld [vmem:[%s15 + $0x8] sm:$0xff]
        %v6000 = vld [vmem:[%s15 + $0x10] sm:$0xff]
        %v6001 = vld [vmem:[%s15 + $0x18] sm:$0xff]
        %v6002 = vld [vmem:[%s15 + $0x20] sm:$0xff]
        %v6003 = vld [vmem:[%s15 + $0x28] sm:$0xff]
        %v6004 = vld [vmem:[%s15 + $0x30] sm:$0xff]
        %v6005 = vld [vmem:[%s15 + $0x38] sm:$0xff]
        %v6006 = vld [vmem:[#allocation27] sm:$0x1]
        %v6008 = vsel %vm773, %v5997, 0
        %6010 = vmatpush.msra.mxu0 0.0
        %6011 = vmatpush.msra.mxu0 0.0
        %6012 = vmatpush.msra.mxu0 0.0
        %6013 = vmatpush.msra.mxu0 0.0
        %6014 = vmatpush.msra.mxu0 0.0
        %6015 = vmatpush.msra.mxu0 0.0
        %6016 = vmatpush.msra.mxu0 0.0
        %6017 = vmatpush.msra.mxu0 0.0
        %6018 = vmatpush.msra.mxu0 %v6005
        %6019 = vmatpush.msra.mxu0 %v6004
        %6020 = vmatpush.msra.mxu0 %v6003
        %6021 = vmatpush.msra.mxu0 %v6002
        %6022 = vmatpush.msra.mxu0 %v6001
        %6023 = vmatpush.msra.mxu0 %v6000
        %6024 = vmatpush.msra.mxu0 %v5999
        %6025 = vmatpush.msra.mxu0 %v5998
        %6026 = vmatmul.f32.gmra.mxu0 %v6008
        %v6027 = vpop.f32.mrf.mxu0
        %v6028 = vadd.f32 %v6006, %v6027
        %6029 = vdwg.mxu0
        %vm6030 = vcmask 319488
        %6031 = vst.msk [vmem:[%s702] sm:$0x1] %vm6030, %v6028
        %s6032 = sand.u32 %s407, 1
        %s6033 = scalar_lea.sflag [#allocation12], %s6032
        %s6034 = sand.u32 %s407, 1
        %s6035 = scalar_lea.vmem [#allocation28], %s6034
        // Predicated region
        $region133: #{tpu_custom_call.1} parent=87 // pred_check
          %p6036 = pneg %p417
        $region134: #{tpu_custom_call.1} parent=87 // pred_check_branch
          %6038 = sbr.rel (%p6036) target = $region136
        $region135: #{tpu_custom_call.1} parent=87 // pred_region
          %6040 = vsyncadd %s6033, 0
          %s6041 = scalar_lea.hbm %s17, %s37
          %s6043 = sshll.u32 %s6035, 4
          %s6044 = int_to_ptr.vmem [resolvable:$true] %s6043
          %s6045 = sshll.u32 %s6041, 4
          %s6046 = int_to_ptr.hbm [resolvable:$true] %s6045
          %6048 = dma.vmem_to_hbm [thread:$0]  %s6044, 16, %s6046, %s6033
        $region136: #{tpu_custom_call.1} parent=87 // pred_fallthru
          _
      $region88: #{tpu_custom_call.1} parent=5 // pred_fallthru
        _
      %p6049 = scmp.le.s32.totalorder 2, %s32
      // Predicated region
      $region137: #{tpu_custom_call.1} parent=5 // pred_check
        %p6050 = pneg %p6049
      $region138: #{tpu_custom_call.1} parent=5 // pred_check_branch
        %6052 = sbr.rel (%p6050) target = $region140
      $region139: #{tpu_custom_call.1} parent=5 // pred_region
        %s6053 = ssub.s32 %s32, 2
        // Predicated region
        $region141: #{tpu_custom_call.1} parent=139 // pred_check
          %p6054 = pneg %p423
        $region142: #{tpu_custom_call.1} parent=139 // pred_check_branch
          %6056 = sbr.rel (%p6054) target = $region144
        $region143: #{tpu_custom_call.1} parent=139 // pred_region
          %s6057 = sand.u32 %s408, 1
          %s6058 = scalar_lea.sflag [#allocation12], %s6057
          %s6059 = sand.u32 %s408, 1
          %s6060 = scalar_lea.vmem [#allocation28], %s6059
          %6062 = dma.done %s6058, 16
        $region144: #{tpu_custom_call.1} parent=139 // pred_fallthru
          _
      $region140: #{tpu_custom_call.1} parent=5 // pred_fallthru
        _
    $region6: #{tpu_custom_call.1} parent=1 // loop_footer
      %s36 = sadd.s32 1, %s32
    $region7: #{tpu_custom_call.1} parent=1 // loop_footer_branch
      %31 = sbr.rel target = $region3
    $region8: #{tpu_custom_call.1} parent=1 // loop_exit
      _
    %6063 = vsyncpa [#allocation11], 1
    %s6064 = scalar_lea.sflag [#allocation11], 1
    %6065 = vsyncpa %s6064, 1
    %6066 = vsyncpa [#allocation14], 1
    %6067 = vsyncpa [#allocation17], 1
    %6068 = vsyncpa [#allocation20], 1
    %6069 = vsyncpa [#allocation23], 1
    %6070 = vsyncpa [#allocation26], 1
    %6071 = vsyncpa [#allocation12], 1
    %s6072 = scalar_lea.sflag [#allocation12], 1
    %6073 = vsyncpa %s6072, 1

</llo_original>
